<compile_context>
chip_gen: v6e
topology: v6e:2x2x1
jax: 0.10.0
libtpu: 0.0.40
codegen_flags: <defaults>
</compile_context>

<pallas_src>
import functools
import numpy as np
import jax
import jax.numpy as jnp
from jax import lax
from jax.experimental import pallas as pl
from jax.experimental.pallas import tpu as pltpu

LANE = 128          # lane-dense channel padding (review item: lane-dense vregs)
LEAKY_SLOPE = 0.01


def _rup(c):
    return ((c + LANE - 1) // LANE) * LANE


def _pick_tile_h(H, W, max_rows=2048):
    """Largest divisor of H keeping the matmul M-dim (tile_h*W) <= max_rows."""
    if H * W <= max_rows:
        return H
    best = H
    for t in range(1, H):
        if H % t == 0 and (t * W) % 8 == 0 and t * W <= max_rows:
            best = t
    return best


# ----------------------------------------------------------------------------
# Fused Pallas kernel: in-VMEM pad + im2col + one big matmul + BN + leaky_relu
# ----------------------------------------------------------------------------
def _conv_bn_act_kernel(x_ref, w_ref, scale_ref, bias_ref, o_ref,
                        pad_ref, col_ref, *,
                        K, dil, pad, H, W, tile_h, slope, act):
    # x_ref:     (1, H, W, Cin)        unpadded input (one batch element), bf16
    # w_ref:     (K*K*Cin, Cout)       im2col weights, bf16
    # scale_ref: (1, Cout) f32         folded BN scale (gamma/sqrt(var+eps))
    # bias_ref:  (1, Cout) f32         folded BN bias
    # o_ref:     (1, tile_h*W, Cout)   lane-dense flattened output rows, bf16
    # pad_ref:   (H+2p, W+2p, Cin)     VMEM scratch with the zero-padded image
    # col_ref:   (tile_h, W, K*K*Cin)  VMEM im2col scratch
    Cin = x_ref.shape[3]
    h = pl.program_id(1)

    # Build the zero-padded image once per batch element, entirely in VMEM
    # (removes the per-layer jnp.pad HBM read+write of the activation).
    @pl.when(h == 0)
    def _():
        pad_ref[...] = jnp.zeros_like(pad_ref)
        pad_ref[pad:pad + H, pad:pad + W, :] = x_ref[0]

    # im2col: one lane-aligned window copy per tap straight from the padded
    # scratch (window selection happens in the load addressing — no per-tap
    # value reshape copies feeding tiny matmuls).
    row0 = h * tile_h
    for kh in range(K):
        for kw in range(K):
            t = kh * K + kw
            col_ref[:, :, t * Cin:(t + 1) * Cin] = pad_ref[
                pl.ds(row0 + kh * dil, tile_h), pl.ds(kw * dil, W), :]

    patches = col_ref[...]
    if tile_h > 1 and W > 1 and W % 16 != 0:
        # For tiny spatial tiles the (tile_h, W) collapse needs sublane
        # repacking; do it in f32 layout (proven path), cost is negligible.
        patches = patches.astype(jnp.float32)
    patches = patches.reshape(tile_h * W, K * K * Cin).astype(jnp.bfloat16)

    # Single MXU matmul: contraction = K*K*Cin (1152..6400), output = Cout
    # (multiple of 128).  Accumulate in f32.
    y = jnp.dot(patches, w_ref[...], preferred_element_type=jnp.float32)

    # Folded BN + leaky_relu epilogue in f32, bf16 store.
    y = y * scale_ref[...] + bias_ref[...]
    if act:
        y = jnp.where(y >= 0.0, y, y * slope)
    o_ref[0] = y.astype(o_ref.dtype)


def conv_bn_act(x, layer):
    """x: (N, H, W, Cin_padded) bf16 -> (N, H, W, Cout_padded) bf16."""
    N, H, W, Cin = x.shape
    assert Cin == layer['cinp'], (Cin, layer['cinp'])
    K, pad, dil = layer['K'], layer['pad'], layer['dil']
    Cout = layer['coutp']
    assert 2 * pad == dil * (K - 1)            # every Unet1 conv preserves size
    Hp, Wp = H + 2 * pad, W + 2 * pad
    tile_h = _pick_tile_h(H, W)
    n_h = H // tile_h
    kkc = K * K * Cin

    kernel = functools.partial(
        _conv_bn_act_kernel, K=K, dil=dil, pad=pad, H=H, W=W, tile_h=tile_h,
        slope=LEAKY_SLOPE, act=layer['act'])

    flops = 2 * N * H * W * kkc * Cout
    bytes_accessed = (x.size * 2 + layer['wp'].size * 2 +
                      (layer['scalep'].size + layer['biasp'].size) * 4 +
                      N * H * W * Cout * 2)

    out = pl.pallas_call(
        kernel,
        out_shape=jax.ShapeDtypeStruct((N, H * W, Cout), jnp.bfloat16),
        grid=(N, n_h),
        in_specs=[
            pl.BlockSpec((1, H, W, Cin), lambda n, h: (n, 0, 0, 0)),
            pl.BlockSpec((kkc, Cout), lambda n, h: (0, 0)),
            pl.BlockSpec((1, Cout), lambda n, h: (0, 0)),
            pl.BlockSpec((1, Cout), lambda n, h: (0, 0)),
        ],
        out_specs=pl.BlockSpec((1, tile_h * W, Cout), lambda n, h: (n, h, 0)),
        scratch_shapes=[
            pltpu.VMEM((Hp, Wp, Cin), jnp.bfloat16),
            pltpu.VMEM((tile_h, W, kkc), jnp.bfloat16),
        ],
        compiler_params=pltpu.CompilerParams(
            dimension_semantics=("parallel", "arbitrary"),
            vmem_limit_bytes=48 * 1024 * 1024),
        cost_estimate=pl.CostEstimate(flops=flops, transcendentals=0,
                                      bytes_accessed=bytes_accessed),
    )(x, layer['wp'], layer['scalep'], layer['biasp'])
    return out.reshape(N, H, W, Cout)


# ----------------------------------------------------------------------------
# Cheap JAX glue: 2x2 max-pool, bilinear 2x upsample (align_corners=False)
# ----------------------------------------------------------------------------
def maxpool2x(x):
    N, H, W, C = x.shape
    return x.reshape(N, H // 2, 2, W // 2, 2, C).max(axis=(2, 4))


def upsample2x_bilinear(x):
    # F.interpolate(scale_factor=2, mode='bilinear', align_corners=False),
    # written as a 0.25/0.75 stencil with edge replication (no gathers).
    N, H, W, C = x.shape
    xp = jnp.concatenate([x[:, :1], x[:, :-1]], axis=1)
    xn = jnp.concatenate([x[:, 1:], x[:, -1:]], axis=1)
    even = 0.25 * xp + 0.75 * x
    odd = 0.75 * x + 0.25 * xn
    x2 = jnp.stack([even, odd], axis=2).reshape(N, 2 * H, W, C)
    yp = jnp.concatenate([x2[:, :, :1], x2[:, :, :-1]], axis=2)
    yn = jnp.concatenate([x2[:, :, 1:], x2[:, :, -1:]], axis=2)
    even = 0.25 * yp + 0.75 * x2
    odd = 0.75 * x2 + 0.25 * yn
    return jnp.stack([even, odd], axis=3).reshape(N, 2 * H, 2 * W, C)


# ----------------------------------------------------------------------------
# Parameter construction (deterministic, synthetic), channel-padded to 128
# ----------------------------------------------------------------------------
def make_conv_layer(key, in_splits, cout, K, pad, dil, act=True):
    cin = sum(in_splits)
    k1, k2, k3 = jax.random.split(key, 3)
    w = jax.random.normal(k1, (K, K, cin, cout), jnp.float32) / np.sqrt(K * K * cin)
    if act:
        gamma = 1.0 + 0.1 * jax.random.normal(k2, (cout,), jnp.float32)
        beta = 0.1 * jax.random.normal(k3, (cout,), jnp.float32)
        eps = 1e-5                      # eval-mode ABN: running mean 0, var 1
        scale = gamma / np.sqrt(1.0 + eps)
        bias = beta
    else:                               # plain Conv2d (dec5): no BN, no act
        scale = jnp.ones((cout,), jnp.float32)
        bias = jnp.zeros((cout,), jnp.float32)

    cinp = sum(_rup(c) for c in in_splits)
    coutp = _rup(cout)
    wp = jnp.zeros((K, K, cinp, coutp), jnp.float32)
    off_r, off_p = 0, 0
    for c in in_splits:                 # map real channel segments (concat-aware)
        wp = wp.at[:, :, off_p:off_p + c, :cout].set(w[:, :, off_r:off_r + c, :])
        off_r += c
        off_p += _rup(c)
    scalep = jnp.ones((coutp,), jnp.float32).at[:cout].set(scale)
    biasp = jnp.zeros((coutp,), jnp.float32).at[:cout].set(bias)
    return dict(K=K, pad=pad, dil=dil, act=act,
                w=w, scale=scale, bias=bias,                      # real (ref)
                wp=wp.astype(jnp.bfloat16).reshape(K * K * cinp, coutp),
                scalep=scalep.reshape(1, coutp),
                biasp=biasp.reshape(1, coutp),
                cin=cin, cout=cout, cinp=cinp, coutp=coutp)


def conv0_block(key, in_splits, cout):        # conv_0_ip: two 5x5 d4 p8
    k1, k2 = jax.random.split(key)
    return [make_conv_layer(k1, in_splits, cout, 5, 8, 4),
            make_conv_layer(k2, [cout], cout, 5, 8, 4)]


def conv1_block(key, in_splits, cout):        # conv_1_ip: 3x3 d2 p2, 2x 3x3 p1
    k1, k2, k3 = jax.random.split(key, 3)
    return [make_conv_layer(k1, in_splits, cout, 3, 2, 2),
            make_conv_layer(k2, [cout], cout, 3, 1, 1),
            make_conv_layer(k3, [cout], cout, 3, 1, 1)]


def build_params(key, in_channels, out_channels, ch):
    ks = jax.random.split(key, 10)
    p = {}
    p['enc1'] = conv0_block(ks[0], [in_channels], ch[0])
    p['enc2'] = conv0_block(ks[1], [ch[0]], ch[1])
    p['enc3'] = conv1_block(ks[2], [ch[1]], ch[2])
    p['enc4'] = conv1_block(ks[3], [ch[2]], ch[3])
    p['enc5'] = conv1_block(ks[4], [ch[3]], ch[4])
    p['dec1'] = conv1_block(ks[5], [ch[3], ch[4]], ch[3])
    p['dec2'] = conv1_block(ks[6], [ch[2], ch[3]], ch[2])
    p['dec3'] = conv0_block(ks[7], [ch[1], ch[2]], ch[1])
    p['dec4'] = conv0_block(ks[8], [ch[0], ch[1]], ch[0])
    p['dec5'] = [make_conv_layer(ks[9], [ch[0]], out_channels, 3, 1, 1, act=False)]
    p['out_channels'] = out_channels
    return p


def apply_block(layers, x):
    for layer in layers:
        x = conv_bn_act(x, layer)
    return x


# ----------------------------------------------------------------------------
# Unet1.get_output forward pass
# ----------------------------------------------------------------------------
def unet1_get_output(params, x):
    n, h, w, cin = x.shape
    xp = jnp.zeros((n, h, w, _rup(cin)), jnp.bfloat16).at[..., :cin].set(
        x.astype(jnp.bfloat16))
    xp = jnp.pad(xp, ((0, 0), (2, 2), (2, 2), (0, 0)))          # ConstantPad2d(2)
    x1 = apply_block(params['enc1'], xp)
    x2 = apply_block(params['enc2'], maxpool2x(x1))
    x3 = apply_block(params['enc3'], maxpool2x(x2))
    x4 = apply_block(params['enc4'], maxpool2x(x3))
    out = apply_block(params['enc5'], maxpool2x(x4))
    out = apply_block(params['dec1'],
                      jnp.concatenate([x4, upsample2x_bilinear(out)], axis=-1))
    out = apply_block(params['dec2'],
                      jnp.concatenate([x3, upsample2x_bilinear(out)], axis=-1))
    out = apply_block(params['dec3'],
                      jnp.concatenate([x2, upsample2x_bilinear(out)], axis=-1))
    out = apply_block(params['dec4'],
                      jnp.concatenate([x1, upsample2x_bilinear(out)], axis=-1))
    out = apply_block(params['dec5'], out)
    out = out[:, 2:-2, 2:-2, :params['out_channels']]           # ConstantPad2d(-2)
    # TODO(synk): Unet1.forward additionally applies the external
    # loss_fn.loss_calc_overhead_single_raw(out, target), which is not defined
    # in the provided source; this reproduces the get_output path.
    return out.astype(jnp.float32)


# ----------------------------------------------------------------------------
# In-script correctness checks of the fused kernel vs pure-JAX references
# ----------------------------------------------------------------------------
def _leaky(y, slope=LEAKY_SLOPE):
    return jnp.where(y >= 0.0, y, y * slope)


def conv_bn_act_ref(x_real, layer):
    y = lax.conv_general_dilated(
        x_real, layer['w'].astype(jnp.bfloat16),
        window_strides=(1, 1),
        padding=((layer['pad'],) * 2, (layer['pad'],) * 2),
        rhs_dilation=(layer['dil'],) * 2,
        dimension_numbers=('NHWC', 'HWIO', 'NHWC'),
        preferred_element_type=jnp.float32)
    y = y * layer['scale'][None, None, None, :] + layer['bias'][None, None, None, :]
    return _leaky(y) if layer['act'] else y


def check_layer(key, in_splits, cout, K, pad, dil, H, W, N=2):
    klayer, kx = jax.random.split(key)
    layer = make_conv_layer(klayer, in_splits, cout, K, pad, dil, act=True)
    xs_real, xs_pad = [], []
    for c in in_splits:
        kx, k = jax.random.split(kx)
        xr = jax.random.normal(k, (N, H, W, c), jnp.float32).astype(jnp.bfloat16)
        xs_real.append(xr)
        xs_pad.append(jnp.zeros((N, H, W, _rup(c)), jnp.bfloat16)
                      .at[..., :c].set(xr))
    y = conv_bn_act(jnp.concatenate(xs_pad, -1), layer)
    y = y[..., :cout].astype(jnp.float32)
    y_ref = conv_bn_act_ref(jnp.concatenate(xs_real, -1), layer)
    err = float(jnp.max(jnp.abs(y - y_ref)))
    assert jnp.allclose(y, y_ref, rtol=3e-2, atol=3e-2), f"max|err|={err}"


def _upsample_ref(x):
    N, H, W, C = x.shape

    def src_idx(out_size, in_size):
        dst = np.arange(out_size, dtype=np.float64)
        src = np.maximum((dst + 0.5) / 2.0 - 0.5, 0.0)
        i0 = np.minimum(np.floor(src).astype(np.int32), in_size - 1)
        i1 = np.minimum(i0 + 1, in_size - 1)
        lam = (src - i0).astype(np.float32)
        return i0, i1, lam

    h0, h1, lh = src_idx(2 * H, H)
    w0, w1, lw = src_idx(2 * W, W)
    rows = (x[:, h0] * (1 - lh)[None, :, None, None]
            + x[:, h1] * lh[None, :, None, None])
    return (rows[:, :, w0] * (1 - lw)[None, None, :, None]
            + rows[:, :, w1] * lw[None, None, :, None])


def check_upsample(key):
    x = jax.random.normal(key, (2, 3, 5, 7), jnp.float32)
    assert jnp.allclose(upsample2x_bilinear(x), _upsample_ref(x),
                        rtol=1e-5, atol=1e-5)


if __name__ == "__main__":
    key = jax.random.PRNGKey(0)
    in_channels, out_channels = 4, 1
    ch = (8, 8, 16, 32, 64)       # scaled-down version of (64, 64, 128, 256, 768)
    N, H, W = 2, 12, 12           # 12 + 2*pad(2) = 16 -> four clean 2x2 pools

    kc1, kc2, kc3, kc4, kp, kx = jax.random.split(key, 6)
    # Kernel unit checks: 5x5 d4, 3x3 d2 (tiny spatial), and a concat layer.
    check_layer(kc1, [4], 8, K=5, pad=8, dil=4, H=16, W=16)
    check_layer(kc2, [8], 16, K=3, pad=2, dil=2, H=4, W=4)
    check_layer(kc3, [8, 16], 16, K=3, pad=2, dil=2, H=4, W=4)
    check_upsample(kc4)

    params = build_params(kp, in_channels, out_channels, ch)
    x = jax.random.normal(kx, (N, H, W, in_channels), jnp.float32)

    out = unet1_get_output(params, x)
    out = jax.block_until_ready(out)
    assert out.shape == (N, H, W, out_channels), out.shape
    assert bool(jnp.all(jnp.isfinite(out)))
    print("KERNEL_OK")
</pallas_src>

<mosaic_0001>
module attributes {stable_mosaic.version = 11 : i64} {
  func.func @_conv_bn_act_kernel(%arg0: i32, %arg1: i32, %arg2: memref<1x16x16x128xbf16, #tpu.memory_space<vmem>>, %arg3: memref<3200x128xbf16, #tpu.memory_space<vmem>>, %arg4: memref<1x128xf32, #tpu.memory_space<vmem>>, %arg5: memref<1x128xf32, #tpu.memory_space<vmem>>, %arg6: memref<1x256x128xbf16, #tpu.memory_space<vmem>>, %arg7: memref<32x32x128xbf16, #tpu.memory_space<vmem>>, %arg8: memref<16x16x3200xbf16, #tpu.memory_space<vmem>>) attributes {dimension_semantics = [#tpu.dimension_semantics<parallel>, #tpu.dimension_semantics<arbitrary>], iteration_bounds = array<i64: 2, 1>, scalar_prefetch = 0 : i64, scratch_operands = 2 : i64, tpu.core_type = #tpu.core_type<tc>, window_params = [{transform_indices = @transform_0, window_bounds = array<i64: 1, 16, 16, 128>}, {pipeline_mode = #tpu.pipeline_mode<synchronous>, transform_indices = @transform_1, window_bounds = array<i64: 3200, 128>}, {pipeline_mode = #tpu.pipeline_mode<synchronous>, transform_indices = @transform_2, window_bounds = array<i64: 1, 128>}, {pipeline_mode = #tpu.pipeline_mode<synchronous>, transform_indices = @transform_3, window_bounds = array<i64: 1, 128>}, {transform_indices = @transform_4, window_bounds = array<i64: 1, 256, 128>}]} {
    %c0_i32 = arith.constant 0 : i32
    %0 = arith.cmpi eq, %arg1, %c0_i32 : i32
    %1 = arith.extui %0 : i1 to i32
    %c0_i32_0 = arith.constant 0 : i32
    %2 = arith.cmpi ne, %1, %c0_i32_0 : i32
    scf.if %2 {
      %cst_133 = arith.constant 0.000000e+00 : bf16
      %123 = vector.broadcast %cst_133 : bf16 to vector<32x32x128xbf16>
      %c0_134 = arith.constant 0 : index
      %c0_135 = arith.constant 0 : index
      %c0_136 = arith.constant 0 : index
      %124 = vector.load %arg7[%c0_134, %c0_135, %c0_136] : memref<32x32x128xbf16, #tpu.memory_space<vmem>>, vector<32x32x128xbf16>
      tpu.vector_store %arg7[%c0_134, %c0_135, %c0_136], %123 {strides = array<i32>} : memref<32x32x128xbf16, #tpu.memory_space<vmem>>, vector<32x32x128xbf16>,
      %c0_137 = arith.constant 0 : index
      %c0_138 = arith.constant 0 : index
      %c0_139 = arith.constant 0 : index
      %c0_140 = arith.constant 0 : index
      %125 = vector.load %arg2[%c0_137, %c0_138, %c0_139, %c0_140] : memref<1x16x16x128xbf16, #tpu.memory_space<vmem>>, vector<1x16x16x128xbf16>
      %126 = vector.shape_cast %125 : vector<1x16x16x128xbf16> to vector<16x16x128xbf16>
      %c8_141 = arith.constant 8 : index
      %c8_142 = arith.constant 8 : index
      %c0_143 = arith.constant 0 : index
      %127 = vector.load %arg7[%c8_141, %c8_142, %c0_143] : memref<32x32x128xbf16, #tpu.memory_space<vmem>>, vector<16x16x128xbf16>
      tpu.vector_store %arg7[%c8_141, %c8_142, %c0_143], %126 {strides = array<i32>} : memref<32x32x128xbf16, #tpu.memory_space<vmem>>, vector<16x16x128xbf16>,
    } else {
    }
    %c16_i32 = arith.constant 16 : i32
    %3 = arith.muli %arg1, %c16_i32 : i32
    %c0_i32_1 = arith.constant 0 : i32
    %4 = arith.addi %3, %c0_i32_1 : i32
    %5 = arith.index_cast %4 : i32 to index
    %c0 = arith.constant 0 : index
    %c0_2 = arith.constant 0 : index
    %6 = vector.load %arg7[%5, %c0, %c0_2] : memref<32x32x128xbf16, #tpu.memory_space<vmem>>, vector<16x16x128xbf16>
    %c0_3 = arith.constant 0 : index
    %c0_4 = arith.constant 0 : index
    %c0_5 = arith.constant 0 : index
    %7 = vector.load %arg8[%c0_3, %c0_4, %c0_5] : memref<16x16x3200xbf16, #tpu.memory_space<vmem>>, vector<16x16x128xbf16>
    tpu.vector_store %arg8[%c0_3, %c0_4, %c0_5], %6 {strides = array<i32>} : memref<16x16x3200xbf16, #tpu.memory_space<vmem>>, vector<16x16x128xbf16>,
    %c0_i32_6 = arith.constant 0 : i32
    %8 = arith.addi %3, %c0_i32_6 : i32
    %9 = arith.index_cast %8 : i32 to index
    %c4 = arith.constant 4 : index
    %c0_7 = arith.constant 0 : index
    %10 = vector.load %arg7[%9, %c4, %c0_7] : memref<32x32x128xbf16, #tpu.memory_space<vmem>>, vector<16x16x128xbf16>
    %c0_8 = arith.constant 0 : index
    %c0_9 = arith.constant 0 : index
    %c128 = arith.constant 128 : index
    %11 = vector.load %arg8[%c0_8, %c0_9, %c128] : memref<16x16x3200xbf16, #tpu.memory_space<vmem>>, vector<16x16x128xbf16>
    tpu.vector_store %arg8[%c0_8, %c0_9, %c128], %10 {strides = array<i32>} : memref<16x16x3200xbf16, #tpu.memory_space<vmem>>, vector<16x16x128xbf16>,
    %c0_i32_10 = arith.constant 0 : i32
    %12 = arith.addi %3, %c0_i32_10 : i32
    %13 = arith.index_cast %12 : i32 to index
    %c8 = arith.constant 8 : index
    %c0_11 = arith.constant 0 : index
    %14 = vector.load %arg7[%13, %c8, %c0_11] : memref<32x32x128xbf16, #tpu.memory_space<vmem>>, vector<16x16x128xbf16>
    %c0_12 = arith.constant 0 : index
    %c0_13 = arith.constant 0 : index
    %c256 = arith.constant 256 : index
    %15 = vector.load %arg8[%c0_12, %c0_13, %c256] : memref<16x16x3200xbf16, #tpu.memory_space<vmem>>, vector<16x16x128xbf16>
    tpu.vector_store %arg8[%c0_12, %c0_13, %c256], %14 {strides = array<i32>} : memref<16x16x3200xbf16, #tpu.memory_space<vmem>>, vector<16x16x128xbf16>,
    %c0_i32_14 = arith.constant 0 : i32
    %16 = arith.addi %3, %c0_i32_14 : i32
    %17 = arith.index_cast %16 : i32 to index
    %c12 = arith.constant 12 : index
    %c0_15 = arith.constant 0 : index
    %18 = vector.load %arg7[%17, %c12, %c0_15] : memref<32x32x128xbf16, #tpu.memory_space<vmem>>, vector<16x16x128xbf16>
    %c0_16 = arith.constant 0 : index
    %c0_17 = arith.constant 0 : index
    %c384 = arith.constant 384 : index
    %19 = vector.load %arg8[%c0_16, %c0_17, %c384] : memref<16x16x3200xbf16, #tpu.memory_space<vmem>>, vector<16x16x128xbf16>
    tpu.vector_store %arg8[%c0_16, %c0_17, %c384], %18 {strides = array<i32>} : memref<16x16x3200xbf16, #tpu.memory_space<vmem>>, vector<16x16x128xbf16>,
    %c0_i32_18 = arith.constant 0 : i32
    %20 = arith.addi %3, %c0_i32_18 : i32
    %21 = arith.index_cast %20 : i32 to index
    %c16 = arith.constant 16 : index
    %c0_19 = arith.constant 0 : index
    %22 = vector.load %arg7[%21, %c16, %c0_19] : memref<32x32x128xbf16, #tpu.memory_space<vmem>>, vector<16x16x128xbf16>
    %c0_20 = arith.constant 0 : index
    %c0_21 = arith.constant 0 : index
    %c512 = arith.constant 512 : index
    %23 = vector.load %arg8[%c0_20, %c0_21, %c512] : memref<16x16x3200xbf16, #tpu.memory_space<vmem>>, vector<16x16x128xbf16>
    tpu.vector_store %arg8[%c0_20, %c0_21, %c512], %22 {strides = array<i32>} : memref<16x16x3200xbf16, #tpu.memory_space<vmem>>, vector<16x16x128xbf16>,
    %c4_i32 = arith.constant 4 : i32
    %24 = arith.addi %3, %c4_i32 : i32
    %25 = arith.index_cast %24 : i32 to index
    %c0_22 = arith.constant 0 : index
    %c0_23 = arith.constant 0 : index
    %26 = vector.load %arg7[%25, %c0_22, %c0_23] : memref<32x32x128xbf16, #tpu.memory_space<vmem>>, vector<16x16x128xbf16>
    %c0_24 = arith.constant 0 : index
    %c0_25 = arith.constant 0 : index
    %c640 = arith.constant 640 : index
    %27 = vector.load %arg8[%c0_24, %c0_25, %c640] : memref<16x16x3200xbf16, #tpu.memory_space<vmem>>, vector<16x16x128xbf16>
    tpu.vector_store %arg8[%c0_24, %c0_25, %c640], %26 {strides = array<i32>} : memref<16x16x3200xbf16, #tpu.memory_space<vmem>>, vector<16x16x128xbf16>,
    %c4_i32_26 = arith.constant 4 : i32
    %28 = arith.addi %3, %c4_i32_26 : i32
    %29 = arith.index_cast %28 : i32 to index
    %c4_27 = arith.constant 4 : index
    %c0_28 = arith.constant 0 : index
    %30 = vector.load %arg7[%29, %c4_27, %c0_28] : memref<32x32x128xbf16, #tpu.memory_space<vmem>>, vector<16x16x128xbf16>
    %c0_29 = arith.constant 0 : index
    %c0_30 = arith.constant 0 : index
    %c768 = arith.constant 768 : index
    %31 = vector.load %arg8[%c0_29, %c0_30, %c768] : memref<16x16x3200xbf16, #tpu.memory_space<vmem>>, vector<16x16x128xbf16>
    tpu.vector_store %arg8[%c0_29, %c0_30, %c768], %30 {strides = array<i32>} : memref<16x16x3200xbf16, #tpu.memory_space<vmem>>, vector<16x16x128xbf16>,
    %c4_i32_31 = arith.constant 4 : i32
    %32 = arith.addi %3, %c4_i32_31 : i32
    %33 = arith.index_cast %32 : i32 to index
    %c8_32 = arith.constant 8 : index
    %c0_33 = arith.constant 0 : index
    %34 = vector.load %arg7[%33, %c8_32, %c0_33] : memref<32x32x128xbf16, #tpu.memory_space<vmem>>, vector<16x16x128xbf16>
    %c0_34 = arith.constant 0 : index
    %c0_35 = arith.constant 0 : index
    %c896 = arith.constant 896 : index
    %35 = vector.load %arg8[%c0_34, %c0_35, %c896] : memref<16x16x3200xbf16, #tpu.memory_space<vmem>>, vector<16x16x128xbf16>
    tpu.vector_store %arg8[%c0_34, %c0_35, %c896], %34 {strides = array<i32>} : memref<16x16x3200xbf16, #tpu.memory_space<vmem>>, vector<16x16x128xbf16>,
    %c4_i32_36 = arith.constant 4 : i32
    %36 = arith.addi %3, %c4_i32_36 : i32
    %37 = arith.index_cast %36 : i32 to index
    %c12_37 = arith.constant 12 : index
    %c0_38 = arith.constant 0 : index
    %38 = vector.load %arg7[%37, %c12_37, %c0_38] : memref<32x32x128xbf16, #tpu.memory_space<vmem>>, vector<16x16x128xbf16>
    %c0_39 = arith.constant 0 : index
    %c0_40 = arith.constant 0 : index
    %c1024 = arith.constant 1024 : index
    %39 = vector.load %arg8[%c0_39, %c0_40, %c1024] : memref<16x16x3200xbf16, #tpu.memory_space<vmem>>, vector<16x16x128xbf16>
    tpu.vector_store %arg8[%c0_39, %c0_40, %c1024], %38 {strides = array<i32>} : memref<16x16x3200xbf16, #tpu.memory_space<vmem>>, vector<16x16x128xbf16>,
    %c4_i32_41 = arith.constant 4 : i32
    %40 = arith.addi %3, %c4_i32_41 : i32
    %41 = arith.index_cast %40 : i32 to index
    %c16_42 = arith.constant 16 : index
    %c0_43 = arith.constant 0 : index
    %42 = vector.load %arg7[%41, %c16_42, %c0_43] : memref<32x32x128xbf16, #tpu.memory_space<vmem>>, vector<16x16x128xbf16>
    %c0_44 = arith.constant 0 : index
    %c0_45 = arith.constant 0 : index
    %c1152 = arith.constant 1152 : index
    %43 = vector.load %arg8[%c0_44, %c0_45, %c1152] : memref<16x16x3200xbf16, #tpu.memory_space<vmem>>, vector<16x16x128xbf16>
    tpu.vector_store %arg8[%c0_44, %c0_45, %c1152], %42 {strides = array<i32>} : memref<16x16x3200xbf16, #tpu.memory_space<vmem>>, vector<16x16x128xbf16>,
    %c8_i32 = arith.constant 8 : i32
    %44 = arith.addi %3, %c8_i32 : i32
    %45 = arith.index_cast %44 : i32 to index
    %c0_46 = arith.constant 0 : index
    %c0_47 = arith.constant 0 : index
    %46 = vector.load %arg7[%45, %c0_46, %c0_47] : memref<32x32x128xbf16, #tpu.memory_space<vmem>>, vector<16x16x128xbf16>
    %c0_48 = arith.constant 0 : index
    %c0_49 = arith.constant 0 : index
    %c1280 = arith.constant 1280 : index
    %47 = vector.load %arg8[%c0_48, %c0_49, %c1280] : memref<16x16x3200xbf16, #tpu.memory_space<vmem>>, vector<16x16x128xbf16>
    tpu.vector_store %arg8[%c0_48, %c0_49, %c1280], %46 {strides = array<i32>} : memref<16x16x3200xbf16, #tpu.memory_space<vmem>>, vector<16x16x128xbf16>,
    %c8_i32_50 = arith.constant 8 : i32
    %48 = arith.addi %3, %c8_i32_50 : i32
    %49 = arith.index_cast %48 : i32 to index
    %c4_51 = arith.constant 4 : index
    %c0_52 = arith.constant 0 : index
    %50 = vector.load %arg7[%49, %c4_51, %c0_52] : memref<32x32x128xbf16, #tpu.memory_space<vmem>>, vector<16x16x128xbf16>
    %c0_53 = arith.constant 0 : index
    %c0_54 = arith.constant 0 : index
    %c1408 = arith.constant 1408 : index
    %51 = vector.load %arg8[%c0_53, %c0_54, %c1408] : memref<16x16x3200xbf16, #tpu.memory_space<vmem>>, vector<16x16x128xbf16>
    tpu.vector_store %arg8[%c0_53, %c0_54, %c1408], %50 {strides = array<i32>} : memref<16x16x3200xbf16, #tpu.memory_space<vmem>>, vector<16x16x128xbf16>,
    %c8_i32_55 = arith.constant 8 : i32
    %52 = arith.addi %3, %c8_i32_55 : i32
    %53 = arith.index_cast %52 : i32 to index
    %c8_56 = arith.constant 8 : index
    %c0_57 = arith.constant 0 : index
    %54 = vector.load %arg7[%53, %c8_56, %c0_57] : memref<32x32x128xbf16, #tpu.memory_space<vmem>>, vector<16x16x128xbf16>
    %c0_58 = arith.constant 0 : index
    %c0_59 = arith.constant 0 : index
    %c1536 = arith.constant 1536 : index
    %55 = vector.load %arg8[%c0_58, %c0_59, %c1536] : memref<16x16x3200xbf16, #tpu.memory_space<vmem>>, vector<16x16x128xbf16>
    tpu.vector_store %arg8[%c0_58, %c0_59, %c1536], %54 {strides = array<i32>} : memref<16x16x3200xbf16, #tpu.memory_space<vmem>>, vector<16x16x128xbf16>,
    %c8_i32_60 = arith.constant 8 : i32
    %56 = arith.addi %3, %c8_i32_60 : i32
    %57 = arith.index_cast %56 : i32 to index
    %c12_61 = arith.constant 12 : index
    %c0_62 = arith.constant 0 : index
    %58 = vector.load %arg7[%57, %c12_61, %c0_62] : memref<32x32x128xbf16, #tpu.memory_space<vmem>>, vector<16x16x128xbf16>
    %c0_63 = arith.constant 0 : index
    %c0_64 = arith.constant 0 : index
    %c1664 = arith.constant 1664 : index
    %59 = vector.load %arg8[%c0_63, %c0_64, %c1664] : memref<16x16x3200xbf16, #tpu.memory_space<vmem>>, vector<16x16x128xbf16>
    tpu.vector_store %arg8[%c0_63, %c0_64, %c1664], %58 {strides = array<i32>} : memref<16x16x3200xbf16, #tpu.memory_space<vmem>>, vector<16x16x128xbf16>,
    %c8_i32_65 = arith.constant 8 : i32
    %60 = arith.addi %3, %c8_i32_65 : i32
    %61 = arith.index_cast %60 : i32 to index
    %c16_66 = arith.constant 16 : index
    %c0_67 = arith.constant 0 : index
    %62 = vector.load %arg7[%61, %c16_66, %c0_67] : memref<32x32x128xbf16, #tpu.memory_space<vmem>>, vector<16x16x128xbf16>
    %c0_68 = arith.constant 0 : index
    %c0_69 = arith.constant 0 : index
    %c1792 = arith.constant 1792 : index
    %63 = vector.load %arg8[%c0_68, %c0_69, %c1792] : memref<16x16x3200xbf16, #tpu.memory_space<vmem>>, vector<16x16x128xbf16>
    tpu.vector_store %arg8[%c0_68, %c0_69, %c1792], %62 {strides = array<i32>} : memref<16x16x3200xbf16, #tpu.memory_space<vmem>>, vector<16x16x128xbf16>,
    %c12_i32 = arith.constant 12 : i32
    %64 = arith.addi %3, %c12_i32 : i32
    %65 = arith.index_cast %64 : i32 to index
    %c0_70 = arith.constant 0 : index
    %c0_71 = arith.constant 0 : index
    %66 = vector.load %arg7[%65, %c0_70, %c0_71] : memref<32x32x128xbf16, #tpu.memory_space<vmem>>, vector<16x16x128xbf16>
    %c0_72 = arith.constant 0 : index
    %c0_73 = arith.constant 0 : index
    %c1920 = arith.constant 1920 : index
    %67 = vector.load %arg8[%c0_72, %c0_73, %c1920] : memref<16x16x3200xbf16, #tpu.memory_space<vmem>>, vector<16x16x128xbf16>
    tpu.vector_store %arg8[%c0_72, %c0_73, %c1920], %66 {strides = array<i32>} : memref<16x16x3200xbf16, #tpu.memory_space<vmem>>, vector<16x16x128xbf16>,
    %c12_i32_74 = arith.constant 12 : i32
    %68 = arith.addi %3, %c12_i32_74 : i32
    %69 = arith.index_cast %68 : i32 to index
    %c4_75 = arith.constant 4 : index
    %c0_76 = arith.constant 0 : index
    %70 = vector.load %arg7[%69, %c4_75, %c0_76] : memref<32x32x128xbf16, #tpu.memory_space<vmem>>, vector<16x16x128xbf16>
    %c0_77 = arith.constant 0 : index
    %c0_78 = arith.constant 0 : index
    %c2048 = arith.constant 2048 : index
    %71 = vector.load %arg8[%c0_77, %c0_78, %c2048] : memref<16x16x3200xbf16, #tpu.memory_space<vmem>>, vector<16x16x128xbf16>
    tpu.vector_store %arg8[%c0_77, %c0_78, %c2048], %70 {strides = array<i32>} : memref<16x16x3200xbf16, #tpu.memory_space<vmem>>, vector<16x16x128xbf16>,
    %c12_i32_79 = arith.constant 12 : i32
    %72 = arith.addi %3, %c12_i32_79 : i32
    %73 = arith.index_cast %72 : i32 to index
    %c8_80 = arith.constant 8 : index
    %c0_81 = arith.constant 0 : index
    %74 = vector.load %arg7[%73, %c8_80, %c0_81] : memref<32x32x128xbf16, #tpu.memory_space<vmem>>, vector<16x16x128xbf16>
    %c0_82 = arith.constant 0 : index
    %c0_83 = arith.constant 0 : index
    %c2176 = arith.constant 2176 : index
    %75 = vector.load %arg8[%c0_82, %c0_83, %c2176] : memref<16x16x3200xbf16, #tpu.memory_space<vmem>>, vector<16x16x128xbf16>
    tpu.vector_store %arg8[%c0_82, %c0_83, %c2176], %74 {strides = array<i32>} : memref<16x16x3200xbf16, #tpu.memory_space<vmem>>, vector<16x16x128xbf16>,
    %c12_i32_84 = arith.constant 12 : i32
    %76 = arith.addi %3, %c12_i32_84 : i32
    %77 = arith.index_cast %76 : i32 to index
    %c12_85 = arith.constant 12 : index
    %c0_86 = arith.constant 0 : index
    %78 = vector.load %arg7[%77, %c12_85, %c0_86] : memref<32x32x128xbf16, #tpu.memory_space<vmem>>, vector<16x16x128xbf16>
    %c0_87 = arith.constant 0 : index
    %c0_88 = arith.constant 0 : index
    %c2304 = arith.constant 2304 : index
    %79 = vector.load %arg8[%c0_87, %c0_88, %c2304] : memref<16x16x3200xbf16, #tpu.memory_space<vmem>>, vector<16x16x128xbf16>
    tpu.vector_store %arg8[%c0_87, %c0_88, %c2304], %78 {strides = array<i32>} : memref<16x16x3200xbf16, #tpu.memory_space<vmem>>, vector<16x16x128xbf16>,
    %c12_i32_89 = arith.constant 12 : i32
    %80 = arith.addi %3, %c12_i32_89 : i32
    %81 = arith.index_cast %80 : i32 to index
    %c16_90 = arith.constant 16 : index
    %c0_91 = arith.constant 0 : index
    %82 = vector.load %arg7[%81, %c16_90, %c0_91] : memref<32x32x128xbf16, #tpu.memory_space<vmem>>, vector<16x16x128xbf16>
    %c0_92 = arith.constant 0 : index
    %c0_93 = arith.constant 0 : index
    %c2432 = arith.constant 2432 : index
    %83 = vector.load %arg8[%c0_92, %c0_93, %c2432] : memref<16x16x3200xbf16, #tpu.memory_space<vmem>>, vector<16x16x128xbf16>
    tpu.vector_store %arg8[%c0_92, %c0_93, %c2432], %82 {strides = array<i32>} : memref<16x16x3200xbf16, #tpu.memory_space<vmem>>, vector<16x16x128xbf16>,
    %c16_i32_94 = arith.constant 16 : i32
    %84 = arith.addi %3, %c16_i32_94 : i32
    %85 = arith.index_cast %84 : i32 to index
    %c0_95 = arith.constant 0 : index
    %c0_96 = arith.constant 0 : index
    %86 = vector.load %arg7[%85, %c0_95, %c0_96] : memref<32x32x128xbf16, #tpu.memory_space<vmem>>, vector<16x16x128xbf16>
    %c0_97 = arith.constant 0 : index
    %c0_98 = arith.constant 0 : index
    %c2560 = arith.constant 2560 : index
    %87 = vector.load %arg8[%c0_97, %c0_98, %c2560] : memref<16x16x3200xbf16, #tpu.memory_space<vmem>>, vector<16x16x128xbf16>
    tpu.vector_store %arg8[%c0_97, %c0_98, %c2560], %86 {strides = array<i32>} : memref<16x16x3200xbf16, #tpu.memory_space<vmem>>, vector<16x16x128xbf16>,
    %c16_i32_99 = arith.constant 16 : i32
    %88 = arith.addi %3, %c16_i32_99 : i32
    %89 = arith.index_cast %88 : i32 to index
    %c4_100 = arith.constant 4 : index
    %c0_101 = arith.constant 0 : index
    %90 = vector.load %arg7[%89, %c4_100, %c0_101] : memref<32x32x128xbf16, #tpu.memory_space<vmem>>, vector<16x16x128xbf16>
    %c0_102 = arith.constant 0 : index
    %c0_103 = arith.constant 0 : index
    %c2688 = arith.constant 2688 : index
    %91 = vector.load %arg8[%c0_102, %c0_103, %c2688] : memref<16x16x3200xbf16, #tpu.memory_space<vmem>>, vector<16x16x128xbf16>
    tpu.vector_store %arg8[%c0_102, %c0_103, %c2688], %90 {strides = array<i32>} : memref<16x16x3200xbf16, #tpu.memory_space<vmem>>, vector<16x16x128xbf16>,
    %c16_i32_104 = arith.constant 16 : i32
    %92 = arith.addi %3, %c16_i32_104 : i32
    %93 = arith.index_cast %92 : i32 to index
    %c8_105 = arith.constant 8 : index
    %c0_106 = arith.constant 0 : index
    %94 = vector.load %arg7[%93, %c8_105, %c0_106] : memref<32x32x128xbf16, #tpu.memory_space<vmem>>, vector<16x16x128xbf16>
    %c0_107 = arith.constant 0 : index
    %c0_108 = arith.constant 0 : index
    %c2816 = arith.constant 2816 : index
    %95 = vector.load %arg8[%c0_107, %c0_108, %c2816] : memref<16x16x3200xbf16, #tpu.memory_space<vmem>>, vector<16x16x128xbf16>
    tpu.vector_store %arg8[%c0_107, %c0_108, %c2816], %94 {strides = array<i32>} : memref<16x16x3200xbf16, #tpu.memory_space<vmem>>, vector<16x16x128xbf16>,
    %c16_i32_109 = arith.constant 16 : i32
    %96 = arith.addi %3, %c16_i32_109 : i32
    %97 = arith.index_cast %96 : i32 to index
    %c12_110 = arith.constant 12 : index
    %c0_111 = arith.constant 0 : index
    %98 = vector.load %arg7[%97, %c12_110, %c0_111] : memref<32x32x128xbf16, #tpu.memory_space<vmem>>, vector<16x16x128xbf16>
    %c0_112 = arith.constant 0 : index
    %c0_113 = arith.constant 0 : index
    %c2944 = arith.constant 2944 : index
    %99 = vector.load %arg8[%c0_112, %c0_113, %c2944] : memref<16x16x3200xbf16, #tpu.memory_space<vmem>>, vector<16x16x128xbf16>
    tpu.vector_store %arg8[%c0_112, %c0_113, %c2944], %98 {strides = array<i32>} : memref<16x16x3200xbf16, #tpu.memory_space<vmem>>, vector<16x16x128xbf16>,
    %c16_i32_114 = arith.constant 16 : i32
    %100 = arith.addi %3, %c16_i32_114 : i32
    %101 = arith.index_cast %100 : i32 to index
    %c16_115 = arith.constant 16 : index
    %c0_116 = arith.constant 0 : index
    %102 = vector.load %arg7[%101, %c16_115, %c0_116] : memref<32x32x128xbf16, #tpu.memory_space<vmem>>, vector<16x16x128xbf16>
    %c0_117 = arith.constant 0 : index
    %c0_118 = arith.constant 0 : index
    %c3072 = arith.constant 3072 : index
    %103 = vector.load %arg8[%c0_117, %c0_118, %c3072] : memref<16x16x3200xbf16, #tpu.memory_space<vmem>>, vector<16x16x128xbf16>
    tpu.vector_store %arg8[%c0_117, %c0_118, %c3072], %102 {strides = array<i32>} : memref<16x16x3200xbf16, #tpu.memory_space<vmem>>, vector<16x16x128xbf16>,
    %c0_119 = arith.constant 0 : index
    %c0_120 = arith.constant 0 : index
    %c0_121 = arith.constant 0 : index
    %104 = vector.load %arg8[%c0_119, %c0_120, %c0_121] : memref<16x16x3200xbf16, #tpu.memory_space<vmem>>, vector<16x16x3200xbf16>
    %105 = vector.shape_cast %104 : vector<16x16x3200xbf16> to vector<256x3200xbf16>
    %c0_122 = arith.constant 0 : index
    %c0_123 = arith.constant 0 : index
    %106 = vector.load %arg3[%c0_122, %c0_123] : memref<3200x128xbf16, #tpu.memory_space<vmem>>, vector<3200x128xbf16>
    %cst = arith.constant dense<0.000000e+00> : vector<256x128xf32>
    %107 = tpu.matmul %105, %106, %cst {dimension_numbers = #tpu.dot_dimension_numbers<[1], [0], [0], [1], [0, 0, 1, 1], [], []>} : vector<256x3200xbf16>, vector<3200x128xbf16>, vector<256x128xf32> -> vector<256x128xf32>
    %c0_124 = arith.constant 0 : index
    %c0_125 = arith.constant 0 : index
    %108 = vector.load %arg4[%c0_124, %c0_125] : memref<1x128xf32, #tpu.memory_space<vmem>>, vector<1x128xf32>
    %109 = vector.broadcast %108 : vector<1x128xf32> to vector<256x128xf32>
    %110 = arith.mulf %107, %109 : vector<256x128xf32>
    %c0_126 = arith.constant 0 : index
    %c0_127 = arith.constant 0 : index
    %111 = vector.load %arg5[%c0_126, %c0_127] : memref<1x128xf32, #tpu.memory_space<vmem>>, vector<1x128xf32>
    %112 = vector.broadcast %111 : vector<1x128xf32> to vector<256x128xf32>
    %113 = arith.addf %110, %112 : vector<256x128xf32>
    %cst_128 = arith.constant 0.000000e+00 : f32
    %114 = vector.broadcast %cst_128 : f32 to vector<256x128xf32>
    %115 = arith.cmpf oge, %113, %114 : vector<256x128xf32>
    %cst_129 = arith.constant 0.00999999977 : f32
    %116 = vector.broadcast %cst_129 : f32 to vector<256x128xf32>
    %117 = arith.mulf %113, %116 : vector<256x128xf32>
    %118 = arith.select %115, %113, %117 : vector<256x128xi1>, vector<256x128xf32>
    %119 = arith.truncf %118 : vector<256x128xf32> to vector<256x128xbf16>
    %c0_130 = arith.constant 0 : index
    %c0_131 = arith.constant 0 : index
    %c0_132 = arith.constant 0 : index
    %120 = vector.load %arg6[%c0_130, %c0_131, %c0_132] : memref<1x256x128xbf16, #tpu.memory_space<vmem>>, vector<1x256x128xbf16>
    %121 = vector.shape_cast %120 : vector<1x256x128xbf16> to vector<256x128xbf16>
    %122 = vector.shape_cast %119 : vector<256x128xbf16> to vector<1x256x128xbf16>
    tpu.vector_store %arg6[%c0_130, %c0_131, %c0_132], %122 {strides = array<i32>} : memref<1x256x128xbf16, #tpu.memory_space<vmem>>, vector<1x256x128xbf16>,
    return
  }
  func.func @transform_0(%arg0: i32, %arg1: i32) -> (i32, i32, i32, i32) {
    %c0_i32 = arith.constant 0 : i32
    %c0_i32_0 = arith.constant 0 : i32
    %c0_i32_1 = arith.constant 0 : i32
    %c0_i32_2 = arith.constant 0 : i32
    return %arg0, %c0_i32, %c0_i32_0, %c0_i32_1 : i32, i32, i32, i32
  }
  func.func @transform_1(%arg0: i32, %arg1: i32) -> (i32, i32) {
    %c0_i32 = arith.constant 0 : i32
    %c0_i32_0 = arith.constant 0 : i32
    %c0_i32_1 = arith.constant 0 : i32
    return %c0_i32, %c0_i32_0 : i32, i32
  }
  func.func @transform_2(%arg0: i32, %arg1: i32) -> (i32, i32) {
    %c0_i32 = arith.constant 0 : i32
    %c0_i32_0 = arith.constant 0 : i32
    %c0_i32_1 = arith.constant 0 : i32
    return %c0_i32, %c0_i32_0 : i32, i32
  }
  func.func @transform_3(%arg0: i32, %arg1: i32) -> (i32, i32) {
    %c0_i32 = arith.constant 0 : i32
    %c0_i32_0 = arith.constant 0 : i32
    %c0_i32_1 = arith.constant 0 : i32
    return %c0_i32, %c0_i32_0 : i32, i32
  }
  func.func @transform_4(%arg0: i32, %arg1: i32) -> (i32, i32, i32) {
    %c0_i32 = arith.constant 0 : i32
    %c0_i32_0 = arith.constant 0 : i32
    return %arg0, %arg1, %c0_i32 : i32, i32, i32
  }
}

</mosaic_0001>

<llo_original>
// kernel: tpu_custom_call.1
$region0: #{tpu_custom_call.1}
  #allocation0 [shape = 'u32[]', space=smem, size = 0x4, offset = 0x4, fixed_abs, tag = 'smem constant byte address 0x4 - core index']
  #allocation1 [shape = 'u32[144,128]{1,0:T(1,128)}', space=vmem, size = 0x12000, scoped, tag = 'internal scratch']
  #allocation2 [shape = 'bf16[32,32,128]{2,1,0:T(8,128)(2,1)}', space=vmem, size = 0x40000, scoped, tag = 'scratch operand']
  #allocation3 [shape = 'bf16[16,16,3200]{2,1,0:T(8,128)(2,1)}', space=vmem, size = 0x190000, scoped, tag = 'scratch operand']
  %s0 = inlined_call_operand.hbm [shape: bf16[2,16,16,128], index: 0, kind: input, shape index: {}]
  %s1 = inlined_call_operand.hbm [shape: bf16[3200,128], index: 1, kind: input, shape index: {}]
  %s2 = inlined_call_operand.vmem [shape: f32[1,128], index: 2, kind: input, shape index: {}]
  %s3 = inlined_call_operand.vmem [shape: f32[1,128], index: 3, kind: input, shape index: {}]
  %s4 = inlined_call_operand.hbm [shape: bf16[2,256,128], index: 4, kind: output, shape index: {}]
  %s5 = sld [smem:[#allocation0]]
  $region61: #{tpu_custom_call.1} parent=0
    _
  %s7 = ssub.s32 1, %s5
  %s8 = scalar_select 0, %s7, %s5
  $region1: #{tpu_custom_call.1} parent=0
    #allocation4 [shape = 'u8[131072]{0}', space=vmem, size = 0x20000, scoped, tag = 'input window, operand 0']
    #allocation5 [shape = 's32[2]{0}', space=sflag, size = 0x8, scoped, tag = 'scoped memory for tpu_custom_call.1']
    #allocation6 [shape = 's32[2]{0}', space=sflag, size = 0x8, scoped, tag = 'scoped memory for tpu_custom_call.1']
    #allocation7 [shape = 'u8[819200]{0}', space=vmem, size = 0xc8000, scoped, tag = 'input window, operand 1, single buffered']
    #allocation8 [shape = 's32[1]{0}', space=sflag, size = 0x4, scoped, tag = 'scoped memory for tpu_custom_call.1']
    #allocation9 [shape = 'u8[131072]{0}', space=vmem, size = 0x20000, scoped, tag = 'output window, operand 0']
    %9 = vsyncpa [#allocation5], 0
    %s10 = scalar_lea.sflag [#allocation5], 1
    %11 = vsyncpa %s10, 0
    %12 = vsyncpa [#allocation8], 0
    %13 = vsyncpa [#allocation6], 0
    %s14 = scalar_lea.sflag [#allocation6], 1
    %15 = vsyncpa %s14, 0
    loop: start=0, step=1, limit=4
    $region2: #{tpu_custom_call.1} parent=1 // loop_pre_header
      _
    $region3: #{tpu_custom_call.1} parent=1 // loop_header
      %s17 = sphi 0, %s21
      %p18 = scmp.ge.s32.totalorder %s17, 4
      %s24 = sphi 0, %s36
      %s25 = sphi 0, %s32
      %s26 = sphi 0, %s24
      %s27 = sphi 0, %s25
      %s28 = sphi 0, %s26
      %s29 = sphi 0, %s27
      %s39 = sphi 0, %s41
      %s42 = sphi 0, %s39
      %s43 = sphi 0, %s42
      %s59 = sphi 0, %s43
      %s63 = sphi 0, %s63
      %s65 = sphi 0, %s63
      %s66 = sphi 0, %s65
      %s80 = sphi 0, %s66
      %s84 = sphi 0, %s84
      %s86 = sphi 0, %s84
      %s87 = sphi 0, %s86
      %s101 = sphi 0, %s87
      %s105 = sphi 0, %s105
      %s107 = sphi 0, %s105
      %s108 = sphi 0, %s107
      %s122 = sphi 0, %s108
      %s130 = sphi 0, %s132
      %s133 = sphi 0, %s130
      %s134 = sphi 0, %s133
      %s150 = sphi 0, %s134
    $region4: #{tpu_custom_call.1} parent=1 // loop_header_branch
      %20 = sbr.rel (%p18) target = $region8
    $region5: #{tpu_custom_call.1} parent=1 // loop_body
      %s22 = ssub.s32 %s17, 1
      %s23 = ssub.s32 %s17, 2
      %s30 = sadd.s32 1, %s25
      %p31 = scmp.ge.s32.totalorder %s30, 1
      %s32 = scalar_select %p31, 0, %s30
      %s33 = sadd.s32 1, %s24
      %s34 = scalar_select %p31, %s33, %s24
      %p35 = scmp.ge.s32.totalorder %s34, 2
      %s36 = scalar_select %p35, 0, %s34
      %s37 = ssub.s32 %s24, %s36
      %p38 = scmp.eq.s32.totalorder %s37, 0
      %s40 = sadd.s32 %s39, 1
      %s41 = scalar_select %p38, %s39, %s40
      %p44 = pneg %p38
      %p45 = scmp.eq.s32.totalorder %s17, 1
      %p46 = por %p44, %p45
      %p47 = scmp.ne.s32.totalorder %s39, %s42
      %p48 = scmp.eq.s32.totalorder %s17, 0
      %p49 = por %p47, %p48
      %p50 = scmp.ne.s32.totalorder %s39, %s42
      %p51 = scmp.eq.s32.totalorder %s22, 1
      %p52 = por %p50, %p51
      %p53 = scmp.ne.s32.totalorder %s42, %s43
      %p54 = scmp.eq.s32.totalorder %s22, 0
      %p55 = por %p53, %p54
      %p56 = scmp.ne.s32.totalorder %s42, %s43
      %p57 = scmp.eq.s32.totalorder %s23, 1
      %p58 = por %p56, %p57
      %p60 = scmp.ne.s32.totalorder %s43, %s59
      %p61 = scmp.eq.s32.totalorder %s23, 0
      %p62 = por %p60, %p61
      %s64 = sadd.s32 %s63, 1
      %p67 = scmp.eq.s32.totalorder %s17, 1
      %p68 = scmp.ne.s32.totalorder %s63, %s65
      %p69 = scmp.eq.s32.totalorder %s17, 0
      %p70 = por %p68, %p69
      %p71 = scmp.ne.s32.totalorder %s63, %s65
      %p72 = scmp.eq.s32.totalorder %s22, 1
      %p73 = por %p71, %p72
      %p74 = scmp.ne.s32.totalorder %s65, %s66
      %p75 = scmp.eq.s32.totalorder %s22, 0
      %p76 = por %p74, %p75
      %p77 = scmp.ne.s32.totalorder %s65, %s66
      %p78 = scmp.eq.s32.totalorder %s23, 1
      %p79 = por %p77, %p78
      %p81 = scmp.ne.s32.totalorder %s66, %s80
      %p82 = scmp.eq.s32.totalorder %s23, 0
      %p83 = por %p81, %p82
      %s85 = sadd.s32 %s84, 1
      %p88 = scmp.eq.s32.totalorder %s17, 1
      %p89 = scmp.ne.s32.totalorder %s84, %s86
      %p90 = scmp.eq.s32.totalorder %s17, 0
      %p91 = por %p89, %p90
      %p92 = scmp.ne.s32.totalorder %s84, %s86
      %p93 = scmp.eq.s32.totalorder %s22, 1
      %p94 = por %p92, %p93
      %p95 = scmp.ne.s32.totalorder %s86, %s87
      %p96 = scmp.eq.s32.totalorder %s22, 0
      %p97 = por %p95, %p96
      %p98 = scmp.ne.s32.totalorder %s86, %s87
      %p99 = scmp.eq.s32.totalorder %s23, 1
      %p100 = por %p98, %p99
      %p102 = scmp.ne.s32.totalorder %s87, %s101
      %p103 = scmp.eq.s32.totalorder %s23, 0
      %p104 = por %p102, %p103
      %s106 = sadd.s32 %s105, 1
      %p109 = scmp.eq.s32.totalorder %s17, 1
      %p110 = scmp.ne.s32.totalorder %s105, %s107
      %p111 = scmp.eq.s32.totalorder %s17, 0
      %p112 = por %p110, %p111
      %p113 = scmp.ne.s32.totalorder %s105, %s107
      %p114 = scmp.eq.s32.totalorder %s22, 1
      %p115 = por %p113, %p114
      %p116 = scmp.ne.s32.totalorder %s107, %s108
      %p117 = scmp.eq.s32.totalorder %s22, 0
      %p118 = por %p116, %p117
      %p119 = scmp.ne.s32.totalorder %s107, %s108
      %p120 = scmp.eq.s32.totalorder %s23, 1
      %p121 = por %p119, %p120
      %p123 = scmp.ne.s32.totalorder %s108, %s122
      %p124 = scmp.eq.s32.totalorder %s23, 0
      %p125 = por %p123, %p124
      %s126 = ssub.s32 %s24, %s36
      %s127 = ssub.s32 %s25, %s32
      %s128 = sor.u32 %s126, %s127
      %p129 = scmp.eq.s32.totalorder %s128, 0
      %s131 = sadd.s32 %s130, 1
      %s132 = scalar_select %p129, %s130, %s131
      %p135 = pneg %p129
      %p136 = scmp.eq.s32.totalorder %s17, 1
      %p137 = por %p135, %p136
      %p138 = scmp.ne.s32.totalorder %s130, %s133
      %p139 = scmp.eq.s32.totalorder %s17, 0
      %p140 = por %p138, %p139
      %p141 = scmp.ne.s32.totalorder %s130, %s133
      %p142 = scmp.eq.s32.totalorder %s22, 1
      %p143 = por %p141, %p142
      %p144 = scmp.ne.s32.totalorder %s133, %s134
      %p145 = scmp.eq.s32.totalorder %s22, 0
      %p146 = por %p144, %p145
      %p147 = scmp.ne.s32.totalorder %s133, %s134
      %p148 = scmp.eq.s32.totalorder %s23, 1
      %p149 = por %p147, %p148
      %p151 = scmp.ne.s32.totalorder %s134, %s150
      %p152 = scmp.eq.s32.totalorder %s23, 0
      %p153 = por %p151, %p152
      %p154 = scmp.le.s32.totalorder 1, %s17
      %p155 = scmp.lt.s32.totalorder %s17, 3
      %p156 = pnand %p154, %p155
      %p157 = pneg %p156
      // Predicated region
      $region9: #{tpu_custom_call.1} parent=5 // pred_check
        _
      $region10: #{tpu_custom_call.1} parent=5 // pred_check_branch
        %159 = sbr.rel (%p156) target = $region12
      $region11: #{tpu_custom_call.1} parent=5 // pred_region
        %s160 = ssub.s32 %s17, 1
        // Predicated region
        $region13: #{tpu_custom_call.1} parent=11 // pred_check
          %p161 = pneg %p76
        $region14: #{tpu_custom_call.1} parent=11 // pred_check_branch
          %163 = sbr.rel (%p161) target = $region16
        $region15: #{tpu_custom_call.1} parent=11 // pred_region
          %s165 = ssub.s32 25600, 25600
          %166 = vsyncadd [#allocation8], %s165
          %s167 = sshll.u32 [#allocation7], 4
          %s168 = int_to_ptr.vmem [resolvable:$true] %s167
          %173 = dma.hbm_to_vmem [thread:$0]  %s1, 25600, %s168, [#allocation8], 64, 64, 4
        $region16: #{tpu_custom_call.1} parent=11 // pred_fallthru
          _
        // Predicated region
        $region17: #{tpu_custom_call.1} parent=11 // pred_check
          %p174 = pneg %p97
        $region18: #{tpu_custom_call.1} parent=11 // pred_check_branch
          %176 = sbr.rel (%p174) target = $region20
        $region19: #{tpu_custom_call.1} parent=11 // pred_region
          _
        $region20: #{tpu_custom_call.1} parent=11 // pred_fallthru
          _
        // Predicated region
        $region21: #{tpu_custom_call.1} parent=11 // pred_check
          %p177 = pneg %p118
        $region22: #{tpu_custom_call.1} parent=11 // pred_check_branch
          %179 = sbr.rel (%p177) target = $region24
        $region23: #{tpu_custom_call.1} parent=11 // pred_region
          _
        $region24: #{tpu_custom_call.1} parent=11 // pred_fallthru
          _
      $region12: #{tpu_custom_call.1} parent=5 // pred_fallthru
        _
      %p180 = scmp.lt.s32.totalorder %s17, 2
      // Predicated region
      $region25: #{tpu_custom_call.1} parent=5 // pred_check
        %p181 = pneg %p180
      $region26: #{tpu_custom_call.1} parent=5 // pred_check_branch
        %183 = sbr.rel (%p181) target = $region28
      $region27: #{tpu_custom_call.1} parent=5 // pred_region
        // Predicated region
        $region29: #{tpu_custom_call.1} parent=27 // pred_check
          %p184 = pneg %p49
        $region30: #{tpu_custom_call.1} parent=27 // pred_check_branch
          %186 = sbr.rel (%p184) target = $region32
        $region31: #{tpu_custom_call.1} parent=27 // pred_region
          %s187 = sand.u32 %s39, 1
          %s188 = scalar_lea.sflag [#allocation5], %s187
          %s189 = sand.u32 %s39, 1
          %s190 = smul.addr %s189, 128
          %s191 = scalar_lea.vmem [#allocation4], %s190
          %s193 = ssub.s32 2048, 2048
          %194 = vsyncadd %s188, %s193
          %s195 = smul.addr %s24, 32
          %s196 = smul.addr %s195, 64
          %s197 = scalar_lea.hbm %s0, %s196
          %s198 = sshll.u32 %s191, 4
          %s199 = int_to_ptr.vmem [resolvable:$true] %s198
          %204 = dma.hbm_to_vmem [thread:$0]  %s197, 2048, %s199, %s188, 64, 64, 4
        $region32: #{tpu_custom_call.1} parent=27 // pred_fallthru
          _
      $region28: #{tpu_custom_call.1} parent=5 // pred_fallthru
        _
      %p205 = scmp.le.s32.totalorder 1, %s17
      %p206 = scmp.lt.s32.totalorder %s17, 3
      %p207 = pnand %p205, %p206
      %p208 = pneg %p207
      // Predicated region
      $region33: #{tpu_custom_call.1} parent=5 // pred_check
        _
      $region34: #{tpu_custom_call.1} parent=5 // pred_check_branch
        %210 = sbr.rel (%p207) target = $region36
      $region35: #{tpu_custom_call.1} parent=5 // pred_region
        %s211 = ssub.s32 %s17, 1
        %s212 = sand.u32 %s42, 1
        %s213 = scalar_lea.sflag [#allocation5], %s212
        %s214 = sand.u32 %s42, 1
        %s215 = smul.addr %s214, 128
        %s216 = scalar_lea.vmem [#allocation4], %s215
        // Predicated region
        $region37: #{tpu_custom_call.1} parent=35 // pred_check
          %p217 = pneg %p55
        $region38: #{tpu_custom_call.1} parent=35 // pred_check_branch
          %219 = sbr.rel (%p217) target = $region40
        $region39: #{tpu_custom_call.1} parent=35 // pred_region
          %220 = dma.done %s213, 2048
        $region40: #{tpu_custom_call.1} parent=35 // pred_fallthru
          _
        // Predicated region
        $region41: #{tpu_custom_call.1} parent=35 // pred_check
          %p221 = pneg %p76
        $region42: #{tpu_custom_call.1} parent=35 // pred_check_branch
          %223 = sbr.rel (%p221) target = $region44
        $region43: #{tpu_custom_call.1} parent=35 // pred_region
          %224 = dma.done [#allocation8], 25600
        $region44: #{tpu_custom_call.1} parent=35 // pred_fallthru
          _
        %s225 = sand.u32 %s42, 1
        %s226 = scalar_lea.sflag [#allocation5], %s225
        %s227 = sand.u32 %s42, 1
        %s228 = smul.addr %s227, 128
        %s229 = scalar_lea.vmem [#allocation4], %s228
        %p230 = pneg %p55
        %p231 = pneg %p52
        %p232 = pneg %p76
        %p233 = pneg %p73
        %p234 = pneg %p97
        %p235 = pneg %p94
        %p236 = pneg %p118
        %p237 = pneg %p115
        %p238 = pneg %p146
        %p239 = pneg %p143
        %s240 = sand.u32 %s133, 1
        %s241 = scalar_lea.sflag [#allocation6], %s240
        %s242 = sand.u32 %s133, 1
        %s243 = smul.addr %s242, 128
        %s244 = scalar_lea.vmem [#allocation9], %s243
        %s245 = smul.u32 32, %s27
        %p247 = scmp.eq.s32.totalorder %s27, 0
        // Predicated region
        $region45: #{tpu_custom_call.1} parent=35 // pred_check
          %p248 = pneg %p247
        $region46: #{tpu_custom_call.1} parent=35 // pred_check_branch
          %250 = sbr.rel (%p248) target = $region48
        $region47: #{tpu_custom_call.1} parent=35 // pred_region
          %251 = vst [vmem:[#allocation2] sm:$0xf] 0
          %252 = vst [vmem:[#allocation2 + $0x4] sm:$0xf] 0
          %253 = vst [vmem:[#allocation2 + $0x8] sm:$0xf] 0
          %254 = vst [vmem:[#allocation2 + $0xc] sm:$0xf] 0
          %255 = vst [vmem:[#allocation2 + $0x10] sm:$0xf] 0
          %256 = vst [vmem:[#allocation2 + $0x14] sm:$0xf] 0
          %257 = vst [vmem:[#allocation2 + $0x18] sm:$0xf] 0
          %258 = vst [vmem:[#allocation2 + $0x1c] sm:$0xf] 0
          %259 = vst [vmem:[#allocation2 + $0x20] sm:$0xf] 0
          %260 = vst [vmem:[#allocation2 + $0x24] sm:$0xf] 0
          %261 = vst [vmem:[#allocation2 + $0x28] sm:$0xf] 0
          %262 = vst [vmem:[#allocation2 + $0x2c] sm:$0xf] 0
          %263 = vst [vmem:[#allocation2 + $0x30] sm:$0xf] 0
          %264 = vst [vmem:[#allocation2 + $0x34] sm:$0xf] 0
          %265 = vst [vmem:[#allocation2 + $0x38] sm:$0xf] 0
          %266 = vst [vmem:[#allocation2 + $0x3c] sm:$0xf] 0
          %267 = vst [vmem:[#allocation2 + $0x40] sm:$0xf] 0
          %268 = vst [vmem:[#allocation2 + $0x44] sm:$0xf] 0
          %269 = vst [vmem:[#allocation2 + $0x48] sm:$0xf] 0
          %270 = vst [vmem:[#allocation2 + $0x4c] sm:$0xf] 0
          %271 = vst [vmem:[#allocation2 + $0x50] sm:$0xf] 0
          %272 = vst [vmem:[#allocation2 + $0x54] sm:$0xf] 0
          %273 = vst [vmem:[#allocation2 + $0x58] sm:$0xf] 0
          %274 = vst [vmem:[#allocation2 + $0x5c] sm:$0xf] 0
          %275 = vst [vmem:[#allocation2 + $0x60] sm:$0xf] 0
          %276 = vst [vmem:[#allocation2 + $0x64] sm:$0xf] 0
          %277 = vst [vmem:[#allocation2 + $0x68] sm:$0xf] 0
          %278 = vst [vmem:[#allocation2 + $0x6c] sm:$0xf] 0
          %279 = vst [vmem:[#allocation2 + $0x70] sm:$0xf] 0
          %280 = vst [vmem:[#allocation2 + $0x74] sm:$0xf] 0
          %281 = vst [vmem:[#allocation2 + $0x78] sm:$0xf] 0
          %282 = vst [vmem:[#allocation2 + $0x7c] sm:$0xf] 0
          %283 = vst [vmem:[#allocation2 + $0x80] sm:$0xf] 0
          %284 = vst [vmem:[#allocation2 + $0x84] sm:$0xf] 0
          %285 = vst [vmem:[#allocation2 + $0x88] sm:$0xf] 0
          %286 = vst [vmem:[#allocation2 + $0x8c] sm:$0xf] 0
          %287 = vst [vmem:[#allocation2 + $0x90] sm:$0xf] 0
          %288 = vst [vmem:[#allocation2 + $0x94] sm:$0xf] 0
          %289 = vst [vmem:[#allocation2 + $0x98] sm:$0xf] 0
          %290 = vst [vmem:[#allocation2 + $0x9c] sm:$0xf] 0
          %291 = vst [vmem:[#allocation2 + $0xa0] sm:$0xf] 0
          %292 = vst [vmem:[#allocation2 + $0xa4] sm:$0xf] 0
          %293 = vst [vmem:[#allocation2 + $0xa8] sm:$0xf] 0
          %294 = vst [vmem:[#allocation2 + $0xac] sm:$0xf] 0
          %295 = vst [vmem:[#allocation2 + $0xb0] sm:$0xf] 0
          %296 = vst [vmem:[#allocation2 + $0xb4] sm:$0xf] 0
          %297 = vst [vmem:[#allocation2 + $0xb8] sm:$0xf] 0
          %298 = vst [vmem:[#allocation2 + $0xbc] sm:$0xf] 0
          %299 = vst [vmem:[#allocation2 + $0xc0] sm:$0xf] 0
          %300 = vst [vmem:[#allocation2 + $0xc4] sm:$0xf] 0
          %301 = vst [vmem:[#allocation2 + $0xc8] sm:$0xf] 0
          %302 = vst [vmem:[#allocation2 + $0xcc] sm:$0xf] 0
          %303 = vst [vmem:[#allocation2 + $0xd0] sm:$0xf] 0
          %304 = vst [vmem:[#allocation2 + $0xd4] sm:$0xf] 0
          %305 = vst [vmem:[#allocation2 + $0xd8] sm:$0xf] 0
          %306 = vst [vmem:[#allocation2 + $0xdc] sm:$0xf] 0
          %307 = vst [vmem:[#allocation2 + $0xe0] sm:$0xf] 0
          %308 = vst [vmem:[#allocation2 + $0xe4] sm:$0xf] 0
          %309 = vst [vmem:[#allocation2 + $0xe8] sm:$0xf] 0
          %310 = vst [vmem:[#allocation2 + $0xec] sm:$0xf] 0
          %311 = vst [vmem:[#allocation2 + $0xf0] sm:$0xf] 0
          %312 = vst [vmem:[#allocation2 + $0xf4] sm:$0xf] 0
          %313 = vst [vmem:[#allocation2 + $0xf8] sm:$0xf] 0
          %314 = vst [vmem:[#allocation2 + $0xfc] sm:$0xf] 0
          %315 = vst [vmem:[#allocation2 + $0x100] sm:$0xf] 0
          %316 = vst [vmem:[#allocation2 + $0x104] sm:$0xf] 0
          %317 = vst [vmem:[#allocation2 + $0x108] sm:$0xf] 0
          %318 = vst [vmem:[#allocation2 + $0x10c] sm:$0xf] 0
          %319 = vst [vmem:[#allocation2 + $0x110] sm:$0xf] 0
          %320 = vst [vmem:[#allocation2 + $0x114] sm:$0xf] 0
          %321 = vst [vmem:[#allocation2 + $0x118] sm:$0xf] 0
          %322 = vst [vmem:[#allocation2 + $0x11c] sm:$0xf] 0
          %323 = vst [vmem:[#allocation2 + $0x120] sm:$0xf] 0
          %324 = vst [vmem:[#allocation2 + $0x124] sm:$0xf] 0
          %325 = vst [vmem:[#allocation2 + $0x128] sm:$0xf] 0
          %326 = vst [vmem:[#allocation2 + $0x12c] sm:$0xf] 0
          %327 = vst [vmem:[#allocation2 + $0x130] sm:$0xf] 0
          %328 = vst [vmem:[#allocation2 + $0x134] sm:$0xf] 0
          %329 = vst [vmem:[#allocation2 + $0x138] sm:$0xf] 0
          %330 = vst [vmem:[#allocation2 + $0x13c] sm:$0xf] 0
          %331 = vst [vmem:[#allocation2 + $0x140] sm:$0xf] 0
          %332 = vst [vmem:[#allocation2 + $0x144] sm:$0xf] 0
          %333 = vst [vmem:[#allocation2 + $0x148] sm:$0xf] 0
          %334 = vst [vmem:[#allocation2 + $0x14c] sm:$0xf] 0
          %335 = vst [vmem:[#allocation2 + $0x150] sm:$0xf] 0
          %336 = vst [vmem:[#allocation2 + $0x154] sm:$0xf] 0
          %337 = vst [vmem:[#allocation2 + $0x158] sm:$0xf] 0
          %338 = vst [vmem:[#allocation2 + $0x15c] sm:$0xf] 0
          %339 = vst [vmem:[#allocation2 + $0x160] sm:$0xf] 0
          %340 = vst [vmem:[#allocation2 + $0x164] sm:$0xf] 0
          %341 = vst [vmem:[#allocation2 + $0x168] sm:$0xf] 0
          %342 = vst [vmem:[#allocation2 + $0x16c] sm:$0xf] 0
          %343 = vst [vmem:[#allocation2 + $0x170] sm:$0xf] 0
          %344 = vst [vmem:[#allocation2 + $0x174] sm:$0xf] 0
          %345 = vst [vmem:[#allocation2 + $0x178] sm:$0xf] 0
          %346 = vst [vmem:[#allocation2 + $0x17c] sm:$0xf] 0
          %347 = vst [vmem:[#allocation2 + $0x180] sm:$0xf] 0
          %348 = vst [vmem:[#allocation2 + $0x184] sm:$0xf] 0
          %349 = vst [vmem:[#allocation2 + $0x188] sm:$0xf] 0
          %350 = vst [vmem:[#allocation2 + $0x18c] sm:$0xf] 0
          %351 = vst [vmem:[#allocation2 + $0x190] sm:$0xf] 0
          %352 = vst [vmem:[#allocation2 + $0x194] sm:$0xf] 0
          %353 = vst [vmem:[#allocation2 + $0x198] sm:$0xf] 0
          %354 = vst [vmem:[#allocation2 + $0x19c] sm:$0xf] 0
          %355 = vst [vmem:[#allocation2 + $0x1a0] sm:$0xf] 0
          %356 = vst [vmem:[#allocation2 + $0x1a4] sm:$0xf] 0
          %357 = vst [vmem:[#allocation2 + $0x1a8] sm:$0xf] 0
          %358 = vst [vmem:[#allocation2 + $0x1ac] sm:$0xf] 0
          %359 = vst [vmem:[#allocation2 + $0x1b0] sm:$0xf] 0
          %360 = vst [vmem:[#allocation2 + $0x1b4] sm:$0xf] 0
          %361 = vst [vmem:[#allocation2 + $0x1b8] sm:$0xf] 0
          %362 = vst [vmem:[#allocation2 + $0x1bc] sm:$0xf] 0
          %363 = vst [vmem:[#allocation2 + $0x1c0] sm:$0xf] 0
          %364 = vst [vmem:[#allocation2 + $0x1c4] sm:$0xf] 0
          %365 = vst [vmem:[#allocation2 + $0x1c8] sm:$0xf] 0
          %366 = vst [vmem:[#allocation2 + $0x1cc] sm:$0xf] 0
          %367 = vst [vmem:[#allocation2 + $0x1d0] sm:$0xf] 0
          %368 = vst [vmem:[#allocation2 + $0x1d4] sm:$0xf] 0
          %369 = vst [vmem:[#allocation2 + $0x1d8] sm:$0xf] 0
          %370 = vst [vmem:[#allocation2 + $0x1dc] sm:$0xf] 0
          %371 = vst [vmem:[#allocation2 + $0x1e0] sm:$0xf] 0
          %372 = vst [vmem:[#allocation2 + $0x1e4] sm:$0xf] 0
          %373 = vst [vmem:[#allocation2 + $0x1e8] sm:$0xf] 0
          %374 = vst [vmem:[#allocation2 + $0x1ec] sm:$0xf] 0
          %375 = vst [vmem:[#allocation2 + $0x1f0] sm:$0xf] 0
          %376 = vst [vmem:[#allocation2 + $0x1f4] sm:$0xf] 0
          %377 = vst [vmem:[#allocation2 + $0x1f8] sm:$0xf] 0
          %378 = vst [vmem:[#allocation2 + $0x1fc] sm:$0xf] 0
          %v379 = vld [vmem:[%s216] sm:$0xf]
          %v380 = vld [vmem:[%s216 + $0x4] sm:$0xf]
          %v381 = vld [vmem:[%s216 + $0x8] sm:$0xf]
          %v382 = vld [vmem:[%s216 + $0xc] sm:$0xf]
          %v383 = vld [vmem:[%s216 + $0x10] sm:$0xf]
          %v384 = vld [vmem:[%s216 + $0x14] sm:$0xf]
          %v385 = vld [vmem:[%s216 + $0x18] sm:$0xf]
          %v386 = vld [vmem:[%s216 + $0x1c] sm:$0xf]
          %v387 = vld [vmem:[%s216 + $0x20] sm:$0xf]
          %v388 = vld [vmem:[%s216 + $0x24] sm:$0xf]
          %v389 = vld [vmem:[%s216 + $0x28] sm:$0xf]
          %v390 = vld [vmem:[%s216 + $0x2c] sm:$0xf]
          %v391 = vld [vmem:[%s216 + $0x30] sm:$0xf]
          %v392 = vld [vmem:[%s216 + $0x34] sm:$0xf]
          %v393 = vld [vmem:[%s216 + $0x38] sm:$0xf]
          %v394 = vld [vmem:[%s216 + $0x3c] sm:$0xf]
          %v395 = vld [vmem:[%s216 + $0x40] sm:$0xf]
          %v396 = vld [vmem:[%s216 + $0x44] sm:$0xf]
          %v397 = vld [vmem:[%s216 + $0x48] sm:$0xf]
          %v398 = vld [vmem:[%s216 + $0x4c] sm:$0xf]
          %v399 = vld [vmem:[%s216 + $0x50] sm:$0xf]
          %v400 = vld [vmem:[%s216 + $0x54] sm:$0xf]
          %v401 = vld [vmem:[%s216 + $0x58] sm:$0xf]
          %v402 = vld [vmem:[%s216 + $0x5c] sm:$0xf]
          %v403 = vld [vmem:[%s216 + $0x60] sm:$0xf]
          %v404 = vld [vmem:[%s216 + $0x64] sm:$0xf]
          %v405 = vld [vmem:[%s216 + $0x68] sm:$0xf]
          %v406 = vld [vmem:[%s216 + $0x6c] sm:$0xf]
          %v407 = vld [vmem:[%s216 + $0x70] sm:$0xf]
          %v408 = vld [vmem:[%s216 + $0x74] sm:$0xf]
          %v409 = vld [vmem:[%s216 + $0x78] sm:$0xf]
          %v410 = vld [vmem:[%s216 + $0x7c] sm:$0xf]
          %s411 = scalar_lea.vmem [#allocation2], 128
          %412 = vst [vmem:[%s411 + $0x4] sm:$0xf] %v379
          %413 = vst [vmem:[%s411 + $0x8] sm:$0xf] %v380
          %414 = vst [vmem:[%s411 + $0x14] sm:$0xf] %v381
          %415 = vst [vmem:[%s411 + $0x18] sm:$0xf] %v382
          %416 = vst [vmem:[%s411 + $0x24] sm:$0xf] %v383
          %417 = vst [vmem:[%s411 + $0x28] sm:$0xf] %v384
          %418 = vst [vmem:[%s411 + $0x34] sm:$0xf] %v385
          %419 = vst [vmem:[%s411 + $0x38] sm:$0xf] %v386
          %420 = vst [vmem:[%s411 + $0x44] sm:$0xf] %v387
          %421 = vst [vmem:[%s411 + $0x48] sm:$0xf] %v388
          %422 = vst [vmem:[%s411 + $0x54] sm:$0xf] %v389
          %423 = vst [vmem:[%s411 + $0x58] sm:$0xf] %v390
          %424 = vst [vmem:[%s411 + $0x64] sm:$0xf] %v391
          %425 = vst [vmem:[%s411 + $0x68] sm:$0xf] %v392
          %426 = vst [vmem:[%s411 + $0x74] sm:$0xf] %v393
          %427 = vst [vmem:[%s411 + $0x78] sm:$0xf] %v394
          %428 = vst [vmem:[%s411 + $0x84] sm:$0xf] %v395
          %429 = vst [vmem:[%s411 + $0x88] sm:$0xf] %v396
          %430 = vst [vmem:[%s411 + $0x94] sm:$0xf] %v397
          %431 = vst [vmem:[%s411 + $0x98] sm:$0xf] %v398
          %432 = vst [vmem:[%s411 + $0xa4] sm:$0xf] %v399
          %433 = vst [vmem:[%s411 + $0xa8] sm:$0xf] %v400
          %434 = vst [vmem:[%s411 + $0xb4] sm:$0xf] %v401
          %435 = vst [vmem:[%s411 + $0xb8] sm:$0xf] %v402
          %436 = vst [vmem:[%s411 + $0xc4] sm:$0xf] %v403
          %437 = vst [vmem:[%s411 + $0xc8] sm:$0xf] %v404
          %438 = vst [vmem:[%s411 + $0xd4] sm:$0xf] %v405
          %439 = vst [vmem:[%s411 + $0xd8] sm:$0xf] %v406
          %440 = vst [vmem:[%s411 + $0xe4] sm:$0xf] %v407
          %441 = vst [vmem:[%s411 + $0xe8] sm:$0xf] %v408
          %442 = vst [vmem:[%s411 + $0xf4] sm:$0xf] %v409
          %443 = vst [vmem:[%s411 + $0xf8] sm:$0xf] %v410
        $region48: #{tpu_custom_call.1} parent=35 // pred_fallthru
          _
        %s444 = smul.u32 %s27, 16
        %s445 = smul.u32 %s444, 4
        %s446 = smul.addr %s445, 4
        %s447 = scalar_lea.vmem [#allocation2], %s446
        %v448 = vld [vmem:[%s447] sm:$0xf]
        %v449 = vld [vmem:[%s447 + $0x4] sm:$0xf]
        %v450 = vld [vmem:[%s447 + $0x10] sm:$0xf]
        %v451 = vld [vmem:[%s447 + $0x14] sm:$0xf]
        %v452 = vld [vmem:[%s447 + $0x20] sm:$0xf]
        %v453 = vld [vmem:[%s447 + $0x24] sm:$0xf]
        %v454 = vld [vmem:[%s447 + $0x30] sm:$0xf]
        %v455 = vld [vmem:[%s447 + $0x34] sm:$0xf]
        %v456 = vld [vmem:[%s447 + $0x40] sm:$0xf]
        %v457 = vld [vmem:[%s447 + $0x44] sm:$0xf]
        %v458 = vld [vmem:[%s447 + $0x50] sm:$0xf]
        %v459 = vld [vmem:[%s447 + $0x54] sm:$0xf]
        %v460 = vld [vmem:[%s447 + $0x60] sm:$0xf]
        %v461 = vld [vmem:[%s447 + $0x64] sm:$0xf]
        %v462 = vld [vmem:[%s447 + $0x70] sm:$0xf]
        %v463 = vld [vmem:[%s447 + $0x74] sm:$0xf]
        %v464 = vld [vmem:[%s447 + $0x80] sm:$0xf]
        %v465 = vld [vmem:[%s447 + $0x84] sm:$0xf]
        %v466 = vld [vmem:[%s447 + $0x90] sm:$0xf]
        %v467 = vld [vmem:[%s447 + $0x94] sm:$0xf]
        %v468 = vld [vmem:[%s447 + $0xa0] sm:$0xf]
        %v469 = vld [vmem:[%s447 + $0xa4] sm:$0xf]
        %v470 = vld [vmem:[%s447 + $0xb0] sm:$0xf]
        %v471 = vld [vmem:[%s447 + $0xb4] sm:$0xf]
        %v472 = vld [vmem:[%s447 + $0xc0] sm:$0xf]
        %v473 = vld [vmem:[%s447 + $0xc4] sm:$0xf]
        %v474 = vld [vmem:[%s447 + $0xd0] sm:$0xf]
        %v475 = vld [vmem:[%s447 + $0xd4] sm:$0xf]
        %v476 = vld [vmem:[%s447 + $0xe0] sm:$0xf]
        %v477 = vld [vmem:[%s447 + $0xe4] sm:$0xf]
        %v478 = vld [vmem:[%s447 + $0xf0] sm:$0xf]
        %v479 = vld [vmem:[%s447 + $0xf4] sm:$0xf]
        %480 = vst [vmem:[#allocation3] sm:$0xf] %v448
        %481 = vst [vmem:[#allocation3 + $0x64] sm:$0xf] %v449
        %482 = vst [vmem:[#allocation3 + $0xc8] sm:$0xf] %v450
        %483 = vst [vmem:[#allocation3 + $0x12c] sm:$0xf] %v451
        %484 = vst [vmem:[#allocation3 + $0x190] sm:$0xf] %v452
        %485 = vst [vmem:[#allocation3 + $0x1f4] sm:$0xf] %v453
        %486 = vst [vmem:[#allocation3 + $0x258] sm:$0xf] %v454
        %487 = vst [vmem:[#allocation3 + $0x2bc] sm:$0xf] %v455
        %488 = vst [vmem:[#allocation3 + $0x320] sm:$0xf] %v456
        %489 = vst [vmem:[#allocation3 + $0x384] sm:$0xf] %v457
        %490 = vst [vmem:[#allocation3 + $0x3e8] sm:$0xf] %v458
        %491 = vst [vmem:[#allocation3 + $0x44c] sm:$0xf] %v459
        %492 = vst [vmem:[#allocation3 + $0x4b0] sm:$0xf] %v460
        %493 = vst [vmem:[#allocation3 + $0x514] sm:$0xf] %v461
        %494 = vst [vmem:[#allocation3 + $0x578] sm:$0xf] %v462
        %495 = vst [vmem:[#allocation3 + $0x5dc] sm:$0xf] %v463
        %496 = vst [vmem:[#allocation3 + $0x640] sm:$0xf] %v464
        %497 = vst [vmem:[#allocation3 + $0x6a4] sm:$0xf] %v465
        %498 = vst [vmem:[#allocation3 + $0x708] sm:$0xf] %v466
        %499 = vst [vmem:[#allocation3 + $0x76c] sm:$0xf] %v467
        %500 = vst [vmem:[#allocation3 + $0x7d0] sm:$0xf] %v468
        %501 = vst [vmem:[#allocation3 + $0x834] sm:$0xf] %v469
        %502 = vst [vmem:[#allocation3 + $0x898] sm:$0xf] %v470
        %503 = vst [vmem:[#allocation3 + $0x8fc] sm:$0xf] %v471
        %504 = vst [vmem:[#allocation3 + $0x960] sm:$0xf] %v472
        %505 = vst [vmem:[#allocation3 + $0x9c4] sm:$0xf] %v473
        %506 = vst [vmem:[#allocation3 + $0xa28] sm:$0xf] %v474
        %507 = vst [vmem:[#allocation3 + $0xa8c] sm:$0xf] %v475
        %508 = vst [vmem:[#allocation3 + $0xaf0] sm:$0xf] %v476
        %509 = vst [vmem:[#allocation3 + $0xb54] sm:$0xf] %v477
        %510 = vst [vmem:[#allocation3 + $0xbb8] sm:$0xf] %v478
        %511 = vst [vmem:[#allocation3 + $0xc1c] sm:$0xf] %v479
        %v512 = vld [vmem:[%s447] sm:$0xc]
        %v513 = vld [vmem:[%s447 + $0x4] sm:$0xf]
        %v514 = vld [vmem:[%s447 + $0x8] sm:$0x3]
        %v515 = vld [vmem:[%s447 + $0x10] sm:$0xc]
        %v516 = vld [vmem:[%s447 + $0x14] sm:$0xf]
        %v517 = vld [vmem:[%s447 + $0x18] sm:$0x3]
        %v518 = vld [vmem:[%s447 + $0x20] sm:$0xc]
        %v519 = vld [vmem:[%s447 + $0x24] sm:$0xf]
        %v520 = vld [vmem:[%s447 + $0x28] sm:$0x3]
        %v521 = vld [vmem:[%s447 + $0x30] sm:$0xc]
        %v522 = vld [vmem:[%s447 + $0x34] sm:$0xf]
        %v523 = vld [vmem:[%s447 + $0x38] sm:$0x3]
        %v524 = vld [vmem:[%s447 + $0x40] sm:$0xc]
        %v525 = vld [vmem:[%s447 + $0x44] sm:$0xf]
        %v526 = vld [vmem:[%s447 + $0x48] sm:$0x3]
        %v527 = vld [vmem:[%s447 + $0x50] sm:$0xc]
        %v528 = vld [vmem:[%s447 + $0x54] sm:$0xf]
        %v529 = vld [vmem:[%s447 + $0x58] sm:$0x3]
        %v530 = vld [vmem:[%s447 + $0x60] sm:$0xc]
        %v531 = vld [vmem:[%s447 + $0x64] sm:$0xf]
        %v532 = vld [vmem:[%s447 + $0x68] sm:$0x3]
        %v533 = vld [vmem:[%s447 + $0x70] sm:$0xc]
        %v534 = vld [vmem:[%s447 + $0x74] sm:$0xf]
        %v535 = vld [vmem:[%s447 + $0x78] sm:$0x3]
        %v536 = vld [vmem:[%s447 + $0x80] sm:$0xc]
        %v537 = vld [vmem:[%s447 + $0x84] sm:$0xf]
        %v538 = vld [vmem:[%s447 + $0x88] sm:$0x3]
        %v539 = vld [vmem:[%s447 + $0x90] sm:$0xc]
        %v540 = vld [vmem:[%s447 + $0x94] sm:$0xf]
        %v541 = vld [vmem:[%s447 + $0x98] sm:$0x3]
        %v542 = vld [vmem:[%s447 + $0xa0] sm:$0xc]
        %v543 = vld [vmem:[%s447 + $0xa4] sm:$0xf]
        %v544 = vld [vmem:[%s447 + $0xa8] sm:$0x3]
        %v545 = vld [vmem:[%s447 + $0xb0] sm:$0xc]
        %v546 = vld [vmem:[%s447 + $0xb4] sm:$0xf]
        %v547 = vld [vmem:[%s447 + $0xb8] sm:$0x3]
        %v548 = vld [vmem:[%s447 + $0xc0] sm:$0xc]
        %v549 = vld [vmem:[%s447 + $0xc4] sm:$0xf]
        %v550 = vld [vmem:[%s447 + $0xc8] sm:$0x3]
        %v551 = vld [vmem:[%s447 + $0xd0] sm:$0xc]
        %v552 = vld [vmem:[%s447 + $0xd4] sm:$0xf]
        %v553 = vld [vmem:[%s447 + $0xd8] sm:$0x3]
        %v554 = vld [vmem:[%s447 + $0xe0] sm:$0xc]
        %v555 = vld [vmem:[%s447 + $0xe4] sm:$0xf]
        %v556 = vld [vmem:[%s447 + $0xe8] sm:$0x3]
        %v557 = vld [vmem:[%s447 + $0xf0] sm:$0xc]
        %v558 = vld [vmem:[%s447 + $0xf4] sm:$0xf]
        %v559 = vld [vmem:[%s447 + $0xf8] sm:$0x3]
        %vm608 = vcmask 1041408
        %vm609 = vcmask 1045508
        %vm610 = vmor %vm608, %vm609
        %v611 = vrot.slane %v512, 6
        %v612 = vrot.slane %v611, 4
        %v613 = vrot.slane %v513, 6
        %v614 = vsel %vm610, %v612, %v613
        %v615 = vrot.slane %v613, 4
        %v616 = vrot.slane %v514, 6
        %v617 = vsel %vm610, %v615, %v616
        %v618 = vrot.slane %v515, 6
        %v619 = vrot.slane %v618, 4
        %v620 = vrot.slane %v516, 6
        %v621 = vsel %vm610, %v619, %v620
        %v622 = vrot.slane %v620, 4
        %v623 = vrot.slane %v517, 6
        %v624 = vsel %vm610, %v622, %v623
        %v625 = vrot.slane %v518, 6
        %v626 = vrot.slane %v625, 4
        %v627 = vrot.slane %v519, 6
        %v628 = vsel %vm610, %v626, %v627
        %v629 = vrot.slane %v627, 4
        %v630 = vrot.slane %v520, 6
        %v631 = vsel %vm610, %v629, %v630
        %v632 = vrot.slane %v521, 6
        %v633 = vrot.slane %v632, 4
        %v634 = vrot.slane %v522, 6
        %v635 = vsel %vm610, %v633, %v634
        %v636 = vrot.slane %v634, 4
        %v637 = vrot.slane %v523, 6
        %v638 = vsel %vm610, %v636, %v637
        %v639 = vrot.slane %v524, 6
        %v640 = vrot.slane %v639, 4
        %v641 = vrot.slane %v525, 6
        %v642 = vsel %vm610, %v640, %v641
        %v643 = vrot.slane %v641, 4
        %v644 = vrot.slane %v526, 6
        %v645 = vsel %vm610, %v643, %v644
        %v646 = vrot.slane %v527, 6
        %v647 = vrot.slane %v646, 4
        %v648 = vrot.slane %v528, 6
        %v649 = vsel %vm610, %v647, %v648
        %v650 = vrot.slane %v648, 4
        %v651 = vrot.slane %v529, 6
        %v652 = vsel %vm610, %v650, %v651
        %v653 = vrot.slane %v530, 6
        %v654 = vrot.slane %v653, 4
        %v655 = vrot.slane %v531, 6
        %v656 = vsel %vm610, %v654, %v655
        %v657 = vrot.slane %v655, 4
        %v658 = vrot.slane %v532, 6
        %v659 = vsel %vm610, %v657, %v658
        %v660 = vrot.slane %v533, 6
        %v661 = vrot.slane %v660, 4
        %v662 = vrot.slane %v534, 6
        %v663 = vsel %vm610, %v661, %v662
        %v664 = vrot.slane %v662, 4
        %v665 = vrot.slane %v535, 6
        %v666 = vsel %vm610, %v664, %v665
        %v667 = vrot.slane %v536, 6
        %v668 = vrot.slane %v667, 4
        %v669 = vrot.slane %v537, 6
        %v670 = vsel %vm610, %v668, %v669
        %v671 = vrot.slane %v669, 4
        %v672 = vrot.slane %v538, 6
        %v673 = vsel %vm610, %v671, %v672
        %v674 = vrot.slane %v539, 6
        %v675 = vrot.slane %v674, 4
        %v676 = vrot.slane %v540, 6
        %v677 = vsel %vm610, %v675, %v676
        %v678 = vrot.slane %v676, 4
        %v679 = vrot.slane %v541, 6
        %v680 = vsel %vm610, %v678, %v679
        %v681 = vrot.slane %v542, 6
        %v682 = vrot.slane %v681, 4
        %v683 = vrot.slane %v543, 6
        %v684 = vsel %vm610, %v682, %v683
        %v685 = vrot.slane %v683, 4
        %v686 = vrot.slane %v544, 6
        %v687 = vsel %vm610, %v685, %v686
        %v688 = vrot.slane %v545, 6
        %v689 = vrot.slane %v688, 4
        %v690 = vrot.slane %v546, 6
        %v691 = vsel %vm610, %v689, %v690
        %v692 = vrot.slane %v690, 4
        %v693 = vrot.slane %v547, 6
        %v694 = vsel %vm610, %v692, %v693
        %v695 = vrot.slane %v548, 6
        %v696 = vrot.slane %v695, 4
        %v697 = vrot.slane %v549, 6
        %v698 = vsel %vm610, %v696, %v697
        %v699 = vrot.slane %v697, 4
        %v700 = vrot.slane %v550, 6
        %v701 = vsel %vm610, %v699, %v700
        %v702 = vrot.slane %v551, 6
        %v703 = vrot.slane %v702, 4
        %v704 = vrot.slane %v552, 6
        %v705 = vsel %vm610, %v703, %v704
        %v706 = vrot.slane %v704, 4
        %v707 = vrot.slane %v553, 6
        %v708 = vsel %vm610, %v706, %v707
        %v709 = vrot.slane %v554, 6
        %v710 = vrot.slane %v709, 4
        %v711 = vrot.slane %v555, 6
        %v712 = vsel %vm610, %v710, %v711
        %v713 = vrot.slane %v711, 4
        %v714 = vrot.slane %v556, 6
        %v715 = vsel %vm610, %v713, %v714
        %v716 = vrot.slane %v557, 6
        %v717 = vrot.slane %v716, 4
        %v718 = vrot.slane %v558, 6
        %v719 = vsel %vm610, %v717, %v718
        %v720 = vrot.slane %v718, 4
        %v721 = vrot.slane %v559, 6
        %v722 = vsel %vm610, %v720, %v721
        %755 = vst [vmem:[#allocation3 + $0x4] sm:$0xf] %v614
        %756 = vst [vmem:[#allocation3 + $0x68] sm:$0xf] %v617
        %757 = vst [vmem:[#allocation3 + $0xcc] sm:$0xf] %v621
        %758 = vst [vmem:[#allocation3 + $0x130] sm:$0xf] %v624
        %759 = vst [vmem:[#allocation3 + $0x194] sm:$0xf] %v628
        %760 = vst [vmem:[#allocation3 + $0x1f8] sm:$0xf] %v631
        %761 = vst [vmem:[#allocation3 + $0x25c] sm:$0xf] %v635
        %762 = vst [vmem:[#allocation3 + $0x2c0] sm:$0xf] %v638
        %763 = vst [vmem:[#allocation3 + $0x324] sm:$0xf] %v642
        %764 = vst [vmem:[#allocation3 + $0x388] sm:$0xf] %v645
        %765 = vst [vmem:[#allocation3 + $0x3ec] sm:$0xf] %v649
        %766 = vst [vmem:[#allocation3 + $0x450] sm:$0xf] %v652
        %767 = vst [vmem:[#allocation3 + $0x4b4] sm:$0xf] %v656
        %768 = vst [vmem:[#allocation3 + $0x518] sm:$0xf] %v659
        %769 = vst [vmem:[#allocation3 + $0x57c] sm:$0xf] %v663
        %770 = vst [vmem:[#allocation3 + $0x5e0] sm:$0xf] %v666
        %771 = vst [vmem:[#allocation3 + $0x644] sm:$0xf] %v670
        %772 = vst [vmem:[#allocation3 + $0x6a8] sm:$0xf] %v673
        %773 = vst [vmem:[#allocation3 + $0x70c] sm:$0xf] %v677
        %774 = vst [vmem:[#allocation3 + $0x770] sm:$0xf] %v680
        %775 = vst [vmem:[#allocation3 + $0x7d4] sm:$0xf] %v684
        %776 = vst [vmem:[#allocation3 + $0x838] sm:$0xf] %v687
        %777 = vst [vmem:[#allocation3 + $0x89c] sm:$0xf] %v691
        %778 = vst [vmem:[#allocation3 + $0x900] sm:$0xf] %v694
        %779 = vst [vmem:[#allocation3 + $0x964] sm:$0xf] %v698
        %780 = vst [vmem:[#allocation3 + $0x9c8] sm:$0xf] %v701
        %781 = vst [vmem:[#allocation3 + $0xa2c] sm:$0xf] %v705
        %782 = vst [vmem:[#allocation3 + $0xa90] sm:$0xf] %v708
        %783 = vst [vmem:[#allocation3 + $0xaf4] sm:$0xf] %v712
        %784 = vst [vmem:[#allocation3 + $0xb58] sm:$0xf] %v715
        %785 = vst [vmem:[#allocation3 + $0xbbc] sm:$0xf] %v719
        %786 = vst [vmem:[#allocation3 + $0xc20] sm:$0xf] %v722
        %v787 = vld [vmem:[%s447 + $0x4] sm:$0xf]
        %v788 = vld [vmem:[%s447 + $0x8] sm:$0xf]
        %v789 = vld [vmem:[%s447 + $0x14] sm:$0xf]
        %v790 = vld [vmem:[%s447 + $0x18] sm:$0xf]
        %v791 = vld [vmem:[%s447 + $0x24] sm:$0xf]
        %v792 = vld [vmem:[%s447 + $0x28] sm:$0xf]
        %v793 = vld [vmem:[%s447 + $0x34] sm:$0xf]
        %v794 = vld [vmem:[%s447 + $0x38] sm:$0xf]
        %v795 = vld [vmem:[%s447 + $0x44] sm:$0xf]
        %v796 = vld [vmem:[%s447 + $0x48] sm:$0xf]
        %v797 = vld [vmem:[%s447 + $0x54] sm:$0xf]
        %v798 = vld [vmem:[%s447 + $0x58] sm:$0xf]
        %v799 = vld [vmem:[%s447 + $0x64] sm:$0xf]
        %v800 = vld [vmem:[%s447 + $0x68] sm:$0xf]
        %v801 = vld [vmem:[%s447 + $0x74] sm:$0xf]
        %v802 = vld [vmem:[%s447 + $0x78] sm:$0xf]
        %v803 = vld [vmem:[%s447 + $0x84] sm:$0xf]
        %v804 = vld [vmem:[%s447 + $0x88] sm:$0xf]
        %v805 = vld [vmem:[%s447 + $0x94] sm:$0xf]
        %v806 = vld [vmem:[%s447 + $0x98] sm:$0xf]
        %v807 = vld [vmem:[%s447 + $0xa4] sm:$0xf]
        %v808 = vld [vmem:[%s447 + $0xa8] sm:$0xf]
        %v809 = vld [vmem:[%s447 + $0xb4] sm:$0xf]
        %v810 = vld [vmem:[%s447 + $0xb8] sm:$0xf]
        %v811 = vld [vmem:[%s447 + $0xc4] sm:$0xf]
        %v812 = vld [vmem:[%s447 + $0xc8] sm:$0xf]
        %v813 = vld [vmem:[%s447 + $0xd4] sm:$0xf]
        %v814 = vld [vmem:[%s447 + $0xd8] sm:$0xf]
        %v815 = vld [vmem:[%s447 + $0xe4] sm:$0xf]
        %v816 = vld [vmem:[%s447 + $0xe8] sm:$0xf]
        %v817 = vld [vmem:[%s447 + $0xf4] sm:$0xf]
        %v818 = vld [vmem:[%s447 + $0xf8] sm:$0xf]
        %819 = vst [vmem:[#allocation3 + $0x8] sm:$0xf] %v787
        %820 = vst [vmem:[#allocation3 + $0x6c] sm:$0xf] %v788
        %821 = vst [vmem:[#allocation3 + $0xd0] sm:$0xf] %v789
        %822 = vst [vmem:[#allocation3 + $0x134] sm:$0xf] %v790
        %823 = vst [vmem:[#allocation3 + $0x198] sm:$0xf] %v791
        %824 = vst [vmem:[#allocation3 + $0x1fc] sm:$0xf] %v792
        %825 = vst [vmem:[#allocation3 + $0x260] sm:$0xf] %v793
        %826 = vst [vmem:[#allocation3 + $0x2c4] sm:$0xf] %v794
        %827 = vst [vmem:[#allocation3 + $0x328] sm:$0xf] %v795
        %828 = vst [vmem:[#allocation3 + $0x38c] sm:$0xf] %v796
        %829 = vst [vmem:[#allocation3 + $0x3f0] sm:$0xf] %v797
        %830 = vst [vmem:[#allocation3 + $0x454] sm:$0xf] %v798
        %831 = vst [vmem:[#allocation3 + $0x4b8] sm:$0xf] %v799
        %832 = vst [vmem:[#allocation3 + $0x51c] sm:$0xf] %v800
        %833 = vst [vmem:[#allocation3 + $0x580] sm:$0xf] %v801
        %834 = vst [vmem:[#allocation3 + $0x5e4] sm:$0xf] %v802
        %835 = vst [vmem:[#allocation3 + $0x648] sm:$0xf] %v803
        %836 = vst [vmem:[#allocation3 + $0x6ac] sm:$0xf] %v804
        %837 = vst [vmem:[#allocation3 + $0x710] sm:$0xf] %v805
        %838 = vst [vmem:[#allocation3 + $0x774] sm:$0xf] %v806
        %839 = vst [vmem:[#allocation3 + $0x7d8] sm:$0xf] %v807
        %840 = vst [vmem:[#allocation3 + $0x83c] sm:$0xf] %v808
        %841 = vst [vmem:[#allocation3 + $0x8a0] sm:$0xf] %v809
        %842 = vst [vmem:[#allocation3 + $0x904] sm:$0xf] %v810
        %843 = vst [vmem:[#allocation3 + $0x968] sm:$0xf] %v811
        %844 = vst [vmem:[#allocation3 + $0x9cc] sm:$0xf] %v812
        %845 = vst [vmem:[#allocation3 + $0xa30] sm:$0xf] %v813
        %846 = vst [vmem:[#allocation3 + $0xa94] sm:$0xf] %v814
        %847 = vst [vmem:[#allocation3 + $0xaf8] sm:$0xf] %v815
        %848 = vst [vmem:[#allocation3 + $0xb5c] sm:$0xf] %v816
        %849 = vst [vmem:[#allocation3 + $0xbc0] sm:$0xf] %v817
        %850 = vst [vmem:[#allocation3 + $0xc24] sm:$0xf] %v818
        %v851 = vld [vmem:[%s447 + $0x4] sm:$0xc]
        %v852 = vld [vmem:[%s447 + $0x8] sm:$0xf]
        %v853 = vld [vmem:[%s447 + $0xc] sm:$0x3]
        %v854 = vld [vmem:[%s447 + $0x14] sm:$0xc]
        %v855 = vld [vmem:[%s447 + $0x18] sm:$0xf]
        %v856 = vld [vmem:[%s447 + $0x1c] sm:$0x3]
        %v857 = vld [vmem:[%s447 + $0x24] sm:$0xc]
        %v858 = vld [vmem:[%s447 + $0x28] sm:$0xf]
        %v859 = vld [vmem:[%s447 + $0x2c] sm:$0x3]
        %v860 = vld [vmem:[%s447 + $0x34] sm:$0xc]
        %v861 = vld [vmem:[%s447 + $0x38] sm:$0xf]
        %v862 = vld [vmem:[%s447 + $0x3c] sm:$0x3]
        %v863 = vld [vmem:[%s447 + $0x44] sm:$0xc]
        %v864 = vld [vmem:[%s447 + $0x48] sm:$0xf]
        %v865 = vld [vmem:[%s447 + $0x4c] sm:$0x3]
        %v866 = vld [vmem:[%s447 + $0x54] sm:$0xc]
        %v867 = vld [vmem:[%s447 + $0x58] sm:$0xf]
        %v868 = vld [vmem:[%s447 + $0x5c] sm:$0x3]
        %v869 = vld [vmem:[%s447 + $0x64] sm:$0xc]
        %v870 = vld [vmem:[%s447 + $0x68] sm:$0xf]
        %v871 = vld [vmem:[%s447 + $0x6c] sm:$0x3]
        %v872 = vld [vmem:[%s447 + $0x74] sm:$0xc]
        %v873 = vld [vmem:[%s447 + $0x78] sm:$0xf]
        %v874 = vld [vmem:[%s447 + $0x7c] sm:$0x3]
        %v875 = vld [vmem:[%s447 + $0x84] sm:$0xc]
        %v876 = vld [vmem:[%s447 + $0x88] sm:$0xf]
        %v877 = vld [vmem:[%s447 + $0x8c] sm:$0x3]
        %v878 = vld [vmem:[%s447 + $0x94] sm:$0xc]
        %v879 = vld [vmem:[%s447 + $0x98] sm:$0xf]
        %v880 = vld [vmem:[%s447 + $0x9c] sm:$0x3]
        %v881 = vld [vmem:[%s447 + $0xa4] sm:$0xc]
        %v882 = vld [vmem:[%s447 + $0xa8] sm:$0xf]
        %v883 = vld [vmem:[%s447 + $0xac] sm:$0x3]
        %v884 = vld [vmem:[%s447 + $0xb4] sm:$0xc]
        %v885 = vld [vmem:[%s447 + $0xb8] sm:$0xf]
        %v886 = vld [vmem:[%s447 + $0xbc] sm:$0x3]
        %v887 = vld [vmem:[%s447 + $0xc4] sm:$0xc]
        %v888 = vld [vmem:[%s447 + $0xc8] sm:$0xf]
        %v889 = vld [vmem:[%s447 + $0xcc] sm:$0x3]
        %v890 = vld [vmem:[%s447 + $0xd4] sm:$0xc]
        %v891 = vld [vmem:[%s447 + $0xd8] sm:$0xf]
        %v892 = vld [vmem:[%s447 + $0xdc] sm:$0x3]
        %v893 = vld [vmem:[%s447 + $0xe4] sm:$0xc]
        %v894 = vld [vmem:[%s447 + $0xe8] sm:$0xf]
        %v895 = vld [vmem:[%s447 + $0xec] sm:$0x3]
        %v896 = vld [vmem:[%s447 + $0xf4] sm:$0xc]
        %v897 = vld [vmem:[%s447 + $0xf8] sm:$0xf]
        %v898 = vld [vmem:[%s447 + $0xfc] sm:$0x3]
        %v947 = vrot.slane %v851, 6
        %v948 = vrot.slane %v947, 4
        %v949 = vrot.slane %v852, 6
        %v950 = vsel %vm610, %v948, %v949
        %v951 = vrot.slane %v949, 4
        %v952 = vrot.slane %v853, 6
        %v953 = vsel %vm610, %v951, %v952
        %v954 = vrot.slane %v854, 6
        %v955 = vrot.slane %v954, 4
        %v956 = vrot.slane %v855, 6
        %v957 = vsel %vm610, %v955, %v956
        %v958 = vrot.slane %v956, 4
        %v959 = vrot.slane %v856, 6
        %v960 = vsel %vm610, %v958, %v959
        %v961 = vrot.slane %v857, 6
        %v962 = vrot.slane %v961, 4
        %v963 = vrot.slane %v858, 6
        %v964 = vsel %vm610, %v962, %v963
        %v965 = vrot.slane %v963, 4
        %v966 = vrot.slane %v859, 6
        %v967 = vsel %vm610, %v965, %v966
        %v968 = vrot.slane %v860, 6
        %v969 = vrot.slane %v968, 4
        %v970 = vrot.slane %v861, 6
        %v971 = vsel %vm610, %v969, %v970
        %v972 = vrot.slane %v970, 4
        %v973 = vrot.slane %v862, 6
        %v974 = vsel %vm610, %v972, %v973
        %v975 = vrot.slane %v863, 6
        %v976 = vrot.slane %v975, 4
        %v977 = vrot.slane %v864, 6
        %v978 = vsel %vm610, %v976, %v977
        %v979 = vrot.slane %v977, 4
        %v980 = vrot.slane %v865, 6
        %v981 = vsel %vm610, %v979, %v980
        %v982 = vrot.slane %v866, 6
        %v983 = vrot.slane %v982, 4
        %v984 = vrot.slane %v867, 6
        %v985 = vsel %vm610, %v983, %v984
        %v986 = vrot.slane %v984, 4
        %v987 = vrot.slane %v868, 6
        %v988 = vsel %vm610, %v986, %v987
        %v989 = vrot.slane %v869, 6
        %v990 = vrot.slane %v989, 4
        %v991 = vrot.slane %v870, 6
        %v992 = vsel %vm610, %v990, %v991
        %v993 = vrot.slane %v991, 4
        %v994 = vrot.slane %v871, 6
        %v995 = vsel %vm610, %v993, %v994
        %v996 = vrot.slane %v872, 6
        %v997 = vrot.slane %v996, 4
        %v998 = vrot.slane %v873, 6
        %v999 = vsel %vm610, %v997, %v998
        %v1000 = vrot.slane %v998, 4
        %v1001 = vrot.slane %v874, 6
        %v1002 = vsel %vm610, %v1000, %v1001
        %v1003 = vrot.slane %v875, 6
        %v1004 = vrot.slane %v1003, 4
        %v1005 = vrot.slane %v876, 6
        %v1006 = vsel %vm610, %v1004, %v1005
        %v1007 = vrot.slane %v1005, 4
        %v1008 = vrot.slane %v877, 6
        %v1009 = vsel %vm610, %v1007, %v1008
        %v1010 = vrot.slane %v878, 6
        %v1011 = vrot.slane %v1010, 4
        %v1012 = vrot.slane %v879, 6
        %v1013 = vsel %vm610, %v1011, %v1012
        %v1014 = vrot.slane %v1012, 4
        %v1015 = vrot.slane %v880, 6
        %v1016 = vsel %vm610, %v1014, %v1015
        %v1017 = vrot.slane %v881, 6
        %v1018 = vrot.slane %v1017, 4
        %v1019 = vrot.slane %v882, 6
        %v1020 = vsel %vm610, %v1018, %v1019
        %v1021 = vrot.slane %v1019, 4
        %v1022 = vrot.slane %v883, 6
        %v1023 = vsel %vm610, %v1021, %v1022
        %v1024 = vrot.slane %v884, 6
        %v1025 = vrot.slane %v1024, 4
        %v1026 = vrot.slane %v885, 6
        %v1027 = vsel %vm610, %v1025, %v1026
        %v1028 = vrot.slane %v1026, 4
        %v1029 = vrot.slane %v886, 6
        %v1030 = vsel %vm610, %v1028, %v1029
        %v1031 = vrot.slane %v887, 6
        %v1032 = vrot.slane %v1031, 4
        %v1033 = vrot.slane %v888, 6
        %v1034 = vsel %vm610, %v1032, %v1033
        %v1035 = vrot.slane %v1033, 4
        %v1036 = vrot.slane %v889, 6
        %v1037 = vsel %vm610, %v1035, %v1036
        %v1038 = vrot.slane %v890, 6
        %v1039 = vrot.slane %v1038, 4
        %v1040 = vrot.slane %v891, 6
        %v1041 = vsel %vm610, %v1039, %v1040
        %v1042 = vrot.slane %v1040, 4
        %v1043 = vrot.slane %v892, 6
        %v1044 = vsel %vm610, %v1042, %v1043
        %v1045 = vrot.slane %v893, 6
        %v1046 = vrot.slane %v1045, 4
        %v1047 = vrot.slane %v894, 6
        %v1048 = vsel %vm610, %v1046, %v1047
        %v1049 = vrot.slane %v1047, 4
        %v1050 = vrot.slane %v895, 6
        %v1051 = vsel %vm610, %v1049, %v1050
        %v1052 = vrot.slane %v896, 6
        %v1053 = vrot.slane %v1052, 4
        %v1054 = vrot.slane %v897, 6
        %v1055 = vsel %vm610, %v1053, %v1054
        %v1056 = vrot.slane %v1054, 4
        %v1057 = vrot.slane %v898, 6
        %v1058 = vsel %vm610, %v1056, %v1057
        %1091 = vst [vmem:[#allocation3 + $0xc] sm:$0xf] %v950
        %1092 = vst [vmem:[#allocation3 + $0x70] sm:$0xf] %v953
        %1093 = vst [vmem:[#allocation3 + $0xd4] sm:$0xf] %v957
        %1094 = vst [vmem:[#allocation3 + $0x138] sm:$0xf] %v960
        %1095 = vst [vmem:[#allocation3 + $0x19c] sm:$0xf] %v964
        %1096 = vst [vmem:[#allocation3 + $0x200] sm:$0xf] %v967
        %1097 = vst [vmem:[#allocation3 + $0x264] sm:$0xf] %v971
        %1098 = vst [vmem:[#allocation3 + $0x2c8] sm:$0xf] %v974
        %1099 = vst [vmem:[#allocation3 + $0x32c] sm:$0xf] %v978
        %1100 = vst [vmem:[#allocation3 + $0x390] sm:$0xf] %v981
        %1101 = vst [vmem:[#allocation3 + $0x3f4] sm:$0xf] %v985
        %1102 = vst [vmem:[#allocation3 + $0x458] sm:$0xf] %v988
        %1103 = vst [vmem:[#allocation3 + $0x4bc] sm:$0xf] %v992
        %1104 = vst [vmem:[#allocation3 + $0x520] sm:$0xf] %v995
        %1105 = vst [vmem:[#allocation3 + $0x584] sm:$0xf] %v999
        %1106 = vst [vmem:[#allocation3 + $0x5e8] sm:$0xf] %v1002
        %1107 = vst [vmem:[#allocation3 + $0x64c] sm:$0xf] %v1006
        %1108 = vst [vmem:[#allocation3 + $0x6b0] sm:$0xf] %v1009
        %1109 = vst [vmem:[#allocation3 + $0x714] sm:$0xf] %v1013
        %1110 = vst [vmem:[#allocation3 + $0x778] sm:$0xf] %v1016
        %1111 = vst [vmem:[#allocation3 + $0x7dc] sm:$0xf] %v1020
        %1112 = vst [vmem:[#allocation3 + $0x840] sm:$0xf] %v1023
        %1113 = vst [vmem:[#allocation3 + $0x8a4] sm:$0xf] %v1027
        %1114 = vst [vmem:[#allocation3 + $0x908] sm:$0xf] %v1030
        %1115 = vst [vmem:[#allocation3 + $0x96c] sm:$0xf] %v1034
        %1116 = vst [vmem:[#allocation3 + $0x9d0] sm:$0xf] %v1037
        %1117 = vst [vmem:[#allocation3 + $0xa34] sm:$0xf] %v1041
        %1118 = vst [vmem:[#allocation3 + $0xa98] sm:$0xf] %v1044
        %1119 = vst [vmem:[#allocation3 + $0xafc] sm:$0xf] %v1048
        %1120 = vst [vmem:[#allocation3 + $0xb60] sm:$0xf] %v1051
        %1121 = vst [vmem:[#allocation3 + $0xbc4] sm:$0xf] %v1055
        %1122 = vst [vmem:[#allocation3 + $0xc28] sm:$0xf] %v1058
        %v1123 = vld [vmem:[%s447 + $0x8] sm:$0xf]
        %v1124 = vld [vmem:[%s447 + $0xc] sm:$0xf]
        %v1125 = vld [vmem:[%s447 + $0x18] sm:$0xf]
        %v1126 = vld [vmem:[%s447 + $0x1c] sm:$0xf]
        %v1127 = vld [vmem:[%s447 + $0x28] sm:$0xf]
        %v1128 = vld [vmem:[%s447 + $0x2c] sm:$0xf]
        %v1129 = vld [vmem:[%s447 + $0x38] sm:$0xf]
        %v1130 = vld [vmem:[%s447 + $0x3c] sm:$0xf]
        %v1131 = vld [vmem:[%s447 + $0x48] sm:$0xf]
        %v1132 = vld [vmem:[%s447 + $0x4c] sm:$0xf]
        %v1133 = vld [vmem:[%s447 + $0x58] sm:$0xf]
        %v1134 = vld [vmem:[%s447 + $0x5c] sm:$0xf]
        %v1135 = vld [vmem:[%s447 + $0x68] sm:$0xf]
        %v1136 = vld [vmem:[%s447 + $0x6c] sm:$0xf]
        %v1137 = vld [vmem:[%s447 + $0x78] sm:$0xf]
        %v1138 = vld [vmem:[%s447 + $0x7c] sm:$0xf]
        %v1139 = vld [vmem:[%s447 + $0x88] sm:$0xf]
        %v1140 = vld [vmem:[%s447 + $0x8c] sm:$0xf]
        %v1141 = vld [vmem:[%s447 + $0x98] sm:$0xf]
        %v1142 = vld [vmem:[%s447 + $0x9c] sm:$0xf]
        %v1143 = vld [vmem:[%s447 + $0xa8] sm:$0xf]
        %v1144 = vld [vmem:[%s447 + $0xac] sm:$0xf]
        %v1145 = vld [vmem:[%s447 + $0xb8] sm:$0xf]
        %v1146 = vld [vmem:[%s447 + $0xbc] sm:$0xf]
        %v1147 = vld [vmem:[%s447 + $0xc8] sm:$0xf]
        %v1148 = vld [vmem:[%s447 + $0xcc] sm:$0xf]
        %v1149 = vld [vmem:[%s447 + $0xd8] sm:$0xf]
        %v1150 = vld [vmem:[%s447 + $0xdc] sm:$0xf]
        %v1151 = vld [vmem:[%s447 + $0xe8] sm:$0xf]
        %v1152 = vld [vmem:[%s447 + $0xec] sm:$0xf]
        %v1153 = vld [vmem:[%s447 + $0xf8] sm:$0xf]
        %v1154 = vld [vmem:[%s447 + $0xfc] sm:$0xf]
        %1155 = vst [vmem:[#allocation3 + $0x10] sm:$0xf] %v1123
        %1156 = vst [vmem:[#allocation3 + $0x74] sm:$0xf] %v1124
        %1157 = vst [vmem:[#allocation3 + $0xd8] sm:$0xf] %v1125
        %1158 = vst [vmem:[#allocation3 + $0x13c] sm:$0xf] %v1126
        %1159 = vst [vmem:[#allocation3 + $0x1a0] sm:$0xf] %v1127
        %1160 = vst [vmem:[#allocation3 + $0x204] sm:$0xf] %v1128
        %1161 = vst [vmem:[#allocation3 + $0x268] sm:$0xf] %v1129
        %1162 = vst [vmem:[#allocation3 + $0x2cc] sm:$0xf] %v1130
        %1163 = vst [vmem:[#allocation3 + $0x330] sm:$0xf] %v1131
        %1164 = vst [vmem:[#allocation3 + $0x394] sm:$0xf] %v1132
        %1165 = vst [vmem:[#allocation3 + $0x3f8] sm:$0xf] %v1133
        %1166 = vst [vmem:[#allocation3 + $0x45c] sm:$0xf] %v1134
        %1167 = vst [vmem:[#allocation3 + $0x4c0] sm:$0xf] %v1135
        %1168 = vst [vmem:[#allocation3 + $0x524] sm:$0xf] %v1136
        %1169 = vst [vmem:[#allocation3 + $0x588] sm:$0xf] %v1137
        %1170 = vst [vmem:[#allocation3 + $0x5ec] sm:$0xf] %v1138
        %1171 = vst [vmem:[#allocation3 + $0x650] sm:$0xf] %v1139
        %1172 = vst [vmem:[#allocation3 + $0x6b4] sm:$0xf] %v1140
        %1173 = vst [vmem:[#allocation3 + $0x718] sm:$0xf] %v1141
        %1174 = vst [vmem:[#allocation3 + $0x77c] sm:$0xf] %v1142
        %1175 = vst [vmem:[#allocation3 + $0x7e0] sm:$0xf] %v1143
        %1176 = vst [vmem:[#allocation3 + $0x844] sm:$0xf] %v1144
        %1177 = vst [vmem:[#allocation3 + $0x8a8] sm:$0xf] %v1145
        %1178 = vst [vmem:[#allocation3 + $0x90c] sm:$0xf] %v1146
        %1179 = vst [vmem:[#allocation3 + $0x970] sm:$0xf] %v1147
        %1180 = vst [vmem:[#allocation3 + $0x9d4] sm:$0xf] %v1148
        %1181 = vst [vmem:[#allocation3 + $0xa38] sm:$0xf] %v1149
        %1182 = vst [vmem:[#allocation3 + $0xa9c] sm:$0xf] %v1150
        %1183 = vst [vmem:[#allocation3 + $0xb00] sm:$0xf] %v1151
        %1184 = vst [vmem:[#allocation3 + $0xb64] sm:$0xf] %v1152
        %1185 = vst [vmem:[#allocation3 + $0xbc8] sm:$0xf] %v1153
        %1186 = vst [vmem:[#allocation3 + $0xc2c] sm:$0xf] %v1154
        %s1187 = sadd.s32 %s444, 4
        %s1188 = smul.u32 %s1187, 4
        %s1189 = smul.addr %s1188, 4
        %s1190 = scalar_lea.vmem [#allocation2], %s1189
        %v1191 = vld [vmem:[%s1190] sm:$0xf]
        %v1192 = vld [vmem:[%s1190 + $0x4] sm:$0xf]
        %v1193 = vld [vmem:[%s1190 + $0x10] sm:$0xf]
        %v1194 = vld [vmem:[%s1190 + $0x14] sm:$0xf]
        %v1195 = vld [vmem:[%s1190 + $0x20] sm:$0xf]
        %v1196 = vld [vmem:[%s1190 + $0x24] sm:$0xf]
        %v1197 = vld [vmem:[%s1190 + $0x30] sm:$0xf]
        %v1198 = vld [vmem:[%s1190 + $0x34] sm:$0xf]
        %v1199 = vld [vmem:[%s1190 + $0x40] sm:$0xf]
        %v1200 = vld [vmem:[%s1190 + $0x44] sm:$0xf]
        %v1201 = vld [vmem:[%s1190 + $0x50] sm:$0xf]
        %v1202 = vld [vmem:[%s1190 + $0x54] sm:$0xf]
        %v1203 = vld [vmem:[%s1190 + $0x60] sm:$0xf]
        %v1204 = vld [vmem:[%s1190 + $0x64] sm:$0xf]
        %v1205 = vld [vmem:[%s1190 + $0x70] sm:$0xf]
        %v1206 = vld [vmem:[%s1190 + $0x74] sm:$0xf]
        %v1207 = vld [vmem:[%s1190 + $0x80] sm:$0xf]
        %v1208 = vld [vmem:[%s1190 + $0x84] sm:$0xf]
        %v1209 = vld [vmem:[%s1190 + $0x90] sm:$0xf]
        %v1210 = vld [vmem:[%s1190 + $0x94] sm:$0xf]
        %v1211 = vld [vmem:[%s1190 + $0xa0] sm:$0xf]
        %v1212 = vld [vmem:[%s1190 + $0xa4] sm:$0xf]
        %v1213 = vld [vmem:[%s1190 + $0xb0] sm:$0xf]
        %v1214 = vld [vmem:[%s1190 + $0xb4] sm:$0xf]
        %v1215 = vld [vmem:[%s1190 + $0xc0] sm:$0xf]
        %v1216 = vld [vmem:[%s1190 + $0xc4] sm:$0xf]
        %v1217 = vld [vmem:[%s1190 + $0xd0] sm:$0xf]
        %v1218 = vld [vmem:[%s1190 + $0xd4] sm:$0xf]
        %v1219 = vld [vmem:[%s1190 + $0xe0] sm:$0xf]
        %v1220 = vld [vmem:[%s1190 + $0xe4] sm:$0xf]
        %v1221 = vld [vmem:[%s1190 + $0xf0] sm:$0xf]
        %v1222 = vld [vmem:[%s1190 + $0xf4] sm:$0xf]
        %1223 = vst [vmem:[#allocation3 + $0x14] sm:$0xf] %v1191
        %1224 = vst [vmem:[#allocation3 + $0x78] sm:$0xf] %v1192
        %1225 = vst [vmem:[#allocation3 + $0xdc] sm:$0xf] %v1193
        %1226 = vst [vmem:[#allocation3 + $0x140] sm:$0xf] %v1194
        %1227 = vst [vmem:[#allocation3 + $0x1a4] sm:$0xf] %v1195
        %1228 = vst [vmem:[#allocation3 + $0x208] sm:$0xf] %v1196
        %1229 = vst [vmem:[#allocation3 + $0x26c] sm:$0xf] %v1197
        %1230 = vst [vmem:[#allocation3 + $0x2d0] sm:$0xf] %v1198
        %1231 = vst [vmem:[#allocation3 + $0x334] sm:$0xf] %v1199
        %1232 = vst [vmem:[#allocation3 + $0x398] sm:$0xf] %v1200
        %1233 = vst [vmem:[#allocation3 + $0x3fc] sm:$0xf] %v1201
        %1234 = vst [vmem:[#allocation3 + $0x460] sm:$0xf] %v1202
        %1235 = vst [vmem:[#allocation3 + $0x4c4] sm:$0xf] %v1203
        %1236 = vst [vmem:[#allocation3 + $0x528] sm:$0xf] %v1204
        %1237 = vst [vmem:[#allocation3 + $0x58c] sm:$0xf] %v1205
        %1238 = vst [vmem:[#allocation3 + $0x5f0] sm:$0xf] %v1206
        %1239 = vst [vmem:[#allocation3 + $0x654] sm:$0xf] %v1207
        %1240 = vst [vmem:[#allocation3 + $0x6b8] sm:$0xf] %v1208
        %1241 = vst [vmem:[#allocation3 + $0x71c] sm:$0xf] %v1209
        %1242 = vst [vmem:[#allocation3 + $0x780] sm:$0xf] %v1210
        %1243 = vst [vmem:[#allocation3 + $0x7e4] sm:$0xf] %v1211
        %1244 = vst [vmem:[#allocation3 + $0x848] sm:$0xf] %v1212
        %1245 = vst [vmem:[#allocation3 + $0x8ac] sm:$0xf] %v1213
        %1246 = vst [vmem:[#allocation3 + $0x910] sm:$0xf] %v1214
        %1247 = vst [vmem:[#allocation3 + $0x974] sm:$0xf] %v1215
        %1248 = vst [vmem:[#allocation3 + $0x9d8] sm:$0xf] %v1216
        %1249 = vst [vmem:[#allocation3 + $0xa3c] sm:$0xf] %v1217
        %1250 = vst [vmem:[#allocation3 + $0xaa0] sm:$0xf] %v1218
        %1251 = vst [vmem:[#allocation3 + $0xb04] sm:$0xf] %v1219
        %1252 = vst [vmem:[#allocation3 + $0xb68] sm:$0xf] %v1220
        %1253 = vst [vmem:[#allocation3 + $0xbcc] sm:$0xf] %v1221
        %1254 = vst [vmem:[#allocation3 + $0xc30] sm:$0xf] %v1222
        %v1255 = vld [vmem:[%s1190] sm:$0xc]
        %v1256 = vld [vmem:[%s1190 + $0x4] sm:$0xf]
        %v1257 = vld [vmem:[%s1190 + $0x8] sm:$0x3]
        %v1258 = vld [vmem:[%s1190 + $0x10] sm:$0xc]
        %v1259 = vld [vmem:[%s1190 + $0x14] sm:$0xf]
        %v1260 = vld [vmem:[%s1190 + $0x18] sm:$0x3]
        %v1261 = vld [vmem:[%s1190 + $0x20] sm:$0xc]
        %v1262 = vld [vmem:[%s1190 + $0x24] sm:$0xf]
        %v1263 = vld [vmem:[%s1190 + $0x28] sm:$0x3]
        %v1264 = vld [vmem:[%s1190 + $0x30] sm:$0xc]
        %v1265 = vld [vmem:[%s1190 + $0x34] sm:$0xf]
        %v1266 = vld [vmem:[%s1190 + $0x38] sm:$0x3]
        %v1267 = vld [vmem:[%s1190 + $0x40] sm:$0xc]
        %v1268 = vld [vmem:[%s1190 + $0x44] sm:$0xf]
        %v1269 = vld [vmem:[%s1190 + $0x48] sm:$0x3]
        %v1270 = vld [vmem:[%s1190 + $0x50] sm:$0xc]
        %v1271 = vld [vmem:[%s1190 + $0x54] sm:$0xf]
        %v1272 = vld [vmem:[%s1190 + $0x58] sm:$0x3]
        %v1273 = vld [vmem:[%s1190 + $0x60] sm:$0xc]
        %v1274 = vld [vmem:[%s1190 + $0x64] sm:$0xf]
        %v1275 = vld [vmem:[%s1190 + $0x68] sm:$0x3]
        %v1276 = vld [vmem:[%s1190 + $0x70] sm:$0xc]
        %v1277 = vld [vmem:[%s1190 + $0x74] sm:$0xf]
        %v1278 = vld [vmem:[%s1190 + $0x78] sm:$0x3]
        %v1279 = vld [vmem:[%s1190 + $0x80] sm:$0xc]
        %v1280 = vld [vmem:[%s1190 + $0x84] sm:$0xf]
        %v1281 = vld [vmem:[%s1190 + $0x88] sm:$0x3]
        %v1282 = vld [vmem:[%s1190 + $0x90] sm:$0xc]
        %v1283 = vld [vmem:[%s1190 + $0x94] sm:$0xf]
        %v1284 = vld [vmem:[%s1190 + $0x98] sm:$0x3]
        %v1285 = vld [vmem:[%s1190 + $0xa0] sm:$0xc]
        %v1286 = vld [vmem:[%s1190 + $0xa4] sm:$0xf]
        %v1287 = vld [vmem:[%s1190 + $0xa8] sm:$0x3]
        %v1288 = vld [vmem:[%s1190 + $0xb0] sm:$0xc]
        %v1289 = vld [vmem:[%s1190 + $0xb4] sm:$0xf]
        %v1290 = vld [vmem:[%s1190 + $0xb8] sm:$0x3]
        %v1291 = vld [vmem:[%s1190 + $0xc0] sm:$0xc]
        %v1292 = vld [vmem:[%s1190 + $0xc4] sm:$0xf]
        %v1293 = vld [vmem:[%s1190 + $0xc8] sm:$0x3]
        %v1294 = vld [vmem:[%s1190 + $0xd0] sm:$0xc]
        %v1295 = vld [vmem:[%s1190 + $0xd4] sm:$0xf]
        %v1296 = vld [vmem:[%s1190 + $0xd8] sm:$0x3]
        %v1297 = vld [vmem:[%s1190 + $0xe0] sm:$0xc]
        %v1298 = vld [vmem:[%s1190 + $0xe4] sm:$0xf]
        %v1299 = vld [vmem:[%s1190 + $0xe8] sm:$0x3]
        %v1300 = vld [vmem:[%s1190 + $0xf0] sm:$0xc]
        %v1301 = vld [vmem:[%s1190 + $0xf4] sm:$0xf]
        %v1302 = vld [vmem:[%s1190 + $0xf8] sm:$0x3]
        %v1351 = vrot.slane %v1255, 6
        %v1352 = vrot.slane %v1351, 4
        %v1353 = vrot.slane %v1256, 6
        %v1354 = vsel %vm610, %v1352, %v1353
        %v1355 = vrot.slane %v1353, 4
        %v1356 = vrot.slane %v1257, 6
        %v1357 = vsel %vm610, %v1355, %v1356
        %v1358 = vrot.slane %v1258, 6
        %v1359 = vrot.slane %v1358, 4
        %v1360 = vrot.slane %v1259, 6
        %v1361 = vsel %vm610, %v1359, %v1360
        %v1362 = vrot.slane %v1360, 4
        %v1363 = vrot.slane %v1260, 6
        %v1364 = vsel %vm610, %v1362, %v1363
        %v1365 = vrot.slane %v1261, 6
        %v1366 = vrot.slane %v1365, 4
        %v1367 = vrot.slane %v1262, 6
        %v1368 = vsel %vm610, %v1366, %v1367
        %v1369 = vrot.slane %v1367, 4
        %v1370 = vrot.slane %v1263, 6
        %v1371 = vsel %vm610, %v1369, %v1370
        %v1372 = vrot.slane %v1264, 6
        %v1373 = vrot.slane %v1372, 4
        %v1374 = vrot.slane %v1265, 6
        %v1375 = vsel %vm610, %v1373, %v1374
        %v1376 = vrot.slane %v1374, 4
        %v1377 = vrot.slane %v1266, 6
        %v1378 = vsel %vm610, %v1376, %v1377
        %v1379 = vrot.slane %v1267, 6
        %v1380 = vrot.slane %v1379, 4
        %v1381 = vrot.slane %v1268, 6
        %v1382 = vsel %vm610, %v1380, %v1381
        %v1383 = vrot.slane %v1381, 4
        %v1384 = vrot.slane %v1269, 6
        %v1385 = vsel %vm610, %v1383, %v1384
        %v1386 = vrot.slane %v1270, 6
        %v1387 = vrot.slane %v1386, 4
        %v1388 = vrot.slane %v1271, 6
        %v1389 = vsel %vm610, %v1387, %v1388
        %v1390 = vrot.slane %v1388, 4
        %v1391 = vrot.slane %v1272, 6
        %v1392 = vsel %vm610, %v1390, %v1391
        %v1393 = vrot.slane %v1273, 6
        %v1394 = vrot.slane %v1393, 4
        %v1395 = vrot.slane %v1274, 6
        %v1396 = vsel %vm610, %v1394, %v1395
        %v1397 = vrot.slane %v1395, 4
        %v1398 = vrot.slane %v1275, 6
        %v1399 = vsel %vm610, %v1397, %v1398
        %v1400 = vrot.slane %v1276, 6
        %v1401 = vrot.slane %v1400, 4
        %v1402 = vrot.slane %v1277, 6
        %v1403 = vsel %vm610, %v1401, %v1402
        %v1404 = vrot.slane %v1402, 4
        %v1405 = vrot.slane %v1278, 6
        %v1406 = vsel %vm610, %v1404, %v1405
        %v1407 = vrot.slane %v1279, 6
        %v1408 = vrot.slane %v1407, 4
        %v1409 = vrot.slane %v1280, 6
        %v1410 = vsel %vm610, %v1408, %v1409
        %v1411 = vrot.slane %v1409, 4
        %v1412 = vrot.slane %v1281, 6
        %v1413 = vsel %vm610, %v1411, %v1412
        %v1414 = vrot.slane %v1282, 6
        %v1415 = vrot.slane %v1414, 4
        %v1416 = vrot.slane %v1283, 6
        %v1417 = vsel %vm610, %v1415, %v1416
        %v1418 = vrot.slane %v1416, 4
        %v1419 = vrot.slane %v1284, 6
        %v1420 = vsel %vm610, %v1418, %v1419
        %v1421 = vrot.slane %v1285, 6
        %v1422 = vrot.slane %v1421, 4
        %v1423 = vrot.slane %v1286, 6
        %v1424 = vsel %vm610, %v1422, %v1423
        %v1425 = vrot.slane %v1423, 4
        %v1426 = vrot.slane %v1287, 6
        %v1427 = vsel %vm610, %v1425, %v1426
        %v1428 = vrot.slane %v1288, 6
        %v1429 = vrot.slane %v1428, 4
        %v1430 = vrot.slane %v1289, 6
        %v1431 = vsel %vm610, %v1429, %v1430
        %v1432 = vrot.slane %v1430, 4
        %v1433 = vrot.slane %v1290, 6
        %v1434 = vsel %vm610, %v1432, %v1433
        %v1435 = vrot.slane %v1291, 6
        %v1436 = vrot.slane %v1435, 4
        %v1437 = vrot.slane %v1292, 6
        %v1438 = vsel %vm610, %v1436, %v1437
        %v1439 = vrot.slane %v1437, 4
        %v1440 = vrot.slane %v1293, 6
        %v1441 = vsel %vm610, %v1439, %v1440
        %v1442 = vrot.slane %v1294, 6
        %v1443 = vrot.slane %v1442, 4
        %v1444 = vrot.slane %v1295, 6
        %v1445 = vsel %vm610, %v1443, %v1444
        %v1446 = vrot.slane %v1444, 4
        %v1447 = vrot.slane %v1296, 6
        %v1448 = vsel %vm610, %v1446, %v1447
        %v1449 = vrot.slane %v1297, 6
        %v1450 = vrot.slane %v1449, 4
        %v1451 = vrot.slane %v1298, 6
        %v1452 = vsel %vm610, %v1450, %v1451
        %v1453 = vrot.slane %v1451, 4
        %v1454 = vrot.slane %v1299, 6
        %v1455 = vsel %vm610, %v1453, %v1454
        %v1456 = vrot.slane %v1300, 6
        %v1457 = vrot.slane %v1456, 4
        %v1458 = vrot.slane %v1301, 6
        %v1459 = vsel %vm610, %v1457, %v1458
        %v1460 = vrot.slane %v1458, 4
        %v1461 = vrot.slane %v1302, 6
        %v1462 = vsel %vm610, %v1460, %v1461
        %1495 = vst [vmem:[#allocation3 + $0x18] sm:$0xf] %v1354
        %1496 = vst [vmem:[#allocation3 + $0x7c] sm:$0xf] %v1357
        %1497 = vst [vmem:[#allocation3 + $0xe0] sm:$0xf] %v1361
        %1498 = vst [vmem:[#allocation3 + $0x144] sm:$0xf] %v1364
        %1499 = vst [vmem:[#allocation3 + $0x1a8] sm:$0xf] %v1368
        %1500 = vst [vmem:[#allocation3 + $0x20c] sm:$0xf] %v1371
        %1501 = vst [vmem:[#allocation3 + $0x270] sm:$0xf] %v1375
        %1502 = vst [vmem:[#allocation3 + $0x2d4] sm:$0xf] %v1378
        %1503 = vst [vmem:[#allocation3 + $0x338] sm:$0xf] %v1382
        %1504 = vst [vmem:[#allocation3 + $0x39c] sm:$0xf] %v1385
        %1505 = vst [vmem:[#allocation3 + $0x400] sm:$0xf] %v1389
        %1506 = vst [vmem:[#allocation3 + $0x464] sm:$0xf] %v1392
        %1507 = vst [vmem:[#allocation3 + $0x4c8] sm:$0xf] %v1396
        %1508 = vst [vmem:[#allocation3 + $0x52c] sm:$0xf] %v1399
        %1509 = vst [vmem:[#allocation3 + $0x590] sm:$0xf] %v1403
        %1510 = vst [vmem:[#allocation3 + $0x5f4] sm:$0xf] %v1406
        %1511 = vst [vmem:[#allocation3 + $0x658] sm:$0xf] %v1410
        %1512 = vst [vmem:[#allocation3 + $0x6bc] sm:$0xf] %v1413
        %1513 = vst [vmem:[#allocation3 + $0x720] sm:$0xf] %v1417
        %1514 = vst [vmem:[#allocation3 + $0x784] sm:$0xf] %v1420
        %1515 = vst [vmem:[#allocation3 + $0x7e8] sm:$0xf] %v1424
        %1516 = vst [vmem:[#allocation3 + $0x84c] sm:$0xf] %v1427
        %1517 = vst [vmem:[#allocation3 + $0x8b0] sm:$0xf] %v1431
        %1518 = vst [vmem:[#allocation3 + $0x914] sm:$0xf] %v1434
        %1519 = vst [vmem:[#allocation3 + $0x978] sm:$0xf] %v1438
        %1520 = vst [vmem:[#allocation3 + $0x9dc] sm:$0xf] %v1441
        %1521 = vst [vmem:[#allocation3 + $0xa40] sm:$0xf] %v1445
        %1522 = vst [vmem:[#allocation3 + $0xaa4] sm:$0xf] %v1448
        %1523 = vst [vmem:[#allocation3 + $0xb08] sm:$0xf] %v1452
        %1524 = vst [vmem:[#allocation3 + $0xb6c] sm:$0xf] %v1455
        %1525 = vst [vmem:[#allocation3 + $0xbd0] sm:$0xf] %v1459
        %1526 = vst [vmem:[#allocation3 + $0xc34] sm:$0xf] %v1462
        %v1527 = vld [vmem:[%s1190 + $0x4] sm:$0xf]
        %v1528 = vld [vmem:[%s1190 + $0x8] sm:$0xf]
        %v1529 = vld [vmem:[%s1190 + $0x14] sm:$0xf]
        %v1530 = vld [vmem:[%s1190 + $0x18] sm:$0xf]
        %v1531 = vld [vmem:[%s1190 + $0x24] sm:$0xf]
        %v1532 = vld [vmem:[%s1190 + $0x28] sm:$0xf]
        %v1533 = vld [vmem:[%s1190 + $0x34] sm:$0xf]
        %v1534 = vld [vmem:[%s1190 + $0x38] sm:$0xf]
        %v1535 = vld [vmem:[%s1190 + $0x44] sm:$0xf]
        %v1536 = vld [vmem:[%s1190 + $0x48] sm:$0xf]
        %v1537 = vld [vmem:[%s1190 + $0x54] sm:$0xf]
        %v1538 = vld [vmem:[%s1190 + $0x58] sm:$0xf]
        %v1539 = vld [vmem:[%s1190 + $0x64] sm:$0xf]
        %v1540 = vld [vmem:[%s1190 + $0x68] sm:$0xf]
        %v1541 = vld [vmem:[%s1190 + $0x74] sm:$0xf]
        %v1542 = vld [vmem:[%s1190 + $0x78] sm:$0xf]
        %v1543 = vld [vmem:[%s1190 + $0x84] sm:$0xf]
        %v1544 = vld [vmem:[%s1190 + $0x88] sm:$0xf]
        %v1545 = vld [vmem:[%s1190 + $0x94] sm:$0xf]
        %v1546 = vld [vmem:[%s1190 + $0x98] sm:$0xf]
        %v1547 = vld [vmem:[%s1190 + $0xa4] sm:$0xf]
        %v1548 = vld [vmem:[%s1190 + $0xa8] sm:$0xf]
        %v1549 = vld [vmem:[%s1190 + $0xb4] sm:$0xf]
        %v1550 = vld [vmem:[%s1190 + $0xb8] sm:$0xf]
        %v1551 = vld [vmem:[%s1190 + $0xc4] sm:$0xf]
        %v1552 = vld [vmem:[%s1190 + $0xc8] sm:$0xf]
        %v1553 = vld [vmem:[%s1190 + $0xd4] sm:$0xf]
        %v1554 = vld [vmem:[%s1190 + $0xd8] sm:$0xf]
        %v1555 = vld [vmem:[%s1190 + $0xe4] sm:$0xf]
        %v1556 = vld [vmem:[%s1190 + $0xe8] sm:$0xf]
        %v1557 = vld [vmem:[%s1190 + $0xf4] sm:$0xf]
        %v1558 = vld [vmem:[%s1190 + $0xf8] sm:$0xf]
        %1559 = vst [vmem:[#allocation3 + $0x1c] sm:$0xf] %v1527
        %1560 = vst [vmem:[#allocation3 + $0x80] sm:$0xf] %v1528
        %1561 = vst [vmem:[#allocation3 + $0xe4] sm:$0xf] %v1529
        %1562 = vst [vmem:[#allocation3 + $0x148] sm:$0xf] %v1530
        %1563 = vst [vmem:[#allocation3 + $0x1ac] sm:$0xf] %v1531
        %1564 = vst [vmem:[#allocation3 + $0x210] sm:$0xf] %v1532
        %1565 = vst [vmem:[#allocation3 + $0x274] sm:$0xf] %v1533
        %1566 = vst [vmem:[#allocation3 + $0x2d8] sm:$0xf] %v1534
        %1567 = vst [vmem:[#allocation3 + $0x33c] sm:$0xf] %v1535
        %1568 = vst [vmem:[#allocation3 + $0x3a0] sm:$0xf] %v1536
        %1569 = vst [vmem:[#allocation3 + $0x404] sm:$0xf] %v1537
        %1570 = vst [vmem:[#allocation3 + $0x468] sm:$0xf] %v1538
        %1571 = vst [vmem:[#allocation3 + $0x4cc] sm:$0xf] %v1539
        %1572 = vst [vmem:[#allocation3 + $0x530] sm:$0xf] %v1540
        %1573 = vst [vmem:[#allocation3 + $0x594] sm:$0xf] %v1541
        %1574 = vst [vmem:[#allocation3 + $0x5f8] sm:$0xf] %v1542
        %1575 = vst [vmem:[#allocation3 + $0x65c] sm:$0xf] %v1543
        %1576 = vst [vmem:[#allocation3 + $0x6c0] sm:$0xf] %v1544
        %1577 = vst [vmem:[#allocation3 + $0x724] sm:$0xf] %v1545
        %1578 = vst [vmem:[#allocation3 + $0x788] sm:$0xf] %v1546
        %1579 = vst [vmem:[#allocation3 + $0x7ec] sm:$0xf] %v1547
        %1580 = vst [vmem:[#allocation3 + $0x850] sm:$0xf] %v1548
        %1581 = vst [vmem:[#allocation3 + $0x8b4] sm:$0xf] %v1549
        %1582 = vst [vmem:[#allocation3 + $0x918] sm:$0xf] %v1550
        %1583 = vst [vmem:[#allocation3 + $0x97c] sm:$0xf] %v1551
        %1584 = vst [vmem:[#allocation3 + $0x9e0] sm:$0xf] %v1552
        %1585 = vst [vmem:[#allocation3 + $0xa44] sm:$0xf] %v1553
        %1586 = vst [vmem:[#allocation3 + $0xaa8] sm:$0xf] %v1554
        %1587 = vst [vmem:[#allocation3 + $0xb0c] sm:$0xf] %v1555
        %1588 = vst [vmem:[#allocation3 + $0xb70] sm:$0xf] %v1556
        %1589 = vst [vmem:[#allocation3 + $0xbd4] sm:$0xf] %v1557
        %1590 = vst [vmem:[#allocation3 + $0xc38] sm:$0xf] %v1558
        %v1591 = vld [vmem:[%s1190 + $0x4] sm:$0xc]
        %v1592 = vld [vmem:[%s1190 + $0x8] sm:$0xf]
        %v1593 = vld [vmem:[%s1190 + $0xc] sm:$0x3]
        %v1594 = vld [vmem:[%s1190 + $0x14] sm:$0xc]
        %v1595 = vld [vmem:[%s1190 + $0x18] sm:$0xf]
        %v1596 = vld [vmem:[%s1190 + $0x1c] sm:$0x3]
        %v1597 = vld [vmem:[%s1190 + $0x24] sm:$0xc]
        %v1598 = vld [vmem:[%s1190 + $0x28] sm:$0xf]
        %v1599 = vld [vmem:[%s1190 + $0x2c] sm:$0x3]
        %v1600 = vld [vmem:[%s1190 + $0x34] sm:$0xc]
        %v1601 = vld [vmem:[%s1190 + $0x38] sm:$0xf]
        %v1602 = vld [vmem:[%s1190 + $0x3c] sm:$0x3]
        %v1603 = vld [vmem:[%s1190 + $0x44] sm:$0xc]
        %v1604 = vld [vmem:[%s1190 + $0x48] sm:$0xf]
        %v1605 = vld [vmem:[%s1190 + $0x4c] sm:$0x3]
        %v1606 = vld [vmem:[%s1190 + $0x54] sm:$0xc]
        %v1607 = vld [vmem:[%s1190 + $0x58] sm:$0xf]
        %v1608 = vld [vmem:[%s1190 + $0x5c] sm:$0x3]
        %v1609 = vld [vmem:[%s1190 + $0x64] sm:$0xc]
        %v1610 = vld [vmem:[%s1190 + $0x68] sm:$0xf]
        %v1611 = vld [vmem:[%s1190 + $0x6c] sm:$0x3]
        %v1612 = vld [vmem:[%s1190 + $0x74] sm:$0xc]
        %v1613 = vld [vmem:[%s1190 + $0x78] sm:$0xf]
        %v1614 = vld [vmem:[%s1190 + $0x7c] sm:$0x3]
        %v1615 = vld [vmem:[%s1190 + $0x84] sm:$0xc]
        %v1616 = vld [vmem:[%s1190 + $0x88] sm:$0xf]
        %v1617 = vld [vmem:[%s1190 + $0x8c] sm:$0x3]
        %v1618 = vld [vmem:[%s1190 + $0x94] sm:$0xc]
        %v1619 = vld [vmem:[%s1190 + $0x98] sm:$0xf]
        %v1620 = vld [vmem:[%s1190 + $0x9c] sm:$0x3]
        %v1621 = vld [vmem:[%s1190 + $0xa4] sm:$0xc]
        %v1622 = vld [vmem:[%s1190 + $0xa8] sm:$0xf]
        %v1623 = vld [vmem:[%s1190 + $0xac] sm:$0x3]
        %v1624 = vld [vmem:[%s1190 + $0xb4] sm:$0xc]
        %v1625 = vld [vmem:[%s1190 + $0xb8] sm:$0xf]
        %v1626 = vld [vmem:[%s1190 + $0xbc] sm:$0x3]
        %v1627 = vld [vmem:[%s1190 + $0xc4] sm:$0xc]
        %v1628 = vld [vmem:[%s1190 + $0xc8] sm:$0xf]
        %v1629 = vld [vmem:[%s1190 + $0xcc] sm:$0x3]
        %v1630 = vld [vmem:[%s1190 + $0xd4] sm:$0xc]
        %v1631 = vld [vmem:[%s1190 + $0xd8] sm:$0xf]
        %v1632 = vld [vmem:[%s1190 + $0xdc] sm:$0x3]
        %v1633 = vld [vmem:[%s1190 + $0xe4] sm:$0xc]
        %v1634 = vld [vmem:[%s1190 + $0xe8] sm:$0xf]
        %v1635 = vld [vmem:[%s1190 + $0xec] sm:$0x3]
        %v1636 = vld [vmem:[%s1190 + $0xf4] sm:$0xc]
        %v1637 = vld [vmem:[%s1190 + $0xf8] sm:$0xf]
        %v1638 = vld [vmem:[%s1190 + $0xfc] sm:$0x3]
        %v1687 = vrot.slane %v1591, 6
        %v1688 = vrot.slane %v1687, 4
        %v1689 = vrot.slane %v1592, 6
        %v1690 = vsel %vm610, %v1688, %v1689
        %v1691 = vrot.slane %v1689, 4
        %v1692 = vrot.slane %v1593, 6
        %v1693 = vsel %vm610, %v1691, %v1692
        %v1694 = vrot.slane %v1594, 6
        %v1695 = vrot.slane %v1694, 4
        %v1696 = vrot.slane %v1595, 6
        %v1697 = vsel %vm610, %v1695, %v1696
        %v1698 = vrot.slane %v1696, 4
        %v1699 = vrot.slane %v1596, 6
        %v1700 = vsel %vm610, %v1698, %v1699
        %v1701 = vrot.slane %v1597, 6
        %v1702 = vrot.slane %v1701, 4
        %v1703 = vrot.slane %v1598, 6
        %v1704 = vsel %vm610, %v1702, %v1703
        %v1705 = vrot.slane %v1703, 4
        %v1706 = vrot.slane %v1599, 6
        %v1707 = vsel %vm610, %v1705, %v1706
        %v1708 = vrot.slane %v1600, 6
        %v1709 = vrot.slane %v1708, 4
        %v1710 = vrot.slane %v1601, 6
        %v1711 = vsel %vm610, %v1709, %v1710
        %v1712 = vrot.slane %v1710, 4
        %v1713 = vrot.slane %v1602, 6
        %v1714 = vsel %vm610, %v1712, %v1713
        %v1715 = vrot.slane %v1603, 6
        %v1716 = vrot.slane %v1715, 4
        %v1717 = vrot.slane %v1604, 6
        %v1718 = vsel %vm610, %v1716, %v1717
        %v1719 = vrot.slane %v1717, 4
        %v1720 = vrot.slane %v1605, 6
        %v1721 = vsel %vm610, %v1719, %v1720
        %v1722 = vrot.slane %v1606, 6
        %v1723 = vrot.slane %v1722, 4
        %v1724 = vrot.slane %v1607, 6
        %v1725 = vsel %vm610, %v1723, %v1724
        %v1726 = vrot.slane %v1724, 4
        %v1727 = vrot.slane %v1608, 6
        %v1728 = vsel %vm610, %v1726, %v1727
        %v1729 = vrot.slane %v1609, 6
        %v1730 = vrot.slane %v1729, 4
        %v1731 = vrot.slane %v1610, 6
        %v1732 = vsel %vm610, %v1730, %v1731
        %v1733 = vrot.slane %v1731, 4
        %v1734 = vrot.slane %v1611, 6
        %v1735 = vsel %vm610, %v1733, %v1734
        %v1736 = vrot.slane %v1612, 6
        %v1737 = vrot.slane %v1736, 4
        %v1738 = vrot.slane %v1613, 6
        %v1739 = vsel %vm610, %v1737, %v1738
        %v1740 = vrot.slane %v1738, 4
        %v1741 = vrot.slane %v1614, 6
        %v1742 = vsel %vm610, %v1740, %v1741
        %v1743 = vrot.slane %v1615, 6
        %v1744 = vrot.slane %v1743, 4
        %v1745 = vrot.slane %v1616, 6
        %v1746 = vsel %vm610, %v1744, %v1745
        %v1747 = vrot.slane %v1745, 4
        %v1748 = vrot.slane %v1617, 6
        %v1749 = vsel %vm610, %v1747, %v1748
        %v1750 = vrot.slane %v1618, 6
        %v1751 = vrot.slane %v1750, 4
        %v1752 = vrot.slane %v1619, 6
        %v1753 = vsel %vm610, %v1751, %v1752
        %v1754 = vrot.slane %v1752, 4
        %v1755 = vrot.slane %v1620, 6
        %v1756 = vsel %vm610, %v1754, %v1755
        %v1757 = vrot.slane %v1621, 6
        %v1758 = vrot.slane %v1757, 4
        %v1759 = vrot.slane %v1622, 6
        %v1760 = vsel %vm610, %v1758, %v1759
        %v1761 = vrot.slane %v1759, 4
        %v1762 = vrot.slane %v1623, 6
        %v1763 = vsel %vm610, %v1761, %v1762
        %v1764 = vrot.slane %v1624, 6
        %v1765 = vrot.slane %v1764, 4
        %v1766 = vrot.slane %v1625, 6
        %v1767 = vsel %vm610, %v1765, %v1766
        %v1768 = vrot.slane %v1766, 4
        %v1769 = vrot.slane %v1626, 6
        %v1770 = vsel %vm610, %v1768, %v1769
        %v1771 = vrot.slane %v1627, 6
        %v1772 = vrot.slane %v1771, 4
        %v1773 = vrot.slane %v1628, 6
        %v1774 = vsel %vm610, %v1772, %v1773
        %v1775 = vrot.slane %v1773, 4
        %v1776 = vrot.slane %v1629, 6
        %v1777 = vsel %vm610, %v1775, %v1776
        %v1778 = vrot.slane %v1630, 6
        %v1779 = vrot.slane %v1778, 4
        %v1780 = vrot.slane %v1631, 6
        %v1781 = vsel %vm610, %v1779, %v1780
        %v1782 = vrot.slane %v1780, 4
        %v1783 = vrot.slane %v1632, 6
        %v1784 = vsel %vm610, %v1782, %v1783
        %v1785 = vrot.slane %v1633, 6
        %v1786 = vrot.slane %v1785, 4
        %v1787 = vrot.slane %v1634, 6
        %v1788 = vsel %vm610, %v1786, %v1787
        %v1789 = vrot.slane %v1787, 4
        %v1790 = vrot.slane %v1635, 6
        %v1791 = vsel %vm610, %v1789, %v1790
        %v1792 = vrot.slane %v1636, 6
        %v1793 = vrot.slane %v1792, 4
        %v1794 = vrot.slane %v1637, 6
        %v1795 = vsel %vm610, %v1793, %v1794
        %v1796 = vrot.slane %v1794, 4
        %v1797 = vrot.slane %v1638, 6
        %v1798 = vsel %vm610, %v1796, %v1797
        %1831 = vst [vmem:[#allocation3 + $0x20] sm:$0xf] %v1690
        %1832 = vst [vmem:[#allocation3 + $0x84] sm:$0xf] %v1693
        %1833 = vst [vmem:[#allocation3 + $0xe8] sm:$0xf] %v1697
        %1834 = vst [vmem:[#allocation3 + $0x14c] sm:$0xf] %v1700
        %1835 = vst [vmem:[#allocation3 + $0x1b0] sm:$0xf] %v1704
        %1836 = vst [vmem:[#allocation3 + $0x214] sm:$0xf] %v1707
        %1837 = vst [vmem:[#allocation3 + $0x278] sm:$0xf] %v1711
        %1838 = vst [vmem:[#allocation3 + $0x2dc] sm:$0xf] %v1714
        %1839 = vst [vmem:[#allocation3 + $0x340] sm:$0xf] %v1718
        %1840 = vst [vmem:[#allocation3 + $0x3a4] sm:$0xf] %v1721
        %1841 = vst [vmem:[#allocation3 + $0x408] sm:$0xf] %v1725
        %1842 = vst [vmem:[#allocation3 + $0x46c] sm:$0xf] %v1728
        %1843 = vst [vmem:[#allocation3 + $0x4d0] sm:$0xf] %v1732
        %1844 = vst [vmem:[#allocation3 + $0x534] sm:$0xf] %v1735
        %1845 = vst [vmem:[#allocation3 + $0x598] sm:$0xf] %v1739
        %1846 = vst [vmem:[#allocation3 + $0x5fc] sm:$0xf] %v1742
        %1847 = vst [vmem:[#allocation3 + $0x660] sm:$0xf] %v1746
        %1848 = vst [vmem:[#allocation3 + $0x6c4] sm:$0xf] %v1749
        %1849 = vst [vmem:[#allocation3 + $0x728] sm:$0xf] %v1753
        %1850 = vst [vmem:[#allocation3 + $0x78c] sm:$0xf] %v1756
        %1851 = vst [vmem:[#allocation3 + $0x7f0] sm:$0xf] %v1760
        %1852 = vst [vmem:[#allocation3 + $0x854] sm:$0xf] %v1763
        %1853 = vst [vmem:[#allocation3 + $0x8b8] sm:$0xf] %v1767
        %1854 = vst [vmem:[#allocation3 + $0x91c] sm:$0xf] %v1770
        %1855 = vst [vmem:[#allocation3 + $0x980] sm:$0xf] %v1774
        %1856 = vst [vmem:[#allocation3 + $0x9e4] sm:$0xf] %v1777
        %1857 = vst [vmem:[#allocation3 + $0xa48] sm:$0xf] %v1781
        %1858 = vst [vmem:[#allocation3 + $0xaac] sm:$0xf] %v1784
        %1859 = vst [vmem:[#allocation3 + $0xb10] sm:$0xf] %v1788
        %1860 = vst [vmem:[#allocation3 + $0xb74] sm:$0xf] %v1791
        %1861 = vst [vmem:[#allocation3 + $0xbd8] sm:$0xf] %v1795
        %1862 = vst [vmem:[#allocation3 + $0xc3c] sm:$0xf] %v1798
        %v1863 = vld [vmem:[%s1190 + $0x8] sm:$0xf]
        %v1864 = vld [vmem:[%s1190 + $0xc] sm:$0xf]
        %v1865 = vld [vmem:[%s1190 + $0x18] sm:$0xf]
        %v1866 = vld [vmem:[%s1190 + $0x1c] sm:$0xf]
        %v1867 = vld [vmem:[%s1190 + $0x28] sm:$0xf]
        %v1868 = vld [vmem:[%s1190 + $0x2c] sm:$0xf]
        %v1869 = vld [vmem:[%s1190 + $0x38] sm:$0xf]
        %v1870 = vld [vmem:[%s1190 + $0x3c] sm:$0xf]
        %v1871 = vld [vmem:[%s1190 + $0x48] sm:$0xf]
        %v1872 = vld [vmem:[%s1190 + $0x4c] sm:$0xf]
        %v1873 = vld [vmem:[%s1190 + $0x58] sm:$0xf]
        %v1874 = vld [vmem:[%s1190 + $0x5c] sm:$0xf]
        %v1875 = vld [vmem:[%s1190 + $0x68] sm:$0xf]
        %v1876 = vld [vmem:[%s1190 + $0x6c] sm:$0xf]
        %v1877 = vld [vmem:[%s1190 + $0x78] sm:$0xf]
        %v1878 = vld [vmem:[%s1190 + $0x7c] sm:$0xf]
        %v1879 = vld [vmem:[%s1190 + $0x88] sm:$0xf]
        %v1880 = vld [vmem:[%s1190 + $0x8c] sm:$0xf]
        %v1881 = vld [vmem:[%s1190 + $0x98] sm:$0xf]
        %v1882 = vld [vmem:[%s1190 + $0x9c] sm:$0xf]
        %v1883 = vld [vmem:[%s1190 + $0xa8] sm:$0xf]
        %v1884 = vld [vmem:[%s1190 + $0xac] sm:$0xf]
        %v1885 = vld [vmem:[%s1190 + $0xb8] sm:$0xf]
        %v1886 = vld [vmem:[%s1190 + $0xbc] sm:$0xf]
        %v1887 = vld [vmem:[%s1190 + $0xc8] sm:$0xf]
        %v1888 = vld [vmem:[%s1190 + $0xcc] sm:$0xf]
        %v1889 = vld [vmem:[%s1190 + $0xd8] sm:$0xf]
        %v1890 = vld [vmem:[%s1190 + $0xdc] sm:$0xf]
        %v1891 = vld [vmem:[%s1190 + $0xe8] sm:$0xf]
        %v1892 = vld [vmem:[%s1190 + $0xec] sm:$0xf]
        %v1893 = vld [vmem:[%s1190 + $0xf8] sm:$0xf]
        %v1894 = vld [vmem:[%s1190 + $0xfc] sm:$0xf]
        %1895 = vst [vmem:[#allocation3 + $0x24] sm:$0xf] %v1863
        %1896 = vst [vmem:[#allocation3 + $0x88] sm:$0xf] %v1864
        %1897 = vst [vmem:[#allocation3 + $0xec] sm:$0xf] %v1865
        %1898 = vst [vmem:[#allocation3 + $0x150] sm:$0xf] %v1866
        %1899 = vst [vmem:[#allocation3 + $0x1b4] sm:$0xf] %v1867
        %1900 = vst [vmem:[#allocation3 + $0x218] sm:$0xf] %v1868
        %1901 = vst [vmem:[#allocation3 + $0x27c] sm:$0xf] %v1869
        %1902 = vst [vmem:[#allocation3 + $0x2e0] sm:$0xf] %v1870
        %1903 = vst [vmem:[#allocation3 + $0x344] sm:$0xf] %v1871
        %1904 = vst [vmem:[#allocation3 + $0x3a8] sm:$0xf] %v1872
        %1905 = vst [vmem:[#allocation3 + $0x40c] sm:$0xf] %v1873
        %1906 = vst [vmem:[#allocation3 + $0x470] sm:$0xf] %v1874
        %1907 = vst [vmem:[#allocation3 + $0x4d4] sm:$0xf] %v1875
        %1908 = vst [vmem:[#allocation3 + $0x538] sm:$0xf] %v1876
        %1909 = vst [vmem:[#allocation3 + $0x59c] sm:$0xf] %v1877
        %1910 = vst [vmem:[#allocation3 + $0x600] sm:$0xf] %v1878
        %1911 = vst [vmem:[#allocation3 + $0x664] sm:$0xf] %v1879
        %1912 = vst [vmem:[#allocation3 + $0x6c8] sm:$0xf] %v1880
        %1913 = vst [vmem:[#allocation3 + $0x72c] sm:$0xf] %v1881
        %1914 = vst [vmem:[#allocation3 + $0x790] sm:$0xf] %v1882
        %1915 = vst [vmem:[#allocation3 + $0x7f4] sm:$0xf] %v1883
        %1916 = vst [vmem:[#allocation3 + $0x858] sm:$0xf] %v1884
        %1917 = vst [vmem:[#allocation3 + $0x8bc] sm:$0xf] %v1885
        %1918 = vst [vmem:[#allocation3 + $0x920] sm:$0xf] %v1886
        %1919 = vst [vmem:[#allocation3 + $0x984] sm:$0xf] %v1887
        %1920 = vst [vmem:[#allocation3 + $0x9e8] sm:$0xf] %v1888
        %1921 = vst [vmem:[#allocation3 + $0xa4c] sm:$0xf] %v1889
        %1922 = vst [vmem:[#allocation3 + $0xab0] sm:$0xf] %v1890
        %1923 = vst [vmem:[#allocation3 + $0xb14] sm:$0xf] %v1891
        %1924 = vst [vmem:[#allocation3 + $0xb78] sm:$0xf] %v1892
        %1925 = vst [vmem:[#allocation3 + $0xbdc] sm:$0xf] %v1893
        %1926 = vst [vmem:[#allocation3 + $0xc40] sm:$0xf] %v1894
        %s1927 = sadd.s32 %s444, 8
        %s1928 = smul.u32 %s1927, 4
        %s1929 = smul.addr %s1928, 4
        %s1930 = scalar_lea.vmem [#allocation2], %s1929
        %v1931 = vld [vmem:[%s1930] sm:$0xf]
        %v1932 = vld [vmem:[%s1930 + $0x4] sm:$0xf]
        %v1933 = vld [vmem:[%s1930 + $0x10] sm:$0xf]
        %v1934 = vld [vmem:[%s1930 + $0x14] sm:$0xf]
        %v1935 = vld [vmem:[%s1930 + $0x20] sm:$0xf]
        %v1936 = vld [vmem:[%s1930 + $0x24] sm:$0xf]
        %v1937 = vld [vmem:[%s1930 + $0x30] sm:$0xf]
        %v1938 = vld [vmem:[%s1930 + $0x34] sm:$0xf]
        %v1939 = vld [vmem:[%s1930 + $0x40] sm:$0xf]
        %v1940 = vld [vmem:[%s1930 + $0x44] sm:$0xf]
        %v1941 = vld [vmem:[%s1930 + $0x50] sm:$0xf]
        %v1942 = vld [vmem:[%s1930 + $0x54] sm:$0xf]
        %v1943 = vld [vmem:[%s1930 + $0x60] sm:$0xf]
        %v1944 = vld [vmem:[%s1930 + $0x64] sm:$0xf]
        %v1945 = vld [vmem:[%s1930 + $0x70] sm:$0xf]
        %v1946 = vld [vmem:[%s1930 + $0x74] sm:$0xf]
        %v1947 = vld [vmem:[%s1930 + $0x80] sm:$0xf]
        %v1948 = vld [vmem:[%s1930 + $0x84] sm:$0xf]
        %v1949 = vld [vmem:[%s1930 + $0x90] sm:$0xf]
        %v1950 = vld [vmem:[%s1930 + $0x94] sm:$0xf]
        %v1951 = vld [vmem:[%s1930 + $0xa0] sm:$0xf]
        %v1952 = vld [vmem:[%s1930 + $0xa4] sm:$0xf]
        %v1953 = vld [vmem:[%s1930 + $0xb0] sm:$0xf]
        %v1954 = vld [vmem:[%s1930 + $0xb4] sm:$0xf]
        %v1955 = vld [vmem:[%s1930 + $0xc0] sm:$0xf]
        %v1956 = vld [vmem:[%s1930 + $0xc4] sm:$0xf]
        %v1957 = vld [vmem:[%s1930 + $0xd0] sm:$0xf]
        %v1958 = vld [vmem:[%s1930 + $0xd4] sm:$0xf]
        %v1959 = vld [vmem:[%s1930 + $0xe0] sm:$0xf]
        %v1960 = vld [vmem:[%s1930 + $0xe4] sm:$0xf]
        %v1961 = vld [vmem:[%s1930 + $0xf0] sm:$0xf]
        %v1962 = vld [vmem:[%s1930 + $0xf4] sm:$0xf]
        %1963 = vst [vmem:[#allocation3 + $0x28] sm:$0xf] %v1931
        %1964 = vst [vmem:[#allocation3 + $0x8c] sm:$0xf] %v1932
        %1965 = vst [vmem:[#allocation3 + $0xf0] sm:$0xf] %v1933
        %1966 = vst [vmem:[#allocation3 + $0x154] sm:$0xf] %v1934
        %1967 = vst [vmem:[#allocation3 + $0x1b8] sm:$0xf] %v1935
        %1968 = vst [vmem:[#allocation3 + $0x21c] sm:$0xf] %v1936
        %1969 = vst [vmem:[#allocation3 + $0x280] sm:$0xf] %v1937
        %1970 = vst [vmem:[#allocation3 + $0x2e4] sm:$0xf] %v1938
        %1971 = vst [vmem:[#allocation3 + $0x348] sm:$0xf] %v1939
        %1972 = vst [vmem:[#allocation3 + $0x3ac] sm:$0xf] %v1940
        %1973 = vst [vmem:[#allocation3 + $0x410] sm:$0xf] %v1941
        %1974 = vst [vmem:[#allocation3 + $0x474] sm:$0xf] %v1942
        %1975 = vst [vmem:[#allocation3 + $0x4d8] sm:$0xf] %v1943
        %1976 = vst [vmem:[#allocation3 + $0x53c] sm:$0xf] %v1944
        %1977 = vst [vmem:[#allocation3 + $0x5a0] sm:$0xf] %v1945
        %1978 = vst [vmem:[#allocation3 + $0x604] sm:$0xf] %v1946
        %1979 = vst [vmem:[#allocation3 + $0x668] sm:$0xf] %v1947
        %1980 = vst [vmem:[#allocation3 + $0x6cc] sm:$0xf] %v1948
        %1981 = vst [vmem:[#allocation3 + $0x730] sm:$0xf] %v1949
        %1982 = vst [vmem:[#allocation3 + $0x794] sm:$0xf] %v1950
        %1983 = vst [vmem:[#allocation3 + $0x7f8] sm:$0xf] %v1951
        %1984 = vst [vmem:[#allocation3 + $0x85c] sm:$0xf] %v1952
        %1985 = vst [vmem:[#allocation3 + $0x8c0] sm:$0xf] %v1953
        %1986 = vst [vmem:[#allocation3 + $0x924] sm:$0xf] %v1954
        %1987 = vst [vmem:[#allocation3 + $0x988] sm:$0xf] %v1955
        %1988 = vst [vmem:[#allocation3 + $0x9ec] sm:$0xf] %v1956
        %1989 = vst [vmem:[#allocation3 + $0xa50] sm:$0xf] %v1957
        %1990 = vst [vmem:[#allocation3 + $0xab4] sm:$0xf] %v1958
        %1991 = vst [vmem:[#allocation3 + $0xb18] sm:$0xf] %v1959
        %1992 = vst [vmem:[#allocation3 + $0xb7c] sm:$0xf] %v1960
        %1993 = vst [vmem:[#allocation3 + $0xbe0] sm:$0xf] %v1961
        %1994 = vst [vmem:[#allocation3 + $0xc44] sm:$0xf] %v1962
        %v1995 = vld [vmem:[%s1930] sm:$0xc]
        %v1996 = vld [vmem:[%s1930 + $0x4] sm:$0xf]
        %v1997 = vld [vmem:[%s1930 + $0x8] sm:$0x3]
        %v1998 = vld [vmem:[%s1930 + $0x10] sm:$0xc]
        %v1999 = vld [vmem:[%s1930 + $0x14] sm:$0xf]
        %v2000 = vld [vmem:[%s1930 + $0x18] sm:$0x3]
        %v2001 = vld [vmem:[%s1930 + $0x20] sm:$0xc]
        %v2002 = vld [vmem:[%s1930 + $0x24] sm:$0xf]
        %v2003 = vld [vmem:[%s1930 + $0x28] sm:$0x3]
        %v2004 = vld [vmem:[%s1930 + $0x30] sm:$0xc]
        %v2005 = vld [vmem:[%s1930 + $0x34] sm:$0xf]
        %v2006 = vld [vmem:[%s1930 + $0x38] sm:$0x3]
        %v2007 = vld [vmem:[%s1930 + $0x40] sm:$0xc]
        %v2008 = vld [vmem:[%s1930 + $0x44] sm:$0xf]
        %v2009 = vld [vmem:[%s1930 + $0x48] sm:$0x3]
        %v2010 = vld [vmem:[%s1930 + $0x50] sm:$0xc]
        %v2011 = vld [vmem:[%s1930 + $0x54] sm:$0xf]
        %v2012 = vld [vmem:[%s1930 + $0x58] sm:$0x3]
        %v2013 = vld [vmem:[%s1930 + $0x60] sm:$0xc]
        %v2014 = vld [vmem:[%s1930 + $0x64] sm:$0xf]
        %v2015 = vld [vmem:[%s1930 + $0x68] sm:$0x3]
        %v2016 = vld [vmem:[%s1930 + $0x70] sm:$0xc]
        %v2017 = vld [vmem:[%s1930 + $0x74] sm:$0xf]
        %v2018 = vld [vmem:[%s1930 + $0x78] sm:$0x3]
        %v2019 = vld [vmem:[%s1930 + $0x80] sm:$0xc]
        %v2020 = vld [vmem:[%s1930 + $0x84] sm:$0xf]
        %v2021 = vld [vmem:[%s1930 + $0x88] sm:$0x3]
        %v2022 = vld [vmem:[%s1930 + $0x90] sm:$0xc]
        %v2023 = vld [vmem:[%s1930 + $0x94] sm:$0xf]
        %v2024 = vld [vmem:[%s1930 + $0x98] sm:$0x3]
        %v2025 = vld [vmem:[%s1930 + $0xa0] sm:$0xc]
        %v2026 = vld [vmem:[%s1930 + $0xa4] sm:$0xf]
        %v2027 = vld [vmem:[%s1930 + $0xa8] sm:$0x3]
        %v2028 = vld [vmem:[%s1930 + $0xb0] sm:$0xc]
        %v2029 = vld [vmem:[%s1930 + $0xb4] sm:$0xf]
        %v2030 = vld [vmem:[%s1930 + $0xb8] sm:$0x3]
        %v2031 = vld [vmem:[%s1930 + $0xc0] sm:$0xc]
        %v2032 = vld [vmem:[%s1930 + $0xc4] sm:$0xf]
        %v2033 = vld [vmem:[%s1930 + $0xc8] sm:$0x3]
        %v2034 = vld [vmem:[%s1930 + $0xd0] sm:$0xc]
        %v2035 = vld [vmem:[%s1930 + $0xd4] sm:$0xf]
        %v2036 = vld [vmem:[%s1930 + $0xd8] sm:$0x3]
        %v2037 = vld [vmem:[%s1930 + $0xe0] sm:$0xc]
        %v2038 = vld [vmem:[%s1930 + $0xe4] sm:$0xf]
        %v2039 = vld [vmem:[%s1930 + $0xe8] sm:$0x3]
        %v2040 = vld [vmem:[%s1930 + $0xf0] sm:$0xc]
        %v2041 = vld [vmem:[%s1930 + $0xf4] sm:$0xf]
        %v2042 = vld [vmem:[%s1930 + $0xf8] sm:$0x3]
        %v2091 = vrot.slane %v1995, 6
        %v2092 = vrot.slane %v2091, 4
        %v2093 = vrot.slane %v1996, 6
        %v2094 = vsel %vm610, %v2092, %v2093
        %v2095 = vrot.slane %v2093, 4
        %v2096 = vrot.slane %v1997, 6
        %v2097 = vsel %vm610, %v2095, %v2096
        %v2098 = vrot.slane %v1998, 6
        %v2099 = vrot.slane %v2098, 4
        %v2100 = vrot.slane %v1999, 6
        %v2101 = vsel %vm610, %v2099, %v2100
        %v2102 = vrot.slane %v2100, 4
        %v2103 = vrot.slane %v2000, 6
        %v2104 = vsel %vm610, %v2102, %v2103
        %v2105 = vrot.slane %v2001, 6
        %v2106 = vrot.slane %v2105, 4
        %v2107 = vrot.slane %v2002, 6
        %v2108 = vsel %vm610, %v2106, %v2107
        %v2109 = vrot.slane %v2107, 4
        %v2110 = vrot.slane %v2003, 6
        %v2111 = vsel %vm610, %v2109, %v2110
        %v2112 = vrot.slane %v2004, 6
        %v2113 = vrot.slane %v2112, 4
        %v2114 = vrot.slane %v2005, 6
        %v2115 = vsel %vm610, %v2113, %v2114
        %v2116 = vrot.slane %v2114, 4
        %v2117 = vrot.slane %v2006, 6
        %v2118 = vsel %vm610, %v2116, %v2117
        %v2119 = vrot.slane %v2007, 6
        %v2120 = vrot.slane %v2119, 4
        %v2121 = vrot.slane %v2008, 6
        %v2122 = vsel %vm610, %v2120, %v2121
        %v2123 = vrot.slane %v2121, 4
        %v2124 = vrot.slane %v2009, 6
        %v2125 = vsel %vm610, %v2123, %v2124
        %v2126 = vrot.slane %v2010, 6
        %v2127 = vrot.slane %v2126, 4
        %v2128 = vrot.slane %v2011, 6
        %v2129 = vsel %vm610, %v2127, %v2128
        %v2130 = vrot.slane %v2128, 4
        %v2131 = vrot.slane %v2012, 6
        %v2132 = vsel %vm610, %v2130, %v2131
        %v2133 = vrot.slane %v2013, 6
        %v2134 = vrot.slane %v2133, 4
        %v2135 = vrot.slane %v2014, 6
        %v2136 = vsel %vm610, %v2134, %v2135
        %v2137 = vrot.slane %v2135, 4
        %v2138 = vrot.slane %v2015, 6
        %v2139 = vsel %vm610, %v2137, %v2138
        %v2140 = vrot.slane %v2016, 6
        %v2141 = vrot.slane %v2140, 4
        %v2142 = vrot.slane %v2017, 6
        %v2143 = vsel %vm610, %v2141, %v2142
        %v2144 = vrot.slane %v2142, 4
        %v2145 = vrot.slane %v2018, 6
        %v2146 = vsel %vm610, %v2144, %v2145
        %v2147 = vrot.slane %v2019, 6
        %v2148 = vrot.slane %v2147, 4
        %v2149 = vrot.slane %v2020, 6
        %v2150 = vsel %vm610, %v2148, %v2149
        %v2151 = vrot.slane %v2149, 4
        %v2152 = vrot.slane %v2021, 6
        %v2153 = vsel %vm610, %v2151, %v2152
        %v2154 = vrot.slane %v2022, 6
        %v2155 = vrot.slane %v2154, 4
        %v2156 = vrot.slane %v2023, 6
        %v2157 = vsel %vm610, %v2155, %v2156
        %v2158 = vrot.slane %v2156, 4
        %v2159 = vrot.slane %v2024, 6
        %v2160 = vsel %vm610, %v2158, %v2159
        %v2161 = vrot.slane %v2025, 6
        %v2162 = vrot.slane %v2161, 4
        %v2163 = vrot.slane %v2026, 6
        %v2164 = vsel %vm610, %v2162, %v2163
        %v2165 = vrot.slane %v2163, 4
        %v2166 = vrot.slane %v2027, 6
        %v2167 = vsel %vm610, %v2165, %v2166
        %v2168 = vrot.slane %v2028, 6
        %v2169 = vrot.slane %v2168, 4
        %v2170 = vrot.slane %v2029, 6
        %v2171 = vsel %vm610, %v2169, %v2170
        %v2172 = vrot.slane %v2170, 4
        %v2173 = vrot.slane %v2030, 6
        %v2174 = vsel %vm610, %v2172, %v2173
        %v2175 = vrot.slane %v2031, 6
        %v2176 = vrot.slane %v2175, 4
        %v2177 = vrot.slane %v2032, 6
        %v2178 = vsel %vm610, %v2176, %v2177
        %v2179 = vrot.slane %v2177, 4
        %v2180 = vrot.slane %v2033, 6
        %v2181 = vsel %vm610, %v2179, %v2180
        %v2182 = vrot.slane %v2034, 6
        %v2183 = vrot.slane %v2182, 4
        %v2184 = vrot.slane %v2035, 6
        %v2185 = vsel %vm610, %v2183, %v2184
        %v2186 = vrot.slane %v2184, 4
        %v2187 = vrot.slane %v2036, 6
        %v2188 = vsel %vm610, %v2186, %v2187
        %v2189 = vrot.slane %v2037, 6
        %v2190 = vrot.slane %v2189, 4
        %v2191 = vrot.slane %v2038, 6
        %v2192 = vsel %vm610, %v2190, %v2191
        %v2193 = vrot.slane %v2191, 4
        %v2194 = vrot.slane %v2039, 6
        %v2195 = vsel %vm610, %v2193, %v2194
        %v2196 = vrot.slane %v2040, 6
        %v2197 = vrot.slane %v2196, 4
        %v2198 = vrot.slane %v2041, 6
        %v2199 = vsel %vm610, %v2197, %v2198
        %v2200 = vrot.slane %v2198, 4
        %v2201 = vrot.slane %v2042, 6
        %v2202 = vsel %vm610, %v2200, %v2201
        %2235 = vst [vmem:[#allocation3 + $0x2c] sm:$0xf] %v2094
        %2236 = vst [vmem:[#allocation3 + $0x90] sm:$0xf] %v2097
        %2237 = vst [vmem:[#allocation3 + $0xf4] sm:$0xf] %v2101
        %2238 = vst [vmem:[#allocation3 + $0x158] sm:$0xf] %v2104
        %2239 = vst [vmem:[#allocation3 + $0x1bc] sm:$0xf] %v2108
        %2240 = vst [vmem:[#allocation3 + $0x220] sm:$0xf] %v2111
        %2241 = vst [vmem:[#allocation3 + $0x284] sm:$0xf] %v2115
        %2242 = vst [vmem:[#allocation3 + $0x2e8] sm:$0xf] %v2118
        %2243 = vst [vmem:[#allocation3 + $0x34c] sm:$0xf] %v2122
        %2244 = vst [vmem:[#allocation3 + $0x3b0] sm:$0xf] %v2125
        %2245 = vst [vmem:[#allocation3 + $0x414] sm:$0xf] %v2129
        %2246 = vst [vmem:[#allocation3 + $0x478] sm:$0xf] %v2132
        %2247 = vst [vmem:[#allocation3 + $0x4dc] sm:$0xf] %v2136
        %2248 = vst [vmem:[#allocation3 + $0x540] sm:$0xf] %v2139
        %2249 = vst [vmem:[#allocation3 + $0x5a4] sm:$0xf] %v2143
        %2250 = vst [vmem:[#allocation3 + $0x608] sm:$0xf] %v2146
        %2251 = vst [vmem:[#allocation3 + $0x66c] sm:$0xf] %v2150
        %2252 = vst [vmem:[#allocation3 + $0x6d0] sm:$0xf] %v2153
        %2253 = vst [vmem:[#allocation3 + $0x734] sm:$0xf] %v2157
        %2254 = vst [vmem:[#allocation3 + $0x798] sm:$0xf] %v2160
        %2255 = vst [vmem:[#allocation3 + $0x7fc] sm:$0xf] %v2164
        %2256 = vst [vmem:[#allocation3 + $0x860] sm:$0xf] %v2167
        %2257 = vst [vmem:[#allocation3 + $0x8c4] sm:$0xf] %v2171
        %2258 = vst [vmem:[#allocation3 + $0x928] sm:$0xf] %v2174
        %2259 = vst [vmem:[#allocation3 + $0x98c] sm:$0xf] %v2178
        %2260 = vst [vmem:[#allocation3 + $0x9f0] sm:$0xf] %v2181
        %2261 = vst [vmem:[#allocation3 + $0xa54] sm:$0xf] %v2185
        %2262 = vst [vmem:[#allocation3 + $0xab8] sm:$0xf] %v2188
        %2263 = vst [vmem:[#allocation3 + $0xb1c] sm:$0xf] %v2192
        %2264 = vst [vmem:[#allocation3 + $0xb80] sm:$0xf] %v2195
        %2265 = vst [vmem:[#allocation3 + $0xbe4] sm:$0xf] %v2199
        %2266 = vst [vmem:[#allocation3 + $0xc48] sm:$0xf] %v2202
        %v2267 = vld [vmem:[%s1930 + $0x4] sm:$0xf]
        %v2268 = vld [vmem:[%s1930 + $0x8] sm:$0xf]
        %v2269 = vld [vmem:[%s1930 + $0x14] sm:$0xf]
        %v2270 = vld [vmem:[%s1930 + $0x18] sm:$0xf]
        %v2271 = vld [vmem:[%s1930 + $0x24] sm:$0xf]
        %v2272 = vld [vmem:[%s1930 + $0x28] sm:$0xf]
        %v2273 = vld [vmem:[%s1930 + $0x34] sm:$0xf]
        %v2274 = vld [vmem:[%s1930 + $0x38] sm:$0xf]
        %v2275 = vld [vmem:[%s1930 + $0x44] sm:$0xf]
        %v2276 = vld [vmem:[%s1930 + $0x48] sm:$0xf]
        %v2277 = vld [vmem:[%s1930 + $0x54] sm:$0xf]
        %v2278 = vld [vmem:[%s1930 + $0x58] sm:$0xf]
        %v2279 = vld [vmem:[%s1930 + $0x64] sm:$0xf]
        %v2280 = vld [vmem:[%s1930 + $0x68] sm:$0xf]
        %v2281 = vld [vmem:[%s1930 + $0x74] sm:$0xf]
        %v2282 = vld [vmem:[%s1930 + $0x78] sm:$0xf]
        %v2283 = vld [vmem:[%s1930 + $0x84] sm:$0xf]
        %v2284 = vld [vmem:[%s1930 + $0x88] sm:$0xf]
        %v2285 = vld [vmem:[%s1930 + $0x94] sm:$0xf]
        %v2286 = vld [vmem:[%s1930 + $0x98] sm:$0xf]
        %v2287 = vld [vmem:[%s1930 + $0xa4] sm:$0xf]
        %v2288 = vld [vmem:[%s1930 + $0xa8] sm:$0xf]
        %v2289 = vld [vmem:[%s1930 + $0xb4] sm:$0xf]
        %v2290 = vld [vmem:[%s1930 + $0xb8] sm:$0xf]
        %v2291 = vld [vmem:[%s1930 + $0xc4] sm:$0xf]
        %v2292 = vld [vmem:[%s1930 + $0xc8] sm:$0xf]
        %v2293 = vld [vmem:[%s1930 + $0xd4] sm:$0xf]
        %v2294 = vld [vmem:[%s1930 + $0xd8] sm:$0xf]
        %v2295 = vld [vmem:[%s1930 + $0xe4] sm:$0xf]
        %v2296 = vld [vmem:[%s1930 + $0xe8] sm:$0xf]
        %v2297 = vld [vmem:[%s1930 + $0xf4] sm:$0xf]
        %v2298 = vld [vmem:[%s1930 + $0xf8] sm:$0xf]
        %2299 = vst [vmem:[#allocation3 + $0x30] sm:$0xf] %v2267
        %2300 = vst [vmem:[#allocation3 + $0x94] sm:$0xf] %v2268
        %2301 = vst [vmem:[#allocation3 + $0xf8] sm:$0xf] %v2269
        %2302 = vst [vmem:[#allocation3 + $0x15c] sm:$0xf] %v2270
        %2303 = vst [vmem:[#allocation3 + $0x1c0] sm:$0xf] %v2271
        %2304 = vst [vmem:[#allocation3 + $0x224] sm:$0xf] %v2272
        %2305 = vst [vmem:[#allocation3 + $0x288] sm:$0xf] %v2273
        %2306 = vst [vmem:[#allocation3 + $0x2ec] sm:$0xf] %v2274
        %2307 = vst [vmem:[#allocation3 + $0x350] sm:$0xf] %v2275
        %2308 = vst [vmem:[#allocation3 + $0x3b4] sm:$0xf] %v2276
        %2309 = vst [vmem:[#allocation3 + $0x418] sm:$0xf] %v2277
        %2310 = vst [vmem:[#allocation3 + $0x47c] sm:$0xf] %v2278
        %2311 = vst [vmem:[#allocation3 + $0x4e0] sm:$0xf] %v2279
        %2312 = vst [vmem:[#allocation3 + $0x544] sm:$0xf] %v2280
        %2313 = vst [vmem:[#allocation3 + $0x5a8] sm:$0xf] %v2281
        %2314 = vst [vmem:[#allocation3 + $0x60c] sm:$0xf] %v2282
        %2315 = vst [vmem:[#allocation3 + $0x670] sm:$0xf] %v2283
        %2316 = vst [vmem:[#allocation3 + $0x6d4] sm:$0xf] %v2284
        %2317 = vst [vmem:[#allocation3 + $0x738] sm:$0xf] %v2285
        %2318 = vst [vmem:[#allocation3 + $0x79c] sm:$0xf] %v2286
        %2319 = vst [vmem:[#allocation3 + $0x800] sm:$0xf] %v2287
        %2320 = vst [vmem:[#allocation3 + $0x864] sm:$0xf] %v2288
        %2321 = vst [vmem:[#allocation3 + $0x8c8] sm:$0xf] %v2289
        %2322 = vst [vmem:[#allocation3 + $0x92c] sm:$0xf] %v2290
        %2323 = vst [vmem:[#allocation3 + $0x990] sm:$0xf] %v2291
        %2324 = vst [vmem:[#allocation3 + $0x9f4] sm:$0xf] %v2292
        %2325 = vst [vmem:[#allocation3 + $0xa58] sm:$0xf] %v2293
        %2326 = vst [vmem:[#allocation3 + $0xabc] sm:$0xf] %v2294
        %2327 = vst [vmem:[#allocation3 + $0xb20] sm:$0xf] %v2295
        %2328 = vst [vmem:[#allocation3 + $0xb84] sm:$0xf] %v2296
        %2329 = vst [vmem:[#allocation3 + $0xbe8] sm:$0xf] %v2297
        %2330 = vst [vmem:[#allocation3 + $0xc4c] sm:$0xf] %v2298
        %v2331 = vld [vmem:[%s1930 + $0x4] sm:$0xc]
        %v2332 = vld [vmem:[%s1930 + $0x8] sm:$0xf]
        %v2333 = vld [vmem:[%s1930 + $0xc] sm:$0x3]
        %v2334 = vld [vmem:[%s1930 + $0x14] sm:$0xc]
        %v2335 = vld [vmem:[%s1930 + $0x18] sm:$0xf]
        %v2336 = vld [vmem:[%s1930 + $0x1c] sm:$0x3]
        %v2337 = vld [vmem:[%s1930 + $0x24] sm:$0xc]
        %v2338 = vld [vmem:[%s1930 + $0x28] sm:$0xf]
        %v2339 = vld [vmem:[%s1930 + $0x2c] sm:$0x3]
        %v2340 = vld [vmem:[%s1930 + $0x34] sm:$0xc]
        %v2341 = vld [vmem:[%s1930 + $0x38] sm:$0xf]
        %v2342 = vld [vmem:[%s1930 + $0x3c] sm:$0x3]
        %v2343 = vld [vmem:[%s1930 + $0x44] sm:$0xc]
        %v2344 = vld [vmem:[%s1930 + $0x48] sm:$0xf]
        %v2345 = vld [vmem:[%s1930 + $0x4c] sm:$0x3]
        %v2346 = vld [vmem:[%s1930 + $0x54] sm:$0xc]
        %v2347 = vld [vmem:[%s1930 + $0x58] sm:$0xf]
        %v2348 = vld [vmem:[%s1930 + $0x5c] sm:$0x3]
        %v2349 = vld [vmem:[%s1930 + $0x64] sm:$0xc]
        %v2350 = vld [vmem:[%s1930 + $0x68] sm:$0xf]
        %v2351 = vld [vmem:[%s1930 + $0x6c] sm:$0x3]
        %v2352 = vld [vmem:[%s1930 + $0x74] sm:$0xc]
        %v2353 = vld [vmem:[%s1930 + $0x78] sm:$0xf]
        %v2354 = vld [vmem:[%s1930 + $0x7c] sm:$0x3]
        %v2355 = vld [vmem:[%s1930 + $0x84] sm:$0xc]
        %v2356 = vld [vmem:[%s1930 + $0x88] sm:$0xf]
        %v2357 = vld [vmem:[%s1930 + $0x8c] sm:$0x3]
        %v2358 = vld [vmem:[%s1930 + $0x94] sm:$0xc]
        %v2359 = vld [vmem:[%s1930 + $0x98] sm:$0xf]
        %v2360 = vld [vmem:[%s1930 + $0x9c] sm:$0x3]
        %v2361 = vld [vmem:[%s1930 + $0xa4] sm:$0xc]
        %v2362 = vld [vmem:[%s1930 + $0xa8] sm:$0xf]
        %v2363 = vld [vmem:[%s1930 + $0xac] sm:$0x3]
        %v2364 = vld [vmem:[%s1930 + $0xb4] sm:$0xc]
        %v2365 = vld [vmem:[%s1930 + $0xb8] sm:$0xf]
        %v2366 = vld [vmem:[%s1930 + $0xbc] sm:$0x3]
        %v2367 = vld [vmem:[%s1930 + $0xc4] sm:$0xc]
        %v2368 = vld [vmem:[%s1930 + $0xc8] sm:$0xf]
        %v2369 = vld [vmem:[%s1930 + $0xcc] sm:$0x3]
        %v2370 = vld [vmem:[%s1930 + $0xd4] sm:$0xc]
        %v2371 = vld [vmem:[%s1930 + $0xd8] sm:$0xf]
        %v2372 = vld [vmem:[%s1930 + $0xdc] sm:$0x3]
        %v2373 = vld [vmem:[%s1930 + $0xe4] sm:$0xc]
        %v2374 = vld [vmem:[%s1930 + $0xe8] sm:$0xf]
        %v2375 = vld [vmem:[%s1930 + $0xec] sm:$0x3]
        %v2376 = vld [vmem:[%s1930 + $0xf4] sm:$0xc]
        %v2377 = vld [vmem:[%s1930 + $0xf8] sm:$0xf]
        %v2378 = vld [vmem:[%s1930 + $0xfc] sm:$0x3]
        %v2427 = vrot.slane %v2331, 6
        %v2428 = vrot.slane %v2427, 4
        %v2429 = vrot.slane %v2332, 6
        %v2430 = vsel %vm610, %v2428, %v2429
        %v2431 = vrot.slane %v2429, 4
        %v2432 = vrot.slane %v2333, 6
        %v2433 = vsel %vm610, %v2431, %v2432
        %v2434 = vrot.slane %v2334, 6
        %v2435 = vrot.slane %v2434, 4
        %v2436 = vrot.slane %v2335, 6
        %v2437 = vsel %vm610, %v2435, %v2436
        %v2438 = vrot.slane %v2436, 4
        %v2439 = vrot.slane %v2336, 6
        %v2440 = vsel %vm610, %v2438, %v2439
        %v2441 = vrot.slane %v2337, 6
        %v2442 = vrot.slane %v2441, 4
        %v2443 = vrot.slane %v2338, 6
        %v2444 = vsel %vm610, %v2442, %v2443
        %v2445 = vrot.slane %v2443, 4
        %v2446 = vrot.slane %v2339, 6
        %v2447 = vsel %vm610, %v2445, %v2446
        %v2448 = vrot.slane %v2340, 6
        %v2449 = vrot.slane %v2448, 4
        %v2450 = vrot.slane %v2341, 6
        %v2451 = vsel %vm610, %v2449, %v2450
        %v2452 = vrot.slane %v2450, 4
        %v2453 = vrot.slane %v2342, 6
        %v2454 = vsel %vm610, %v2452, %v2453
        %v2455 = vrot.slane %v2343, 6
        %v2456 = vrot.slane %v2455, 4
        %v2457 = vrot.slane %v2344, 6
        %v2458 = vsel %vm610, %v2456, %v2457
        %v2459 = vrot.slane %v2457, 4
        %v2460 = vrot.slane %v2345, 6
        %v2461 = vsel %vm610, %v2459, %v2460
        %v2462 = vrot.slane %v2346, 6
        %v2463 = vrot.slane %v2462, 4
        %v2464 = vrot.slane %v2347, 6
        %v2465 = vsel %vm610, %v2463, %v2464
        %v2466 = vrot.slane %v2464, 4
        %v2467 = vrot.slane %v2348, 6
        %v2468 = vsel %vm610, %v2466, %v2467
        %v2469 = vrot.slane %v2349, 6
        %v2470 = vrot.slane %v2469, 4
        %v2471 = vrot.slane %v2350, 6
        %v2472 = vsel %vm610, %v2470, %v2471
        %v2473 = vrot.slane %v2471, 4
        %v2474 = vrot.slane %v2351, 6
        %v2475 = vsel %vm610, %v2473, %v2474
        %v2476 = vrot.slane %v2352, 6
        %v2477 = vrot.slane %v2476, 4
        %v2478 = vrot.slane %v2353, 6
        %v2479 = vsel %vm610, %v2477, %v2478
        %v2480 = vrot.slane %v2478, 4
        %v2481 = vrot.slane %v2354, 6
        %v2482 = vsel %vm610, %v2480, %v2481
        %v2483 = vrot.slane %v2355, 6
        %v2484 = vrot.slane %v2483, 4
        %v2485 = vrot.slane %v2356, 6
        %v2486 = vsel %vm610, %v2484, %v2485
        %v2487 = vrot.slane %v2485, 4
        %v2488 = vrot.slane %v2357, 6
        %v2489 = vsel %vm610, %v2487, %v2488
        %v2490 = vrot.slane %v2358, 6
        %v2491 = vrot.slane %v2490, 4
        %v2492 = vrot.slane %v2359, 6
        %v2493 = vsel %vm610, %v2491, %v2492
        %v2494 = vrot.slane %v2492, 4
        %v2495 = vrot.slane %v2360, 6
        %v2496 = vsel %vm610, %v2494, %v2495
        %v2497 = vrot.slane %v2361, 6
        %v2498 = vrot.slane %v2497, 4
        %v2499 = vrot.slane %v2362, 6
        %v2500 = vsel %vm610, %v2498, %v2499
        %v2501 = vrot.slane %v2499, 4
        %v2502 = vrot.slane %v2363, 6
        %v2503 = vsel %vm610, %v2501, %v2502
        %v2504 = vrot.slane %v2364, 6
        %v2505 = vrot.slane %v2504, 4
        %v2506 = vrot.slane %v2365, 6
        %v2507 = vsel %vm610, %v2505, %v2506
        %v2508 = vrot.slane %v2506, 4
        %v2509 = vrot.slane %v2366, 6
        %v2510 = vsel %vm610, %v2508, %v2509
        %v2511 = vrot.slane %v2367, 6
        %v2512 = vrot.slane %v2511, 4
        %v2513 = vrot.slane %v2368, 6
        %v2514 = vsel %vm610, %v2512, %v2513
        %v2515 = vrot.slane %v2513, 4
        %v2516 = vrot.slane %v2369, 6
        %v2517 = vsel %vm610, %v2515, %v2516
        %v2518 = vrot.slane %v2370, 6
        %v2519 = vrot.slane %v2518, 4
        %v2520 = vrot.slane %v2371, 6
        %v2521 = vsel %vm610, %v2519, %v2520
        %v2522 = vrot.slane %v2520, 4
        %v2523 = vrot.slane %v2372, 6
        %v2524 = vsel %vm610, %v2522, %v2523
        %v2525 = vrot.slane %v2373, 6
        %v2526 = vrot.slane %v2525, 4
        %v2527 = vrot.slane %v2374, 6
        %v2528 = vsel %vm610, %v2526, %v2527
        %v2529 = vrot.slane %v2527, 4
        %v2530 = vrot.slane %v2375, 6
        %v2531 = vsel %vm610, %v2529, %v2530
        %v2532 = vrot.slane %v2376, 6
        %v2533 = vrot.slane %v2532, 4
        %v2534 = vrot.slane %v2377, 6
        %v2535 = vsel %vm610, %v2533, %v2534
        %v2536 = vrot.slane %v2534, 4
        %v2537 = vrot.slane %v2378, 6
        %v2538 = vsel %vm610, %v2536, %v2537
        %2571 = vst [vmem:[#allocation3 + $0x34] sm:$0xf] %v2430
        %2572 = vst [vmem:[#allocation3 + $0x98] sm:$0xf] %v2433
        %2573 = vst [vmem:[#allocation3 + $0xfc] sm:$0xf] %v2437
        %2574 = vst [vmem:[#allocation3 + $0x160] sm:$0xf] %v2440
        %2575 = vst [vmem:[#allocation3 + $0x1c4] sm:$0xf] %v2444
        %2576 = vst [vmem:[#allocation3 + $0x228] sm:$0xf] %v2447
        %2577 = vst [vmem:[#allocation3 + $0x28c] sm:$0xf] %v2451
        %2578 = vst [vmem:[#allocation3 + $0x2f0] sm:$0xf] %v2454
        %2579 = vst [vmem:[#allocation3 + $0x354] sm:$0xf] %v2458
        %2580 = vst [vmem:[#allocation3 + $0x3b8] sm:$0xf] %v2461
        %2581 = vst [vmem:[#allocation3 + $0x41c] sm:$0xf] %v2465
        %2582 = vst [vmem:[#allocation3 + $0x480] sm:$0xf] %v2468
        %2583 = vst [vmem:[#allocation3 + $0x4e4] sm:$0xf] %v2472
        %2584 = vst [vmem:[#allocation3 + $0x548] sm:$0xf] %v2475
        %2585 = vst [vmem:[#allocation3 + $0x5ac] sm:$0xf] %v2479
        %2586 = vst [vmem:[#allocation3 + $0x610] sm:$0xf] %v2482
        %2587 = vst [vmem:[#allocation3 + $0x674] sm:$0xf] %v2486
        %2588 = vst [vmem:[#allocation3 + $0x6d8] sm:$0xf] %v2489
        %2589 = vst [vmem:[#allocation3 + $0x73c] sm:$0xf] %v2493
        %2590 = vst [vmem:[#allocation3 + $0x7a0] sm:$0xf] %v2496
        %2591 = vst [vmem:[#allocation3 + $0x804] sm:$0xf] %v2500
        %2592 = vst [vmem:[#allocation3 + $0x868] sm:$0xf] %v2503
        %2593 = vst [vmem:[#allocation3 + $0x8cc] sm:$0xf] %v2507
        %2594 = vst [vmem:[#allocation3 + $0x930] sm:$0xf] %v2510
        %2595 = vst [vmem:[#allocation3 + $0x994] sm:$0xf] %v2514
        %2596 = vst [vmem:[#allocation3 + $0x9f8] sm:$0xf] %v2517
        %2597 = vst [vmem:[#allocation3 + $0xa5c] sm:$0xf] %v2521
        %2598 = vst [vmem:[#allocation3 + $0xac0] sm:$0xf] %v2524
        %2599 = vst [vmem:[#allocation3 + $0xb24] sm:$0xf] %v2528
        %2600 = vst [vmem:[#allocation3 + $0xb88] sm:$0xf] %v2531
        %2601 = vst [vmem:[#allocation3 + $0xbec] sm:$0xf] %v2535
        %2602 = vst [vmem:[#allocation3 + $0xc50] sm:$0xf] %v2538
        %v2603 = vld [vmem:[%s1930 + $0x8] sm:$0xf]
        %v2604 = vld [vmem:[%s1930 + $0xc] sm:$0xf]
        %v2605 = vld [vmem:[%s1930 + $0x18] sm:$0xf]
        %v2606 = vld [vmem:[%s1930 + $0x1c] sm:$0xf]
        %v2607 = vld [vmem:[%s1930 + $0x28] sm:$0xf]
        %v2608 = vld [vmem:[%s1930 + $0x2c] sm:$0xf]
        %v2609 = vld [vmem:[%s1930 + $0x38] sm:$0xf]
        %v2610 = vld [vmem:[%s1930 + $0x3c] sm:$0xf]
        %v2611 = vld [vmem:[%s1930 + $0x48] sm:$0xf]
        %v2612 = vld [vmem:[%s1930 + $0x4c] sm:$0xf]
        %v2613 = vld [vmem:[%s1930 + $0x58] sm:$0xf]
        %v2614 = vld [vmem:[%s1930 + $0x5c] sm:$0xf]
        %v2615 = vld [vmem:[%s1930 + $0x68] sm:$0xf]
        %v2616 = vld [vmem:[%s1930 + $0x6c] sm:$0xf]
        %v2617 = vld [vmem:[%s1930 + $0x78] sm:$0xf]
        %v2618 = vld [vmem:[%s1930 + $0x7c] sm:$0xf]
        %v2619 = vld [vmem:[%s1930 + $0x88] sm:$0xf]
        %v2620 = vld [vmem:[%s1930 + $0x8c] sm:$0xf]
        %v2621 = vld [vmem:[%s1930 + $0x98] sm:$0xf]
        %v2622 = vld [vmem:[%s1930 + $0x9c] sm:$0xf]
        %v2623 = vld [vmem:[%s1930 + $0xa8] sm:$0xf]
        %v2624 = vld [vmem:[%s1930 + $0xac] sm:$0xf]
        %v2625 = vld [vmem:[%s1930 + $0xb8] sm:$0xf]
        %v2626 = vld [vmem:[%s1930 + $0xbc] sm:$0xf]
        %v2627 = vld [vmem:[%s1930 + $0xc8] sm:$0xf]
        %v2628 = vld [vmem:[%s1930 + $0xcc] sm:$0xf]
        %v2629 = vld [vmem:[%s1930 + $0xd8] sm:$0xf]
        %v2630 = vld [vmem:[%s1930 + $0xdc] sm:$0xf]
        %v2631 = vld [vmem:[%s1930 + $0xe8] sm:$0xf]
        %v2632 = vld [vmem:[%s1930 + $0xec] sm:$0xf]
        %v2633 = vld [vmem:[%s1930 + $0xf8] sm:$0xf]
        %v2634 = vld [vmem:[%s1930 + $0xfc] sm:$0xf]
        %2635 = vst [vmem:[#allocation3 + $0x38] sm:$0xf] %v2603
        %2636 = vst [vmem:[#allocation3 + $0x9c] sm:$0xf] %v2604
        %2637 = vst [vmem:[#allocation3 + $0x100] sm:$0xf] %v2605
        %2638 = vst [vmem:[#allocation3 + $0x164] sm:$0xf] %v2606
        %2639 = vst [vmem:[#allocation3 + $0x1c8] sm:$0xf] %v2607
        %2640 = vst [vmem:[#allocation3 + $0x22c] sm:$0xf] %v2608
        %2641 = vst [vmem:[#allocation3 + $0x290] sm:$0xf] %v2609
        %2642 = vst [vmem:[#allocation3 + $0x2f4] sm:$0xf] %v2610
        %2643 = vst [vmem:[#allocation3 + $0x358] sm:$0xf] %v2611
        %2644 = vst [vmem:[#allocation3 + $0x3bc] sm:$0xf] %v2612
        %2645 = vst [vmem:[#allocation3 + $0x420] sm:$0xf] %v2613
        %2646 = vst [vmem:[#allocation3 + $0x484] sm:$0xf] %v2614
        %2647 = vst [vmem:[#allocation3 + $0x4e8] sm:$0xf] %v2615
        %2648 = vst [vmem:[#allocation3 + $0x54c] sm:$0xf] %v2616
        %2649 = vst [vmem:[#allocation3 + $0x5b0] sm:$0xf] %v2617
        %2650 = vst [vmem:[#allocation3 + $0x614] sm:$0xf] %v2618
        %2651 = vst [vmem:[#allocation3 + $0x678] sm:$0xf] %v2619
        %2652 = vst [vmem:[#allocation3 + $0x6dc] sm:$0xf] %v2620
        %2653 = vst [vmem:[#allocation3 + $0x740] sm:$0xf] %v2621
        %2654 = vst [vmem:[#allocation3 + $0x7a4] sm:$0xf] %v2622
        %2655 = vst [vmem:[#allocation3 + $0x808] sm:$0xf] %v2623
        %2656 = vst [vmem:[#allocation3 + $0x86c] sm:$0xf] %v2624
        %2657 = vst [vmem:[#allocation3 + $0x8d0] sm:$0xf] %v2625
        %2658 = vst [vmem:[#allocation3 + $0x934] sm:$0xf] %v2626
        %2659 = vst [vmem:[#allocation3 + $0x998] sm:$0xf] %v2627
        %2660 = vst [vmem:[#allocation3 + $0x9fc] sm:$0xf] %v2628
        %2661 = vst [vmem:[#allocation3 + $0xa60] sm:$0xf] %v2629
        %2662 = vst [vmem:[#allocation3 + $0xac4] sm:$0xf] %v2630
        %2663 = vst [vmem:[#allocation3 + $0xb28] sm:$0xf] %v2631
        %2664 = vst [vmem:[#allocation3 + $0xb8c] sm:$0xf] %v2632
        %2665 = vst [vmem:[#allocation3 + $0xbf0] sm:$0xf] %v2633
        %2666 = vst [vmem:[#allocation3 + $0xc54] sm:$0xf] %v2634
        %s2667 = sadd.s32 %s444, 12
        %s2668 = smul.u32 %s2667, 4
        %s2669 = smul.addr %s2668, 4
        %s2670 = scalar_lea.vmem [#allocation2], %s2669
        %v2671 = vld [vmem:[%s2670] sm:$0xf]
        %v2672 = vld [vmem:[%s2670 + $0x4] sm:$0xf]
        %v2673 = vld [vmem:[%s2670 + $0x10] sm:$0xf]
        %v2674 = vld [vmem:[%s2670 + $0x14] sm:$0xf]
        %v2675 = vld [vmem:[%s2670 + $0x20] sm:$0xf]
        %v2676 = vld [vmem:[%s2670 + $0x24] sm:$0xf]
        %v2677 = vld [vmem:[%s2670 + $0x30] sm:$0xf]
        %v2678 = vld [vmem:[%s2670 + $0x34] sm:$0xf]
        %v2679 = vld [vmem:[%s2670 + $0x40] sm:$0xf]
        %v2680 = vld [vmem:[%s2670 + $0x44] sm:$0xf]
        %v2681 = vld [vmem:[%s2670 + $0x50] sm:$0xf]
        %v2682 = vld [vmem:[%s2670 + $0x54] sm:$0xf]
        %v2683 = vld [vmem:[%s2670 + $0x60] sm:$0xf]
        %v2684 = vld [vmem:[%s2670 + $0x64] sm:$0xf]
        %v2685 = vld [vmem:[%s2670 + $0x70] sm:$0xf]
        %v2686 = vld [vmem:[%s2670 + $0x74] sm:$0xf]
        %v2687 = vld [vmem:[%s2670 + $0x80] sm:$0xf]
        %v2688 = vld [vmem:[%s2670 + $0x84] sm:$0xf]
        %v2689 = vld [vmem:[%s2670 + $0x90] sm:$0xf]
        %v2690 = vld [vmem:[%s2670 + $0x94] sm:$0xf]
        %v2691 = vld [vmem:[%s2670 + $0xa0] sm:$0xf]
        %v2692 = vld [vmem:[%s2670 + $0xa4] sm:$0xf]
        %v2693 = vld [vmem:[%s2670 + $0xb0] sm:$0xf]
        %v2694 = vld [vmem:[%s2670 + $0xb4] sm:$0xf]
        %v2695 = vld [vmem:[%s2670 + $0xc0] sm:$0xf]
        %v2696 = vld [vmem:[%s2670 + $0xc4] sm:$0xf]
        %v2697 = vld [vmem:[%s2670 + $0xd0] sm:$0xf]
        %v2698 = vld [vmem:[%s2670 + $0xd4] sm:$0xf]
        %v2699 = vld [vmem:[%s2670 + $0xe0] sm:$0xf]
        %v2700 = vld [vmem:[%s2670 + $0xe4] sm:$0xf]
        %v2701 = vld [vmem:[%s2670 + $0xf0] sm:$0xf]
        %v2702 = vld [vmem:[%s2670 + $0xf4] sm:$0xf]
        %2703 = vst [vmem:[#allocation3 + $0x3c] sm:$0xf] %v2671
        %2704 = vst [vmem:[#allocation3 + $0xa0] sm:$0xf] %v2672
        %2705 = vst [vmem:[#allocation3 + $0x104] sm:$0xf] %v2673
        %2706 = vst [vmem:[#allocation3 + $0x168] sm:$0xf] %v2674
        %2707 = vst [vmem:[#allocation3 + $0x1cc] sm:$0xf] %v2675
        %2708 = vst [vmem:[#allocation3 + $0x230] sm:$0xf] %v2676
        %2709 = vst [vmem:[#allocation3 + $0x294] sm:$0xf] %v2677
        %2710 = vst [vmem:[#allocation3 + $0x2f8] sm:$0xf] %v2678
        %2711 = vst [vmem:[#allocation3 + $0x35c] sm:$0xf] %v2679
        %2712 = vst [vmem:[#allocation3 + $0x3c0] sm:$0xf] %v2680
        %2713 = vst [vmem:[#allocation3 + $0x424] sm:$0xf] %v2681
        %2714 = vst [vmem:[#allocation3 + $0x488] sm:$0xf] %v2682
        %2715 = vst [vmem:[#allocation3 + $0x4ec] sm:$0xf] %v2683
        %2716 = vst [vmem:[#allocation3 + $0x550] sm:$0xf] %v2684
        %2717 = vst [vmem:[#allocation3 + $0x5b4] sm:$0xf] %v2685
        %2718 = vst [vmem:[#allocation3 + $0x618] sm:$0xf] %v2686
        %2719 = vst [vmem:[#allocation3 + $0x67c] sm:$0xf] %v2687
        %2720 = vst [vmem:[#allocation3 + $0x6e0] sm:$0xf] %v2688
        %2721 = vst [vmem:[#allocation3 + $0x744] sm:$0xf] %v2689
        %2722 = vst [vmem:[#allocation3 + $0x7a8] sm:$0xf] %v2690
        %2723 = vst [vmem:[#allocation3 + $0x80c] sm:$0xf] %v2691
        %2724 = vst [vmem:[#allocation3 + $0x870] sm:$0xf] %v2692
        %2725 = vst [vmem:[#allocation3 + $0x8d4] sm:$0xf] %v2693
        %2726 = vst [vmem:[#allocation3 + $0x938] sm:$0xf] %v2694
        %2727 = vst [vmem:[#allocation3 + $0x99c] sm:$0xf] %v2695
        %2728 = vst [vmem:[#allocation3 + $0xa00] sm:$0xf] %v2696
        %2729 = vst [vmem:[#allocation3 + $0xa64] sm:$0xf] %v2697
        %2730 = vst [vmem:[#allocation3 + $0xac8] sm:$0xf] %v2698
        %2731 = vst [vmem:[#allocation3 + $0xb2c] sm:$0xf] %v2699
        %2732 = vst [vmem:[#allocation3 + $0xb90] sm:$0xf] %v2700
        %2733 = vst [vmem:[#allocation3 + $0xbf4] sm:$0xf] %v2701
        %2734 = vst [vmem:[#allocation3 + $0xc58] sm:$0xf] %v2702
        %v2735 = vld [vmem:[%s2670] sm:$0xc]
        %v2736 = vld [vmem:[%s2670 + $0x4] sm:$0xf]
        %v2737 = vld [vmem:[%s2670 + $0x8] sm:$0x3]
        %v2738 = vld [vmem:[%s2670 + $0x10] sm:$0xc]
        %v2739 = vld [vmem:[%s2670 + $0x14] sm:$0xf]
        %v2740 = vld [vmem:[%s2670 + $0x18] sm:$0x3]
        %v2741 = vld [vmem:[%s2670 + $0x20] sm:$0xc]
        %v2742 = vld [vmem:[%s2670 + $0x24] sm:$0xf]
        %v2743 = vld [vmem:[%s2670 + $0x28] sm:$0x3]
        %v2744 = vld [vmem:[%s2670 + $0x30] sm:$0xc]
        %v2745 = vld [vmem:[%s2670 + $0x34] sm:$0xf]
        %v2746 = vld [vmem:[%s2670 + $0x38] sm:$0x3]
        %v2747 = vld [vmem:[%s2670 + $0x40] sm:$0xc]
        %v2748 = vld [vmem:[%s2670 + $0x44] sm:$0xf]
        %v2749 = vld [vmem:[%s2670 + $0x48] sm:$0x3]
        %v2750 = vld [vmem:[%s2670 + $0x50] sm:$0xc]
        %v2751 = vld [vmem:[%s2670 + $0x54] sm:$0xf]
        %v2752 = vld [vmem:[%s2670 + $0x58] sm:$0x3]
        %v2753 = vld [vmem:[%s2670 + $0x60] sm:$0xc]
        %v2754 = vld [vmem:[%s2670 + $0x64] sm:$0xf]
        %v2755 = vld [vmem:[%s2670 + $0x68] sm:$0x3]
        %v2756 = vld [vmem:[%s2670 + $0x70] sm:$0xc]
        %v2757 = vld [vmem:[%s2670 + $0x74] sm:$0xf]
        %v2758 = vld [vmem:[%s2670 + $0x78] sm:$0x3]
        %v2759 = vld [vmem:[%s2670 + $0x80] sm:$0xc]
        %v2760 = vld [vmem:[%s2670 + $0x84] sm:$0xf]
        %v2761 = vld [vmem:[%s2670 + $0x88] sm:$0x3]
        %v2762 = vld [vmem:[%s2670 + $0x90] sm:$0xc]
        %v2763 = vld [vmem:[%s2670 + $0x94] sm:$0xf]
        %v2764 = vld [vmem:[%s2670 + $0x98] sm:$0x3]
        %v2765 = vld [vmem:[%s2670 + $0xa0] sm:$0xc]
        %v2766 = vld [vmem:[%s2670 + $0xa4] sm:$0xf]
        %v2767 = vld [vmem:[%s2670 + $0xa8] sm:$0x3]
        %v2768 = vld [vmem:[%s2670 + $0xb0] sm:$0xc]
        %v2769 = vld [vmem:[%s2670 + $0xb4] sm:$0xf]
        %v2770 = vld [vmem:[%s2670 + $0xb8] sm:$0x3]
        %v2771 = vld [vmem:[%s2670 + $0xc0] sm:$0xc]
        %v2772 = vld [vmem:[%s2670 + $0xc4] sm:$0xf]
        %v2773 = vld [vmem:[%s2670 + $0xc8] sm:$0x3]
        %v2774 = vld [vmem:[%s2670 + $0xd0] sm:$0xc]
        %v2775 = vld [vmem:[%s2670 + $0xd4] sm:$0xf]
        %v2776 = vld [vmem:[%s2670 + $0xd8] sm:$0x3]
        %v2777 = vld [vmem:[%s2670 + $0xe0] sm:$0xc]
        %v2778 = vld [vmem:[%s2670 + $0xe4] sm:$0xf]
        %v2779 = vld [vmem:[%s2670 + $0xe8] sm:$0x3]
        %v2780 = vld [vmem:[%s2670 + $0xf0] sm:$0xc]
        %v2781 = vld [vmem:[%s2670 + $0xf4] sm:$0xf]
        %v2782 = vld [vmem:[%s2670 + $0xf8] sm:$0x3]
        %v2831 = vrot.slane %v2735, 6
        %v2832 = vrot.slane %v2831, 4
        %v2833 = vrot.slane %v2736, 6
        %v2834 = vsel %vm610, %v2832, %v2833
        %v2835 = vrot.slane %v2833, 4
        %v2836 = vrot.slane %v2737, 6
        %v2837 = vsel %vm610, %v2835, %v2836
        %v2838 = vrot.slane %v2738, 6
        %v2839 = vrot.slane %v2838, 4
        %v2840 = vrot.slane %v2739, 6
        %v2841 = vsel %vm610, %v2839, %v2840
        %v2842 = vrot.slane %v2840, 4
        %v2843 = vrot.slane %v2740, 6
        %v2844 = vsel %vm610, %v2842, %v2843
        %v2845 = vrot.slane %v2741, 6
        %v2846 = vrot.slane %v2845, 4
        %v2847 = vrot.slane %v2742, 6
        %v2848 = vsel %vm610, %v2846, %v2847
        %v2849 = vrot.slane %v2847, 4
        %v2850 = vrot.slane %v2743, 6
        %v2851 = vsel %vm610, %v2849, %v2850
        %v2852 = vrot.slane %v2744, 6
        %v2853 = vrot.slane %v2852, 4
        %v2854 = vrot.slane %v2745, 6
        %v2855 = vsel %vm610, %v2853, %v2854
        %v2856 = vrot.slane %v2854, 4
        %v2857 = vrot.slane %v2746, 6
        %v2858 = vsel %vm610, %v2856, %v2857
        %v2859 = vrot.slane %v2747, 6
        %v2860 = vrot.slane %v2859, 4
        %v2861 = vrot.slane %v2748, 6
        %v2862 = vsel %vm610, %v2860, %v2861
        %v2863 = vrot.slane %v2861, 4
        %v2864 = vrot.slane %v2749, 6
        %v2865 = vsel %vm610, %v2863, %v2864
        %v2866 = vrot.slane %v2750, 6
        %v2867 = vrot.slane %v2866, 4
        %v2868 = vrot.slane %v2751, 6
        %v2869 = vsel %vm610, %v2867, %v2868
        %v2870 = vrot.slane %v2868, 4
        %v2871 = vrot.slane %v2752, 6
        %v2872 = vsel %vm610, %v2870, %v2871
        %v2873 = vrot.slane %v2753, 6
        %v2874 = vrot.slane %v2873, 4
        %v2875 = vrot.slane %v2754, 6
        %v2876 = vsel %vm610, %v2874, %v2875
        %v2877 = vrot.slane %v2875, 4
        %v2878 = vrot.slane %v2755, 6
        %v2879 = vsel %vm610, %v2877, %v2878
        %v2880 = vrot.slane %v2756, 6
        %v2881 = vrot.slane %v2880, 4
        %v2882 = vrot.slane %v2757, 6
        %v2883 = vsel %vm610, %v2881, %v2882
        %v2884 = vrot.slane %v2882, 4
        %v2885 = vrot.slane %v2758, 6
        %v2886 = vsel %vm610, %v2884, %v2885
        %v2887 = vrot.slane %v2759, 6
        %v2888 = vrot.slane %v2887, 4
        %v2889 = vrot.slane %v2760, 6
        %v2890 = vsel %vm610, %v2888, %v2889
        %v2891 = vrot.slane %v2889, 4
        %v2892 = vrot.slane %v2761, 6
        %v2893 = vsel %vm610, %v2891, %v2892
        %v2894 = vrot.slane %v2762, 6
        %v2895 = vrot.slane %v2894, 4
        %v2896 = vrot.slane %v2763, 6
        %v2897 = vsel %vm610, %v2895, %v2896
        %v2898 = vrot.slane %v2896, 4
        %v2899 = vrot.slane %v2764, 6
        %v2900 = vsel %vm610, %v2898, %v2899
        %v2901 = vrot.slane %v2765, 6
        %v2902 = vrot.slane %v2901, 4
        %v2903 = vrot.slane %v2766, 6
        %v2904 = vsel %vm610, %v2902, %v2903
        %v2905 = vrot.slane %v2903, 4
        %v2906 = vrot.slane %v2767, 6
        %v2907 = vsel %vm610, %v2905, %v2906
        %v2908 = vrot.slane %v2768, 6
        %v2909 = vrot.slane %v2908, 4
        %v2910 = vrot.slane %v2769, 6
        %v2911 = vsel %vm610, %v2909, %v2910
        %v2912 = vrot.slane %v2910, 4
        %v2913 = vrot.slane %v2770, 6
        %v2914 = vsel %vm610, %v2912, %v2913
        %v2915 = vrot.slane %v2771, 6
        %v2916 = vrot.slane %v2915, 4
        %v2917 = vrot.slane %v2772, 6
        %v2918 = vsel %vm610, %v2916, %v2917
        %v2919 = vrot.slane %v2917, 4
        %v2920 = vrot.slane %v2773, 6
        %v2921 = vsel %vm610, %v2919, %v2920
        %v2922 = vrot.slane %v2774, 6
        %v2923 = vrot.slane %v2922, 4
        %v2924 = vrot.slane %v2775, 6
        %v2925 = vsel %vm610, %v2923, %v2924
        %v2926 = vrot.slane %v2924, 4
        %v2927 = vrot.slane %v2776, 6
        %v2928 = vsel %vm610, %v2926, %v2927
        %v2929 = vrot.slane %v2777, 6
        %v2930 = vrot.slane %v2929, 4
        %v2931 = vrot.slane %v2778, 6
        %v2932 = vsel %vm610, %v2930, %v2931
        %v2933 = vrot.slane %v2931, 4
        %v2934 = vrot.slane %v2779, 6
        %v2935 = vsel %vm610, %v2933, %v2934
        %v2936 = vrot.slane %v2780, 6
        %v2937 = vrot.slane %v2936, 4
        %v2938 = vrot.slane %v2781, 6
        %v2939 = vsel %vm610, %v2937, %v2938
        %v2940 = vrot.slane %v2938, 4
        %v2941 = vrot.slane %v2782, 6
        %v2942 = vsel %vm610, %v2940, %v2941
        %2975 = vst [vmem:[#allocation3 + $0x40] sm:$0xf] %v2834
        %2976 = vst [vmem:[#allocation3 + $0xa4] sm:$0xf] %v2837
        %2977 = vst [vmem:[#allocation3 + $0x108] sm:$0xf] %v2841
        %2978 = vst [vmem:[#allocation3 + $0x16c] sm:$0xf] %v2844
        %2979 = vst [vmem:[#allocation3 + $0x1d0] sm:$0xf] %v2848
        %2980 = vst [vmem:[#allocation3 + $0x234] sm:$0xf] %v2851
        %2981 = vst [vmem:[#allocation3 + $0x298] sm:$0xf] %v2855
        %2982 = vst [vmem:[#allocation3 + $0x2fc] sm:$0xf] %v2858
        %2983 = vst [vmem:[#allocation3 + $0x360] sm:$0xf] %v2862
        %2984 = vst [vmem:[#allocation3 + $0x3c4] sm:$0xf] %v2865
        %2985 = vst [vmem:[#allocation3 + $0x428] sm:$0xf] %v2869
        %2986 = vst [vmem:[#allocation3 + $0x48c] sm:$0xf] %v2872
        %2987 = vst [vmem:[#allocation3 + $0x4f0] sm:$0xf] %v2876
        %2988 = vst [vmem:[#allocation3 + $0x554] sm:$0xf] %v2879
        %2989 = vst [vmem:[#allocation3 + $0x5b8] sm:$0xf] %v2883
        %2990 = vst [vmem:[#allocation3 + $0x61c] sm:$0xf] %v2886
        %2991 = vst [vmem:[#allocation3 + $0x680] sm:$0xf] %v2890
        %2992 = vst [vmem:[#allocation3 + $0x6e4] sm:$0xf] %v2893
        %2993 = vst [vmem:[#allocation3 + $0x748] sm:$0xf] %v2897
        %2994 = vst [vmem:[#allocation3 + $0x7ac] sm:$0xf] %v2900
        %2995 = vst [vmem:[#allocation3 + $0x810] sm:$0xf] %v2904
        %2996 = vst [vmem:[#allocation3 + $0x874] sm:$0xf] %v2907
        %2997 = vst [vmem:[#allocation3 + $0x8d8] sm:$0xf] %v2911
        %2998 = vst [vmem:[#allocation3 + $0x93c] sm:$0xf] %v2914
        %2999 = vst [vmem:[#allocation3 + $0x9a0] sm:$0xf] %v2918
        %3000 = vst [vmem:[#allocation3 + $0xa04] sm:$0xf] %v2921
        %3001 = vst [vmem:[#allocation3 + $0xa68] sm:$0xf] %v2925
        %3002 = vst [vmem:[#allocation3 + $0xacc] sm:$0xf] %v2928
        %3003 = vst [vmem:[#allocation3 + $0xb30] sm:$0xf] %v2932
        %3004 = vst [vmem:[#allocation3 + $0xb94] sm:$0xf] %v2935
        %3005 = vst [vmem:[#allocation3 + $0xbf8] sm:$0xf] %v2939
        %3006 = vst [vmem:[#allocation3 + $0xc5c] sm:$0xf] %v2942
        %v3007 = vld [vmem:[%s2670 + $0x4] sm:$0xf]
        %v3008 = vld [vmem:[%s2670 + $0x8] sm:$0xf]
        %v3009 = vld [vmem:[%s2670 + $0x14] sm:$0xf]
        %v3010 = vld [vmem:[%s2670 + $0x18] sm:$0xf]
        %v3011 = vld [vmem:[%s2670 + $0x24] sm:$0xf]
        %v3012 = vld [vmem:[%s2670 + $0x28] sm:$0xf]
        %v3013 = vld [vmem:[%s2670 + $0x34] sm:$0xf]
        %v3014 = vld [vmem:[%s2670 + $0x38] sm:$0xf]
        %v3015 = vld [vmem:[%s2670 + $0x44] sm:$0xf]
        %v3016 = vld [vmem:[%s2670 + $0x48] sm:$0xf]
        %v3017 = vld [vmem:[%s2670 + $0x54] sm:$0xf]
        %v3018 = vld [vmem:[%s2670 + $0x58] sm:$0xf]
        %v3019 = vld [vmem:[%s2670 + $0x64] sm:$0xf]
        %v3020 = vld [vmem:[%s2670 + $0x68] sm:$0xf]
        %v3021 = vld [vmem:[%s2670 + $0x74] sm:$0xf]
        %v3022 = vld [vmem:[%s2670 + $0x78] sm:$0xf]
        %v3023 = vld [vmem:[%s2670 + $0x84] sm:$0xf]
        %v3024 = vld [vmem:[%s2670 + $0x88] sm:$0xf]
        %v3025 = vld [vmem:[%s2670 + $0x94] sm:$0xf]
        %v3026 = vld [vmem:[%s2670 + $0x98] sm:$0xf]
        %v3027 = vld [vmem:[%s2670 + $0xa4] sm:$0xf]
        %v3028 = vld [vmem:[%s2670 + $0xa8] sm:$0xf]
        %v3029 = vld [vmem:[%s2670 + $0xb4] sm:$0xf]
        %v3030 = vld [vmem:[%s2670 + $0xb8] sm:$0xf]
        %v3031 = vld [vmem:[%s2670 + $0xc4] sm:$0xf]
        %v3032 = vld [vmem:[%s2670 + $0xc8] sm:$0xf]
        %v3033 = vld [vmem:[%s2670 + $0xd4] sm:$0xf]
        %v3034 = vld [vmem:[%s2670 + $0xd8] sm:$0xf]
        %v3035 = vld [vmem:[%s2670 + $0xe4] sm:$0xf]
        %v3036 = vld [vmem:[%s2670 + $0xe8] sm:$0xf]
        %v3037 = vld [vmem:[%s2670 + $0xf4] sm:$0xf]
        %v3038 = vld [vmem:[%s2670 + $0xf8] sm:$0xf]
        %3039 = vst [vmem:[#allocation3 + $0x44] sm:$0xf] %v3007
        %3040 = vst [vmem:[#allocation3 + $0xa8] sm:$0xf] %v3008
        %3041 = vst [vmem:[#allocation3 + $0x10c] sm:$0xf] %v3009
        %3042 = vst [vmem:[#allocation3 + $0x170] sm:$0xf] %v3010
        %3043 = vst [vmem:[#allocation3 + $0x1d4] sm:$0xf] %v3011
        %3044 = vst [vmem:[#allocation3 + $0x238] sm:$0xf] %v3012
        %3045 = vst [vmem:[#allocation3 + $0x29c] sm:$0xf] %v3013
        %3046 = vst [vmem:[#allocation3 + $0x300] sm:$0xf] %v3014
        %3047 = vst [vmem:[#allocation3 + $0x364] sm:$0xf] %v3015
        %3048 = vst [vmem:[#allocation3 + $0x3c8] sm:$0xf] %v3016
        %3049 = vst [vmem:[#allocation3 + $0x42c] sm:$0xf] %v3017
        %3050 = vst [vmem:[#allocation3 + $0x490] sm:$0xf] %v3018
        %3051 = vst [vmem:[#allocation3 + $0x4f4] sm:$0xf] %v3019
        %3052 = vst [vmem:[#allocation3 + $0x558] sm:$0xf] %v3020
        %3053 = vst [vmem:[#allocation3 + $0x5bc] sm:$0xf] %v3021
        %3054 = vst [vmem:[#allocation3 + $0x620] sm:$0xf] %v3022
        %3055 = vst [vmem:[#allocation3 + $0x684] sm:$0xf] %v3023
        %3056 = vst [vmem:[#allocation3 + $0x6e8] sm:$0xf] %v3024
        %3057 = vst [vmem:[#allocation3 + $0x74c] sm:$0xf] %v3025
        %3058 = vst [vmem:[#allocation3 + $0x7b0] sm:$0xf] %v3026
        %3059 = vst [vmem:[#allocation3 + $0x814] sm:$0xf] %v3027
        %3060 = vst [vmem:[#allocation3 + $0x878] sm:$0xf] %v3028
        %3061 = vst [vmem:[#allocation3 + $0x8dc] sm:$0xf] %v3029
        %3062 = vst [vmem:[#allocation3 + $0x940] sm:$0xf] %v3030
        %3063 = vst [vmem:[#allocation3 + $0x9a4] sm:$0xf] %v3031
        %3064 = vst [vmem:[#allocation3 + $0xa08] sm:$0xf] %v3032
        %3065 = vst [vmem:[#allocation3 + $0xa6c] sm:$0xf] %v3033
        %3066 = vst [vmem:[#allocation3 + $0xad0] sm:$0xf] %v3034
        %3067 = vst [vmem:[#allocation3 + $0xb34] sm:$0xf] %v3035
        %3068 = vst [vmem:[#allocation3 + $0xb98] sm:$0xf] %v3036
        %3069 = vst [vmem:[#allocation3 + $0xbfc] sm:$0xf] %v3037
        %3070 = vst [vmem:[#allocation3 + $0xc60] sm:$0xf] %v3038
        %v3071 = vld [vmem:[%s2670 + $0x4] sm:$0xc]
        %v3072 = vld [vmem:[%s2670 + $0x8] sm:$0xf]
        %v3073 = vld [vmem:[%s2670 + $0xc] sm:$0x3]
        %v3074 = vld [vmem:[%s2670 + $0x14] sm:$0xc]
        %v3075 = vld [vmem:[%s2670 + $0x18] sm:$0xf]
        %v3076 = vld [vmem:[%s2670 + $0x1c] sm:$0x3]
        %v3077 = vld [vmem:[%s2670 + $0x24] sm:$0xc]
        %v3078 = vld [vmem:[%s2670 + $0x28] sm:$0xf]
        %v3079 = vld [vmem:[%s2670 + $0x2c] sm:$0x3]
        %v3080 = vld [vmem:[%s2670 + $0x34] sm:$0xc]
        %v3081 = vld [vmem:[%s2670 + $0x38] sm:$0xf]
        %v3082 = vld [vmem:[%s2670 + $0x3c] sm:$0x3]
        %v3083 = vld [vmem:[%s2670 + $0x44] sm:$0xc]
        %v3084 = vld [vmem:[%s2670 + $0x48] sm:$0xf]
        %v3085 = vld [vmem:[%s2670 + $0x4c] sm:$0x3]
        %v3086 = vld [vmem:[%s2670 + $0x54] sm:$0xc]
        %v3087 = vld [vmem:[%s2670 + $0x58] sm:$0xf]
        %v3088 = vld [vmem:[%s2670 + $0x5c] sm:$0x3]
        %v3089 = vld [vmem:[%s2670 + $0x64] sm:$0xc]
        %v3090 = vld [vmem:[%s2670 + $0x68] sm:$0xf]
        %v3091 = vld [vmem:[%s2670 + $0x6c] sm:$0x3]
        %v3092 = vld [vmem:[%s2670 + $0x74] sm:$0xc]
        %v3093 = vld [vmem:[%s2670 + $0x78] sm:$0xf]
        %v3094 = vld [vmem:[%s2670 + $0x7c] sm:$0x3]
        %v3095 = vld [vmem:[%s2670 + $0x84] sm:$0xc]
        %v3096 = vld [vmem:[%s2670 + $0x88] sm:$0xf]
        %v3097 = vld [vmem:[%s2670 + $0x8c] sm:$0x3]
        %v3098 = vld [vmem:[%s2670 + $0x94] sm:$0xc]
        %v3099 = vld [vmem:[%s2670 + $0x98] sm:$0xf]
        %v3100 = vld [vmem:[%s2670 + $0x9c] sm:$0x3]
        %v3101 = vld [vmem:[%s2670 + $0xa4] sm:$0xc]
        %v3102 = vld [vmem:[%s2670 + $0xa8] sm:$0xf]
        %v3103 = vld [vmem:[%s2670 + $0xac] sm:$0x3]
        %v3104 = vld [vmem:[%s2670 + $0xb4] sm:$0xc]
        %v3105 = vld [vmem:[%s2670 + $0xb8] sm:$0xf]
        %v3106 = vld [vmem:[%s2670 + $0xbc] sm:$0x3]
        %v3107 = vld [vmem:[%s2670 + $0xc4] sm:$0xc]
        %v3108 = vld [vmem:[%s2670 + $0xc8] sm:$0xf]
        %v3109 = vld [vmem:[%s2670 + $0xcc] sm:$0x3]
        %v3110 = vld [vmem:[%s2670 + $0xd4] sm:$0xc]
        %v3111 = vld [vmem:[%s2670 + $0xd8] sm:$0xf]
        %v3112 = vld [vmem:[%s2670 + $0xdc] sm:$0x3]
        %v3113 = vld [vmem:[%s2670 + $0xe4] sm:$0xc]
        %v3114 = vld [vmem:[%s2670 + $0xe8] sm:$0xf]
        %v3115 = vld [vmem:[%s2670 + $0xec] sm:$0x3]
        %v3116 = vld [vmem:[%s2670 + $0xf4] sm:$0xc]
        %v3117 = vld [vmem:[%s2670 + $0xf8] sm:$0xf]
        %v3118 = vld [vmem:[%s2670 + $0xfc] sm:$0x3]
        %v3167 = vrot.slane %v3071, 6
        %v3168 = vrot.slane %v3167, 4
        %v3169 = vrot.slane %v3072, 6
        %v3170 = vsel %vm610, %v3168, %v3169
        %v3171 = vrot.slane %v3169, 4
        %v3172 = vrot.slane %v3073, 6
        %v3173 = vsel %vm610, %v3171, %v3172
        %v3174 = vrot.slane %v3074, 6
        %v3175 = vrot.slane %v3174, 4
        %v3176 = vrot.slane %v3075, 6
        %v3177 = vsel %vm610, %v3175, %v3176
        %v3178 = vrot.slane %v3176, 4
        %v3179 = vrot.slane %v3076, 6
        %v3180 = vsel %vm610, %v3178, %v3179
        %v3181 = vrot.slane %v3077, 6
        %v3182 = vrot.slane %v3181, 4
        %v3183 = vrot.slane %v3078, 6
        %v3184 = vsel %vm610, %v3182, %v3183
        %v3185 = vrot.slane %v3183, 4
        %v3186 = vrot.slane %v3079, 6
        %v3187 = vsel %vm610, %v3185, %v3186
        %v3188 = vrot.slane %v3080, 6
        %v3189 = vrot.slane %v3188, 4
        %v3190 = vrot.slane %v3081, 6
        %v3191 = vsel %vm610, %v3189, %v3190
        %v3192 = vrot.slane %v3190, 4
        %v3193 = vrot.slane %v3082, 6
        %v3194 = vsel %vm610, %v3192, %v3193
        %v3195 = vrot.slane %v3083, 6
        %v3196 = vrot.slane %v3195, 4
        %v3197 = vrot.slane %v3084, 6
        %v3198 = vsel %vm610, %v3196, %v3197
        %v3199 = vrot.slane %v3197, 4
        %v3200 = vrot.slane %v3085, 6
        %v3201 = vsel %vm610, %v3199, %v3200
        %v3202 = vrot.slane %v3086, 6
        %v3203 = vrot.slane %v3202, 4
        %v3204 = vrot.slane %v3087, 6
        %v3205 = vsel %vm610, %v3203, %v3204
        %v3206 = vrot.slane %v3204, 4
        %v3207 = vrot.slane %v3088, 6
        %v3208 = vsel %vm610, %v3206, %v3207
        %v3209 = vrot.slane %v3089, 6
        %v3210 = vrot.slane %v3209, 4
        %v3211 = vrot.slane %v3090, 6
        %v3212 = vsel %vm610, %v3210, %v3211
        %v3213 = vrot.slane %v3211, 4
        %v3214 = vrot.slane %v3091, 6
        %v3215 = vsel %vm610, %v3213, %v3214
        %v3216 = vrot.slane %v3092, 6
        %v3217 = vrot.slane %v3216, 4
        %v3218 = vrot.slane %v3093, 6
        %v3219 = vsel %vm610, %v3217, %v3218
        %v3220 = vrot.slane %v3218, 4
        %v3221 = vrot.slane %v3094, 6
        %v3222 = vsel %vm610, %v3220, %v3221
        %v3223 = vrot.slane %v3095, 6
        %v3224 = vrot.slane %v3223, 4
        %v3225 = vrot.slane %v3096, 6
        %v3226 = vsel %vm610, %v3224, %v3225
        %v3227 = vrot.slane %v3225, 4
        %v3228 = vrot.slane %v3097, 6
        %v3229 = vsel %vm610, %v3227, %v3228
        %v3230 = vrot.slane %v3098, 6
        %v3231 = vrot.slane %v3230, 4
        %v3232 = vrot.slane %v3099, 6
        %v3233 = vsel %vm610, %v3231, %v3232
        %v3234 = vrot.slane %v3232, 4
        %v3235 = vrot.slane %v3100, 6
        %v3236 = vsel %vm610, %v3234, %v3235
        %v3237 = vrot.slane %v3101, 6
        %v3238 = vrot.slane %v3237, 4
        %v3239 = vrot.slane %v3102, 6
        %v3240 = vsel %vm610, %v3238, %v3239
        %v3241 = vrot.slane %v3239, 4
        %v3242 = vrot.slane %v3103, 6
        %v3243 = vsel %vm610, %v3241, %v3242
        %v3244 = vrot.slane %v3104, 6
        %v3245 = vrot.slane %v3244, 4
        %v3246 = vrot.slane %v3105, 6
        %v3247 = vsel %vm610, %v3245, %v3246
        %v3248 = vrot.slane %v3246, 4
        %v3249 = vrot.slane %v3106, 6
        %v3250 = vsel %vm610, %v3248, %v3249
        %v3251 = vrot.slane %v3107, 6
        %v3252 = vrot.slane %v3251, 4
        %v3253 = vrot.slane %v3108, 6
        %v3254 = vsel %vm610, %v3252, %v3253
        %v3255 = vrot.slane %v3253, 4
        %v3256 = vrot.slane %v3109, 6
        %v3257 = vsel %vm610, %v3255, %v3256
        %v3258 = vrot.slane %v3110, 6
        %v3259 = vrot.slane %v3258, 4
        %v3260 = vrot.slane %v3111, 6
        %v3261 = vsel %vm610, %v3259, %v3260
        %v3262 = vrot.slane %v3260, 4
        %v3263 = vrot.slane %v3112, 6
        %v3264 = vsel %vm610, %v3262, %v3263
        %v3265 = vrot.slane %v3113, 6
        %v3266 = vrot.slane %v3265, 4
        %v3267 = vrot.slane %v3114, 6
        %v3268 = vsel %vm610, %v3266, %v3267
        %v3269 = vrot.slane %v3267, 4
        %v3270 = vrot.slane %v3115, 6
        %v3271 = vsel %vm610, %v3269, %v3270
        %v3272 = vrot.slane %v3116, 6
        %v3273 = vrot.slane %v3272, 4
        %v3274 = vrot.slane %v3117, 6
        %v3275 = vsel %vm610, %v3273, %v3274
        %v3276 = vrot.slane %v3274, 4
        %v3277 = vrot.slane %v3118, 6
        %v3278 = vsel %vm610, %v3276, %v3277
        %3311 = vst [vmem:[#allocation3 + $0x48] sm:$0xf] %v3170
        %3312 = vst [vmem:[#allocation3 + $0xac] sm:$0xf] %v3173
        %3313 = vst [vmem:[#allocation3 + $0x110] sm:$0xf] %v3177
        %3314 = vst [vmem:[#allocation3 + $0x174] sm:$0xf] %v3180
        %3315 = vst [vmem:[#allocation3 + $0x1d8] sm:$0xf] %v3184
        %3316 = vst [vmem:[#allocation3 + $0x23c] sm:$0xf] %v3187
        %3317 = vst [vmem:[#allocation3 + $0x2a0] sm:$0xf] %v3191
        %3318 = vst [vmem:[#allocation3 + $0x304] sm:$0xf] %v3194
        %3319 = vst [vmem:[#allocation3 + $0x368] sm:$0xf] %v3198
        %3320 = vst [vmem:[#allocation3 + $0x3cc] sm:$0xf] %v3201
        %3321 = vst [vmem:[#allocation3 + $0x430] sm:$0xf] %v3205
        %3322 = vst [vmem:[#allocation3 + $0x494] sm:$0xf] %v3208
        %3323 = vst [vmem:[#allocation3 + $0x4f8] sm:$0xf] %v3212
        %3324 = vst [vmem:[#allocation3 + $0x55c] sm:$0xf] %v3215
        %3325 = vst [vmem:[#allocation3 + $0x5c0] sm:$0xf] %v3219
        %3326 = vst [vmem:[#allocation3 + $0x624] sm:$0xf] %v3222
        %3327 = vst [vmem:[#allocation3 + $0x688] sm:$0xf] %v3226
        %3328 = vst [vmem:[#allocation3 + $0x6ec] sm:$0xf] %v3229
        %3329 = vst [vmem:[#allocation3 + $0x750] sm:$0xf] %v3233
        %3330 = vst [vmem:[#allocation3 + $0x7b4] sm:$0xf] %v3236
        %3331 = vst [vmem:[#allocation3 + $0x818] sm:$0xf] %v3240
        %3332 = vst [vmem:[#allocation3 + $0x87c] sm:$0xf] %v3243
        %3333 = vst [vmem:[#allocation3 + $0x8e0] sm:$0xf] %v3247
        %3334 = vst [vmem:[#allocation3 + $0x944] sm:$0xf] %v3250
        %3335 = vst [vmem:[#allocation3 + $0x9a8] sm:$0xf] %v3254
        %3336 = vst [vmem:[#allocation3 + $0xa0c] sm:$0xf] %v3257
        %3337 = vst [vmem:[#allocation3 + $0xa70] sm:$0xf] %v3261
        %3338 = vst [vmem:[#allocation3 + $0xad4] sm:$0xf] %v3264
        %3339 = vst [vmem:[#allocation3 + $0xb38] sm:$0xf] %v3268
        %3340 = vst [vmem:[#allocation3 + $0xb9c] sm:$0xf] %v3271
        %3341 = vst [vmem:[#allocation3 + $0xc00] sm:$0xf] %v3275
        %3342 = vst [vmem:[#allocation3 + $0xc64] sm:$0xf] %v3278
        %v3343 = vld [vmem:[%s2670 + $0x8] sm:$0xf]
        %v3344 = vld [vmem:[%s2670 + $0xc] sm:$0xf]
        %v3345 = vld [vmem:[%s2670 + $0x18] sm:$0xf]
        %v3346 = vld [vmem:[%s2670 + $0x1c] sm:$0xf]
        %v3347 = vld [vmem:[%s2670 + $0x28] sm:$0xf]
        %v3348 = vld [vmem:[%s2670 + $0x2c] sm:$0xf]
        %v3349 = vld [vmem:[%s2670 + $0x38] sm:$0xf]
        %v3350 = vld [vmem:[%s2670 + $0x3c] sm:$0xf]
        %v3351 = vld [vmem:[%s2670 + $0x48] sm:$0xf]
        %v3352 = vld [vmem:[%s2670 + $0x4c] sm:$0xf]
        %v3353 = vld [vmem:[%s2670 + $0x58] sm:$0xf]
        %v3354 = vld [vmem:[%s2670 + $0x5c] sm:$0xf]
        %v3355 = vld [vmem:[%s2670 + $0x68] sm:$0xf]
        %v3356 = vld [vmem:[%s2670 + $0x6c] sm:$0xf]
        %v3357 = vld [vmem:[%s2670 + $0x78] sm:$0xf]
        %v3358 = vld [vmem:[%s2670 + $0x7c] sm:$0xf]
        %v3359 = vld [vmem:[%s2670 + $0x88] sm:$0xf]
        %v3360 = vld [vmem:[%s2670 + $0x8c] sm:$0xf]
        %v3361 = vld [vmem:[%s2670 + $0x98] sm:$0xf]
        %v3362 = vld [vmem:[%s2670 + $0x9c] sm:$0xf]
        %v3363 = vld [vmem:[%s2670 + $0xa8] sm:$0xf]
        %v3364 = vld [vmem:[%s2670 + $0xac] sm:$0xf]
        %v3365 = vld [vmem:[%s2670 + $0xb8] sm:$0xf]
        %v3366 = vld [vmem:[%s2670 + $0xbc] sm:$0xf]
        %v3367 = vld [vmem:[%s2670 + $0xc8] sm:$0xf]
        %v3368 = vld [vmem:[%s2670 + $0xcc] sm:$0xf]
        %v3369 = vld [vmem:[%s2670 + $0xd8] sm:$0xf]
        %v3370 = vld [vmem:[%s2670 + $0xdc] sm:$0xf]
        %v3371 = vld [vmem:[%s2670 + $0xe8] sm:$0xf]
        %v3372 = vld [vmem:[%s2670 + $0xec] sm:$0xf]
        %v3373 = vld [vmem:[%s2670 + $0xf8] sm:$0xf]
        %v3374 = vld [vmem:[%s2670 + $0xfc] sm:$0xf]
        %3375 = vst [vmem:[#allocation3 + $0x4c] sm:$0xf] %v3343
        %3376 = vst [vmem:[#allocation3 + $0xb0] sm:$0xf] %v3344
        %3377 = vst [vmem:[#allocation3 + $0x114] sm:$0xf] %v3345
        %3378 = vst [vmem:[#allocation3 + $0x178] sm:$0xf] %v3346
        %3379 = vst [vmem:[#allocation3 + $0x1dc] sm:$0xf] %v3347
        %3380 = vst [vmem:[#allocation3 + $0x240] sm:$0xf] %v3348
        %3381 = vst [vmem:[#allocation3 + $0x2a4] sm:$0xf] %v3349
        %3382 = vst [vmem:[#allocation3 + $0x308] sm:$0xf] %v3350
        %3383 = vst [vmem:[#allocation3 + $0x36c] sm:$0xf] %v3351
        %3384 = vst [vmem:[#allocation3 + $0x3d0] sm:$0xf] %v3352
        %3385 = vst [vmem:[#allocation3 + $0x434] sm:$0xf] %v3353
        %3386 = vst [vmem:[#allocation3 + $0x498] sm:$0xf] %v3354
        %3387 = vst [vmem:[#allocation3 + $0x4fc] sm:$0xf] %v3355
        %3388 = vst [vmem:[#allocation3 + $0x560] sm:$0xf] %v3356
        %3389 = vst [vmem:[#allocation3 + $0x5c4] sm:$0xf] %v3357
        %3390 = vst [vmem:[#allocation3 + $0x628] sm:$0xf] %v3358
        %3391 = vst [vmem:[#allocation3 + $0x68c] sm:$0xf] %v3359
        %3392 = vst [vmem:[#allocation3 + $0x6f0] sm:$0xf] %v3360
        %3393 = vst [vmem:[#allocation3 + $0x754] sm:$0xf] %v3361
        %3394 = vst [vmem:[#allocation3 + $0x7b8] sm:$0xf] %v3362
        %3395 = vst [vmem:[#allocation3 + $0x81c] sm:$0xf] %v3363
        %3396 = vst [vmem:[#allocation3 + $0x880] sm:$0xf] %v3364
        %3397 = vst [vmem:[#allocation3 + $0x8e4] sm:$0xf] %v3365
        %3398 = vst [vmem:[#allocation3 + $0x948] sm:$0xf] %v3366
        %3399 = vst [vmem:[#allocation3 + $0x9ac] sm:$0xf] %v3367
        %3400 = vst [vmem:[#allocation3 + $0xa10] sm:$0xf] %v3368
        %3401 = vst [vmem:[#allocation3 + $0xa74] sm:$0xf] %v3369
        %3402 = vst [vmem:[#allocation3 + $0xad8] sm:$0xf] %v3370
        %3403 = vst [vmem:[#allocation3 + $0xb3c] sm:$0xf] %v3371
        %3404 = vst [vmem:[#allocation3 + $0xba0] sm:$0xf] %v3372
        %3405 = vst [vmem:[#allocation3 + $0xc04] sm:$0xf] %v3373
        %3406 = vst [vmem:[#allocation3 + $0xc68] sm:$0xf] %v3374
        %s3407 = sadd.s32 %s444, 16
        %s3408 = smul.u32 %s3407, 4
        %s3409 = smul.addr %s3408, 4
        %s3410 = scalar_lea.vmem [#allocation2], %s3409
        %v3411 = vld [vmem:[%s3410] sm:$0xf]
        %v3412 = vld [vmem:[%s3410 + $0x4] sm:$0xf]
        %v3413 = vld [vmem:[%s3410 + $0x10] sm:$0xf]
        %v3414 = vld [vmem:[%s3410 + $0x14] sm:$0xf]
        %v3415 = vld [vmem:[%s3410 + $0x20] sm:$0xf]
        %v3416 = vld [vmem:[%s3410 + $0x24] sm:$0xf]
        %v3417 = vld [vmem:[%s3410 + $0x30] sm:$0xf]
        %v3418 = vld [vmem:[%s3410 + $0x34] sm:$0xf]
        %v3419 = vld [vmem:[%s3410 + $0x40] sm:$0xf]
        %v3420 = vld [vmem:[%s3410 + $0x44] sm:$0xf]
        %v3421 = vld [vmem:[%s3410 + $0x50] sm:$0xf]
        %v3422 = vld [vmem:[%s3410 + $0x54] sm:$0xf]
        %v3423 = vld [vmem:[%s3410 + $0x60] sm:$0xf]
        %v3424 = vld [vmem:[%s3410 + $0x64] sm:$0xf]
        %v3425 = vld [vmem:[%s3410 + $0x70] sm:$0xf]
        %v3426 = vld [vmem:[%s3410 + $0x74] sm:$0xf]
        %v3427 = vld [vmem:[%s3410 + $0x80] sm:$0xf]
        %v3428 = vld [vmem:[%s3410 + $0x84] sm:$0xf]
        %v3429 = vld [vmem:[%s3410 + $0x90] sm:$0xf]
        %v3430 = vld [vmem:[%s3410 + $0x94] sm:$0xf]
        %v3431 = vld [vmem:[%s3410 + $0xa0] sm:$0xf]
        %v3432 = vld [vmem:[%s3410 + $0xa4] sm:$0xf]
        %v3433 = vld [vmem:[%s3410 + $0xb0] sm:$0xf]
        %v3434 = vld [vmem:[%s3410 + $0xb4] sm:$0xf]
        %v3435 = vld [vmem:[%s3410 + $0xc0] sm:$0xf]
        %v3436 = vld [vmem:[%s3410 + $0xc4] sm:$0xf]
        %v3437 = vld [vmem:[%s3410 + $0xd0] sm:$0xf]
        %v3438 = vld [vmem:[%s3410 + $0xd4] sm:$0xf]
        %v3439 = vld [vmem:[%s3410 + $0xe0] sm:$0xf]
        %v3440 = vld [vmem:[%s3410 + $0xe4] sm:$0xf]
        %v3441 = vld [vmem:[%s3410 + $0xf0] sm:$0xf]
        %v3442 = vld [vmem:[%s3410 + $0xf4] sm:$0xf]
        %3443 = vst [vmem:[#allocation3 + $0x50] sm:$0xf] %v3411
        %3444 = vst [vmem:[#allocation3 + $0xb4] sm:$0xf] %v3412
        %3445 = vst [vmem:[#allocation3 + $0x118] sm:$0xf] %v3413
        %3446 = vst [vmem:[#allocation3 + $0x17c] sm:$0xf] %v3414
        %3447 = vst [vmem:[#allocation3 + $0x1e0] sm:$0xf] %v3415
        %3448 = vst [vmem:[#allocation3 + $0x244] sm:$0xf] %v3416
        %3449 = vst [vmem:[#allocation3 + $0x2a8] sm:$0xf] %v3417
        %3450 = vst [vmem:[#allocation3 + $0x30c] sm:$0xf] %v3418
        %3451 = vst [vmem:[#allocation3 + $0x370] sm:$0xf] %v3419
        %3452 = vst [vmem:[#allocation3 + $0x3d4] sm:$0xf] %v3420
        %3453 = vst [vmem:[#allocation3 + $0x438] sm:$0xf] %v3421
        %3454 = vst [vmem:[#allocation3 + $0x49c] sm:$0xf] %v3422
        %3455 = vst [vmem:[#allocation3 + $0x500] sm:$0xf] %v3423
        %3456 = vst [vmem:[#allocation3 + $0x564] sm:$0xf] %v3424
        %3457 = vst [vmem:[#allocation3 + $0x5c8] sm:$0xf] %v3425
        %3458 = vst [vmem:[#allocation3 + $0x62c] sm:$0xf] %v3426
        %3459 = vst [vmem:[#allocation3 + $0x690] sm:$0xf] %v3427
        %3460 = vst [vmem:[#allocation3 + $0x6f4] sm:$0xf] %v3428
        %3461 = vst [vmem:[#allocation3 + $0x758] sm:$0xf] %v3429
        %3462 = vst [vmem:[#allocation3 + $0x7bc] sm:$0xf] %v3430
        %3463 = vst [vmem:[#allocation3 + $0x820] sm:$0xf] %v3431
        %3464 = vst [vmem:[#allocation3 + $0x884] sm:$0xf] %v3432
        %3465 = vst [vmem:[#allocation3 + $0x8e8] sm:$0xf] %v3433
        %3466 = vst [vmem:[#allocation3 + $0x94c] sm:$0xf] %v3434
        %3467 = vst [vmem:[#allocation3 + $0x9b0] sm:$0xf] %v3435
        %3468 = vst [vmem:[#allocation3 + $0xa14] sm:$0xf] %v3436
        %3469 = vst [vmem:[#allocation3 + $0xa78] sm:$0xf] %v3437
        %3470 = vst [vmem:[#allocation3 + $0xadc] sm:$0xf] %v3438
        %3471 = vst [vmem:[#allocation3 + $0xb40] sm:$0xf] %v3439
        %3472 = vst [vmem:[#allocation3 + $0xba4] sm:$0xf] %v3440
        %3473 = vst [vmem:[#allocation3 + $0xc08] sm:$0xf] %v3441
        %3474 = vst [vmem:[#allocation3 + $0xc6c] sm:$0xf] %v3442
        %v3475 = vld [vmem:[%s3410] sm:$0xc]
        %v3476 = vld [vmem:[%s3410 + $0x4] sm:$0xf]
        %v3477 = vld [vmem:[%s3410 + $0x8] sm:$0x3]
        %v3478 = vld [vmem:[%s3410 + $0x10] sm:$0xc]
        %v3479 = vld [vmem:[%s3410 + $0x14] sm:$0xf]
        %v3480 = vld [vmem:[%s3410 + $0x18] sm:$0x3]
        %v3481 = vld [vmem:[%s3410 + $0x20] sm:$0xc]
        %v3482 = vld [vmem:[%s3410 + $0x24] sm:$0xf]
        %v3483 = vld [vmem:[%s3410 + $0x28] sm:$0x3]
        %v3484 = vld [vmem:[%s3410 + $0x30] sm:$0xc]
        %v3485 = vld [vmem:[%s3410 + $0x34] sm:$0xf]
        %v3486 = vld [vmem:[%s3410 + $0x38] sm:$0x3]
        %v3487 = vld [vmem:[%s3410 + $0x40] sm:$0xc]
        %v3488 = vld [vmem:[%s3410 + $0x44] sm:$0xf]
        %v3489 = vld [vmem:[%s3410 + $0x48] sm:$0x3]
        %v3490 = vld [vmem:[%s3410 + $0x50] sm:$0xc]
        %v3491 = vld [vmem:[%s3410 + $0x54] sm:$0xf]
        %v3492 = vld [vmem:[%s3410 + $0x58] sm:$0x3]
        %v3493 = vld [vmem:[%s3410 + $0x60] sm:$0xc]
        %v3494 = vld [vmem:[%s3410 + $0x64] sm:$0xf]
        %v3495 = vld [vmem:[%s3410 + $0x68] sm:$0x3]
        %v3496 = vld [vmem:[%s3410 + $0x70] sm:$0xc]
        %v3497 = vld [vmem:[%s3410 + $0x74] sm:$0xf]
        %v3498 = vld [vmem:[%s3410 + $0x78] sm:$0x3]
        %v3499 = vld [vmem:[%s3410 + $0x80] sm:$0xc]
        %v3500 = vld [vmem:[%s3410 + $0x84] sm:$0xf]
        %v3501 = vld [vmem:[%s3410 + $0x88] sm:$0x3]
        %v3502 = vld [vmem:[%s3410 + $0x90] sm:$0xc]
        %v3503 = vld [vmem:[%s3410 + $0x94] sm:$0xf]
        %v3504 = vld [vmem:[%s3410 + $0x98] sm:$0x3]
        %v3505 = vld [vmem:[%s3410 + $0xa0] sm:$0xc]
        %v3506 = vld [vmem:[%s3410 + $0xa4] sm:$0xf]
        %v3507 = vld [vmem:[%s3410 + $0xa8] sm:$0x3]
        %v3508 = vld [vmem:[%s3410 + $0xb0] sm:$0xc]
        %v3509 = vld [vmem:[%s3410 + $0xb4] sm:$0xf]
        %v3510 = vld [vmem:[%s3410 + $0xb8] sm:$0x3]
        %v3511 = vld [vmem:[%s3410 + $0xc0] sm:$0xc]
        %v3512 = vld [vmem:[%s3410 + $0xc4] sm:$0xf]
        %v3513 = vld [vmem:[%s3410 + $0xc8] sm:$0x3]
        %v3514 = vld [vmem:[%s3410 + $0xd0] sm:$0xc]
        %v3515 = vld [vmem:[%s3410 + $0xd4] sm:$0xf]
        %v3516 = vld [vmem:[%s3410 + $0xd8] sm:$0x3]
        %v3517 = vld [vmem:[%s3410 + $0xe0] sm:$0xc]
        %v3518 = vld [vmem:[%s3410 + $0xe4] sm:$0xf]
        %v3519 = vld [vmem:[%s3410 + $0xe8] sm:$0x3]
        %v3520 = vld [vmem:[%s3410 + $0xf0] sm:$0xc]
        %v3521 = vld [vmem:[%s3410 + $0xf4] sm:$0xf]
        %v3522 = vld [vmem:[%s3410 + $0xf8] sm:$0x3]
        %v3571 = vrot.slane %v3475, 6
        %v3572 = vrot.slane %v3571, 4
        %v3573 = vrot.slane %v3476, 6
        %v3574 = vsel %vm610, %v3572, %v3573
        %v3575 = vrot.slane %v3573, 4
        %v3576 = vrot.slane %v3477, 6
        %v3577 = vsel %vm610, %v3575, %v3576
        %v3578 = vrot.slane %v3478, 6
        %v3579 = vrot.slane %v3578, 4
        %v3580 = vrot.slane %v3479, 6
        %v3581 = vsel %vm610, %v3579, %v3580
        %v3582 = vrot.slane %v3580, 4
        %v3583 = vrot.slane %v3480, 6
        %v3584 = vsel %vm610, %v3582, %v3583
        %v3585 = vrot.slane %v3481, 6
        %v3586 = vrot.slane %v3585, 4
        %v3587 = vrot.slane %v3482, 6
        %v3588 = vsel %vm610, %v3586, %v3587
        %v3589 = vrot.slane %v3587, 4
        %v3590 = vrot.slane %v3483, 6
        %v3591 = vsel %vm610, %v3589, %v3590
        %v3592 = vrot.slane %v3484, 6
        %v3593 = vrot.slane %v3592, 4
        %v3594 = vrot.slane %v3485, 6
        %v3595 = vsel %vm610, %v3593, %v3594
        %v3596 = vrot.slane %v3594, 4
        %v3597 = vrot.slane %v3486, 6
        %v3598 = vsel %vm610, %v3596, %v3597
        %v3599 = vrot.slane %v3487, 6
        %v3600 = vrot.slane %v3599, 4
        %v3601 = vrot.slane %v3488, 6
        %v3602 = vsel %vm610, %v3600, %v3601
        %v3603 = vrot.slane %v3601, 4
        %v3604 = vrot.slane %v3489, 6
        %v3605 = vsel %vm610, %v3603, %v3604
        %v3606 = vrot.slane %v3490, 6
        %v3607 = vrot.slane %v3606, 4
        %v3608 = vrot.slane %v3491, 6
        %v3609 = vsel %vm610, %v3607, %v3608
        %v3610 = vrot.slane %v3608, 4
        %v3611 = vrot.slane %v3492, 6
        %v3612 = vsel %vm610, %v3610, %v3611
        %v3613 = vrot.slane %v3493, 6
        %v3614 = vrot.slane %v3613, 4
        %v3615 = vrot.slane %v3494, 6
        %v3616 = vsel %vm610, %v3614, %v3615
        %v3617 = vrot.slane %v3615, 4
        %v3618 = vrot.slane %v3495, 6
        %v3619 = vsel %vm610, %v3617, %v3618
        %v3620 = vrot.slane %v3496, 6
        %v3621 = vrot.slane %v3620, 4
        %v3622 = vrot.slane %v3497, 6
        %v3623 = vsel %vm610, %v3621, %v3622
        %v3624 = vrot.slane %v3622, 4
        %v3625 = vrot.slane %v3498, 6
        %v3626 = vsel %vm610, %v3624, %v3625
        %v3627 = vrot.slane %v3499, 6
        %v3628 = vrot.slane %v3627, 4
        %v3629 = vrot.slane %v3500, 6
        %v3630 = vsel %vm610, %v3628, %v3629
        %v3631 = vrot.slane %v3629, 4
        %v3632 = vrot.slane %v3501, 6
        %v3633 = vsel %vm610, %v3631, %v3632
        %v3634 = vrot.slane %v3502, 6
        %v3635 = vrot.slane %v3634, 4
        %v3636 = vrot.slane %v3503, 6
        %v3637 = vsel %vm610, %v3635, %v3636
        %v3638 = vrot.slane %v3636, 4
        %v3639 = vrot.slane %v3504, 6
        %v3640 = vsel %vm610, %v3638, %v3639
        %v3641 = vrot.slane %v3505, 6
        %v3642 = vrot.slane %v3641, 4
        %v3643 = vrot.slane %v3506, 6
        %v3644 = vsel %vm610, %v3642, %v3643
        %v3645 = vrot.slane %v3643, 4
        %v3646 = vrot.slane %v3507, 6
        %v3647 = vsel %vm610, %v3645, %v3646
        %v3648 = vrot.slane %v3508, 6
        %v3649 = vrot.slane %v3648, 4
        %v3650 = vrot.slane %v3509, 6
        %v3651 = vsel %vm610, %v3649, %v3650
        %v3652 = vrot.slane %v3650, 4
        %v3653 = vrot.slane %v3510, 6
        %v3654 = vsel %vm610, %v3652, %v3653
        %v3655 = vrot.slane %v3511, 6
        %v3656 = vrot.slane %v3655, 4
        %v3657 = vrot.slane %v3512, 6
        %v3658 = vsel %vm610, %v3656, %v3657
        %v3659 = vrot.slane %v3657, 4
        %v3660 = vrot.slane %v3513, 6
        %v3661 = vsel %vm610, %v3659, %v3660
        %v3662 = vrot.slane %v3514, 6
        %v3663 = vrot.slane %v3662, 4
        %v3664 = vrot.slane %v3515, 6
        %v3665 = vsel %vm610, %v3663, %v3664
        %v3666 = vrot.slane %v3664, 4
        %v3667 = vrot.slane %v3516, 6
        %v3668 = vsel %vm610, %v3666, %v3667
        %v3669 = vrot.slane %v3517, 6
        %v3670 = vrot.slane %v3669, 4
        %v3671 = vrot.slane %v3518, 6
        %v3672 = vsel %vm610, %v3670, %v3671
        %v3673 = vrot.slane %v3671, 4
        %v3674 = vrot.slane %v3519, 6
        %v3675 = vsel %vm610, %v3673, %v3674
        %v3676 = vrot.slane %v3520, 6
        %v3677 = vrot.slane %v3676, 4
        %v3678 = vrot.slane %v3521, 6
        %v3679 = vsel %vm610, %v3677, %v3678
        %v3680 = vrot.slane %v3678, 4
        %v3681 = vrot.slane %v3522, 6
        %v3682 = vsel %vm610, %v3680, %v3681
        %3715 = vst [vmem:[#allocation3 + $0x54] sm:$0xf] %v3574
        %3716 = vst [vmem:[#allocation3 + $0xb8] sm:$0xf] %v3577
        %3717 = vst [vmem:[#allocation3 + $0x11c] sm:$0xf] %v3581
        %3718 = vst [vmem:[#allocation3 + $0x180] sm:$0xf] %v3584
        %3719 = vst [vmem:[#allocation3 + $0x1e4] sm:$0xf] %v3588
        %3720 = vst [vmem:[#allocation3 + $0x248] sm:$0xf] %v3591
        %3721 = vst [vmem:[#allocation3 + $0x2ac] sm:$0xf] %v3595
        %3722 = vst [vmem:[#allocation3 + $0x310] sm:$0xf] %v3598
        %3723 = vst [vmem:[#allocation3 + $0x374] sm:$0xf] %v3602
        %3724 = vst [vmem:[#allocation3 + $0x3d8] sm:$0xf] %v3605
        %3725 = vst [vmem:[#allocation3 + $0x43c] sm:$0xf] %v3609
        %3726 = vst [vmem:[#allocation3 + $0x4a0] sm:$0xf] %v3612
        %3727 = vst [vmem:[#allocation3 + $0x504] sm:$0xf] %v3616
        %3728 = vst [vmem:[#allocation3 + $0x568] sm:$0xf] %v3619
        %3729 = vst [vmem:[#allocation3 + $0x5cc] sm:$0xf] %v3623
        %3730 = vst [vmem:[#allocation3 + $0x630] sm:$0xf] %v3626
        %3731 = vst [vmem:[#allocation3 + $0x694] sm:$0xf] %v3630
        %3732 = vst [vmem:[#allocation3 + $0x6f8] sm:$0xf] %v3633
        %3733 = vst [vmem:[#allocation3 + $0x75c] sm:$0xf] %v3637
        %3734 = vst [vmem:[#allocation3 + $0x7c0] sm:$0xf] %v3640
        %3735 = vst [vmem:[#allocation3 + $0x824] sm:$0xf] %v3644
        %3736 = vst [vmem:[#allocation3 + $0x888] sm:$0xf] %v3647
        %3737 = vst [vmem:[#allocation3 + $0x8ec] sm:$0xf] %v3651
        %3738 = vst [vmem:[#allocation3 + $0x950] sm:$0xf] %v3654
        %3739 = vst [vmem:[#allocation3 + $0x9b4] sm:$0xf] %v3658
        %3740 = vst [vmem:[#allocation3 + $0xa18] sm:$0xf] %v3661
        %3741 = vst [vmem:[#allocation3 + $0xa7c] sm:$0xf] %v3665
        %3742 = vst [vmem:[#allocation3 + $0xae0] sm:$0xf] %v3668
        %3743 = vst [vmem:[#allocation3 + $0xb44] sm:$0xf] %v3672
        %3744 = vst [vmem:[#allocation3 + $0xba8] sm:$0xf] %v3675
        %3745 = vst [vmem:[#allocation3 + $0xc0c] sm:$0xf] %v3679
        %3746 = vst [vmem:[#allocation3 + $0xc70] sm:$0xf] %v3682
        %v3747 = vld [vmem:[%s3410 + $0x4] sm:$0xf]
        %v3748 = vld [vmem:[%s3410 + $0x8] sm:$0xf]
        %v3749 = vld [vmem:[%s3410 + $0x14] sm:$0xf]
        %v3750 = vld [vmem:[%s3410 + $0x18] sm:$0xf]
        %v3751 = vld [vmem:[%s3410 + $0x24] sm:$0xf]
        %v3752 = vld [vmem:[%s3410 + $0x28] sm:$0xf]
        %v3753 = vld [vmem:[%s3410 + $0x34] sm:$0xf]
        %v3754 = vld [vmem:[%s3410 + $0x38] sm:$0xf]
        %v3755 = vld [vmem:[%s3410 + $0x44] sm:$0xf]
        %v3756 = vld [vmem:[%s3410 + $0x48] sm:$0xf]
        %v3757 = vld [vmem:[%s3410 + $0x54] sm:$0xf]
        %v3758 = vld [vmem:[%s3410 + $0x58] sm:$0xf]
        %v3759 = vld [vmem:[%s3410 + $0x64] sm:$0xf]
        %v3760 = vld [vmem:[%s3410 + $0x68] sm:$0xf]
        %v3761 = vld [vmem:[%s3410 + $0x74] sm:$0xf]
        %v3762 = vld [vmem:[%s3410 + $0x78] sm:$0xf]
        %v3763 = vld [vmem:[%s3410 + $0x84] sm:$0xf]
        %v3764 = vld [vmem:[%s3410 + $0x88] sm:$0xf]
        %v3765 = vld [vmem:[%s3410 + $0x94] sm:$0xf]
        %v3766 = vld [vmem:[%s3410 + $0x98] sm:$0xf]
        %v3767 = vld [vmem:[%s3410 + $0xa4] sm:$0xf]
        %v3768 = vld [vmem:[%s3410 + $0xa8] sm:$0xf]
        %v3769 = vld [vmem:[%s3410 + $0xb4] sm:$0xf]
        %v3770 = vld [vmem:[%s3410 + $0xb8] sm:$0xf]
        %v3771 = vld [vmem:[%s3410 + $0xc4] sm:$0xf]
        %v3772 = vld [vmem:[%s3410 + $0xc8] sm:$0xf]
        %v3773 = vld [vmem:[%s3410 + $0xd4] sm:$0xf]
        %v3774 = vld [vmem:[%s3410 + $0xd8] sm:$0xf]
        %v3775 = vld [vmem:[%s3410 + $0xe4] sm:$0xf]
        %v3776 = vld [vmem:[%s3410 + $0xe8] sm:$0xf]
        %v3777 = vld [vmem:[%s3410 + $0xf4] sm:$0xf]
        %v3778 = vld [vmem:[%s3410 + $0xf8] sm:$0xf]
        %3779 = vst [vmem:[#allocation3 + $0x58] sm:$0xf] %v3747
        %3780 = vst [vmem:[#allocation3 + $0xbc] sm:$0xf] %v3748
        %3781 = vst [vmem:[#allocation3 + $0x120] sm:$0xf] %v3749
        %3782 = vst [vmem:[#allocation3 + $0x184] sm:$0xf] %v3750
        %3783 = vst [vmem:[#allocation3 + $0x1e8] sm:$0xf] %v3751
        %3784 = vst [vmem:[#allocation3 + $0x24c] sm:$0xf] %v3752
        %3785 = vst [vmem:[#allocation3 + $0x2b0] sm:$0xf] %v3753
        %3786 = vst [vmem:[#allocation3 + $0x314] sm:$0xf] %v3754
        %3787 = vst [vmem:[#allocation3 + $0x378] sm:$0xf] %v3755
        %3788 = vst [vmem:[#allocation3 + $0x3dc] sm:$0xf] %v3756
        %3789 = vst [vmem:[#allocation3 + $0x440] sm:$0xf] %v3757
        %3790 = vst [vmem:[#allocation3 + $0x4a4] sm:$0xf] %v3758
        %3791 = vst [vmem:[#allocation3 + $0x508] sm:$0xf] %v3759
        %3792 = vst [vmem:[#allocation3 + $0x56c] sm:$0xf] %v3760
        %3793 = vst [vmem:[#allocation3 + $0x5d0] sm:$0xf] %v3761
        %3794 = vst [vmem:[#allocation3 + $0x634] sm:$0xf] %v3762
        %3795 = vst [vmem:[#allocation3 + $0x698] sm:$0xf] %v3763
        %3796 = vst [vmem:[#allocation3 + $0x6fc] sm:$0xf] %v3764
        %3797 = vst [vmem:[#allocation3 + $0x760] sm:$0xf] %v3765
        %3798 = vst [vmem:[#allocation3 + $0x7c4] sm:$0xf] %v3766
        %3799 = vst [vmem:[#allocation3 + $0x828] sm:$0xf] %v3767
        %3800 = vst [vmem:[#allocation3 + $0x88c] sm:$0xf] %v3768
        %3801 = vst [vmem:[#allocation3 + $0x8f0] sm:$0xf] %v3769
        %3802 = vst [vmem:[#allocation3 + $0x954] sm:$0xf] %v3770
        %3803 = vst [vmem:[#allocation3 + $0x9b8] sm:$0xf] %v3771
        %3804 = vst [vmem:[#allocation3 + $0xa1c] sm:$0xf] %v3772
        %3805 = vst [vmem:[#allocation3 + $0xa80] sm:$0xf] %v3773
        %3806 = vst [vmem:[#allocation3 + $0xae4] sm:$0xf] %v3774
        %3807 = vst [vmem:[#allocation3 + $0xb48] sm:$0xf] %v3775
        %3808 = vst [vmem:[#allocation3 + $0xbac] sm:$0xf] %v3776
        %3809 = vst [vmem:[#allocation3 + $0xc10] sm:$0xf] %v3777
        %3810 = vst [vmem:[#allocation3 + $0xc74] sm:$0xf] %v3778
        %v3811 = vld [vmem:[%s3410 + $0x4] sm:$0xc]
        %v3812 = vld [vmem:[%s3410 + $0x8] sm:$0xf]
        %v3813 = vld [vmem:[%s3410 + $0xc] sm:$0x3]
        %v3814 = vld [vmem:[%s3410 + $0x14] sm:$0xc]
        %v3815 = vld [vmem:[%s3410 + $0x18] sm:$0xf]
        %v3816 = vld [vmem:[%s3410 + $0x1c] sm:$0x3]
        %v3817 = vld [vmem:[%s3410 + $0x24] sm:$0xc]
        %v3818 = vld [vmem:[%s3410 + $0x28] sm:$0xf]
        %v3819 = vld [vmem:[%s3410 + $0x2c] sm:$0x3]
        %v3820 = vld [vmem:[%s3410 + $0x34] sm:$0xc]
        %v3821 = vld [vmem:[%s3410 + $0x38] sm:$0xf]
        %v3822 = vld [vmem:[%s3410 + $0x3c] sm:$0x3]
        %v3823 = vld [vmem:[%s3410 + $0x44] sm:$0xc]
        %v3824 = vld [vmem:[%s3410 + $0x48] sm:$0xf]
        %v3825 = vld [vmem:[%s3410 + $0x4c] sm:$0x3]
        %v3826 = vld [vmem:[%s3410 + $0x54] sm:$0xc]
        %v3827 = vld [vmem:[%s3410 + $0x58] sm:$0xf]
        %v3828 = vld [vmem:[%s3410 + $0x5c] sm:$0x3]
        %v3829 = vld [vmem:[%s3410 + $0x64] sm:$0xc]
        %v3830 = vld [vmem:[%s3410 + $0x68] sm:$0xf]
        %v3831 = vld [vmem:[%s3410 + $0x6c] sm:$0x3]
        %v3832 = vld [vmem:[%s3410 + $0x74] sm:$0xc]
        %v3833 = vld [vmem:[%s3410 + $0x78] sm:$0xf]
        %v3834 = vld [vmem:[%s3410 + $0x7c] sm:$0x3]
        %v3835 = vld [vmem:[%s3410 + $0x84] sm:$0xc]
        %v3836 = vld [vmem:[%s3410 + $0x88] sm:$0xf]
        %v3837 = vld [vmem:[%s3410 + $0x8c] sm:$0x3]
        %v3838 = vld [vmem:[%s3410 + $0x94] sm:$0xc]
        %v3839 = vld [vmem:[%s3410 + $0x98] sm:$0xf]
        %v3840 = vld [vmem:[%s3410 + $0x9c] sm:$0x3]
        %v3841 = vld [vmem:[%s3410 + $0xa4] sm:$0xc]
        %v3842 = vld [vmem:[%s3410 + $0xa8] sm:$0xf]
        %v3843 = vld [vmem:[%s3410 + $0xac] sm:$0x3]
        %v3844 = vld [vmem:[%s3410 + $0xb4] sm:$0xc]
        %v3845 = vld [vmem:[%s3410 + $0xb8] sm:$0xf]
        %v3846 = vld [vmem:[%s3410 + $0xbc] sm:$0x3]
        %v3847 = vld [vmem:[%s3410 + $0xc4] sm:$0xc]
        %v3848 = vld [vmem:[%s3410 + $0xc8] sm:$0xf]
        %v3849 = vld [vmem:[%s3410 + $0xcc] sm:$0x3]
        %v3850 = vld [vmem:[%s3410 + $0xd4] sm:$0xc]
        %v3851 = vld [vmem:[%s3410 + $0xd8] sm:$0xf]
        %v3852 = vld [vmem:[%s3410 + $0xdc] sm:$0x3]
        %v3853 = vld [vmem:[%s3410 + $0xe4] sm:$0xc]
        %v3854 = vld [vmem:[%s3410 + $0xe8] sm:$0xf]
        %v3855 = vld [vmem:[%s3410 + $0xec] sm:$0x3]
        %v3856 = vld [vmem:[%s3410 + $0xf4] sm:$0xc]
        %v3857 = vld [vmem:[%s3410 + $0xf8] sm:$0xf]
        %v3858 = vld [vmem:[%s3410 + $0xfc] sm:$0x3]
        %v3907 = vrot.slane %v3811, 6
        %v3908 = vrot.slane %v3907, 4
        %v3909 = vrot.slane %v3812, 6
        %v3910 = vsel %vm610, %v3908, %v3909
        %v3911 = vrot.slane %v3909, 4
        %v3912 = vrot.slane %v3813, 6
        %v3913 = vsel %vm610, %v3911, %v3912
        %v3914 = vrot.slane %v3814, 6
        %v3915 = vrot.slane %v3914, 4
        %v3916 = vrot.slane %v3815, 6
        %v3917 = vsel %vm610, %v3915, %v3916
        %v3918 = vrot.slane %v3916, 4
        %v3919 = vrot.slane %v3816, 6
        %v3920 = vsel %vm610, %v3918, %v3919
        %v3921 = vrot.slane %v3817, 6
        %v3922 = vrot.slane %v3921, 4
        %v3923 = vrot.slane %v3818, 6
        %v3924 = vsel %vm610, %v3922, %v3923
        %v3925 = vrot.slane %v3923, 4
        %v3926 = vrot.slane %v3819, 6
        %v3927 = vsel %vm610, %v3925, %v3926
        %v3928 = vrot.slane %v3820, 6
        %v3929 = vrot.slane %v3928, 4
        %v3930 = vrot.slane %v3821, 6
        %v3931 = vsel %vm610, %v3929, %v3930
        %v3932 = vrot.slane %v3930, 4
        %v3933 = vrot.slane %v3822, 6
        %v3934 = vsel %vm610, %v3932, %v3933
        %v3935 = vrot.slane %v3823, 6
        %v3936 = vrot.slane %v3935, 4
        %v3937 = vrot.slane %v3824, 6
        %v3938 = vsel %vm610, %v3936, %v3937
        %v3939 = vrot.slane %v3937, 4
        %v3940 = vrot.slane %v3825, 6
        %v3941 = vsel %vm610, %v3939, %v3940
        %v3942 = vrot.slane %v3826, 6
        %v3943 = vrot.slane %v3942, 4
        %v3944 = vrot.slane %v3827, 6
        %v3945 = vsel %vm610, %v3943, %v3944
        %v3946 = vrot.slane %v3944, 4
        %v3947 = vrot.slane %v3828, 6
        %v3948 = vsel %vm610, %v3946, %v3947
        %v3949 = vrot.slane %v3829, 6
        %v3950 = vrot.slane %v3949, 4
        %v3951 = vrot.slane %v3830, 6
        %v3952 = vsel %vm610, %v3950, %v3951
        %v3953 = vrot.slane %v3951, 4
        %v3954 = vrot.slane %v3831, 6
        %v3955 = vsel %vm610, %v3953, %v3954
        %v3956 = vrot.slane %v3832, 6
        %v3957 = vrot.slane %v3956, 4
        %v3958 = vrot.slane %v3833, 6
        %v3959 = vsel %vm610, %v3957, %v3958
        %v3960 = vrot.slane %v3958, 4
        %v3961 = vrot.slane %v3834, 6
        %v3962 = vsel %vm610, %v3960, %v3961
        %v3963 = vrot.slane %v3835, 6
        %v3964 = vrot.slane %v3963, 4
        %v3965 = vrot.slane %v3836, 6
        %v3966 = vsel %vm610, %v3964, %v3965
        %v3967 = vrot.slane %v3965, 4
        %v3968 = vrot.slane %v3837, 6
        %v3969 = vsel %vm610, %v3967, %v3968
        %v3970 = vrot.slane %v3838, 6
        %v3971 = vrot.slane %v3970, 4
        %v3972 = vrot.slane %v3839, 6
        %v3973 = vsel %vm610, %v3971, %v3972
        %v3974 = vrot.slane %v3972, 4
        %v3975 = vrot.slane %v3840, 6
        %v3976 = vsel %vm610, %v3974, %v3975
        %v3977 = vrot.slane %v3841, 6
        %v3978 = vrot.slane %v3977, 4
        %v3979 = vrot.slane %v3842, 6
        %v3980 = vsel %vm610, %v3978, %v3979
        %v3981 = vrot.slane %v3979, 4
        %v3982 = vrot.slane %v3843, 6
        %v3983 = vsel %vm610, %v3981, %v3982
        %v3984 = vrot.slane %v3844, 6
        %v3985 = vrot.slane %v3984, 4
        %v3986 = vrot.slane %v3845, 6
        %v3987 = vsel %vm610, %v3985, %v3986
        %v3988 = vrot.slane %v3986, 4
        %v3989 = vrot.slane %v3846, 6
        %v3990 = vsel %vm610, %v3988, %v3989
        %v3991 = vrot.slane %v3847, 6
        %v3992 = vrot.slane %v3991, 4
        %v3993 = vrot.slane %v3848, 6
        %v3994 = vsel %vm610, %v3992, %v3993
        %v3995 = vrot.slane %v3993, 4
        %v3996 = vrot.slane %v3849, 6
        %v3997 = vsel %vm610, %v3995, %v3996
        %v3998 = vrot.slane %v3850, 6
        %v3999 = vrot.slane %v3998, 4
        %v4000 = vrot.slane %v3851, 6
        %v4001 = vsel %vm610, %v3999, %v4000
        %v4002 = vrot.slane %v4000, 4
        %v4003 = vrot.slane %v3852, 6
        %v4004 = vsel %vm610, %v4002, %v4003
        %v4005 = vrot.slane %v3853, 6
        %v4006 = vrot.slane %v4005, 4
        %v4007 = vrot.slane %v3854, 6
        %v4008 = vsel %vm610, %v4006, %v4007
        %v4009 = vrot.slane %v4007, 4
        %v4010 = vrot.slane %v3855, 6
        %v4011 = vsel %vm610, %v4009, %v4010
        %v4012 = vrot.slane %v3856, 6
        %v4013 = vrot.slane %v4012, 4
        %v4014 = vrot.slane %v3857, 6
        %v4015 = vsel %vm610, %v4013, %v4014
        %v4016 = vrot.slane %v4014, 4
        %v4017 = vrot.slane %v3858, 6
        %v4018 = vsel %vm610, %v4016, %v4017
        %4051 = vst [vmem:[#allocation3 + $0x5c] sm:$0xf] %v3910
        %4052 = vst [vmem:[#allocation3 + $0xc0] sm:$0xf] %v3913
        %4053 = vst [vmem:[#allocation3 + $0x124] sm:$0xf] %v3917
        %4054 = vst [vmem:[#allocation3 + $0x188] sm:$0xf] %v3920
        %4055 = vst [vmem:[#allocation3 + $0x1ec] sm:$0xf] %v3924
        %4056 = vst [vmem:[#allocation3 + $0x250] sm:$0xf] %v3927
        %4057 = vst [vmem:[#allocation3 + $0x2b4] sm:$0xf] %v3931
        %4058 = vst [vmem:[#allocation3 + $0x318] sm:$0xf] %v3934
        %4059 = vst [vmem:[#allocation3 + $0x37c] sm:$0xf] %v3938
        %4060 = vst [vmem:[#allocation3 + $0x3e0] sm:$0xf] %v3941
        %4061 = vst [vmem:[#allocation3 + $0x444] sm:$0xf] %v3945
        %4062 = vst [vmem:[#allocation3 + $0x4a8] sm:$0xf] %v3948
        %4063 = vst [vmem:[#allocation3 + $0x50c] sm:$0xf] %v3952
        %4064 = vst [vmem:[#allocation3 + $0x570] sm:$0xf] %v3955
        %4065 = vst [vmem:[#allocation3 + $0x5d4] sm:$0xf] %v3959
        %4066 = vst [vmem:[#allocation3 + $0x638] sm:$0xf] %v3962
        %4067 = vst [vmem:[#allocation3 + $0x69c] sm:$0xf] %v3966
        %4068 = vst [vmem:[#allocation3 + $0x700] sm:$0xf] %v3969
        %4069 = vst [vmem:[#allocation3 + $0x764] sm:$0xf] %v3973
        %4070 = vst [vmem:[#allocation3 + $0x7c8] sm:$0xf] %v3976
        %4071 = vst [vmem:[#allocation3 + $0x82c] sm:$0xf] %v3980
        %4072 = vst [vmem:[#allocation3 + $0x890] sm:$0xf] %v3983
        %4073 = vst [vmem:[#allocation3 + $0x8f4] sm:$0xf] %v3987
        %4074 = vst [vmem:[#allocation3 + $0x958] sm:$0xf] %v3990
        %4075 = vst [vmem:[#allocation3 + $0x9bc] sm:$0xf] %v3994
        %4076 = vst [vmem:[#allocation3 + $0xa20] sm:$0xf] %v3997
        %4077 = vst [vmem:[#allocation3 + $0xa84] sm:$0xf] %v4001
        %4078 = vst [vmem:[#allocation3 + $0xae8] sm:$0xf] %v4004
        %4079 = vst [vmem:[#allocation3 + $0xb4c] sm:$0xf] %v4008
        %4080 = vst [vmem:[#allocation3 + $0xbb0] sm:$0xf] %v4011
        %4081 = vst [vmem:[#allocation3 + $0xc14] sm:$0xf] %v4015
        %4082 = vst [vmem:[#allocation3 + $0xc78] sm:$0xf] %v4018
        %v4083 = vld [vmem:[%s3410 + $0x8] sm:$0xf]
        %v4084 = vld [vmem:[%s3410 + $0xc] sm:$0xf]
        %v4085 = vld [vmem:[%s3410 + $0x18] sm:$0xf]
        %v4086 = vld [vmem:[%s3410 + $0x1c] sm:$0xf]
        %v4087 = vld [vmem:[%s3410 + $0x28] sm:$0xf]
        %v4088 = vld [vmem:[%s3410 + $0x2c] sm:$0xf]
        %v4089 = vld [vmem:[%s3410 + $0x38] sm:$0xf]
        %v4090 = vld [vmem:[%s3410 + $0x3c] sm:$0xf]
        %v4091 = vld [vmem:[%s3410 + $0x48] sm:$0xf]
        %v4092 = vld [vmem:[%s3410 + $0x4c] sm:$0xf]
        %v4093 = vld [vmem:[%s3410 + $0x58] sm:$0xf]
        %v4094 = vld [vmem:[%s3410 + $0x5c] sm:$0xf]
        %v4095 = vld [vmem:[%s3410 + $0x68] sm:$0xf]
        %v4096 = vld [vmem:[%s3410 + $0x6c] sm:$0xf]
        %v4097 = vld [vmem:[%s3410 + $0x78] sm:$0xf]
        %v4098 = vld [vmem:[%s3410 + $0x7c] sm:$0xf]
        %v4099 = vld [vmem:[%s3410 + $0x88] sm:$0xf]
        %v4100 = vld [vmem:[%s3410 + $0x8c] sm:$0xf]
        %v4101 = vld [vmem:[%s3410 + $0x98] sm:$0xf]
        %v4102 = vld [vmem:[%s3410 + $0x9c] sm:$0xf]
        %v4103 = vld [vmem:[%s3410 + $0xa8] sm:$0xf]
        %v4104 = vld [vmem:[%s3410 + $0xac] sm:$0xf]
        %v4105 = vld [vmem:[%s3410 + $0xb8] sm:$0xf]
        %v4106 = vld [vmem:[%s3410 + $0xbc] sm:$0xf]
        %v4107 = vld [vmem:[%s3410 + $0xc8] sm:$0xf]
        %v4108 = vld [vmem:[%s3410 + $0xcc] sm:$0xf]
        %v4109 = vld [vmem:[%s3410 + $0xd8] sm:$0xf]
        %v4110 = vld [vmem:[%s3410 + $0xdc] sm:$0xf]
        %v4111 = vld [vmem:[%s3410 + $0xe8] sm:$0xf]
        %v4112 = vld [vmem:[%s3410 + $0xec] sm:$0xf]
        %v4113 = vld [vmem:[%s3410 + $0xf8] sm:$0xf]
        %v4114 = vld [vmem:[%s3410 + $0xfc] sm:$0xf]
        %4115 = vst [vmem:[#allocation3 + $0x60] sm:$0xf] %v4083
        %4116 = vst [vmem:[#allocation3 + $0xc4] sm:$0xf] %v4084
        %4117 = vst [vmem:[#allocation3 + $0x128] sm:$0xf] %v4085
        %4118 = vst [vmem:[#allocation3 + $0x18c] sm:$0xf] %v4086
        %4119 = vst [vmem:[#allocation3 + $0x1f0] sm:$0xf] %v4087
        %4120 = vst [vmem:[#allocation3 + $0x254] sm:$0xf] %v4088
        %4121 = vst [vmem:[#allocation3 + $0x2b8] sm:$0xf] %v4089
        %4122 = vst [vmem:[#allocation3 + $0x31c] sm:$0xf] %v4090
        %4123 = vst [vmem:[#allocation3 + $0x380] sm:$0xf] %v4091
        %4124 = vst [vmem:[#allocation3 + $0x3e4] sm:$0xf] %v4092
        %4125 = vst [vmem:[#allocation3 + $0x448] sm:$0xf] %v4093
        %4126 = vst [vmem:[#allocation3 + $0x4ac] sm:$0xf] %v4094
        %4127 = vst [vmem:[#allocation3 + $0x510] sm:$0xf] %v4095
        %4128 = vst [vmem:[#allocation3 + $0x574] sm:$0xf] %v4096
        %4129 = vst [vmem:[#allocation3 + $0x5d8] sm:$0xf] %v4097
        %4130 = vst [vmem:[#allocation3 + $0x63c] sm:$0xf] %v4098
        %4131 = vst [vmem:[#allocation3 + $0x6a0] sm:$0xf] %v4099
        %4132 = vst [vmem:[#allocation3 + $0x704] sm:$0xf] %v4100
        %4133 = vst [vmem:[#allocation3 + $0x768] sm:$0xf] %v4101
        %4134 = vst [vmem:[#allocation3 + $0x7cc] sm:$0xf] %v4102
        %4135 = vst [vmem:[#allocation3 + $0x830] sm:$0xf] %v4103
        %4136 = vst [vmem:[#allocation3 + $0x894] sm:$0xf] %v4104
        %4137 = vst [vmem:[#allocation3 + $0x8f8] sm:$0xf] %v4105
        %4138 = vst [vmem:[#allocation3 + $0x95c] sm:$0xf] %v4106
        %4139 = vst [vmem:[#allocation3 + $0x9c0] sm:$0xf] %v4107
        %4140 = vst [vmem:[#allocation3 + $0xa24] sm:$0xf] %v4108
        %4141 = vst [vmem:[#allocation3 + $0xa88] sm:$0xf] %v4109
        %4142 = vst [vmem:[#allocation3 + $0xaec] sm:$0xf] %v4110
        %4143 = vst [vmem:[#allocation3 + $0xb50] sm:$0xf] %v4111
        %4144 = vst [vmem:[#allocation3 + $0xbb4] sm:$0xf] %v4112
        %4145 = vst [vmem:[#allocation3 + $0xc18] sm:$0xf] %v4113
        %4146 = vst [vmem:[#allocation3 + $0xc7c] sm:$0xf] %v4114
        %v4147 = vld [vmem:[#allocation3] sm:$0xff]
        %v4148 = vld [vmem:[#allocation3 + $0x8] sm:$0xff]
        %v4149 = vld [vmem:[#allocation3 + $0x10] sm:$0xff]
        %v4150 = vld [vmem:[#allocation3 + $0x18] sm:$0xff]
        %v4151 = vld [vmem:[#allocation3 + $0x20] sm:$0xff]
        %v4152 = vld [vmem:[#allocation3 + $0x28] sm:$0xff]
        %v4153 = vld [vmem:[#allocation3 + $0x30] sm:$0xff]
        %v4154 = vld [vmem:[#allocation3 + $0x38] sm:$0xff]
        %v4155 = vld [vmem:[#allocation3 + $0x40] sm:$0xff]
        %v4156 = vld [vmem:[#allocation3 + $0x48] sm:$0xff]
        %v4157 = vld [vmem:[#allocation3 + $0x50] sm:$0xff]
        %v4158 = vld [vmem:[#allocation3 + $0x58] sm:$0xff]
        %v4159 = vld [vmem:[#allocation3 + $0x60] sm:$0xf]
        %v4160 = vld [vmem:[#allocation3 + $0x64] sm:$0xff]
        %v4161 = vld [vmem:[#allocation3 + $0x6c] sm:$0xff]
        %v4162 = vld [vmem:[#allocation3 + $0x74] sm:$0xff]
        %v4163 = vld [vmem:[#allocation3 + $0x7c] sm:$0xff]
        %v4164 = vld [vmem:[#allocation3 + $0x84] sm:$0xff]
        %v4165 = vld [vmem:[#allocation3 + $0x8c] sm:$0xff]
        %v4166 = vld [vmem:[#allocation3 + $0x94] sm:$0xff]
        %v4167 = vld [vmem:[#allocation3 + $0x9c] sm:$0xff]
        %v4168 = vld [vmem:[#allocation3 + $0xa4] sm:$0xff]
        %v4169 = vld [vmem:[#allocation3 + $0xac] sm:$0xff]
        %v4170 = vld [vmem:[#allocation3 + $0xb4] sm:$0xff]
        %v4171 = vld [vmem:[#allocation3 + $0xbc] sm:$0xff]
        %v4172 = vld [vmem:[#allocation3 + $0xc4] sm:$0xf]
        %v4173 = vld [vmem:[#allocation3 + $0xc8] sm:$0xff]
        %v4174 = vld [vmem:[#allocation3 + $0xd0] sm:$0xff]
        %v4175 = vld [vmem:[#allocation3 + $0xd8] sm:$0xff]
        %v4176 = vld [vmem:[#allocation3 + $0xe0] sm:$0xff]
        %v4177 = vld [vmem:[#allocation3 + $0xe8] sm:$0xff]
        %v4178 = vld [vmem:[#allocation3 + $0xf0] sm:$0xff]
        %v4179 = vld [vmem:[#allocation3 + $0xf8] sm:$0xff]
        %v4180 = vld [vmem:[#allocation3 + $0x100] sm:$0xff]
        %v4181 = vld [vmem:[#allocation3 + $0x108] sm:$0xff]
        %v4182 = vld [vmem:[#allocation3 + $0x110] sm:$0xff]
        %v4183 = vld [vmem:[#allocation3 + $0x118] sm:$0xff]
        %v4184 = vld [vmem:[#allocation3 + $0x120] sm:$0xff]
        %v4185 = vld [vmem:[#allocation3 + $0x128] sm:$0xf]
        %v4186 = vld [vmem:[#allocation3 + $0x12c] sm:$0xff]
        %v4187 = vld [vmem:[#allocation3 + $0x134] sm:$0xff]
        %v4188 = vld [vmem:[#allocation3 + $0x13c] sm:$0xff]
        %v4189 = vld [vmem:[#allocation3 + $0x144] sm:$0xff]
        %v4190 = vld [vmem:[#allocation3 + $0x14c] sm:$0xff]
        %v4191 = vld [vmem:[#allocation3 + $0x154] sm:$0xff]
        %v4192 = vld [vmem:[#allocation3 + $0x15c] sm:$0xff]
        %v4193 = vld [vmem:[#allocation3 + $0x164] sm:$0xff]
        %v4194 = vld [vmem:[#allocation3 + $0x16c] sm:$0xff]
        %v4195 = vld [vmem:[#allocation3 + $0x174] sm:$0xff]
        %v4196 = vld [vmem:[#allocation3 + $0x17c] sm:$0xff]
        %v4197 = vld [vmem:[#allocation3 + $0x184] sm:$0xff]
        %v4198 = vld [vmem:[#allocation3 + $0x18c] sm:$0xf]
        %v4199 = vld [vmem:[#allocation3 + $0x190] sm:$0xff]
        %v4200 = vld [vmem:[#allocation3 + $0x198] sm:$0xff]
        %v4201 = vld [vmem:[#allocation3 + $0x1a0] sm:$0xff]
        %v4202 = vld [vmem:[#allocation3 + $0x1a8] sm:$0xff]
        %v4203 = vld [vmem:[#allocation3 + $0x1b0] sm:$0xff]
        %v4204 = vld [vmem:[#allocation3 + $0x1b8] sm:$0xff]
        %v4205 = vld [vmem:[#allocation3 + $0x1c0] sm:$0xff]
        %v4206 = vld [vmem:[#allocation3 + $0x1c8] sm:$0xff]
        %v4207 = vld [vmem:[#allocation3 + $0x1d0] sm:$0xff]
        %v4208 = vld [vmem:[#allocation3 + $0x1d8] sm:$0xff]
        %v4209 = vld [vmem:[#allocation3 + $0x1e0] sm:$0xff]
        %v4210 = vld [vmem:[#allocation3 + $0x1e8] sm:$0xff]
        %v4211 = vld [vmem:[#allocation3 + $0x1f0] sm:$0xf]
        %v4212 = vld [vmem:[#allocation3 + $0x1f4] sm:$0xff]
        %v4213 = vld [vmem:[#allocation3 + $0x1fc] sm:$0xff]
        %v4214 = vld [vmem:[#allocation3 + $0x204] sm:$0xff]
        %v4215 = vld [vmem:[#allocation3 + $0x20c] sm:$0xff]
        %v4216 = vld [vmem:[#allocation3 + $0x214] sm:$0xff]
        %v4217 = vld [vmem:[#allocation3 + $0x21c] sm:$0xff]
        %v4218 = vld [vmem:[#allocation3 + $0x224] sm:$0xff]
        %v4219 = vld [vmem:[#allocation3 + $0x22c] sm:$0xff]
        %v4220 = vld [vmem:[#allocation3 + $0x234] sm:$0xff]
        %v4221 = vld [vmem:[#allocation3 + $0x23c] sm:$0xff]
        %v4222 = vld [vmem:[#allocation3 + $0x244] sm:$0xff]
        %v4223 = vld [vmem:[#allocation3 + $0x24c] sm:$0xff]
        %v4224 = vld [vmem:[#allocation3 + $0x254] sm:$0xf]
        %v4225 = vld [vmem:[#allocation3 + $0x258] sm:$0xff]
        %v4226 = vld [vmem:[#allocation3 + $0x260] sm:$0xff]
        %v4227 = vld [vmem:[#allocation3 + $0x268] sm:$0xff]
        %v4228 = vld [vmem:[#allocation3 + $0x270] sm:$0xff]
        %v4229 = vld [vmem:[#allocation3 + $0x278] sm:$0xff]
        %v4230 = vld [vmem:[#allocation3 + $0x280] sm:$0xff]
        %v4231 = vld [vmem:[#allocation3 + $0x288] sm:$0xff]
        %v4232 = vld [vmem:[#allocation3 + $0x290] sm:$0xff]
        %v4233 = vld [vmem:[#allocation3 + $0x298] sm:$0xff]
        %v4234 = vld [vmem:[#allocation3 + $0x2a0] sm:$0xff]
        %v4235 = vld [vmem:[#allocation3 + $0x2a8] sm:$0xff]
        %v4236 = vld [vmem:[#allocation3 + $0x2b0] sm:$0xff]
        %v4237 = vld [vmem:[#allocation3 + $0x2b8] sm:$0xf]
        %v4238 = vld [vmem:[#allocation3 + $0x2bc] sm:$0xff]
        %v4239 = vld [vmem:[#allocation3 + $0x2c4] sm:$0xff]
        %v4240 = vld [vmem:[#allocation3 + $0x2cc] sm:$0xff]
        %v4241 = vld [vmem:[#allocation3 + $0x2d4] sm:$0xff]
        %v4242 = vld [vmem:[#allocation3 + $0x2dc] sm:$0xff]
        %v4243 = vld [vmem:[#allocation3 + $0x2e4] sm:$0xff]
        %v4244 = vld [vmem:[#allocation3 + $0x2ec] sm:$0xff]
        %v4245 = vld [vmem:[#allocation3 + $0x2f4] sm:$0xff]
        %v4246 = vld [vmem:[#allocation3 + $0x2fc] sm:$0xff]
        %v4247 = vld [vmem:[#allocation3 + $0x304] sm:$0xff]
        %v4248 = vld [vmem:[#allocation3 + $0x30c] sm:$0xff]
        %v4249 = vld [vmem:[#allocation3 + $0x314] sm:$0xff]
        %v4250 = vld [vmem:[#allocation3 + $0x31c] sm:$0xf]
        %v4251 = vld [vmem:[#allocation3 + $0x320] sm:$0xff]
        %v4252 = vld [vmem:[#allocation3 + $0x328] sm:$0xff]
        %v4253 = vld [vmem:[#allocation3 + $0x330] sm:$0xff]
        %v4254 = vld [vmem:[#allocation3 + $0x338] sm:$0xff]
        %v4255 = vld [vmem:[#allocation3 + $0x340] sm:$0xff]
        %v4256 = vld [vmem:[#allocation3 + $0x348] sm:$0xff]
        %v4257 = vld [vmem:[#allocation3 + $0x350] sm:$0xff]
        %v4258 = vld [vmem:[#allocation3 + $0x358] sm:$0xff]
        %v4259 = vld [vmem:[#allocation3 + $0x360] sm:$0xff]
        %v4260 = vld [vmem:[#allocation3 + $0x368] sm:$0xff]
        %v4261 = vld [vmem:[#allocation3 + $0x370] sm:$0xff]
        %v4262 = vld [vmem:[#allocation3 + $0x378] sm:$0xff]
        %v4263 = vld [vmem:[#allocation3 + $0x380] sm:$0xf]
        %v4264 = vld [vmem:[#allocation3 + $0x384] sm:$0xff]
        %v4265 = vld [vmem:[#allocation3 + $0x38c] sm:$0xff]
        %v4266 = vld [vmem:[#allocation3 + $0x394] sm:$0xff]
        %v4267 = vld [vmem:[#allocation3 + $0x39c] sm:$0xff]
        %v4268 = vld [vmem:[#allocation3 + $0x3a4] sm:$0xff]
        %v4269 = vld [vmem:[#allocation3 + $0x3ac] sm:$0xff]
        %v4270 = vld [vmem:[#allocation3 + $0x3b4] sm:$0xff]
        %v4271 = vld [vmem:[#allocation3 + $0x3bc] sm:$0xff]
        %v4272 = vld [vmem:[#allocation3 + $0x3c4] sm:$0xff]
        %v4273 = vld [vmem:[#allocation3 + $0x3cc] sm:$0xff]
        %v4274 = vld [vmem:[#allocation3 + $0x3d4] sm:$0xff]
        %v4275 = vld [vmem:[#allocation3 + $0x3dc] sm:$0xff]
        %v4276 = vld [vmem:[#allocation3 + $0x3e4] sm:$0xf]
        %v4277 = vld [vmem:[#allocation3 + $0x3e8] sm:$0xff]
        %v4278 = vld [vmem:[#allocation3 + $0x3f0] sm:$0xff]
        %v4279 = vld [vmem:[#allocation3 + $0x3f8] sm:$0xff]
        %v4280 = vld [vmem:[#allocation3 + $0x400] sm:$0xff]
        %v4281 = vld [vmem:[#allocation3 + $0x408] sm:$0xff]
        %v4282 = vld [vmem:[#allocation3 + $0x410] sm:$0xff]
        %v4283 = vld [vmem:[#allocation3 + $0x418] sm:$0xff]
        %v4284 = vld [vmem:[#allocation3 + $0x420] sm:$0xff]
        %v4285 = vld [vmem:[#allocation3 + $0x428] sm:$0xff]
        %v4286 = vld [vmem:[#allocation3 + $0x430] sm:$0xff]
        %v4287 = vld [vmem:[#allocation3 + $0x438] sm:$0xff]
        %v4288 = vld [vmem:[#allocation3 + $0x440] sm:$0xff]
        %v4289 = vld [vmem:[#allocation3 + $0x448] sm:$0xf]
        %v4290 = vld [vmem:[#allocation3 + $0x44c] sm:$0xff]
        %v4291 = vld [vmem:[#allocation3 + $0x454] sm:$0xff]
        %v4292 = vld [vmem:[#allocation3 + $0x45c] sm:$0xff]
        %v4293 = vld [vmem:[#allocation3 + $0x464] sm:$0xff]
        %v4294 = vld [vmem:[#allocation3 + $0x46c] sm:$0xff]
        %v4295 = vld [vmem:[#allocation3 + $0x474] sm:$0xff]
        %v4296 = vld [vmem:[#allocation3 + $0x47c] sm:$0xff]
        %v4297 = vld [vmem:[#allocation3 + $0x484] sm:$0xff]
        %v4298 = vld [vmem:[#allocation3 + $0x48c] sm:$0xff]
        %v4299 = vld [vmem:[#allocation3 + $0x494] sm:$0xff]
        %v4300 = vld [vmem:[#allocation3 + $0x49c] sm:$0xff]
        %v4301 = vld [vmem:[#allocation3 + $0x4a4] sm:$0xff]
        %v4302 = vld [vmem:[#allocation3 + $0x4ac] sm:$0xf]
        %v4303 = vld [vmem:[#allocation3 + $0x4b0] sm:$0xff]
        %v4304 = vld [vmem:[#allocation3 + $0x4b8] sm:$0xff]
        %v4305 = vld [vmem:[#allocation3 + $0x4c0] sm:$0xff]
        %v4306 = vld [vmem:[#allocation3 + $0x4c8] sm:$0xff]
        %v4307 = vld [vmem:[#allocation3 + $0x4d0] sm:$0xff]
        %v4308 = vld [vmem:[#allocation3 + $0x4d8] sm:$0xff]
        %v4309 = vld [vmem:[#allocation3 + $0x4e0] sm:$0xff]
        %v4310 = vld [vmem:[#allocation3 + $0x4e8] sm:$0xff]
        %v4311 = vld [vmem:[#allocation3 + $0x4f0] sm:$0xff]
        %v4312 = vld [vmem:[#allocation3 + $0x4f8] sm:$0xff]
        %v4313 = vld [vmem:[#allocation3 + $0x500] sm:$0xff]
        %v4314 = vld [vmem:[#allocation3 + $0x508] sm:$0xff]
        %v4315 = vld [vmem:[#allocation3 + $0x510] sm:$0xf]
        %v4316 = vld [vmem:[#allocation3 + $0x514] sm:$0xff]
        %v4317 = vld [vmem:[#allocation3 + $0x51c] sm:$0xff]
        %v4318 = vld [vmem:[#allocation3 + $0x524] sm:$0xff]
        %v4319 = vld [vmem:[#allocation3 + $0x52c] sm:$0xff]
        %v4320 = vld [vmem:[#allocation3 + $0x534] sm:$0xff]
        %v4321 = vld [vmem:[#allocation3 + $0x53c] sm:$0xff]
        %v4322 = vld [vmem:[#allocation3 + $0x544] sm:$0xff]
        %v4323 = vld [vmem:[#allocation3 + $0x54c] sm:$0xff]
        %v4324 = vld [vmem:[#allocation3 + $0x554] sm:$0xff]
        %v4325 = vld [vmem:[#allocation3 + $0x55c] sm:$0xff]
        %v4326 = vld [vmem:[#allocation3 + $0x564] sm:$0xff]
        %v4327 = vld [vmem:[#allocation3 + $0x56c] sm:$0xff]
        %v4328 = vld [vmem:[#allocation3 + $0x574] sm:$0xf]
        %v4329 = vld [vmem:[#allocation3 + $0x578] sm:$0xff]
        %v4330 = vld [vmem:[#allocation3 + $0x580] sm:$0xff]
        %v4331 = vld [vmem:[#allocation3 + $0x588] sm:$0xff]
        %v4332 = vld [vmem:[#allocation3 + $0x590] sm:$0xff]
        %v4333 = vld [vmem:[#allocation3 + $0x598] sm:$0xff]
        %v4334 = vld [vmem:[#allocation3 + $0x5a0] sm:$0xff]
        %v4335 = vld [vmem:[#allocation3 + $0x5a8] sm:$0xff]
        %v4336 = vld [vmem:[#allocation3 + $0x5b0] sm:$0xff]
        %v4337 = vld [vmem:[#allocation3 + $0x5b8] sm:$0xff]
        %v4338 = vld [vmem:[#allocation3 + $0x5c0] sm:$0xff]
        %v4339 = vld [vmem:[#allocation3 + $0x5c8] sm:$0xff]
        %v4340 = vld [vmem:[#allocation3 + $0x5d0] sm:$0xff]
        %v4341 = vld [vmem:[#allocation3 + $0x5d8] sm:$0xf]
        %v4342 = vld [vmem:[#allocation3 + $0x5dc] sm:$0xff]
        %v4343 = vld [vmem:[#allocation3 + $0x5e4] sm:$0xff]
        %v4344 = vld [vmem:[#allocation3 + $0x5ec] sm:$0xff]
        %v4345 = vld [vmem:[#allocation3 + $0x5f4] sm:$0xff]
        %v4346 = vld [vmem:[#allocation3 + $0x5fc] sm:$0xff]
        %v4347 = vld [vmem:[#allocation3 + $0x604] sm:$0xff]
        %v4348 = vld [vmem:[#allocation3 + $0x60c] sm:$0xff]
        %v4349 = vld [vmem:[#allocation3 + $0x614] sm:$0xff]
        %v4350 = vld [vmem:[#allocation3 + $0x61c] sm:$0xff]
        %v4351 = vld [vmem:[#allocation3 + $0x624] sm:$0xff]
        %v4352 = vld [vmem:[#allocation3 + $0x62c] sm:$0xff]
        %v4353 = vld [vmem:[#allocation3 + $0x634] sm:$0xff]
        %v4354 = vld [vmem:[#allocation3 + $0x63c] sm:$0xf]
        %v4355 = vld [vmem:[#allocation3 + $0x640] sm:$0xff]
        %v4356 = vld [vmem:[#allocation3 + $0x648] sm:$0xff]
        %v4357 = vld [vmem:[#allocation3 + $0x650] sm:$0xff]
        %v4358 = vld [vmem:[#allocation3 + $0x658] sm:$0xff]
        %v4359 = vld [vmem:[#allocation3 + $0x660] sm:$0xff]
        %v4360 = vld [vmem:[#allocation3 + $0x668] sm:$0xff]
        %v4361 = vld [vmem:[#allocation3 + $0x670] sm:$0xff]
        %v4362 = vld [vmem:[#allocation3 + $0x678] sm:$0xff]
        %v4363 = vld [vmem:[#allocation3 + $0x680] sm:$0xff]
        %v4364 = vld [vmem:[#allocation3 + $0x688] sm:$0xff]
        %v4365 = vld [vmem:[#allocation3 + $0x690] sm:$0xff]
        %v4366 = vld [vmem:[#allocation3 + $0x698] sm:$0xff]
        %v4367 = vld [vmem:[#allocation3 + $0x6a0] sm:$0xf]
        %v4368 = vld [vmem:[#allocation3 + $0x6a4] sm:$0xff]
        %v4369 = vld [vmem:[#allocation3 + $0x6ac] sm:$0xff]
        %v4370 = vld [vmem:[#allocation3 + $0x6b4] sm:$0xff]
        %v4371 = vld [vmem:[#allocation3 + $0x6bc] sm:$0xff]
        %v4372 = vld [vmem:[#allocation3 + $0x6c4] sm:$0xff]
        %v4373 = vld [vmem:[#allocation3 + $0x6cc] sm:$0xff]
        %v4374 = vld [vmem:[#allocation3 + $0x6d4] sm:$0xff]
        %v4375 = vld [vmem:[#allocation3 + $0x6dc] sm:$0xff]
        %v4376 = vld [vmem:[#allocation3 + $0x6e4] sm:$0xff]
        %v4377 = vld [vmem:[#allocation3 + $0x6ec] sm:$0xff]
        %v4378 = vld [vmem:[#allocation3 + $0x6f4] sm:$0xff]
        %v4379 = vld [vmem:[#allocation3 + $0x6fc] sm:$0xff]
        %v4380 = vld [vmem:[#allocation3 + $0x704] sm:$0xf]
        %v4381 = vld [vmem:[#allocation3 + $0x708] sm:$0xff]
        %v4382 = vld [vmem:[#allocation3 + $0x710] sm:$0xff]
        %v4383 = vld [vmem:[#allocation3 + $0x718] sm:$0xff]
        %v4384 = vld [vmem:[#allocation3 + $0x720] sm:$0xff]
        %v4385 = vld [vmem:[#allocation3 + $0x728] sm:$0xff]
        %v4386 = vld [vmem:[#allocation3 + $0x730] sm:$0xff]
        %v4387 = vld [vmem:[#allocation3 + $0x738] sm:$0xff]
        %v4388 = vld [vmem:[#allocation3 + $0x740] sm:$0xff]
        %v4389 = vld [vmem:[#allocation3 + $0x748] sm:$0xff]
        %v4390 = vld [vmem:[#allocation3 + $0x750] sm:$0xff]
        %v4391 = vld [vmem:[#allocation3 + $0x758] sm:$0xff]
        %v4392 = vld [vmem:[#allocation3 + $0x760] sm:$0xff]
        %v4393 = vld [vmem:[#allocation3 + $0x768] sm:$0xf]
        %v4394 = vld [vmem:[#allocation3 + $0x76c] sm:$0xff]
        %v4395 = vld [vmem:[#allocation3 + $0x774] sm:$0xff]
        %v4396 = vld [vmem:[#allocation3 + $0x77c] sm:$0xff]
        %v4397 = vld [vmem:[#allocation3 + $0x784] sm:$0xff]
        %v4398 = vld [vmem:[#allocation3 + $0x78c] sm:$0xff]
        %v4399 = vld [vmem:[#allocation3 + $0x794] sm:$0xff]
        %v4400 = vld [vmem:[#allocation3 + $0x79c] sm:$0xff]
        %v4401 = vld [vmem:[#allocation3 + $0x7a4] sm:$0xff]
        %v4402 = vld [vmem:[#allocation3 + $0x7ac] sm:$0xff]
        %v4403 = vld [vmem:[#allocation3 + $0x7b4] sm:$0xff]
        %v4404 = vld [vmem:[#allocation3 + $0x7bc] sm:$0xff]
        %v4405 = vld [vmem:[#allocation3 + $0x7c4] sm:$0xff]
        %v4406 = vld [vmem:[#allocation3 + $0x7cc] sm:$0xf]
        %v4407 = vld [vmem:[#allocation3 + $0x7d0] sm:$0xff]
        %v4408 = vld [vmem:[#allocation3 + $0x7d8] sm:$0xff]
        %v4409 = vld [vmem:[#allocation3 + $0x7e0] sm:$0xff]
        %v4410 = vld [vmem:[#allocation3 + $0x7e8] sm:$0xff]
        %v4411 = vld [vmem:[#allocation3 + $0x7f0] sm:$0xff]
        %v4412 = vld [vmem:[#allocation3 + $0x7f8] sm:$0xff]
        %v4413 = vld [vmem:[#allocation3 + $0x800] sm:$0xff]
        %v4414 = vld [vmem:[#allocation3 + $0x808] sm:$0xff]
        %v4415 = vld [vmem:[#allocation3 + $0x810] sm:$0xff]
        %v4416 = vld [vmem:[#allocation3 + $0x818] sm:$0xff]
        %v4417 = vld [vmem:[#allocation3 + $0x820] sm:$0xff]
        %v4418 = vld [vmem:[#allocation3 + $0x828] sm:$0xff]
        %v4419 = vld [vmem:[#allocation3 + $0x830] sm:$0xf]
        %v4420 = vld [vmem:[#allocation3 + $0x834] sm:$0xff]
        %v4421 = vld [vmem:[#allocation3 + $0x83c] sm:$0xff]
        %v4422 = vld [vmem:[#allocation3 + $0x844] sm:$0xff]
        %v4423 = vld [vmem:[#allocation3 + $0x84c] sm:$0xff]
        %v4424 = vld [vmem:[#allocation3 + $0x854] sm:$0xff]
        %v4425 = vld [vmem:[#allocation3 + $0x85c] sm:$0xff]
        %v4426 = vld [vmem:[#allocation3 + $0x864] sm:$0xff]
        %v4427 = vld [vmem:[#allocation3 + $0x86c] sm:$0xff]
        %v4428 = vld [vmem:[#allocation3 + $0x874] sm:$0xff]
        %v4429 = vld [vmem:[#allocation3 + $0x87c] sm:$0xff]
        %v4430 = vld [vmem:[#allocation3 + $0x884] sm:$0xff]
        %v4431 = vld [vmem:[#allocation3 + $0x88c] sm:$0xff]
        %v4432 = vld [vmem:[#allocation3 + $0x894] sm:$0xf]
        %v4433 = vld [vmem:[#allocation3 + $0x898] sm:$0xff]
        %v4434 = vld [vmem:[#allocation3 + $0x8a0] sm:$0xff]
        %v4435 = vld [vmem:[#allocation3 + $0x8a8] sm:$0xff]
        %v4436 = vld [vmem:[#allocation3 + $0x8b0] sm:$0xff]
        %v4437 = vld [vmem:[#allocation3 + $0x8b8] sm:$0xff]
        %v4438 = vld [vmem:[#allocation3 + $0x8c0] sm:$0xff]
        %v4439 = vld [vmem:[#allocation3 + $0x8c8] sm:$0xff]
        %v4440 = vld [vmem:[#allocation3 + $0x8d0] sm:$0xff]
        %v4441 = vld [vmem:[#allocation3 + $0x8d8] sm:$0xff]
        %v4442 = vld [vmem:[#allocation3 + $0x8e0] sm:$0xff]
        %v4443 = vld [vmem:[#allocation3 + $0x8e8] sm:$0xff]
        %v4444 = vld [vmem:[#allocation3 + $0x8f0] sm:$0xff]
        %v4445 = vld [vmem:[#allocation3 + $0x8f8] sm:$0xf]
        %v4446 = vld [vmem:[#allocation3 + $0x8fc] sm:$0xff]
        %v4447 = vld [vmem:[#allocation3 + $0x904] sm:$0xff]
        %v4448 = vld [vmem:[#allocation3 + $0x90c] sm:$0xff]
        %v4449 = vld [vmem:[#allocation3 + $0x914] sm:$0xff]
        %v4450 = vld [vmem:[#allocation3 + $0x91c] sm:$0xff]
        %v4451 = vld [vmem:[#allocation3 + $0x924] sm:$0xff]
        %v4452 = vld [vmem:[#allocation3 + $0x92c] sm:$0xff]
        %v4453 = vld [vmem:[#allocation3 + $0x934] sm:$0xff]
        %v4454 = vld [vmem:[#allocation3 + $0x93c] sm:$0xff]
        %v4455 = vld [vmem:[#allocation3 + $0x944] sm:$0xff]
        %v4456 = vld [vmem:[#allocation3 + $0x94c] sm:$0xff]
        %v4457 = vld [vmem:[#allocation3 + $0x954] sm:$0xff]
        %v4458 = vld [vmem:[#allocation3 + $0x95c] sm:$0xf]
        %v4459 = vld [vmem:[#allocation3 + $0x960] sm:$0xff]
        %v4460 = vld [vmem:[#allocation3 + $0x968] sm:$0xff]
        %v4461 = vld [vmem:[#allocation3 + $0x970] sm:$0xff]
        %v4462 = vld [vmem:[#allocation3 + $0x978] sm:$0xff]
        %v4463 = vld [vmem:[#allocation3 + $0x980] sm:$0xff]
        %v4464 = vld [vmem:[#allocation3 + $0x988] sm:$0xff]
        %v4465 = vld [vmem:[#allocation3 + $0x990] sm:$0xff]
        %v4466 = vld [vmem:[#allocation3 + $0x998] sm:$0xff]
        %v4467 = vld [vmem:[#allocation3 + $0x9a0] sm:$0xff]
        %v4468 = vld [vmem:[#allocation3 + $0x9a8] sm:$0xff]
        %v4469 = vld [vmem:[#allocation3 + $0x9b0] sm:$0xff]
        %v4470 = vld [vmem:[#allocation3 + $0x9b8] sm:$0xff]
        %v4471 = vld [vmem:[#allocation3 + $0x9c0] sm:$0xf]
        %v4472 = vld [vmem:[#allocation3 + $0x9c4] sm:$0xff]
        %v4473 = vld [vmem:[#allocation3 + $0x9cc] sm:$0xff]
        %v4474 = vld [vmem:[#allocation3 + $0x9d4] sm:$0xff]
        %v4475 = vld [vmem:[#allocation3 + $0x9dc] sm:$0xff]
        %v4476 = vld [vmem:[#allocation3 + $0x9e4] sm:$0xff]
        %v4477 = vld [vmem:[#allocation3 + $0x9ec] sm:$0xff]
        %v4478 = vld [vmem:[#allocation3 + $0x9f4] sm:$0xff]
        %v4479 = vld [vmem:[#allocation3 + $0x9fc] sm:$0xff]
        %v4480 = vld [vmem:[#allocation3 + $0xa04] sm:$0xff]
        %v4481 = vld [vmem:[#allocation3 + $0xa0c] sm:$0xff]
        %v4482 = vld [vmem:[#allocation3 + $0xa14] sm:$0xff]
        %v4483 = vld [vmem:[#allocation3 + $0xa1c] sm:$0xff]
        %v4484 = vld [vmem:[#allocation3 + $0xa24] sm:$0xf]
        %v4485 = vld [vmem:[#allocation3 + $0xa28] sm:$0xff]
        %v4486 = vld [vmem:[#allocation3 + $0xa30] sm:$0xff]
        %v4487 = vld [vmem:[#allocation3 + $0xa38] sm:$0xff]
        %v4488 = vld [vmem:[#allocation3 + $0xa40] sm:$0xff]
        %v4489 = vld [vmem:[#allocation3 + $0xa48] sm:$0xff]
        %v4490 = vld [vmem:[#allocation3 + $0xa50] sm:$0xff]
        %v4491 = vld [vmem:[#allocation3 + $0xa58] sm:$0xff]
        %v4492 = vld [vmem:[#allocation3 + $0xa60] sm:$0xff]
        %v4493 = vld [vmem:[#allocation3 + $0xa68] sm:$0xff]
        %v4494 = vld [vmem:[#allocation3 + $0xa70] sm:$0xff]
        %v4495 = vld [vmem:[#allocation3 + $0xa78] sm:$0xff]
        %v4496 = vld [vmem:[#allocation3 + $0xa80] sm:$0xff]
        %v4497 = vld [vmem:[#allocation3 + $0xa88] sm:$0xf]
        %v4498 = vld [vmem:[#allocation3 + $0xa8c] sm:$0xff]
        %v4499 = vld [vmem:[#allocation3 + $0xa94] sm:$0xff]
        %v4500 = vld [vmem:[#allocation3 + $0xa9c] sm:$0xff]
        %v4501 = vld [vmem:[#allocation3 + $0xaa4] sm:$0xff]
        %v4502 = vld [vmem:[#allocation3 + $0xaac] sm:$0xff]
        %v4503 = vld [vmem:[#allocation3 + $0xab4] sm:$0xff]
        %v4504 = vld [vmem:[#allocation3 + $0xabc] sm:$0xff]
        %v4505 = vld [vmem:[#allocation3 + $0xac4] sm:$0xff]
        %v4506 = vld [vmem:[#allocation3 + $0xacc] sm:$0xff]
        %v4507 = vld [vmem:[#allocation3 + $0xad4] sm:$0xff]
        %v4508 = vld [vmem:[#allocation3 + $0xadc] sm:$0xff]
        %v4509 = vld [vmem:[#allocation3 + $0xae4] sm:$0xff]
        %v4510 = vld [vmem:[#allocation3 + $0xaec] sm:$0xf]
        %v4511 = vld [vmem:[#allocation3 + $0xaf0] sm:$0xff]
        %v4512 = vld [vmem:[#allocation3 + $0xaf8] sm:$0xff]
        %v4513 = vld [vmem:[#allocation3 + $0xb00] sm:$0xff]
        %v4514 = vld [vmem:[#allocation3 + $0xb08] sm:$0xff]
        %v4515 = vld [vmem:[#allocation3 + $0xb10] sm:$0xff]
        %v4516 = vld [vmem:[#allocation3 + $0xb18] sm:$0xff]
        %v4517 = vld [vmem:[#allocation3 + $0xb20] sm:$0xff]
        %v4518 = vld [vmem:[#allocation3 + $0xb28] sm:$0xff]
        %v4519 = vld [vmem:[#allocation3 + $0xb30] sm:$0xff]
        %v4520 = vld [vmem:[#allocation3 + $0xb38] sm:$0xff]
        %v4521 = vld [vmem:[#allocation3 + $0xb40] sm:$0xff]
        %v4522 = vld [vmem:[#allocation3 + $0xb48] sm:$0xff]
        %v4523 = vld [vmem:[#allocation3 + $0xb50] sm:$0xf]
        %v4524 = vld [vmem:[#allocation3 + $0xb54] sm:$0xff]
        %v4525 = vld [vmem:[#allocation3 + $0xb5c] sm:$0xff]
        %v4526 = vld [vmem:[#allocation3 + $0xb64] sm:$0xff]
        %v4527 = vld [vmem:[#allocation3 + $0xb6c] sm:$0xff]
        %v4528 = vld [vmem:[#allocation3 + $0xb74] sm:$0xff]
        %v4529 = vld [vmem:[#allocation3 + $0xb7c] sm:$0xff]
        %v4530 = vld [vmem:[#allocation3 + $0xb84] sm:$0xff]
        %v4531 = vld [vmem:[#allocation3 + $0xb8c] sm:$0xff]
        %v4532 = vld [vmem:[#allocation3 + $0xb94] sm:$0xff]
        %v4533 = vld [vmem:[#allocation3 + $0xb9c] sm:$0xff]
        %v4534 = vld [vmem:[#allocation3 + $0xba4] sm:$0xff]
        %v4535 = vld [vmem:[#allocation3 + $0xbac] sm:$0xff]
        %v4536 = vld [vmem:[#allocation3 + $0xbb4] sm:$0xf]
        %v4537 = vld [vmem:[#allocation3 + $0xbb8] sm:$0xff]
        %v4538 = vld [vmem:[#allocation3 + $0xbc0] sm:$0xff]
        %v4539 = vld [vmem:[#allocation3 + $0xbc8] sm:$0xff]
        %v4540 = vld [vmem:[#allocation3 + $0xbd0] sm:$0xff]
        %v4541 = vld [vmem:[#allocation3 + $0xbd8] sm:$0xff]
        %v4542 = vld [vmem:[#allocation3 + $0xbe0] sm:$0xff]
        %v4543 = vld [vmem:[#allocation3 + $0xbe8] sm:$0xff]
        %v4544 = vld [vmem:[#allocation3 + $0xbf0] sm:$0xff]
        %v4545 = vld [vmem:[#allocation3 + $0xbf8] sm:$0xff]
        %v4546 = vld [vmem:[#allocation3 + $0xc00] sm:$0xff]
        %v4547 = vld [vmem:[#allocation3 + $0xc08] sm:$0xff]
        %v4548 = vld [vmem:[#allocation3 + $0xc10] sm:$0xff]
        %v4549 = vld [vmem:[#allocation3 + $0xc18] sm:$0xf]
        %v4550 = vld [vmem:[#allocation3 + $0xc1c] sm:$0xff]
        %v4551 = vld [vmem:[#allocation3 + $0xc24] sm:$0xff]
        %v4552 = vld [vmem:[#allocation3 + $0xc2c] sm:$0xff]
        %v4553 = vld [vmem:[#allocation3 + $0xc34] sm:$0xff]
        %v4554 = vld [vmem:[#allocation3 + $0xc3c] sm:$0xff]
        %v4555 = vld [vmem:[#allocation3 + $0xc44] sm:$0xff]
        %v4556 = vld [vmem:[#allocation3 + $0xc4c] sm:$0xff]
        %v4557 = vld [vmem:[#allocation3 + $0xc54] sm:$0xff]
        %v4558 = vld [vmem:[#allocation3 + $0xc5c] sm:$0xff]
        %v4559 = vld [vmem:[#allocation3 + $0xc64] sm:$0xff]
        %v4560 = vld [vmem:[#allocation3 + $0xc6c] sm:$0xff]
        %v4561 = vld [vmem:[#allocation3 + $0xc74] sm:$0xff]
        %v4562 = vld [vmem:[#allocation3 + $0xc7c] sm:$0xf]
        %v4563 = vld [vmem:[#allocation7] sm:$0xf]
        %v4564 = vld [vmem:[#allocation7 + $0x4] sm:$0xf]
        %v4565 = vld [vmem:[#allocation7 + $0x8] sm:$0xf]
        %v4566 = vld [vmem:[#allocation7 + $0xc] sm:$0xf]
        %v4567 = vld [vmem:[#allocation7 + $0x10] sm:$0xf]
        %v4568 = vld [vmem:[#allocation7 + $0x14] sm:$0xf]
        %v4569 = vld [vmem:[#allocation7 + $0x18] sm:$0xf]
        %v4570 = vld [vmem:[#allocation7 + $0x1c] sm:$0xf]
        %v4571 = vld [vmem:[#allocation7 + $0x20] sm:$0xf]
        %v4572 = vld [vmem:[#allocation7 + $0x24] sm:$0xf]
        %v4573 = vld [vmem:[#allocation7 + $0x28] sm:$0xf]
        %v4574 = vld [vmem:[#allocation7 + $0x2c] sm:$0xf]
        %v4575 = vld [vmem:[#allocation7 + $0x30] sm:$0xf]
        %v4576 = vld [vmem:[#allocation7 + $0x34] sm:$0xf]
        %v4577 = vld [vmem:[#allocation7 + $0x38] sm:$0xf]
        %v4578 = vld [vmem:[#allocation7 + $0x3c] sm:$0xf]
        %v4579 = vld [vmem:[#allocation7 + $0x40] sm:$0xf]
        %v4580 = vld [vmem:[#allocation7 + $0x44] sm:$0xf]
        %v4581 = vld [vmem:[#allocation7 + $0x48] sm:$0xf]
        %v4582 = vld [vmem:[#allocation7 + $0x4c] sm:$0xf]
        %v4583 = vld [vmem:[#allocation7 + $0x50] sm:$0xf]
        %v4584 = vld [vmem:[#allocation7 + $0x54] sm:$0xf]
        %v4585 = vld [vmem:[#allocation7 + $0x58] sm:$0xf]
        %v4586 = vld [vmem:[#allocation7 + $0x5c] sm:$0xf]
        %v4587 = vld [vmem:[#allocation7 + $0x60] sm:$0xf]
        %v4588 = vld [vmem:[#allocation7 + $0x64] sm:$0xf]
        %v4589 = vld [vmem:[#allocation7 + $0x68] sm:$0xf]
        %v4590 = vld [vmem:[#allocation7 + $0x6c] sm:$0xf]
        %v4591 = vld [vmem:[#allocation7 + $0x70] sm:$0xf]
        %v4592 = vld [vmem:[#allocation7 + $0x74] sm:$0xf]
        %v4593 = vld [vmem:[#allocation7 + $0x78] sm:$0xf]
        %v4594 = vld [vmem:[#allocation7 + $0x7c] sm:$0xf]
        %v4595 = vld [vmem:[#allocation7 + $0x80] sm:$0xf]
        %v4596 = vld [vmem:[#allocation7 + $0x84] sm:$0xf]
        %v4597 = vld [vmem:[#allocation7 + $0x88] sm:$0xf]
        %v4598 = vld [vmem:[#allocation7 + $0x8c] sm:$0xf]
        %v4599 = vld [vmem:[#allocation7 + $0x90] sm:$0xf]
        %v4600 = vld [vmem:[#allocation7 + $0x94] sm:$0xf]
        %v4601 = vld [vmem:[#allocation7 + $0x98] sm:$0xf]
        %v4602 = vld [vmem:[#allocation7 + $0x9c] sm:$0xf]
        %v4603 = vld [vmem:[#allocation7 + $0xa0] sm:$0xf]
        %v4604 = vld [vmem:[#allocation7 + $0xa4] sm:$0xf]
        %v4605 = vld [vmem:[#allocation7 + $0xa8] sm:$0xf]
        %v4606 = vld [vmem:[#allocation7 + $0xac] sm:$0xf]
        %v4607 = vld [vmem:[#allocation7 + $0xb0] sm:$0xf]
        %v4608 = vld [vmem:[#allocation7 + $0xb4] sm:$0xf]
        %v4609 = vld [vmem:[#allocation7 + $0xb8] sm:$0xf]
        %v4610 = vld [vmem:[#allocation7 + $0xbc] sm:$0xf]
        %v4611 = vld [vmem:[#allocation7 + $0xc0] sm:$0xf]
        %v4612 = vld [vmem:[#allocation7 + $0xc4] sm:$0xf]
        %v4613 = vld [vmem:[#allocation7 + $0xc8] sm:$0xf]
        %v4614 = vld [vmem:[#allocation7 + $0xcc] sm:$0xf]
        %v4615 = vld [vmem:[#allocation7 + $0xd0] sm:$0xf]
        %v4616 = vld [vmem:[#allocation7 + $0xd4] sm:$0xf]
        %v4617 = vld [vmem:[#allocation7 + $0xd8] sm:$0xf]
        %v4618 = vld [vmem:[#allocation7 + $0xdc] sm:$0xf]
        %v4619 = vld [vmem:[#allocation7 + $0xe0] sm:$0xf]
        %v4620 = vld [vmem:[#allocation7 + $0xe4] sm:$0xf]
        %v4621 = vld [vmem:[#allocation7 + $0xe8] sm:$0xf]
        %v4622 = vld [vmem:[#allocation7 + $0xec] sm:$0xf]
        %v4623 = vld [vmem:[#allocation7 + $0xf0] sm:$0xf]
        %v4624 = vld [vmem:[#allocation7 + $0xf4] sm:$0xf]
        %v4625 = vld [vmem:[#allocation7 + $0xf8] sm:$0xf]
        %v4626 = vld [vmem:[#allocation7 + $0xfc] sm:$0xf]
        %v4627 = vld [vmem:[#allocation7 + $0x100] sm:$0xf]
        %v4628 = vld [vmem:[#allocation7 + $0x104] sm:$0xf]
        %v4629 = vld [vmem:[#allocation7 + $0x108] sm:$0xf]
        %v4630 = vld [vmem:[#allocation7 + $0x10c] sm:$0xf]
        %v4631 = vld [vmem:[#allocation7 + $0x110] sm:$0xf]
        %v4632 = vld [vmem:[#allocation7 + $0x114] sm:$0xf]
        %v4633 = vld [vmem:[#allocation7 + $0x118] sm:$0xf]
        %v4634 = vld [vmem:[#allocation7 + $0x11c] sm:$0xf]
        %v4635 = vld [vmem:[#allocation7 + $0x120] sm:$0xf]
        %v4636 = vld [vmem:[#allocation7 + $0x124] sm:$0xf]
        %v4637 = vld [vmem:[#allocation7 + $0x128] sm:$0xf]
        %v4638 = vld [vmem:[#allocation7 + $0x12c] sm:$0xf]
        %v4639 = vld [vmem:[#allocation7 + $0x130] sm:$0xf]
        %v4640 = vld [vmem:[#allocation7 + $0x134] sm:$0xf]
        %v4641 = vld [vmem:[#allocation7 + $0x138] sm:$0xf]
        %v4642 = vld [vmem:[#allocation7 + $0x13c] sm:$0xf]
        %v4643 = vld [vmem:[#allocation7 + $0x140] sm:$0xf]
        %v4644 = vld [vmem:[#allocation7 + $0x144] sm:$0xf]
        %v4645 = vld [vmem:[#allocation7 + $0x148] sm:$0xf]
        %v4646 = vld [vmem:[#allocation7 + $0x14c] sm:$0xf]
        %v4647 = vld [vmem:[#allocation7 + $0x150] sm:$0xf]
        %v4648 = vld [vmem:[#allocation7 + $0x154] sm:$0xf]
        %v4649 = vld [vmem:[#allocation7 + $0x158] sm:$0xf]
        %v4650 = vld [vmem:[#allocation7 + $0x15c] sm:$0xf]
        %v4651 = vld [vmem:[#allocation7 + $0x160] sm:$0xf]
        %v4652 = vld [vmem:[#allocation7 + $0x164] sm:$0xf]
        %v4653 = vld [vmem:[#allocation7 + $0x168] sm:$0xf]
        %v4654 = vld [vmem:[#allocation7 + $0x16c] sm:$0xf]
        %v4655 = vld [vmem:[#allocation7 + $0x170] sm:$0xf]
        %v4656 = vld [vmem:[#allocation7 + $0x174] sm:$0xf]
        %v4657 = vld [vmem:[#allocation7 + $0x178] sm:$0xf]
        %v4658 = vld [vmem:[#allocation7 + $0x17c] sm:$0xf]
        %v4659 = vld [vmem:[#allocation7 + $0x180] sm:$0xf]
        %v4660 = vld [vmem:[#allocation7 + $0x184] sm:$0xf]
        %v4661 = vld [vmem:[#allocation7 + $0x188] sm:$0xf]
        %v4662 = vld [vmem:[#allocation7 + $0x18c] sm:$0xf]
        %v4663 = vld [vmem:[#allocation7 + $0x190] sm:$0xf]
        %v4664 = vld [vmem:[#allocation7 + $0x194] sm:$0xf]
        %v4665 = vld [vmem:[#allocation7 + $0x198] sm:$0xf]
        %v4666 = vld [vmem:[#allocation7 + $0x19c] sm:$0xf]
        %v4667 = vld [vmem:[#allocation7 + $0x1a0] sm:$0xf]
        %v4668 = vld [vmem:[#allocation7 + $0x1a4] sm:$0xf]
        %v4669 = vld [vmem:[#allocation7 + $0x1a8] sm:$0xf]
        %v4670 = vld [vmem:[#allocation7 + $0x1ac] sm:$0xf]
        %v4671 = vld [vmem:[#allocation7 + $0x1b0] sm:$0xf]
        %v4672 = vld [vmem:[#allocation7 + $0x1b4] sm:$0xf]
        %v4673 = vld [vmem:[#allocation7 + $0x1b8] sm:$0xf]
        %v4674 = vld [vmem:[#allocation7 + $0x1bc] sm:$0xf]
        %v4675 = vld [vmem:[#allocation7 + $0x1c0] sm:$0xf]
        %v4676 = vld [vmem:[#allocation7 + $0x1c4] sm:$0xf]
        %v4677 = vld [vmem:[#allocation7 + $0x1c8] sm:$0xf]
        %v4678 = vld [vmem:[#allocation7 + $0x1cc] sm:$0xf]
        %v4679 = vld [vmem:[#allocation7 + $0x1d0] sm:$0xf]
        %v4680 = vld [vmem:[#allocation7 + $0x1d4] sm:$0xf]
        %v4681 = vld [vmem:[#allocation7 + $0x1d8] sm:$0xf]
        %v4682 = vld [vmem:[#allocation7 + $0x1dc] sm:$0xf]
        %v4683 = vld [vmem:[#allocation7 + $0x1e0] sm:$0xf]
        %v4684 = vld [vmem:[#allocation7 + $0x1e4] sm:$0xf]
        %v4685 = vld [vmem:[#allocation7 + $0x1e8] sm:$0xf]
        %v4686 = vld [vmem:[#allocation7 + $0x1ec] sm:$0xf]
        %v4687 = vld [vmem:[#allocation7 + $0x1f0] sm:$0xf]
        %v4688 = vld [vmem:[#allocation7 + $0x1f4] sm:$0xf]
        %v4689 = vld [vmem:[#allocation7 + $0x1f8] sm:$0xf]
        %v4690 = vld [vmem:[#allocation7 + $0x1fc] sm:$0xf]
        %v4691 = vld [vmem:[#allocation7 + $0x200] sm:$0xf]
        %v4692 = vld [vmem:[#allocation7 + $0x204] sm:$0xf]
        %v4693 = vld [vmem:[#allocation7 + $0x208] sm:$0xf]
        %v4694 = vld [vmem:[#allocation7 + $0x20c] sm:$0xf]
        %v4695 = vld [vmem:[#allocation7 + $0x210] sm:$0xf]
        %v4696 = vld [vmem:[#allocation7 + $0x214] sm:$0xf]
        %v4697 = vld [vmem:[#allocation7 + $0x218] sm:$0xf]
        %v4698 = vld [vmem:[#allocation7 + $0x21c] sm:$0xf]
        %v4699 = vld [vmem:[#allocation7 + $0x220] sm:$0xf]
        %v4700 = vld [vmem:[#allocation7 + $0x224] sm:$0xf]
        %v4701 = vld [vmem:[#allocation7 + $0x228] sm:$0xf]
        %v4702 = vld [vmem:[#allocation7 + $0x22c] sm:$0xf]
        %v4703 = vld [vmem:[#allocation7 + $0x230] sm:$0xf]
        %v4704 = vld [vmem:[#allocation7 + $0x234] sm:$0xf]
        %v4705 = vld [vmem:[#allocation7 + $0x238] sm:$0xf]
        %v4706 = vld [vmem:[#allocation7 + $0x23c] sm:$0xf]
        %v4707 = vld [vmem:[#allocation7 + $0x240] sm:$0xf]
        %v4708 = vld [vmem:[#allocation7 + $0x244] sm:$0xf]
        %v4709 = vld [vmem:[#allocation7 + $0x248] sm:$0xf]
        %v4710 = vld [vmem:[#allocation7 + $0x24c] sm:$0xf]
        %v4711 = vld [vmem:[#allocation7 + $0x250] sm:$0xf]
        %v4712 = vld [vmem:[#allocation7 + $0x254] sm:$0xf]
        %v4713 = vld [vmem:[#allocation7 + $0x258] sm:$0xf]
        %v4714 = vld [vmem:[#allocation7 + $0x25c] sm:$0xf]
        %v4715 = vld [vmem:[#allocation7 + $0x260] sm:$0xf]
        %v4716 = vld [vmem:[#allocation7 + $0x264] sm:$0xf]
        %v4717 = vld [vmem:[#allocation7 + $0x268] sm:$0xf]
        %v4718 = vld [vmem:[#allocation7 + $0x26c] sm:$0xf]
        %v4719 = vld [vmem:[#allocation7 + $0x270] sm:$0xf]
        %v4720 = vld [vmem:[#allocation7 + $0x274] sm:$0xf]
        %v4721 = vld [vmem:[#allocation7 + $0x278] sm:$0xf]
        %v4722 = vld [vmem:[#allocation7 + $0x27c] sm:$0xf]
        %v4723 = vld [vmem:[#allocation7 + $0x280] sm:$0xf]
        %v4724 = vld [vmem:[#allocation7 + $0x284] sm:$0xf]
        %v4725 = vld [vmem:[#allocation7 + $0x288] sm:$0xf]
        %v4726 = vld [vmem:[#allocation7 + $0x28c] sm:$0xf]
        %v4727 = vld [vmem:[#allocation7 + $0x290] sm:$0xf]
        %v4728 = vld [vmem:[#allocation7 + $0x294] sm:$0xf]
        %v4729 = vld [vmem:[#allocation7 + $0x298] sm:$0xf]
        %v4730 = vld [vmem:[#allocation7 + $0x29c] sm:$0xf]
        %v4731 = vld [vmem:[#allocation7 + $0x2a0] sm:$0xf]
        %v4732 = vld [vmem:[#allocation7 + $0x2a4] sm:$0xf]
        %v4733 = vld [vmem:[#allocation7 + $0x2a8] sm:$0xf]
        %v4734 = vld [vmem:[#allocation7 + $0x2ac] sm:$0xf]
        %v4735 = vld [vmem:[#allocation7 + $0x2b0] sm:$0xf]
        %v4736 = vld [vmem:[#allocation7 + $0x2b4] sm:$0xf]
        %v4737 = vld [vmem:[#allocation7 + $0x2b8] sm:$0xf]
        %v4738 = vld [vmem:[#allocation7 + $0x2bc] sm:$0xf]
        %v4739 = vld [vmem:[#allocation7 + $0x2c0] sm:$0xf]
        %v4740 = vld [vmem:[#allocation7 + $0x2c4] sm:$0xf]
        %v4741 = vld [vmem:[#allocation7 + $0x2c8] sm:$0xf]
        %v4742 = vld [vmem:[#allocation7 + $0x2cc] sm:$0xf]
        %v4743 = vld [vmem:[#allocation7 + $0x2d0] sm:$0xf]
        %v4744 = vld [vmem:[#allocation7 + $0x2d4] sm:$0xf]
        %v4745 = vld [vmem:[#allocation7 + $0x2d8] sm:$0xf]
        %v4746 = vld [vmem:[#allocation7 + $0x2dc] sm:$0xf]
        %v4747 = vld [vmem:[#allocation7 + $0x2e0] sm:$0xf]
        %v4748 = vld [vmem:[#allocation7 + $0x2e4] sm:$0xf]
        %v4749 = vld [vmem:[#allocation7 + $0x2e8] sm:$0xf]
        %v4750 = vld [vmem:[#allocation7 + $0x2ec] sm:$0xf]
        %v4751 = vld [vmem:[#allocation7 + $0x2f0] sm:$0xf]
        %v4752 = vld [vmem:[#allocation7 + $0x2f4] sm:$0xf]
        %v4753 = vld [vmem:[#allocation7 + $0x2f8] sm:$0xf]
        %v4754 = vld [vmem:[#allocation7 + $0x2fc] sm:$0xf]
        %v4755 = vld [vmem:[#allocation7 + $0x300] sm:$0xf]
        %v4756 = vld [vmem:[#allocation7 + $0x304] sm:$0xf]
        %v4757 = vld [vmem:[#allocation7 + $0x308] sm:$0xf]
        %v4758 = vld [vmem:[#allocation7 + $0x30c] sm:$0xf]
        %v4759 = vld [vmem:[#allocation7 + $0x310] sm:$0xf]
        %v4760 = vld [vmem:[#allocation7 + $0x314] sm:$0xf]
        %v4761 = vld [vmem:[#allocation7 + $0x318] sm:$0xf]
        %v4762 = vld [vmem:[#allocation7 + $0x31c] sm:$0xf]
        %v4763 = vld [vmem:[#allocation7 + $0x320] sm:$0xf]
        %v4764 = vld [vmem:[#allocation7 + $0x324] sm:$0xf]
        %v4765 = vld [vmem:[#allocation7 + $0x328] sm:$0xf]
        %v4766 = vld [vmem:[#allocation7 + $0x32c] sm:$0xf]
        %v4767 = vld [vmem:[#allocation7 + $0x330] sm:$0xf]
        %v4768 = vld [vmem:[#allocation7 + $0x334] sm:$0xf]
        %v4769 = vld [vmem:[#allocation7 + $0x338] sm:$0xf]
        %v4770 = vld [vmem:[#allocation7 + $0x33c] sm:$0xf]
        %v4771 = vld [vmem:[#allocation7 + $0x340] sm:$0xf]
        %v4772 = vld [vmem:[#allocation7 + $0x344] sm:$0xf]
        %v4773 = vld [vmem:[#allocation7 + $0x348] sm:$0xf]
        %v4774 = vld [vmem:[#allocation7 + $0x34c] sm:$0xf]
        %v4775 = vld [vmem:[#allocation7 + $0x350] sm:$0xf]
        %v4776 = vld [vmem:[#allocation7 + $0x354] sm:$0xf]
        %v4777 = vld [vmem:[#allocation7 + $0x358] sm:$0xf]
        %v4778 = vld [vmem:[#allocation7 + $0x35c] sm:$0xf]
        %v4779 = vld [vmem:[#allocation7 + $0x360] sm:$0xf]
        %v4780 = vld [vmem:[#allocation7 + $0x364] sm:$0xf]
        %v4781 = vld [vmem:[#allocation7 + $0x368] sm:$0xf]
        %v4782 = vld [vmem:[#allocation7 + $0x36c] sm:$0xf]
        %v4783 = vld [vmem:[#allocation7 + $0x370] sm:$0xf]
        %v4784 = vld [vmem:[#allocation7 + $0x374] sm:$0xf]
        %v4785 = vld [vmem:[#allocation7 + $0x378] sm:$0xf]
        %v4786 = vld [vmem:[#allocation7 + $0x37c] sm:$0xf]
        %v4787 = vld [vmem:[#allocation7 + $0x380] sm:$0xf]
        %v4788 = vld [vmem:[#allocation7 + $0x384] sm:$0xf]
        %v4789 = vld [vmem:[#allocation7 + $0x388] sm:$0xf]
        %v4790 = vld [vmem:[#allocation7 + $0x38c] sm:$0xf]
        %v4791 = vld [vmem:[#allocation7 + $0x390] sm:$0xf]
        %v4792 = vld [vmem:[#allocation7 + $0x394] sm:$0xf]
        %v4793 = vld [vmem:[#allocation7 + $0x398] sm:$0xf]
        %v4794 = vld [vmem:[#allocation7 + $0x39c] sm:$0xf]
        %v4795 = vld [vmem:[#allocation7 + $0x3a0] sm:$0xf]
        %v4796 = vld [vmem:[#allocation7 + $0x3a4] sm:$0xf]
        %v4797 = vld [vmem:[#allocation7 + $0x3a8] sm:$0xf]
        %v4798 = vld [vmem:[#allocation7 + $0x3ac] sm:$0xf]
        %v4799 = vld [vmem:[#allocation7 + $0x3b0] sm:$0xf]
        %v4800 = vld [vmem:[#allocation7 + $0x3b4] sm:$0xf]
        %v4801 = vld [vmem:[#allocation7 + $0x3b8] sm:$0xf]
        %v4802 = vld [vmem:[#allocation7 + $0x3bc] sm:$0xf]
        %v4803 = vld [vmem:[#allocation7 + $0x3c0] sm:$0xf]
        %v4804 = vld [vmem:[#allocation7 + $0x3c4] sm:$0xf]
        %v4805 = vld [vmem:[#allocation7 + $0x3c8] sm:$0xf]
        %v4806 = vld [vmem:[#allocation7 + $0x3cc] sm:$0xf]
        %v4807 = vld [vmem:[#allocation7 + $0x3d0] sm:$0xf]
        %v4808 = vld [vmem:[#allocation7 + $0x3d4] sm:$0xf]
        %v4809 = vld [vmem:[#allocation7 + $0x3d8] sm:$0xf]
        %v4810 = vld [vmem:[#allocation7 + $0x3dc] sm:$0xf]
        %v4811 = vld [vmem:[#allocation7 + $0x3e0] sm:$0xf]
        %v4812 = vld [vmem:[#allocation7 + $0x3e4] sm:$0xf]
        %v4813 = vld [vmem:[#allocation7 + $0x3e8] sm:$0xf]
        %v4814 = vld [vmem:[#allocation7 + $0x3ec] sm:$0xf]
        %v4815 = vld [vmem:[#allocation7 + $0x3f0] sm:$0xf]
        %v4816 = vld [vmem:[#allocation7 + $0x3f4] sm:$0xf]
        %v4817 = vld [vmem:[#allocation7 + $0x3f8] sm:$0xf]
        %v4818 = vld [vmem:[#allocation7 + $0x3fc] sm:$0xf]
        %v4819 = vld [vmem:[#allocation7 + $0x400] sm:$0xf]
        %v4820 = vld [vmem:[#allocation7 + $0x404] sm:$0xf]
        %v4821 = vld [vmem:[#allocation7 + $0x408] sm:$0xf]
        %v4822 = vld [vmem:[#allocation7 + $0x40c] sm:$0xf]
        %v4823 = vld [vmem:[#allocation7 + $0x410] sm:$0xf]
        %v4824 = vld [vmem:[#allocation7 + $0x414] sm:$0xf]
        %v4825 = vld [vmem:[#allocation7 + $0x418] sm:$0xf]
        %v4826 = vld [vmem:[#allocation7 + $0x41c] sm:$0xf]
        %v4827 = vld [vmem:[#allocation7 + $0x420] sm:$0xf]
        %v4828 = vld [vmem:[#allocation7 + $0x424] sm:$0xf]
        %v4829 = vld [vmem:[#allocation7 + $0x428] sm:$0xf]
        %v4830 = vld [vmem:[#allocation7 + $0x42c] sm:$0xf]
        %v4831 = vld [vmem:[#allocation7 + $0x430] sm:$0xf]
        %v4832 = vld [vmem:[#allocation7 + $0x434] sm:$0xf]
        %v4833 = vld [vmem:[#allocation7 + $0x438] sm:$0xf]
        %v4834 = vld [vmem:[#allocation7 + $0x43c] sm:$0xf]
        %v4835 = vld [vmem:[#allocation7 + $0x440] sm:$0xf]
        %v4836 = vld [vmem:[#allocation7 + $0x444] sm:$0xf]
        %v4837 = vld [vmem:[#allocation7 + $0x448] sm:$0xf]
        %v4838 = vld [vmem:[#allocation7 + $0x44c] sm:$0xf]
        %v4839 = vld [vmem:[#allocation7 + $0x450] sm:$0xf]
        %v4840 = vld [vmem:[#allocation7 + $0x454] sm:$0xf]
        %v4841 = vld [vmem:[#allocation7 + $0x458] sm:$0xf]
        %v4842 = vld [vmem:[#allocation7 + $0x45c] sm:$0xf]
        %v4843 = vld [vmem:[#allocation7 + $0x460] sm:$0xf]
        %v4844 = vld [vmem:[#allocation7 + $0x464] sm:$0xf]
        %v4845 = vld [vmem:[#allocation7 + $0x468] sm:$0xf]
        %v4846 = vld [vmem:[#allocation7 + $0x46c] sm:$0xf]
        %v4847 = vld [vmem:[#allocation7 + $0x470] sm:$0xf]
        %v4848 = vld [vmem:[#allocation7 + $0x474] sm:$0xf]
        %v4849 = vld [vmem:[#allocation7 + $0x478] sm:$0xf]
        %v4850 = vld [vmem:[#allocation7 + $0x47c] sm:$0xf]
        %v4851 = vld [vmem:[#allocation7 + $0x480] sm:$0xf]
        %v4852 = vld [vmem:[#allocation7 + $0x484] sm:$0xf]
        %v4853 = vld [vmem:[#allocation7 + $0x488] sm:$0xf]
        %v4854 = vld [vmem:[#allocation7 + $0x48c] sm:$0xf]
        %v4855 = vld [vmem:[#allocation7 + $0x490] sm:$0xf]
        %v4856 = vld [vmem:[#allocation7 + $0x494] sm:$0xf]
        %v4857 = vld [vmem:[#allocation7 + $0x498] sm:$0xf]
        %v4858 = vld [vmem:[#allocation7 + $0x49c] sm:$0xf]
        %v4859 = vld [vmem:[#allocation7 + $0x4a0] sm:$0xf]
        %v4860 = vld [vmem:[#allocation7 + $0x4a4] sm:$0xf]
        %v4861 = vld [vmem:[#allocation7 + $0x4a8] sm:$0xf]
        %v4862 = vld [vmem:[#allocation7 + $0x4ac] sm:$0xf]
        %v4863 = vld [vmem:[#allocation7 + $0x4b0] sm:$0xf]
        %v4864 = vld [vmem:[#allocation7 + $0x4b4] sm:$0xf]
        %v4865 = vld [vmem:[#allocation7 + $0x4b8] sm:$0xf]
        %v4866 = vld [vmem:[#allocation7 + $0x4bc] sm:$0xf]
        %v4867 = vld [vmem:[#allocation7 + $0x4c0] sm:$0xf]
        %v4868 = vld [vmem:[#allocation7 + $0x4c4] sm:$0xf]
        %v4869 = vld [vmem:[#allocation7 + $0x4c8] sm:$0xf]
        %v4870 = vld [vmem:[#allocation7 + $0x4cc] sm:$0xf]
        %v4871 = vld [vmem:[#allocation7 + $0x4d0] sm:$0xf]
        %v4872 = vld [vmem:[#allocation7 + $0x4d4] sm:$0xf]
        %v4873 = vld [vmem:[#allocation7 + $0x4d8] sm:$0xf]
        %v4874 = vld [vmem:[#allocation7 + $0x4dc] sm:$0xf]
        %v4875 = vld [vmem:[#allocation7 + $0x4e0] sm:$0xf]
        %v4876 = vld [vmem:[#allocation7 + $0x4e4] sm:$0xf]
        %v4877 = vld [vmem:[#allocation7 + $0x4e8] sm:$0xf]
        %v4878 = vld [vmem:[#allocation7 + $0x4ec] sm:$0xf]
        %v4879 = vld [vmem:[#allocation7 + $0x4f0] sm:$0xf]
        %v4880 = vld [vmem:[#allocation7 + $0x4f4] sm:$0xf]
        %v4881 = vld [vmem:[#allocation7 + $0x4f8] sm:$0xf]
        %v4882 = vld [vmem:[#allocation7 + $0x4fc] sm:$0xf]
        %v4883 = vld [vmem:[#allocation7 + $0x500] sm:$0xf]
        %v4884 = vld [vmem:[#allocation7 + $0x504] sm:$0xf]
        %v4885 = vld [vmem:[#allocation7 + $0x508] sm:$0xf]
        %v4886 = vld [vmem:[#allocation7 + $0x50c] sm:$0xf]
        %v4887 = vld [vmem:[#allocation7 + $0x510] sm:$0xf]
        %v4888 = vld [vmem:[#allocation7 + $0x514] sm:$0xf]
        %v4889 = vld [vmem:[#allocation7 + $0x518] sm:$0xf]
        %v4890 = vld [vmem:[#allocation7 + $0x51c] sm:$0xf]
        %v4891 = vld [vmem:[#allocation7 + $0x520] sm:$0xf]
        %v4892 = vld [vmem:[#allocation7 + $0x524] sm:$0xf]
        %v4893 = vld [vmem:[#allocation7 + $0x528] sm:$0xf]
        %v4894 = vld [vmem:[#allocation7 + $0x52c] sm:$0xf]
        %v4895 = vld [vmem:[#allocation7 + $0x530] sm:$0xf]
        %v4896 = vld [vmem:[#allocation7 + $0x534] sm:$0xf]
        %v4897 = vld [vmem:[#allocation7 + $0x538] sm:$0xf]
        %v4898 = vld [vmem:[#allocation7 + $0x53c] sm:$0xf]
        %v4899 = vld [vmem:[#allocation7 + $0x540] sm:$0xf]
        %v4900 = vld [vmem:[#allocation7 + $0x544] sm:$0xf]
        %v4901 = vld [vmem:[#allocation7 + $0x548] sm:$0xf]
        %v4902 = vld [vmem:[#allocation7 + $0x54c] sm:$0xf]
        %v4903 = vld [vmem:[#allocation7 + $0x550] sm:$0xf]
        %v4904 = vld [vmem:[#allocation7 + $0x554] sm:$0xf]
        %v4905 = vld [vmem:[#allocation7 + $0x558] sm:$0xf]
        %v4906 = vld [vmem:[#allocation7 + $0x55c] sm:$0xf]
        %v4907 = vld [vmem:[#allocation7 + $0x560] sm:$0xf]
        %v4908 = vld [vmem:[#allocation7 + $0x564] sm:$0xf]
        %v4909 = vld [vmem:[#allocation7 + $0x568] sm:$0xf]
        %v4910 = vld [vmem:[#allocation7 + $0x56c] sm:$0xf]
        %v4911 = vld [vmem:[#allocation7 + $0x570] sm:$0xf]
        %v4912 = vld [vmem:[#allocation7 + $0x574] sm:$0xf]
        %v4913 = vld [vmem:[#allocation7 + $0x578] sm:$0xf]
        %v4914 = vld [vmem:[#allocation7 + $0x57c] sm:$0xf]
        %v4915 = vld [vmem:[#allocation7 + $0x580] sm:$0xf]
        %v4916 = vld [vmem:[#allocation7 + $0x584] sm:$0xf]
        %v4917 = vld [vmem:[#allocation7 + $0x588] sm:$0xf]
        %v4918 = vld [vmem:[#allocation7 + $0x58c] sm:$0xf]
        %v4919 = vld [vmem:[#allocation7 + $0x590] sm:$0xf]
        %v4920 = vld [vmem:[#allocation7 + $0x594] sm:$0xf]
        %v4921 = vld [vmem:[#allocation7 + $0x598] sm:$0xf]
        %v4922 = vld [vmem:[#allocation7 + $0x59c] sm:$0xf]
        %v4923 = vld [vmem:[#allocation7 + $0x5a0] sm:$0xf]
        %v4924 = vld [vmem:[#allocation7 + $0x5a4] sm:$0xf]
        %v4925 = vld [vmem:[#allocation7 + $0x5a8] sm:$0xf]
        %v4926 = vld [vmem:[#allocation7 + $0x5ac] sm:$0xf]
        %v4927 = vld [vmem:[#allocation7 + $0x5b0] sm:$0xf]
        %v4928 = vld [vmem:[#allocation7 + $0x5b4] sm:$0xf]
        %v4929 = vld [vmem:[#allocation7 + $0x5b8] sm:$0xf]
        %v4930 = vld [vmem:[#allocation7 + $0x5bc] sm:$0xf]
        %v4931 = vld [vmem:[#allocation7 + $0x5c0] sm:$0xf]
        %v4932 = vld [vmem:[#allocation7 + $0x5c4] sm:$0xf]
        %v4933 = vld [vmem:[#allocation7 + $0x5c8] sm:$0xf]
        %v4934 = vld [vmem:[#allocation7 + $0x5cc] sm:$0xf]
        %v4935 = vld [vmem:[#allocation7 + $0x5d0] sm:$0xf]
        %v4936 = vld [vmem:[#allocation7 + $0x5d4] sm:$0xf]
        %v4937 = vld [vmem:[#allocation7 + $0x5d8] sm:$0xf]
        %v4938 = vld [vmem:[#allocation7 + $0x5dc] sm:$0xf]
        %v4939 = vld [vmem:[#allocation7 + $0x5e0] sm:$0xf]
        %v4940 = vld [vmem:[#allocation7 + $0x5e4] sm:$0xf]
        %v4941 = vld [vmem:[#allocation7 + $0x5e8] sm:$0xf]
        %v4942 = vld [vmem:[#allocation7 + $0x5ec] sm:$0xf]
        %v4943 = vld [vmem:[#allocation7 + $0x5f0] sm:$0xf]
        %v4944 = vld [vmem:[#allocation7 + $0x5f4] sm:$0xf]
        %v4945 = vld [vmem:[#allocation7 + $0x5f8] sm:$0xf]
        %v4946 = vld [vmem:[#allocation7 + $0x5fc] sm:$0xf]
        %v4947 = vld [vmem:[#allocation7 + $0x600] sm:$0xf]
        %v4948 = vld [vmem:[#allocation7 + $0x604] sm:$0xf]
        %v4949 = vld [vmem:[#allocation7 + $0x608] sm:$0xf]
        %v4950 = vld [vmem:[#allocation7 + $0x60c] sm:$0xf]
        %v4951 = vld [vmem:[#allocation7 + $0x610] sm:$0xf]
        %v4952 = vld [vmem:[#allocation7 + $0x614] sm:$0xf]
        %v4953 = vld [vmem:[#allocation7 + $0x618] sm:$0xf]
        %v4954 = vld [vmem:[#allocation7 + $0x61c] sm:$0xf]
        %v4955 = vld [vmem:[#allocation7 + $0x620] sm:$0xf]
        %v4956 = vld [vmem:[#allocation7 + $0x624] sm:$0xf]
        %v4957 = vld [vmem:[#allocation7 + $0x628] sm:$0xf]
        %v4958 = vld [vmem:[#allocation7 + $0x62c] sm:$0xf]
        %v4959 = vld [vmem:[#allocation7 + $0x630] sm:$0xf]
        %v4960 = vld [vmem:[#allocation7 + $0x634] sm:$0xf]
        %v4961 = vld [vmem:[#allocation7 + $0x638] sm:$0xf]
        %v4962 = vld [vmem:[#allocation7 + $0x63c] sm:$0xf]
        %v5379 = vunpack.c.l.b16 %v4147
        %v5380 = vunpack.c.h.b16 %v4147
        %v5381 = vunpack.c.l.b16 %v4148
        %v5382 = vunpack.c.h.b16 %v4148
        %v5383 = vunpack.c.l.b16 %v4149
        %v5384 = vunpack.c.h.b16 %v4149
        %v5385 = vunpack.c.l.b16 %v4150
        %v5386 = vunpack.c.h.b16 %v4150
        %v5387 = vunpack.c.l.b16 %v4151
        %v5388 = vunpack.c.h.b16 %v4151
        %v5389 = vunpack.c.l.b16 %v4152
        %v5390 = vunpack.c.h.b16 %v4152
        %v5391 = vunpack.c.l.b16 %v4153
        %v5392 = vunpack.c.h.b16 %v4153
        %v5393 = vunpack.c.l.b16 %v4154
        %v5394 = vunpack.c.h.b16 %v4154
        %v5395 = vunpack.c.l.b16 %v4155
        %v5396 = vunpack.c.h.b16 %v4155
        %v5397 = vunpack.c.l.b16 %v4156
        %v5398 = vunpack.c.h.b16 %v4156
        %v5399 = vunpack.c.l.b16 %v4157
        %v5400 = vunpack.c.h.b16 %v4157
        %v5401 = vunpack.c.l.b16 %v4158
        %v5402 = vunpack.c.h.b16 %v4158
        %v5403 = vunpack.c.l.b16 %v4159
        %v5404 = vunpack.c.l.b16 %v4160
        %v5405 = vunpack.c.h.b16 %v4160
        %v5406 = vunpack.c.l.b16 %v4161
        %v5407 = vunpack.c.h.b16 %v4161
        %v5408 = vunpack.c.l.b16 %v4162
        %v5409 = vunpack.c.h.b16 %v4162
        %v5410 = vunpack.c.l.b16 %v4163
        %v5411 = vunpack.c.h.b16 %v4163
        %v5412 = vunpack.c.l.b16 %v4164
        %v5413 = vunpack.c.h.b16 %v4164
        %v5414 = vunpack.c.l.b16 %v4165
        %v5415 = vunpack.c.h.b16 %v4165
        %v5416 = vunpack.c.l.b16 %v4166
        %v5417 = vunpack.c.h.b16 %v4166
        %v5418 = vunpack.c.l.b16 %v4167
        %v5419 = vunpack.c.h.b16 %v4167
        %v5420 = vunpack.c.l.b16 %v4168
        %v5421 = vunpack.c.h.b16 %v4168
        %v5422 = vunpack.c.l.b16 %v4169
        %v5423 = vunpack.c.h.b16 %v4169
        %v5424 = vunpack.c.l.b16 %v4170
        %v5425 = vunpack.c.h.b16 %v4170
        %v5426 = vunpack.c.l.b16 %v4171
        %v5427 = vunpack.c.h.b16 %v4171
        %v5428 = vunpack.c.l.b16 %v4172
        %v5429 = vunpack.c.l.b16 %v4173
        %v5430 = vunpack.c.h.b16 %v4173
        %v5431 = vunpack.c.l.b16 %v4174
        %v5432 = vunpack.c.h.b16 %v4174
        %v5433 = vunpack.c.l.b16 %v4175
        %v5434 = vunpack.c.h.b16 %v4175
        %v5435 = vunpack.c.l.b16 %v4176
        %v5436 = vunpack.c.h.b16 %v4176
        %v5437 = vunpack.c.l.b16 %v4177
        %v5438 = vunpack.c.h.b16 %v4177
        %v5439 = vunpack.c.l.b16 %v4178
        %v5440 = vunpack.c.h.b16 %v4178
        %v5441 = vunpack.c.l.b16 %v4179
        %v5442 = vunpack.c.h.b16 %v4179
        %v5443 = vunpack.c.l.b16 %v4180
        %v5444 = vunpack.c.h.b16 %v4180
        %v5445 = vunpack.c.l.b16 %v4181
        %v5446 = vunpack.c.h.b16 %v4181
        %v5447 = vunpack.c.l.b16 %v4182
        %v5448 = vunpack.c.h.b16 %v4182
        %v5449 = vunpack.c.l.b16 %v4183
        %v5450 = vunpack.c.h.b16 %v4183
        %v5451 = vunpack.c.l.b16 %v4184
        %v5452 = vunpack.c.h.b16 %v4184
        %v5453 = vunpack.c.l.b16 %v4185
        %v5454 = vunpack.c.l.b16 %v4186
        %v5455 = vunpack.c.h.b16 %v4186
        %v5456 = vunpack.c.l.b16 %v4187
        %v5457 = vunpack.c.h.b16 %v4187
        %v5458 = vunpack.c.l.b16 %v4188
        %v5459 = vunpack.c.h.b16 %v4188
        %v5460 = vunpack.c.l.b16 %v4189
        %v5461 = vunpack.c.h.b16 %v4189
        %v5462 = vunpack.c.l.b16 %v4190
        %v5463 = vunpack.c.h.b16 %v4190
        %v5464 = vunpack.c.l.b16 %v4191
        %v5465 = vunpack.c.h.b16 %v4191
        %v5466 = vunpack.c.l.b16 %v4192
        %v5467 = vunpack.c.h.b16 %v4192
        %v5468 = vunpack.c.l.b16 %v4193
        %v5469 = vunpack.c.h.b16 %v4193
        %v5470 = vunpack.c.l.b16 %v4194
        %v5471 = vunpack.c.h.b16 %v4194
        %v5472 = vunpack.c.l.b16 %v4195
        %v5473 = vunpack.c.h.b16 %v4195
        %v5474 = vunpack.c.l.b16 %v4196
        %v5475 = vunpack.c.h.b16 %v4196
        %v5476 = vunpack.c.l.b16 %v4197
        %v5477 = vunpack.c.h.b16 %v4197
        %v5478 = vunpack.c.l.b16 %v4198
        %v5479 = vunpack.c.l.b16 %v4199
        %v5480 = vunpack.c.h.b16 %v4199
        %v5481 = vunpack.c.l.b16 %v4200
        %v5482 = vunpack.c.h.b16 %v4200
        %v5483 = vunpack.c.l.b16 %v4201
        %v5484 = vunpack.c.h.b16 %v4201
        %v5485 = vunpack.c.l.b16 %v4202
        %v5486 = vunpack.c.h.b16 %v4202
        %v5487 = vunpack.c.l.b16 %v4203
        %v5488 = vunpack.c.h.b16 %v4203
        %v5489 = vunpack.c.l.b16 %v4204
        %v5490 = vunpack.c.h.b16 %v4204
        %v5491 = vunpack.c.l.b16 %v4205
        %v5492 = vunpack.c.h.b16 %v4205
        %v5493 = vunpack.c.l.b16 %v4206
        %v5494 = vunpack.c.h.b16 %v4206
        %v5495 = vunpack.c.l.b16 %v4207
        %v5496 = vunpack.c.h.b16 %v4207
        %v5497 = vunpack.c.l.b16 %v4208
        %v5498 = vunpack.c.h.b16 %v4208
        %v5499 = vunpack.c.l.b16 %v4209
        %v5500 = vunpack.c.h.b16 %v4209
        %v5501 = vunpack.c.l.b16 %v4210
        %v5502 = vunpack.c.h.b16 %v4210
        %v5503 = vunpack.c.l.b16 %v4211
        %v5504 = vunpack.c.l.b16 %v4212
        %v5505 = vunpack.c.h.b16 %v4212
        %v5506 = vunpack.c.l.b16 %v4213
        %v5507 = vunpack.c.h.b16 %v4213
        %v5508 = vunpack.c.l.b16 %v4214
        %v5509 = vunpack.c.h.b16 %v4214
        %v5510 = vunpack.c.l.b16 %v4215
        %v5511 = vunpack.c.h.b16 %v4215
        %v5512 = vunpack.c.l.b16 %v4216
        %v5513 = vunpack.c.h.b16 %v4216
        %v5514 = vunpack.c.l.b16 %v4217
        %v5515 = vunpack.c.h.b16 %v4217
        %v5516 = vunpack.c.l.b16 %v4218
        %v5517 = vunpack.c.h.b16 %v4218
        %v5518 = vunpack.c.l.b16 %v4219
        %v5519 = vunpack.c.h.b16 %v4219
        %v5520 = vunpack.c.l.b16 %v4220
        %v5521 = vunpack.c.h.b16 %v4220
        %v5522 = vunpack.c.l.b16 %v4221
        %v5523 = vunpack.c.h.b16 %v4221
        %v5524 = vunpack.c.l.b16 %v4222
        %v5525 = vunpack.c.h.b16 %v4222
        %v5526 = vunpack.c.l.b16 %v4223
        %v5527 = vunpack.c.h.b16 %v4223
        %v5528 = vunpack.c.l.b16 %v4224
        %v5529 = vunpack.c.l.b16 %v4225
        %v5530 = vunpack.c.h.b16 %v4225
        %v5531 = vunpack.c.l.b16 %v4226
        %v5532 = vunpack.c.h.b16 %v4226
        %v5533 = vunpack.c.l.b16 %v4227
        %v5534 = vunpack.c.h.b16 %v4227
        %v5535 = vunpack.c.l.b16 %v4228
        %v5536 = vunpack.c.h.b16 %v4228
        %v5537 = vunpack.c.l.b16 %v4229
        %v5538 = vunpack.c.h.b16 %v4229
        %v5539 = vunpack.c.l.b16 %v4230
        %v5540 = vunpack.c.h.b16 %v4230
        %v5541 = vunpack.c.l.b16 %v4231
        %v5542 = vunpack.c.h.b16 %v4231
        %v5543 = vunpack.c.l.b16 %v4232
        %v5544 = vunpack.c.h.b16 %v4232
        %v5545 = vunpack.c.l.b16 %v4233
        %v5546 = vunpack.c.h.b16 %v4233
        %v5547 = vunpack.c.l.b16 %v4234
        %v5548 = vunpack.c.h.b16 %v4234
        %v5549 = vunpack.c.l.b16 %v4235
        %v5550 = vunpack.c.h.b16 %v4235
        %v5551 = vunpack.c.l.b16 %v4236
        %v5552 = vunpack.c.h.b16 %v4236
        %v5553 = vunpack.c.l.b16 %v4237
        %v5554 = vunpack.c.l.b16 %v4238
        %v5555 = vunpack.c.h.b16 %v4238
        %v5556 = vunpack.c.l.b16 %v4239
        %v5557 = vunpack.c.h.b16 %v4239
        %v5558 = vunpack.c.l.b16 %v4240
        %v5559 = vunpack.c.h.b16 %v4240
        %v5560 = vunpack.c.l.b16 %v4241
        %v5561 = vunpack.c.h.b16 %v4241
        %v5562 = vunpack.c.l.b16 %v4242
        %v5563 = vunpack.c.h.b16 %v4242
        %v5564 = vunpack.c.l.b16 %v4243
        %v5565 = vunpack.c.h.b16 %v4243
        %v5566 = vunpack.c.l.b16 %v4244
        %v5567 = vunpack.c.h.b16 %v4244
        %v5568 = vunpack.c.l.b16 %v4245
        %v5569 = vunpack.c.h.b16 %v4245
        %v5570 = vunpack.c.l.b16 %v4246
        %v5571 = vunpack.c.h.b16 %v4246
        %v5572 = vunpack.c.l.b16 %v4247
        %v5573 = vunpack.c.h.b16 %v4247
        %v5574 = vunpack.c.l.b16 %v4248
        %v5575 = vunpack.c.h.b16 %v4248
        %v5576 = vunpack.c.l.b16 %v4249
        %v5577 = vunpack.c.h.b16 %v4249
        %v5578 = vunpack.c.l.b16 %v4250
        %v5579 = vunpack.c.l.b16 %v4251
        %v5580 = vunpack.c.h.b16 %v4251
        %v5581 = vunpack.c.l.b16 %v4252
        %v5582 = vunpack.c.h.b16 %v4252
        %v5583 = vunpack.c.l.b16 %v4253
        %v5584 = vunpack.c.h.b16 %v4253
        %v5585 = vunpack.c.l.b16 %v4254
        %v5586 = vunpack.c.h.b16 %v4254
        %v5587 = vunpack.c.l.b16 %v4255
        %v5588 = vunpack.c.h.b16 %v4255
        %v5589 = vunpack.c.l.b16 %v4256
        %v5590 = vunpack.c.h.b16 %v4256
        %v5591 = vunpack.c.l.b16 %v4257
        %v5592 = vunpack.c.h.b16 %v4257
        %v5593 = vunpack.c.l.b16 %v4258
        %v5594 = vunpack.c.h.b16 %v4258
        %v5595 = vunpack.c.l.b16 %v4259
        %v5596 = vunpack.c.h.b16 %v4259
        %v5597 = vunpack.c.l.b16 %v4260
        %v5598 = vunpack.c.h.b16 %v4260
        %v5599 = vunpack.c.l.b16 %v4261
        %v5600 = vunpack.c.h.b16 %v4261
        %v5601 = vunpack.c.l.b16 %v4262
        %v5602 = vunpack.c.h.b16 %v4262
        %v5603 = vunpack.c.l.b16 %v4263
        %v5604 = vunpack.c.l.b16 %v4264
        %v5605 = vunpack.c.h.b16 %v4264
        %v5606 = vunpack.c.l.b16 %v4265
        %v5607 = vunpack.c.h.b16 %v4265
        %v5608 = vunpack.c.l.b16 %v4266
        %v5609 = vunpack.c.h.b16 %v4266
        %v5610 = vunpack.c.l.b16 %v4267
        %v5611 = vunpack.c.h.b16 %v4267
        %v5612 = vunpack.c.l.b16 %v4268
        %v5613 = vunpack.c.h.b16 %v4268
        %v5614 = vunpack.c.l.b16 %v4269
        %v5615 = vunpack.c.h.b16 %v4269
        %v5616 = vunpack.c.l.b16 %v4270
        %v5617 = vunpack.c.h.b16 %v4270
        %v5618 = vunpack.c.l.b16 %v4271
        %v5619 = vunpack.c.h.b16 %v4271
        %v5620 = vunpack.c.l.b16 %v4272
        %v5621 = vunpack.c.h.b16 %v4272
        %v5622 = vunpack.c.l.b16 %v4273
        %v5623 = vunpack.c.h.b16 %v4273
        %v5624 = vunpack.c.l.b16 %v4274
        %v5625 = vunpack.c.h.b16 %v4274
        %v5626 = vunpack.c.l.b16 %v4275
        %v5627 = vunpack.c.h.b16 %v4275
        %v5628 = vunpack.c.l.b16 %v4276
        %v5629 = vunpack.c.l.b16 %v4277
        %v5630 = vunpack.c.h.b16 %v4277
        %v5631 = vunpack.c.l.b16 %v4278
        %v5632 = vunpack.c.h.b16 %v4278
        %v5633 = vunpack.c.l.b16 %v4279
        %v5634 = vunpack.c.h.b16 %v4279
        %v5635 = vunpack.c.l.b16 %v4280
        %v5636 = vunpack.c.h.b16 %v4280
        %v5637 = vunpack.c.l.b16 %v4281
        %v5638 = vunpack.c.h.b16 %v4281
        %v5639 = vunpack.c.l.b16 %v4282
        %v5640 = vunpack.c.h.b16 %v4282
        %v5641 = vunpack.c.l.b16 %v4283
        %v5642 = vunpack.c.h.b16 %v4283
        %v5643 = vunpack.c.l.b16 %v4284
        %v5644 = vunpack.c.h.b16 %v4284
        %v5645 = vunpack.c.l.b16 %v4285
        %v5646 = vunpack.c.h.b16 %v4285
        %v5647 = vunpack.c.l.b16 %v4286
        %v5648 = vunpack.c.h.b16 %v4286
        %v5649 = vunpack.c.l.b16 %v4287
        %v5650 = vunpack.c.h.b16 %v4287
        %v5651 = vunpack.c.l.b16 %v4288
        %v5652 = vunpack.c.h.b16 %v4288
        %v5653 = vunpack.c.l.b16 %v4289
        %v5654 = vunpack.c.l.b16 %v4290
        %v5655 = vunpack.c.h.b16 %v4290
        %v5656 = vunpack.c.l.b16 %v4291
        %v5657 = vunpack.c.h.b16 %v4291
        %v5658 = vunpack.c.l.b16 %v4292
        %v5659 = vunpack.c.h.b16 %v4292
        %v5660 = vunpack.c.l.b16 %v4293
        %v5661 = vunpack.c.h.b16 %v4293
        %v5662 = vunpack.c.l.b16 %v4294
        %v5663 = vunpack.c.h.b16 %v4294
        %v5664 = vunpack.c.l.b16 %v4295
        %v5665 = vunpack.c.h.b16 %v4295
        %v5666 = vunpack.c.l.b16 %v4296
        %v5667 = vunpack.c.h.b16 %v4296
        %v5668 = vunpack.c.l.b16 %v4297
        %v5669 = vunpack.c.h.b16 %v4297
        %v5670 = vunpack.c.l.b16 %v4298
        %v5671 = vunpack.c.h.b16 %v4298
        %v5672 = vunpack.c.l.b16 %v4299
        %v5673 = vunpack.c.h.b16 %v4299
        %v5674 = vunpack.c.l.b16 %v4300
        %v5675 = vunpack.c.h.b16 %v4300
        %v5676 = vunpack.c.l.b16 %v4301
        %v5677 = vunpack.c.h.b16 %v4301
        %v5678 = vunpack.c.l.b16 %v4302
        %v5679 = vunpack.c.l.b16 %v4303
        %v5680 = vunpack.c.h.b16 %v4303
        %v5681 = vunpack.c.l.b16 %v4304
        %v5682 = vunpack.c.h.b16 %v4304
        %v5683 = vunpack.c.l.b16 %v4305
        %v5684 = vunpack.c.h.b16 %v4305
        %v5685 = vunpack.c.l.b16 %v4306
        %v5686 = vunpack.c.h.b16 %v4306
        %v5687 = vunpack.c.l.b16 %v4307
        %v5688 = vunpack.c.h.b16 %v4307
        %v5689 = vunpack.c.l.b16 %v4308
        %v5690 = vunpack.c.h.b16 %v4308
        %v5691 = vunpack.c.l.b16 %v4309
        %v5692 = vunpack.c.h.b16 %v4309
        %v5693 = vunpack.c.l.b16 %v4310
        %v5694 = vunpack.c.h.b16 %v4310
        %v5695 = vunpack.c.l.b16 %v4311
        %v5696 = vunpack.c.h.b16 %v4311
        %v5697 = vunpack.c.l.b16 %v4312
        %v5698 = vunpack.c.h.b16 %v4312
        %v5699 = vunpack.c.l.b16 %v4313
        %v5700 = vunpack.c.h.b16 %v4313
        %v5701 = vunpack.c.l.b16 %v4314
        %v5702 = vunpack.c.h.b16 %v4314
        %v5703 = vunpack.c.l.b16 %v4315
        %v5704 = vunpack.c.l.b16 %v4316
        %v5705 = vunpack.c.h.b16 %v4316
        %v5706 = vunpack.c.l.b16 %v4317
        %v5707 = vunpack.c.h.b16 %v4317
        %v5708 = vunpack.c.l.b16 %v4318
        %v5709 = vunpack.c.h.b16 %v4318
        %v5710 = vunpack.c.l.b16 %v4319
        %v5711 = vunpack.c.h.b16 %v4319
        %v5712 = vunpack.c.l.b16 %v4320
        %v5713 = vunpack.c.h.b16 %v4320
        %v5714 = vunpack.c.l.b16 %v4321
        %v5715 = vunpack.c.h.b16 %v4321
        %v5716 = vunpack.c.l.b16 %v4322
        %v5717 = vunpack.c.h.b16 %v4322
        %v5718 = vunpack.c.l.b16 %v4323
        %v5719 = vunpack.c.h.b16 %v4323
        %v5720 = vunpack.c.l.b16 %v4324
        %v5721 = vunpack.c.h.b16 %v4324
        %v5722 = vunpack.c.l.b16 %v4325
        %v5723 = vunpack.c.h.b16 %v4325
        %v5724 = vunpack.c.l.b16 %v4326
        %v5725 = vunpack.c.h.b16 %v4326
        %v5726 = vunpack.c.l.b16 %v4327
        %v5727 = vunpack.c.h.b16 %v4327
        %v5728 = vunpack.c.l.b16 %v4328
        %v5729 = vunpack.c.l.b16 %v4329
        %v5730 = vunpack.c.h.b16 %v4329
        %v5731 = vunpack.c.l.b16 %v4330
        %v5732 = vunpack.c.h.b16 %v4330
        %v5733 = vunpack.c.l.b16 %v4331
        %v5734 = vunpack.c.h.b16 %v4331
        %v5735 = vunpack.c.l.b16 %v4332
        %v5736 = vunpack.c.h.b16 %v4332
        %v5737 = vunpack.c.l.b16 %v4333
        %v5738 = vunpack.c.h.b16 %v4333
        %v5739 = vunpack.c.l.b16 %v4334
        %v5740 = vunpack.c.h.b16 %v4334
        %v5741 = vunpack.c.l.b16 %v4335
        %v5742 = vunpack.c.h.b16 %v4335
        %v5743 = vunpack.c.l.b16 %v4336
        %v5744 = vunpack.c.h.b16 %v4336
        %v5745 = vunpack.c.l.b16 %v4337
        %v5746 = vunpack.c.h.b16 %v4337
        %v5747 = vunpack.c.l.b16 %v4338
        %v5748 = vunpack.c.h.b16 %v4338
        %v5749 = vunpack.c.l.b16 %v4339
        %v5750 = vunpack.c.h.b16 %v4339
        %v5751 = vunpack.c.l.b16 %v4340
        %v5752 = vunpack.c.h.b16 %v4340
        %v5753 = vunpack.c.l.b16 %v4341
        %v5754 = vunpack.c.l.b16 %v4342
        %v5755 = vunpack.c.h.b16 %v4342
        %v5756 = vunpack.c.l.b16 %v4343
        %v5757 = vunpack.c.h.b16 %v4343
        %v5758 = vunpack.c.l.b16 %v4344
        %v5759 = vunpack.c.h.b16 %v4344
        %v5760 = vunpack.c.l.b16 %v4345
        %v5761 = vunpack.c.h.b16 %v4345
        %v5762 = vunpack.c.l.b16 %v4346
        %v5763 = vunpack.c.h.b16 %v4346
        %v5764 = vunpack.c.l.b16 %v4347
        %v5765 = vunpack.c.h.b16 %v4347
        %v5766 = vunpack.c.l.b16 %v4348
        %v5767 = vunpack.c.h.b16 %v4348
        %v5768 = vunpack.c.l.b16 %v4349
        %v5769 = vunpack.c.h.b16 %v4349
        %v5770 = vunpack.c.l.b16 %v4350
        %v5771 = vunpack.c.h.b16 %v4350
        %v5772 = vunpack.c.l.b16 %v4351
        %v5773 = vunpack.c.h.b16 %v4351
        %v5774 = vunpack.c.l.b16 %v4352
        %v5775 = vunpack.c.h.b16 %v4352
        %v5776 = vunpack.c.l.b16 %v4353
        %v5777 = vunpack.c.h.b16 %v4353
        %v5778 = vunpack.c.l.b16 %v4354
        %v5779 = vunpack.c.l.b16 %v4355
        %v5780 = vunpack.c.h.b16 %v4355
        %v5781 = vunpack.c.l.b16 %v4356
        %v5782 = vunpack.c.h.b16 %v4356
        %v5783 = vunpack.c.l.b16 %v4357
        %v5784 = vunpack.c.h.b16 %v4357
        %v5785 = vunpack.c.l.b16 %v4358
        %v5786 = vunpack.c.h.b16 %v4358
        %v5787 = vunpack.c.l.b16 %v4359
        %v5788 = vunpack.c.h.b16 %v4359
        %v5789 = vunpack.c.l.b16 %v4360
        %v5790 = vunpack.c.h.b16 %v4360
        %v5791 = vunpack.c.l.b16 %v4361
        %v5792 = vunpack.c.h.b16 %v4361
        %v5793 = vunpack.c.l.b16 %v4362
        %v5794 = vunpack.c.h.b16 %v4362
        %v5795 = vunpack.c.l.b16 %v4363
        %v5796 = vunpack.c.h.b16 %v4363
        %v5797 = vunpack.c.l.b16 %v4364
        %v5798 = vunpack.c.h.b16 %v4364
        %v5799 = vunpack.c.l.b16 %v4365
        %v5800 = vunpack.c.h.b16 %v4365
        %v5801 = vunpack.c.l.b16 %v4366
        %v5802 = vunpack.c.h.b16 %v4366
        %v5803 = vunpack.c.l.b16 %v4367
        %v5804 = vunpack.c.l.b16 %v4368
        %v5805 = vunpack.c.h.b16 %v4368
        %v5806 = vunpack.c.l.b16 %v4369
        %v5807 = vunpack.c.h.b16 %v4369
        %v5808 = vunpack.c.l.b16 %v4370
        %v5809 = vunpack.c.h.b16 %v4370
        %v5810 = vunpack.c.l.b16 %v4371
        %v5811 = vunpack.c.h.b16 %v4371
        %v5812 = vunpack.c.l.b16 %v4372
        %v5813 = vunpack.c.h.b16 %v4372
        %v5814 = vunpack.c.l.b16 %v4373
        %v5815 = vunpack.c.h.b16 %v4373
        %v5816 = vunpack.c.l.b16 %v4374
        %v5817 = vunpack.c.h.b16 %v4374
        %v5818 = vunpack.c.l.b16 %v4375
        %v5819 = vunpack.c.h.b16 %v4375
        %v5820 = vunpack.c.l.b16 %v4376
        %v5821 = vunpack.c.h.b16 %v4376
        %v5822 = vunpack.c.l.b16 %v4377
        %v5823 = vunpack.c.h.b16 %v4377
        %v5824 = vunpack.c.l.b16 %v4378
        %v5825 = vunpack.c.h.b16 %v4378
        %v5826 = vunpack.c.l.b16 %v4379
        %v5827 = vunpack.c.h.b16 %v4379
        %v5828 = vunpack.c.l.b16 %v4380
        %v5829 = vunpack.c.l.b16 %v4381
        %v5830 = vunpack.c.h.b16 %v4381
        %v5831 = vunpack.c.l.b16 %v4382
        %v5832 = vunpack.c.h.b16 %v4382
        %v5833 = vunpack.c.l.b16 %v4383
        %v5834 = vunpack.c.h.b16 %v4383
        %v5835 = vunpack.c.l.b16 %v4384
        %v5836 = vunpack.c.h.b16 %v4384
        %v5837 = vunpack.c.l.b16 %v4385
        %v5838 = vunpack.c.h.b16 %v4385
        %v5839 = vunpack.c.l.b16 %v4386
        %v5840 = vunpack.c.h.b16 %v4386
        %v5841 = vunpack.c.l.b16 %v4387
        %v5842 = vunpack.c.h.b16 %v4387
        %v5843 = vunpack.c.l.b16 %v4388
        %v5844 = vunpack.c.h.b16 %v4388
        %v5845 = vunpack.c.l.b16 %v4389
        %v5846 = vunpack.c.h.b16 %v4389
        %v5847 = vunpack.c.l.b16 %v4390
        %v5848 = vunpack.c.h.b16 %v4390
        %v5849 = vunpack.c.l.b16 %v4391
        %v5850 = vunpack.c.h.b16 %v4391
        %v5851 = vunpack.c.l.b16 %v4392
        %v5852 = vunpack.c.h.b16 %v4392
        %v5853 = vunpack.c.l.b16 %v4393
        %v5854 = vunpack.c.l.b16 %v4394
        %v5855 = vunpack.c.h.b16 %v4394
        %v5856 = vunpack.c.l.b16 %v4395
        %v5857 = vunpack.c.h.b16 %v4395
        %v5858 = vunpack.c.l.b16 %v4396
        %v5859 = vunpack.c.h.b16 %v4396
        %v5860 = vunpack.c.l.b16 %v4397
        %v5861 = vunpack.c.h.b16 %v4397
        %v5862 = vunpack.c.l.b16 %v4398
        %v5863 = vunpack.c.h.b16 %v4398
        %v5864 = vunpack.c.l.b16 %v4399
        %v5865 = vunpack.c.h.b16 %v4399
        %v5866 = vunpack.c.l.b16 %v4400
        %v5867 = vunpack.c.h.b16 %v4400
        %v5868 = vunpack.c.l.b16 %v4401
        %v5869 = vunpack.c.h.b16 %v4401
        %v5870 = vunpack.c.l.b16 %v4402
        %v5871 = vunpack.c.h.b16 %v4402
        %v5872 = vunpack.c.l.b16 %v4403
        %v5873 = vunpack.c.h.b16 %v4403
        %v5874 = vunpack.c.l.b16 %v4404
        %v5875 = vunpack.c.h.b16 %v4404
        %v5876 = vunpack.c.l.b16 %v4405
        %v5877 = vunpack.c.h.b16 %v4405
        %v5878 = vunpack.c.l.b16 %v4406
        %v5879 = vunpack.c.l.b16 %v4407
        %v5880 = vunpack.c.h.b16 %v4407
        %v5881 = vunpack.c.l.b16 %v4408
        %v5882 = vunpack.c.h.b16 %v4408
        %v5883 = vunpack.c.l.b16 %v4409
        %v5884 = vunpack.c.h.b16 %v4409
        %v5885 = vunpack.c.l.b16 %v4410
        %v5886 = vunpack.c.h.b16 %v4410
        %v5887 = vunpack.c.l.b16 %v4411
        %v5888 = vunpack.c.h.b16 %v4411
        %v5889 = vunpack.c.l.b16 %v4412
        %v5890 = vunpack.c.h.b16 %v4412
        %v5891 = vunpack.c.l.b16 %v4413
        %v5892 = vunpack.c.h.b16 %v4413
        %v5893 = vunpack.c.l.b16 %v4414
        %v5894 = vunpack.c.h.b16 %v4414
        %v5895 = vunpack.c.l.b16 %v4415
        %v5896 = vunpack.c.h.b16 %v4415
        %v5897 = vunpack.c.l.b16 %v4416
        %v5898 = vunpack.c.h.b16 %v4416
        %v5899 = vunpack.c.l.b16 %v4417
        %v5900 = vunpack.c.h.b16 %v4417
        %v5901 = vunpack.c.l.b16 %v4418
        %v5902 = vunpack.c.h.b16 %v4418
        %v5903 = vunpack.c.l.b16 %v4419
        %v5904 = vunpack.c.l.b16 %v4420
        %v5905 = vunpack.c.h.b16 %v4420
        %v5906 = vunpack.c.l.b16 %v4421
        %v5907 = vunpack.c.h.b16 %v4421
        %v5908 = vunpack.c.l.b16 %v4422
        %v5909 = vunpack.c.h.b16 %v4422
        %v5910 = vunpack.c.l.b16 %v4423
        %v5911 = vunpack.c.h.b16 %v4423
        %v5912 = vunpack.c.l.b16 %v4424
        %v5913 = vunpack.c.h.b16 %v4424
        %v5914 = vunpack.c.l.b16 %v4425
        %v5915 = vunpack.c.h.b16 %v4425
        %v5916 = vunpack.c.l.b16 %v4426
        %v5917 = vunpack.c.h.b16 %v4426
        %v5918 = vunpack.c.l.b16 %v4427
        %v5919 = vunpack.c.h.b16 %v4427
        %v5920 = vunpack.c.l.b16 %v4428
        %v5921 = vunpack.c.h.b16 %v4428
        %v5922 = vunpack.c.l.b16 %v4429
        %v5923 = vunpack.c.h.b16 %v4429
        %v5924 = vunpack.c.l.b16 %v4430
        %v5925 = vunpack.c.h.b16 %v4430
        %v5926 = vunpack.c.l.b16 %v4431
        %v5927 = vunpack.c.h.b16 %v4431
        %v5928 = vunpack.c.l.b16 %v4432
        %v5929 = vunpack.c.l.b16 %v4433
        %v5930 = vunpack.c.h.b16 %v4433
        %v5931 = vunpack.c.l.b16 %v4434
        %v5932 = vunpack.c.h.b16 %v4434
        %v5933 = vunpack.c.l.b16 %v4435
        %v5934 = vunpack.c.h.b16 %v4435
        %v5935 = vunpack.c.l.b16 %v4436
        %v5936 = vunpack.c.h.b16 %v4436
        %v5937 = vunpack.c.l.b16 %v4437
        %v5938 = vunpack.c.h.b16 %v4437
        %v5939 = vunpack.c.l.b16 %v4438
        %v5940 = vunpack.c.h.b16 %v4438
        %v5941 = vunpack.c.l.b16 %v4439
        %v5942 = vunpack.c.h.b16 %v4439
        %v5943 = vunpack.c.l.b16 %v4440
        %v5944 = vunpack.c.h.b16 %v4440
        %v5945 = vunpack.c.l.b16 %v4441
        %v5946 = vunpack.c.h.b16 %v4441
        %v5947 = vunpack.c.l.b16 %v4442
        %v5948 = vunpack.c.h.b16 %v4442
        %v5949 = vunpack.c.l.b16 %v4443
        %v5950 = vunpack.c.h.b16 %v4443
        %v5951 = vunpack.c.l.b16 %v4444
        %v5952 = vunpack.c.h.b16 %v4444
        %v5953 = vunpack.c.l.b16 %v4445
        %v5954 = vunpack.c.l.b16 %v4446
        %v5955 = vunpack.c.h.b16 %v4446
        %v5956 = vunpack.c.l.b16 %v4447
        %v5957 = vunpack.c.h.b16 %v4447
        %v5958 = vunpack.c.l.b16 %v4448
        %v5959 = vunpack.c.h.b16 %v4448
        %v5960 = vunpack.c.l.b16 %v4449
        %v5961 = vunpack.c.h.b16 %v4449
        %v5962 = vunpack.c.l.b16 %v4450
        %v5963 = vunpack.c.h.b16 %v4450
        %v5964 = vunpack.c.l.b16 %v4451
        %v5965 = vunpack.c.h.b16 %v4451
        %v5966 = vunpack.c.l.b16 %v4452
        %v5967 = vunpack.c.h.b16 %v4452
        %v5968 = vunpack.c.l.b16 %v4453
        %v5969 = vunpack.c.h.b16 %v4453
        %v5970 = vunpack.c.l.b16 %v4454
        %v5971 = vunpack.c.h.b16 %v4454
        %v5972 = vunpack.c.l.b16 %v4455
        %v5973 = vunpack.c.h.b16 %v4455
        %v5974 = vunpack.c.l.b16 %v4456
        %v5975 = vunpack.c.h.b16 %v4456
        %v5976 = vunpack.c.l.b16 %v4457
        %v5977 = vunpack.c.h.b16 %v4457
        %v5978 = vunpack.c.l.b16 %v4458
        %v5979 = vunpack.c.l.b16 %v4459
        %v5980 = vunpack.c.h.b16 %v4459
        %v5981 = vunpack.c.l.b16 %v4460
        %v5982 = vunpack.c.h.b16 %v4460
        %v5983 = vunpack.c.l.b16 %v4461
        %v5984 = vunpack.c.h.b16 %v4461
        %v5985 = vunpack.c.l.b16 %v4462
        %v5986 = vunpack.c.h.b16 %v4462
        %v5987 = vunpack.c.l.b16 %v4463
        %v5988 = vunpack.c.h.b16 %v4463
        %v5989 = vunpack.c.l.b16 %v4464
        %v5990 = vunpack.c.h.b16 %v4464
        %v5991 = vunpack.c.l.b16 %v4465
        %v5992 = vunpack.c.h.b16 %v4465
        %v5993 = vunpack.c.l.b16 %v4466
        %v5994 = vunpack.c.h.b16 %v4466
        %v5995 = vunpack.c.l.b16 %v4467
        %v5996 = vunpack.c.h.b16 %v4467
        %v5997 = vunpack.c.l.b16 %v4468
        %v5998 = vunpack.c.h.b16 %v4468
        %v5999 = vunpack.c.l.b16 %v4469
        %v6000 = vunpack.c.h.b16 %v4469
        %v6001 = vunpack.c.l.b16 %v4470
        %v6002 = vunpack.c.h.b16 %v4470
        %v6003 = vunpack.c.l.b16 %v4471
        %v6004 = vunpack.c.l.b16 %v4472
        %v6005 = vunpack.c.h.b16 %v4472
        %v6006 = vunpack.c.l.b16 %v4473
        %v6007 = vunpack.c.h.b16 %v4473
        %v6008 = vunpack.c.l.b16 %v4474
        %v6009 = vunpack.c.h.b16 %v4474
        %v6010 = vunpack.c.l.b16 %v4475
        %v6011 = vunpack.c.h.b16 %v4475
        %v6012 = vunpack.c.l.b16 %v4476
        %v6013 = vunpack.c.h.b16 %v4476
        %v6014 = vunpack.c.l.b16 %v4477
        %v6015 = vunpack.c.h.b16 %v4477
        %v6016 = vunpack.c.l.b16 %v4478
        %v6017 = vunpack.c.h.b16 %v4478
        %v6018 = vunpack.c.l.b16 %v4479
        %v6019 = vunpack.c.h.b16 %v4479
        %v6020 = vunpack.c.l.b16 %v4480
        %v6021 = vunpack.c.h.b16 %v4480
        %v6022 = vunpack.c.l.b16 %v4481
        %v6023 = vunpack.c.h.b16 %v4481
        %v6024 = vunpack.c.l.b16 %v4482
        %v6025 = vunpack.c.h.b16 %v4482
        %v6026 = vunpack.c.l.b16 %v4483
        %v6027 = vunpack.c.h.b16 %v4483
        %v6028 = vunpack.c.l.b16 %v4484
        %v6029 = vunpack.c.l.b16 %v4485
        %v6030 = vunpack.c.h.b16 %v4485
        %v6031 = vunpack.c.l.b16 %v4486
        %v6032 = vunpack.c.h.b16 %v4486
        %v6033 = vunpack.c.l.b16 %v4487
        %v6034 = vunpack.c.h.b16 %v4487
        %v6035 = vunpack.c.l.b16 %v4488
        %v6036 = vunpack.c.h.b16 %v4488
        %v6037 = vunpack.c.l.b16 %v4489
        %v6038 = vunpack.c.h.b16 %v4489
        %v6039 = vunpack.c.l.b16 %v4490
        %v6040 = vunpack.c.h.b16 %v4490
        %v6041 = vunpack.c.l.b16 %v4491
        %v6042 = vunpack.c.h.b16 %v4491
        %v6043 = vunpack.c.l.b16 %v4492
        %v6044 = vunpack.c.h.b16 %v4492
        %v6045 = vunpack.c.l.b16 %v4493
        %v6046 = vunpack.c.h.b16 %v4493
        %v6047 = vunpack.c.l.b16 %v4494
        %v6048 = vunpack.c.h.b16 %v4494
        %v6049 = vunpack.c.l.b16 %v4495
        %v6050 = vunpack.c.h.b16 %v4495
        %v6051 = vunpack.c.l.b16 %v4496
        %v6052 = vunpack.c.h.b16 %v4496
        %v6053 = vunpack.c.l.b16 %v4497
        %v6054 = vunpack.c.l.b16 %v4498
        %v6055 = vunpack.c.h.b16 %v4498
        %v6056 = vunpack.c.l.b16 %v4499
        %v6057 = vunpack.c.h.b16 %v4499
        %v6058 = vunpack.c.l.b16 %v4500
        %v6059 = vunpack.c.h.b16 %v4500
        %v6060 = vunpack.c.l.b16 %v4501
        %v6061 = vunpack.c.h.b16 %v4501
        %v6062 = vunpack.c.l.b16 %v4502
        %v6063 = vunpack.c.h.b16 %v4502
        %v6064 = vunpack.c.l.b16 %v4503
        %v6065 = vunpack.c.h.b16 %v4503
        %v6066 = vunpack.c.l.b16 %v4504
        %v6067 = vunpack.c.h.b16 %v4504
        %v6068 = vunpack.c.l.b16 %v4505
        %v6069 = vunpack.c.h.b16 %v4505
        %v6070 = vunpack.c.l.b16 %v4506
        %v6071 = vunpack.c.h.b16 %v4506
        %v6072 = vunpack.c.l.b16 %v4507
        %v6073 = vunpack.c.h.b16 %v4507
        %v6074 = vunpack.c.l.b16 %v4508
        %v6075 = vunpack.c.h.b16 %v4508
        %v6076 = vunpack.c.l.b16 %v4509
        %v6077 = vunpack.c.h.b16 %v4509
        %v6078 = vunpack.c.l.b16 %v4510
        %v6079 = vunpack.c.l.b16 %v4511
        %v6080 = vunpack.c.h.b16 %v4511
        %v6081 = vunpack.c.l.b16 %v4512
        %v6082 = vunpack.c.h.b16 %v4512
        %v6083 = vunpack.c.l.b16 %v4513
        %v6084 = vunpack.c.h.b16 %v4513
        %v6085 = vunpack.c.l.b16 %v4514
        %v6086 = vunpack.c.h.b16 %v4514
        %v6087 = vunpack.c.l.b16 %v4515
        %v6088 = vunpack.c.h.b16 %v4515
        %v6089 = vunpack.c.l.b16 %v4516
        %v6090 = vunpack.c.h.b16 %v4516
        %v6091 = vunpack.c.l.b16 %v4517
        %v6092 = vunpack.c.h.b16 %v4517
        %v6093 = vunpack.c.l.b16 %v4518
        %v6094 = vunpack.c.h.b16 %v4518
        %v6095 = vunpack.c.l.b16 %v4519
        %v6096 = vunpack.c.h.b16 %v4519
        %v6097 = vunpack.c.l.b16 %v4520
        %v6098 = vunpack.c.h.b16 %v4520
        %v6099 = vunpack.c.l.b16 %v4521
        %v6100 = vunpack.c.h.b16 %v4521
        %v6101 = vunpack.c.l.b16 %v4522
        %v6102 = vunpack.c.h.b16 %v4522
        %v6103 = vunpack.c.l.b16 %v4523
        %v6104 = vunpack.c.l.b16 %v4524
        %v6105 = vunpack.c.h.b16 %v4524
        %v6106 = vunpack.c.l.b16 %v4525
        %v6107 = vunpack.c.h.b16 %v4525
        %v6108 = vunpack.c.l.b16 %v4526
        %v6109 = vunpack.c.h.b16 %v4526
        %v6110 = vunpack.c.l.b16 %v4527
        %v6111 = vunpack.c.h.b16 %v4527
        %v6112 = vunpack.c.l.b16 %v4528
        %v6113 = vunpack.c.h.b16 %v4528
        %v6114 = vunpack.c.l.b16 %v4529
        %v6115 = vunpack.c.h.b16 %v4529
        %v6116 = vunpack.c.l.b16 %v4530
        %v6117 = vunpack.c.h.b16 %v4530
        %v6118 = vunpack.c.l.b16 %v4531
        %v6119 = vunpack.c.h.b16 %v4531
        %v6120 = vunpack.c.l.b16 %v4532
        %v6121 = vunpack.c.h.b16 %v4532
        %v6122 = vunpack.c.l.b16 %v4533
        %v6123 = vunpack.c.h.b16 %v4533
        %v6124 = vunpack.c.l.b16 %v4534
        %v6125 = vunpack.c.h.b16 %v4534
        %v6126 = vunpack.c.l.b16 %v4535
        %v6127 = vunpack.c.h.b16 %v4535
        %v6128 = vunpack.c.l.b16 %v4536
        %v6129 = vunpack.c.l.b16 %v4537
        %v6130 = vunpack.c.h.b16 %v4537
        %v6131 = vunpack.c.l.b16 %v4538
        %v6132 = vunpack.c.h.b16 %v4538
        %v6133 = vunpack.c.l.b16 %v4539
        %v6134 = vunpack.c.h.b16 %v4539
        %v6135 = vunpack.c.l.b16 %v4540
        %v6136 = vunpack.c.h.b16 %v4540
        %v6137 = vunpack.c.l.b16 %v4541
        %v6138 = vunpack.c.h.b16 %v4541
        %v6139 = vunpack.c.l.b16 %v4542
        %v6140 = vunpack.c.h.b16 %v4542
        %v6141 = vunpack.c.l.b16 %v4543
        %v6142 = vunpack.c.h.b16 %v4543
        %v6143 = vunpack.c.l.b16 %v4544
        %v6144 = vunpack.c.h.b16 %v4544
        %v6145 = vunpack.c.l.b16 %v4545
        %v6146 = vunpack.c.h.b16 %v4545
        %v6147 = vunpack.c.l.b16 %v4546
        %v6148 = vunpack.c.h.b16 %v4546
        %v6149 = vunpack.c.l.b16 %v4547
        %v6150 = vunpack.c.h.b16 %v4547
        %v6151 = vunpack.c.l.b16 %v4548
        %v6152 = vunpack.c.h.b16 %v4548
        %v6153 = vunpack.c.l.b16 %v4549
        %v6154 = vunpack.c.l.b16 %v4550
        %v6155 = vunpack.c.h.b16 %v4550
        %v6156 = vunpack.c.l.b16 %v4551
        %v6157 = vunpack.c.h.b16 %v4551
        %v6158 = vunpack.c.l.b16 %v4552
        %v6159 = vunpack.c.h.b16 %v4552
        %v6160 = vunpack.c.l.b16 %v4553
        %v6161 = vunpack.c.h.b16 %v4553
        %v6162 = vunpack.c.l.b16 %v4554
        %v6163 = vunpack.c.h.b16 %v4554
        %v6164 = vunpack.c.l.b16 %v4555
        %v6165 = vunpack.c.h.b16 %v4555
        %v6166 = vunpack.c.l.b16 %v4556
        %v6167 = vunpack.c.h.b16 %v4556
        %v6168 = vunpack.c.l.b16 %v4557
        %v6169 = vunpack.c.h.b16 %v4557
        %v6170 = vunpack.c.l.b16 %v4558
        %v6171 = vunpack.c.h.b16 %v4558
        %v6172 = vunpack.c.l.b16 %v4559
        %v6173 = vunpack.c.h.b16 %v4559
        %v6174 = vunpack.c.l.b16 %v4560
        %v6175 = vunpack.c.h.b16 %v4560
        %v6176 = vunpack.c.l.b16 %v4561
        %v6177 = vunpack.c.h.b16 %v4561
        %v6178 = vunpack.c.l.b16 %v4562
        %v6179 = vpack.c.b16 %v5404, %v5379
        %v6180 = vpack.c.b16 %v5405, %v5380
        %v6181 = vpack.c.b16 %v5406, %v5381
        %v6182 = vpack.c.b16 %v5407, %v5382
        %v6183 = vpack.c.b16 %v5408, %v5383
        %v6184 = vpack.c.b16 %v5409, %v5384
        %v6185 = vpack.c.b16 %v5410, %v5385
        %v6186 = vpack.c.b16 %v5411, %v5386
        %v6187 = vpack.c.b16 %v5412, %v5387
        %v6188 = vpack.c.b16 %v5413, %v5388
        %v6189 = vpack.c.b16 %v5414, %v5389
        %v6190 = vpack.c.b16 %v5415, %v5390
        %v6191 = vpack.c.b16 %v5416, %v5391
        %v6192 = vpack.c.b16 %v5417, %v5392
        %v6193 = vpack.c.b16 %v5418, %v5393
        %v6194 = vpack.c.b16 %v5419, %v5394
        %v6195 = vpack.c.b16 %v5420, %v5395
        %v6196 = vpack.c.b16 %v5421, %v5396
        %v6197 = vpack.c.b16 %v5422, %v5397
        %v6198 = vpack.c.b16 %v5423, %v5398
        %v6199 = vpack.c.b16 %v5424, %v5399
        %v6200 = vpack.c.b16 %v5425, %v5400
        %v6201 = vpack.c.b16 %v5426, %v5401
        %v6202 = vpack.c.b16 %v5427, %v5402
        %v6203 = vpack.c.b16 %v5428, %v5403
        %v6204 = vpack.c.b16 %v5454, %v5429
        %v6205 = vpack.c.b16 %v5455, %v5430
        %v6206 = vpack.c.b16 %v5456, %v5431
        %v6207 = vpack.c.b16 %v5457, %v5432
        %v6208 = vpack.c.b16 %v5458, %v5433
        %v6209 = vpack.c.b16 %v5459, %v5434
        %v6210 = vpack.c.b16 %v5460, %v5435
        %v6211 = vpack.c.b16 %v5461, %v5436
        %v6212 = vpack.c.b16 %v5462, %v5437
        %v6213 = vpack.c.b16 %v5463, %v5438
        %v6214 = vpack.c.b16 %v5464, %v5439
        %v6215 = vpack.c.b16 %v5465, %v5440
        %v6216 = vpack.c.b16 %v5466, %v5441
        %v6217 = vpack.c.b16 %v5467, %v5442
        %v6218 = vpack.c.b16 %v5468, %v5443
        %v6219 = vpack.c.b16 %v5469, %v5444
        %v6220 = vpack.c.b16 %v5470, %v5445
        %v6221 = vpack.c.b16 %v5471, %v5446
        %v6222 = vpack.c.b16 %v5472, %v5447
        %v6223 = vpack.c.b16 %v5473, %v5448
        %v6224 = vpack.c.b16 %v5474, %v5449
        %v6225 = vpack.c.b16 %v5475, %v5450
        %v6226 = vpack.c.b16 %v5476, %v5451
        %v6227 = vpack.c.b16 %v5477, %v5452
        %v6228 = vpack.c.b16 %v5478, %v5453
        %v6229 = vpack.c.b16 %v5504, %v5479
        %v6230 = vpack.c.b16 %v5505, %v5480
        %v6231 = vpack.c.b16 %v5506, %v5481
        %v6232 = vpack.c.b16 %v5507, %v5482
        %v6233 = vpack.c.b16 %v5508, %v5483
        %v6234 = vpack.c.b16 %v5509, %v5484
        %v6235 = vpack.c.b16 %v5510, %v5485
        %v6236 = vpack.c.b16 %v5511, %v5486
        %v6237 = vpack.c.b16 %v5512, %v5487
        %v6238 = vpack.c.b16 %v5513, %v5488
        %v6239 = vpack.c.b16 %v5514, %v5489
        %v6240 = vpack.c.b16 %v5515, %v5490
        %v6241 = vpack.c.b16 %v5516, %v5491
        %v6242 = vpack.c.b16 %v5517, %v5492
        %v6243 = vpack.c.b16 %v5518, %v5493
        %v6244 = vpack.c.b16 %v5519, %v5494
        %v6245 = vpack.c.b16 %v5520, %v5495
        %v6246 = vpack.c.b16 %v5521, %v5496
        %v6247 = vpack.c.b16 %v5522, %v5497
        %v6248 = vpack.c.b16 %v5523, %v5498
        %v6249 = vpack.c.b16 %v5524, %v5499
        %v6250 = vpack.c.b16 %v5525, %v5500
        %v6251 = vpack.c.b16 %v5526, %v5501
        %v6252 = vpack.c.b16 %v5527, %v5502
        %v6253 = vpack.c.b16 %v5528, %v5503
        %v6254 = vpack.c.b16 %v5554, %v5529
        %v6255 = vpack.c.b16 %v5555, %v5530
        %v6256 = vpack.c.b16 %v5556, %v5531
        %v6257 = vpack.c.b16 %v5557, %v5532
        %v6258 = vpack.c.b16 %v5558, %v5533
        %v6259 = vpack.c.b16 %v5559, %v5534
        %v6260 = vpack.c.b16 %v5560, %v5535
        %v6261 = vpack.c.b16 %v5561, %v5536
        %v6262 = vpack.c.b16 %v5562, %v5537
        %v6263 = vpack.c.b16 %v5563, %v5538
        %v6264 = vpack.c.b16 %v5564, %v5539
        %v6265 = vpack.c.b16 %v5565, %v5540
        %v6266 = vpack.c.b16 %v5566, %v5541
        %v6267 = vpack.c.b16 %v5567, %v5542
        %v6268 = vpack.c.b16 %v5568, %v5543
        %v6269 = vpack.c.b16 %v5569, %v5544
        %v6270 = vpack.c.b16 %v5570, %v5545
        %v6271 = vpack.c.b16 %v5571, %v5546
        %v6272 = vpack.c.b16 %v5572, %v5547
        %v6273 = vpack.c.b16 %v5573, %v5548
        %v6274 = vpack.c.b16 %v5574, %v5549
        %v6275 = vpack.c.b16 %v5575, %v5550
        %v6276 = vpack.c.b16 %v5576, %v5551
        %v6277 = vpack.c.b16 %v5577, %v5552
        %v6278 = vpack.c.b16 %v5578, %v5553
        %v6279 = vpack.c.b16 %v5604, %v5579
        %v6280 = vpack.c.b16 %v5605, %v5580
        %v6281 = vpack.c.b16 %v5606, %v5581
        %v6282 = vpack.c.b16 %v5607, %v5582
        %v6283 = vpack.c.b16 %v5608, %v5583
        %v6284 = vpack.c.b16 %v5609, %v5584
        %v6285 = vpack.c.b16 %v5610, %v5585
        %v6286 = vpack.c.b16 %v5611, %v5586
        %v6287 = vpack.c.b16 %v5612, %v5587
        %v6288 = vpack.c.b16 %v5613, %v5588
        %v6289 = vpack.c.b16 %v5614, %v5589
        %v6290 = vpack.c.b16 %v5615, %v5590
        %v6291 = vpack.c.b16 %v5616, %v5591
        %v6292 = vpack.c.b16 %v5617, %v5592
        %v6293 = vpack.c.b16 %v5618, %v5593
        %v6294 = vpack.c.b16 %v5619, %v5594
        %v6295 = vpack.c.b16 %v5620, %v5595
        %v6296 = vpack.c.b16 %v5621, %v5596
        %v6297 = vpack.c.b16 %v5622, %v5597
        %v6298 = vpack.c.b16 %v5623, %v5598
        %v6299 = vpack.c.b16 %v5624, %v5599
        %v6300 = vpack.c.b16 %v5625, %v5600
        %v6301 = vpack.c.b16 %v5626, %v5601
        %v6302 = vpack.c.b16 %v5627, %v5602
        %v6303 = vpack.c.b16 %v5628, %v5603
        %v6304 = vpack.c.b16 %v5654, %v5629
        %v6305 = vpack.c.b16 %v5655, %v5630
        %v6306 = vpack.c.b16 %v5656, %v5631
        %v6307 = vpack.c.b16 %v5657, %v5632
        %v6308 = vpack.c.b16 %v5658, %v5633
        %v6309 = vpack.c.b16 %v5659, %v5634
        %v6310 = vpack.c.b16 %v5660, %v5635
        %v6311 = vpack.c.b16 %v5661, %v5636
        %v6312 = vpack.c.b16 %v5662, %v5637
        %v6313 = vpack.c.b16 %v5663, %v5638
        %v6314 = vpack.c.b16 %v5664, %v5639
        %v6315 = vpack.c.b16 %v5665, %v5640
        %v6316 = vpack.c.b16 %v5666, %v5641
        %v6317 = vpack.c.b16 %v5667, %v5642
        %v6318 = vpack.c.b16 %v5668, %v5643
        %v6319 = vpack.c.b16 %v5669, %v5644
        %v6320 = vpack.c.b16 %v5670, %v5645
        %v6321 = vpack.c.b16 %v5671, %v5646
        %v6322 = vpack.c.b16 %v5672, %v5647
        %v6323 = vpack.c.b16 %v5673, %v5648
        %v6324 = vpack.c.b16 %v5674, %v5649
        %v6325 = vpack.c.b16 %v5675, %v5650
        %v6326 = vpack.c.b16 %v5676, %v5651
        %v6327 = vpack.c.b16 %v5677, %v5652
        %v6328 = vpack.c.b16 %v5678, %v5653
        %v6329 = vpack.c.b16 %v5704, %v5679
        %v6330 = vpack.c.b16 %v5705, %v5680
        %v6331 = vpack.c.b16 %v5706, %v5681
        %v6332 = vpack.c.b16 %v5707, %v5682
        %v6333 = vpack.c.b16 %v5708, %v5683
        %v6334 = vpack.c.b16 %v5709, %v5684
        %v6335 = vpack.c.b16 %v5710, %v5685
        %v6336 = vpack.c.b16 %v5711, %v5686
        %v6337 = vpack.c.b16 %v5712, %v5687
        %v6338 = vpack.c.b16 %v5713, %v5688
        %v6339 = vpack.c.b16 %v5714, %v5689
        %v6340 = vpack.c.b16 %v5715, %v5690
        %v6341 = vpack.c.b16 %v5716, %v5691
        %v6342 = vpack.c.b16 %v5717, %v5692
        %v6343 = vpack.c.b16 %v5718, %v5693
        %v6344 = vpack.c.b16 %v5719, %v5694
        %v6345 = vpack.c.b16 %v5720, %v5695
        %v6346 = vpack.c.b16 %v5721, %v5696
        %v6347 = vpack.c.b16 %v5722, %v5697
        %v6348 = vpack.c.b16 %v5723, %v5698
        %v6349 = vpack.c.b16 %v5724, %v5699
        %v6350 = vpack.c.b16 %v5725, %v5700
        %v6351 = vpack.c.b16 %v5726, %v5701
        %v6352 = vpack.c.b16 %v5727, %v5702
        %v6353 = vpack.c.b16 %v5728, %v5703
        %v6354 = vpack.c.b16 %v5754, %v5729
        %v6355 = vpack.c.b16 %v5755, %v5730
        %v6356 = vpack.c.b16 %v5756, %v5731
        %v6357 = vpack.c.b16 %v5757, %v5732
        %v6358 = vpack.c.b16 %v5758, %v5733
        %v6359 = vpack.c.b16 %v5759, %v5734
        %v6360 = vpack.c.b16 %v5760, %v5735
        %v6361 = vpack.c.b16 %v5761, %v5736
        %v6362 = vpack.c.b16 %v5762, %v5737
        %v6363 = vpack.c.b16 %v5763, %v5738
        %v6364 = vpack.c.b16 %v5764, %v5739
        %v6365 = vpack.c.b16 %v5765, %v5740
        %v6366 = vpack.c.b16 %v5766, %v5741
        %v6367 = vpack.c.b16 %v5767, %v5742
        %v6368 = vpack.c.b16 %v5768, %v5743
        %v6369 = vpack.c.b16 %v5769, %v5744
        %v6370 = vpack.c.b16 %v5770, %v5745
        %v6371 = vpack.c.b16 %v5771, %v5746
        %v6372 = vpack.c.b16 %v5772, %v5747
        %v6373 = vpack.c.b16 %v5773, %v5748
        %v6374 = vpack.c.b16 %v5774, %v5749
        %v6375 = vpack.c.b16 %v5775, %v5750
        %v6376 = vpack.c.b16 %v5776, %v5751
        %v6377 = vpack.c.b16 %v5777, %v5752
        %v6378 = vpack.c.b16 %v5778, %v5753
        %v6379 = vpack.c.b16 %v5804, %v5779
        %v6380 = vpack.c.b16 %v5805, %v5780
        %v6381 = vpack.c.b16 %v5806, %v5781
        %v6382 = vpack.c.b16 %v5807, %v5782
        %v6383 = vpack.c.b16 %v5808, %v5783
        %v6384 = vpack.c.b16 %v5809, %v5784
        %v6385 = vpack.c.b16 %v5810, %v5785
        %v6386 = vpack.c.b16 %v5811, %v5786
        %v6387 = vpack.c.b16 %v5812, %v5787
        %v6388 = vpack.c.b16 %v5813, %v5788
        %v6389 = vpack.c.b16 %v5814, %v5789
        %v6390 = vpack.c.b16 %v5815, %v5790
        %v6391 = vpack.c.b16 %v5816, %v5791
        %v6392 = vpack.c.b16 %v5817, %v5792
        %v6393 = vpack.c.b16 %v5818, %v5793
        %v6394 = vpack.c.b16 %v5819, %v5794
        %v6395 = vpack.c.b16 %v5820, %v5795
        %v6396 = vpack.c.b16 %v5821, %v5796
        %v6397 = vpack.c.b16 %v5822, %v5797
        %v6398 = vpack.c.b16 %v5823, %v5798
        %v6399 = vpack.c.b16 %v5824, %v5799
        %v6400 = vpack.c.b16 %v5825, %v5800
        %v6401 = vpack.c.b16 %v5826, %v5801
        %v6402 = vpack.c.b16 %v5827, %v5802
        %v6403 = vpack.c.b16 %v5828, %v5803
        %v6404 = vpack.c.b16 %v5854, %v5829
        %v6405 = vpack.c.b16 %v5855, %v5830
        %v6406 = vpack.c.b16 %v5856, %v5831
        %v6407 = vpack.c.b16 %v5857, %v5832
        %v6408 = vpack.c.b16 %v5858, %v5833
        %v6409 = vpack.c.b16 %v5859, %v5834
        %v6410 = vpack.c.b16 %v5860, %v5835
        %v6411 = vpack.c.b16 %v5861, %v5836
        %v6412 = vpack.c.b16 %v5862, %v5837
        %v6413 = vpack.c.b16 %v5863, %v5838
        %v6414 = vpack.c.b16 %v5864, %v5839
        %v6415 = vpack.c.b16 %v5865, %v5840
        %v6416 = vpack.c.b16 %v5866, %v5841
        %v6417 = vpack.c.b16 %v5867, %v5842
        %v6418 = vpack.c.b16 %v5868, %v5843
        %v6419 = vpack.c.b16 %v5869, %v5844
        %v6420 = vpack.c.b16 %v5870, %v5845
        %v6421 = vpack.c.b16 %v5871, %v5846
        %v6422 = vpack.c.b16 %v5872, %v5847
        %v6423 = vpack.c.b16 %v5873, %v5848
        %v6424 = vpack.c.b16 %v5874, %v5849
        %v6425 = vpack.c.b16 %v5875, %v5850
        %v6426 = vpack.c.b16 %v5876, %v5851
        %v6427 = vpack.c.b16 %v5877, %v5852
        %v6428 = vpack.c.b16 %v5878, %v5853
        %v6429 = vpack.c.b16 %v5904, %v5879
        %v6430 = vpack.c.b16 %v5905, %v5880
        %v6431 = vpack.c.b16 %v5906, %v5881
        %v6432 = vpack.c.b16 %v5907, %v5882
        %v6433 = vpack.c.b16 %v5908, %v5883
        %v6434 = vpack.c.b16 %v5909, %v5884
        %v6435 = vpack.c.b16 %v5910, %v5885
        %v6436 = vpack.c.b16 %v5911, %v5886
        %v6437 = vpack.c.b16 %v5912, %v5887
        %v6438 = vpack.c.b16 %v5913, %v5888
        %v6439 = vpack.c.b16 %v5914, %v5889
        %v6440 = vpack.c.b16 %v5915, %v5890
        %v6441 = vpack.c.b16 %v5916, %v5891
        %v6442 = vpack.c.b16 %v5917, %v5892
        %v6443 = vpack.c.b16 %v5918, %v5893
        %v6444 = vpack.c.b16 %v5919, %v5894
        %v6445 = vpack.c.b16 %v5920, %v5895
        %v6446 = vpack.c.b16 %v5921, %v5896
        %v6447 = vpack.c.b16 %v5922, %v5897
        %v6448 = vpack.c.b16 %v5923, %v5898
        %v6449 = vpack.c.b16 %v5924, %v5899
        %v6450 = vpack.c.b16 %v5925, %v5900
        %v6451 = vpack.c.b16 %v5926, %v5901
        %v6452 = vpack.c.b16 %v5927, %v5902
        %v6453 = vpack.c.b16 %v5928, %v5903
        %v6454 = vpack.c.b16 %v5954, %v5929
        %v6455 = vpack.c.b16 %v5955, %v5930
        %v6456 = vpack.c.b16 %v5956, %v5931
        %v6457 = vpack.c.b16 %v5957, %v5932
        %v6458 = vpack.c.b16 %v5958, %v5933
        %v6459 = vpack.c.b16 %v5959, %v5934
        %v6460 = vpack.c.b16 %v5960, %v5935
        %v6461 = vpack.c.b16 %v5961, %v5936
        %v6462 = vpack.c.b16 %v5962, %v5937
        %v6463 = vpack.c.b16 %v5963, %v5938
        %v6464 = vpack.c.b16 %v5964, %v5939
        %v6465 = vpack.c.b16 %v5965, %v5940
        %v6466 = vpack.c.b16 %v5966, %v5941
        %v6467 = vpack.c.b16 %v5967, %v5942
        %v6468 = vpack.c.b16 %v5968, %v5943
        %v6469 = vpack.c.b16 %v5969, %v5944
        %v6470 = vpack.c.b16 %v5970, %v5945
        %v6471 = vpack.c.b16 %v5971, %v5946
        %v6472 = vpack.c.b16 %v5972, %v5947
        %v6473 = vpack.c.b16 %v5973, %v5948
        %v6474 = vpack.c.b16 %v5974, %v5949
        %v6475 = vpack.c.b16 %v5975, %v5950
        %v6476 = vpack.c.b16 %v5976, %v5951
        %v6477 = vpack.c.b16 %v5977, %v5952
        %v6478 = vpack.c.b16 %v5978, %v5953
        %v6479 = vpack.c.b16 %v6004, %v5979
        %v6480 = vpack.c.b16 %v6005, %v5980
        %v6481 = vpack.c.b16 %v6006, %v5981
        %v6482 = vpack.c.b16 %v6007, %v5982
        %v6483 = vpack.c.b16 %v6008, %v5983
        %v6484 = vpack.c.b16 %v6009, %v5984
        %v6485 = vpack.c.b16 %v6010, %v5985
        %v6486 = vpack.c.b16 %v6011, %v5986
        %v6487 = vpack.c.b16 %v6012, %v5987
        %v6488 = vpack.c.b16 %v6013, %v5988
        %v6489 = vpack.c.b16 %v6014, %v5989
        %v6490 = vpack.c.b16 %v6015, %v5990
        %v6491 = vpack.c.b16 %v6016, %v5991
        %v6492 = vpack.c.b16 %v6017, %v5992
        %v6493 = vpack.c.b16 %v6018, %v5993
        %v6494 = vpack.c.b16 %v6019, %v5994
        %v6495 = vpack.c.b16 %v6020, %v5995
        %v6496 = vpack.c.b16 %v6021, %v5996
        %v6497 = vpack.c.b16 %v6022, %v5997
        %v6498 = vpack.c.b16 %v6023, %v5998
        %v6499 = vpack.c.b16 %v6024, %v5999
        %v6500 = vpack.c.b16 %v6025, %v6000
        %v6501 = vpack.c.b16 %v6026, %v6001
        %v6502 = vpack.c.b16 %v6027, %v6002
        %v6503 = vpack.c.b16 %v6028, %v6003
        %v6504 = vpack.c.b16 %v6054, %v6029
        %v6505 = vpack.c.b16 %v6055, %v6030
        %v6506 = vpack.c.b16 %v6056, %v6031
        %v6507 = vpack.c.b16 %v6057, %v6032
        %v6508 = vpack.c.b16 %v6058, %v6033
        %v6509 = vpack.c.b16 %v6059, %v6034
        %v6510 = vpack.c.b16 %v6060, %v6035
        %v6511 = vpack.c.b16 %v6061, %v6036
        %v6512 = vpack.c.b16 %v6062, %v6037
        %v6513 = vpack.c.b16 %v6063, %v6038
        %v6514 = vpack.c.b16 %v6064, %v6039
        %v6515 = vpack.c.b16 %v6065, %v6040
        %v6516 = vpack.c.b16 %v6066, %v6041
        %v6517 = vpack.c.b16 %v6067, %v6042
        %v6518 = vpack.c.b16 %v6068, %v6043
        %v6519 = vpack.c.b16 %v6069, %v6044
        %v6520 = vpack.c.b16 %v6070, %v6045
        %v6521 = vpack.c.b16 %v6071, %v6046
        %v6522 = vpack.c.b16 %v6072, %v6047
        %v6523 = vpack.c.b16 %v6073, %v6048
        %v6524 = vpack.c.b16 %v6074, %v6049
        %v6525 = vpack.c.b16 %v6075, %v6050
        %v6526 = vpack.c.b16 %v6076, %v6051
        %v6527 = vpack.c.b16 %v6077, %v6052
        %v6528 = vpack.c.b16 %v6078, %v6053
        %v6529 = vpack.c.b16 %v6104, %v6079
        %v6530 = vpack.c.b16 %v6105, %v6080
        %v6531 = vpack.c.b16 %v6106, %v6081
        %v6532 = vpack.c.b16 %v6107, %v6082
        %v6533 = vpack.c.b16 %v6108, %v6083
        %v6534 = vpack.c.b16 %v6109, %v6084
        %v6535 = vpack.c.b16 %v6110, %v6085
        %v6536 = vpack.c.b16 %v6111, %v6086
        %v6537 = vpack.c.b16 %v6112, %v6087
        %v6538 = vpack.c.b16 %v6113, %v6088
        %v6539 = vpack.c.b16 %v6114, %v6089
        %v6540 = vpack.c.b16 %v6115, %v6090
        %v6541 = vpack.c.b16 %v6116, %v6091
        %v6542 = vpack.c.b16 %v6117, %v6092
        %v6543 = vpack.c.b16 %v6118, %v6093
        %v6544 = vpack.c.b16 %v6119, %v6094
        %v6545 = vpack.c.b16 %v6120, %v6095
        %v6546 = vpack.c.b16 %v6121, %v6096
        %v6547 = vpack.c.b16 %v6122, %v6097
        %v6548 = vpack.c.b16 %v6123, %v6098
        %v6549 = vpack.c.b16 %v6124, %v6099
        %v6550 = vpack.c.b16 %v6125, %v6100
        %v6551 = vpack.c.b16 %v6126, %v6101
        %v6552 = vpack.c.b16 %v6127, %v6102
        %v6553 = vpack.c.b16 %v6128, %v6103
        %v6554 = vpack.c.b16 %v6154, %v6129
        %v6555 = vpack.c.b16 %v6155, %v6130
        %v6556 = vpack.c.b16 %v6156, %v6131
        %v6557 = vpack.c.b16 %v6157, %v6132
        %v6558 = vpack.c.b16 %v6158, %v6133
        %v6559 = vpack.c.b16 %v6159, %v6134
        %v6560 = vpack.c.b16 %v6160, %v6135
        %v6561 = vpack.c.b16 %v6161, %v6136
        %v6562 = vpack.c.b16 %v6162, %v6137
        %v6563 = vpack.c.b16 %v6163, %v6138
        %v6564 = vpack.c.b16 %v6164, %v6139
        %v6565 = vpack.c.b16 %v6165, %v6140
        %v6566 = vpack.c.b16 %v6166, %v6141
        %v6567 = vpack.c.b16 %v6167, %v6142
        %v6568 = vpack.c.b16 %v6168, %v6143
        %v6569 = vpack.c.b16 %v6169, %v6144
        %v6570 = vpack.c.b16 %v6170, %v6145
        %v6571 = vpack.c.b16 %v6171, %v6146
        %v6572 = vpack.c.b16 %v6172, %v6147
        %v6573 = vpack.c.b16 %v6173, %v6148
        %v6574 = vpack.c.b16 %v6174, %v6149
        %v6575 = vpack.c.b16 %v6175, %v6150
        %v6576 = vpack.c.b16 %v6176, %v6151
        %v6577 = vpack.c.b16 %v6177, %v6152
        %v6578 = vpack.c.b16 %v6178, %v6153
        %v7379 = vunpack.c.l.b16 %v4563
        %v7380 = vunpack.c.l.b16 %v4564
        %v7381 = vunpack.c.l.b16 %v4565
        %v7382 = vunpack.c.l.b16 %v4566
        %v7383 = vunpack.c.l.b16 %v4567
        %v7384 = vunpack.c.l.b16 %v4568
        %v7385 = vunpack.c.l.b16 %v4569
        %v7386 = vunpack.c.l.b16 %v4570
        %v7387 = vunpack.c.l.b16 %v4571
        %v7388 = vunpack.c.l.b16 %v4572
        %v7389 = vunpack.c.l.b16 %v4573
        %v7390 = vunpack.c.l.b16 %v4574
        %v7391 = vunpack.c.l.b16 %v4575
        %v7392 = vunpack.c.l.b16 %v4576
        %v7393 = vunpack.c.l.b16 %v4577
        %v7394 = vunpack.c.l.b16 %v4578
        %v7395 = vunpack.c.l.b16 %v4579
        %v7396 = vunpack.c.l.b16 %v4580
        %v7397 = vunpack.c.l.b16 %v4581
        %v7398 = vunpack.c.l.b16 %v4582
        %v7399 = vunpack.c.l.b16 %v4583
        %v7400 = vunpack.c.l.b16 %v4584
        %v7401 = vunpack.c.l.b16 %v4585
        %v7402 = vunpack.c.l.b16 %v4586
        %v7403 = vunpack.c.l.b16 %v4587
        %v7404 = vunpack.c.l.b16 %v4588
        %v7405 = vunpack.c.l.b16 %v4589
        %v7406 = vunpack.c.l.b16 %v4590
        %v7407 = vunpack.c.l.b16 %v4591
        %v7408 = vunpack.c.l.b16 %v4592
        %v7409 = vunpack.c.l.b16 %v4593
        %v7410 = vunpack.c.l.b16 %v4594
        %v7411 = vunpack.c.l.b16 %v4595
        %v7412 = vunpack.c.l.b16 %v4596
        %v7413 = vunpack.c.l.b16 %v4597
        %v7414 = vunpack.c.l.b16 %v4598
        %v7415 = vunpack.c.l.b16 %v4599
        %v7416 = vunpack.c.l.b16 %v4600
        %v7417 = vunpack.c.l.b16 %v4601
        %v7418 = vunpack.c.l.b16 %v4602
        %v7419 = vunpack.c.l.b16 %v4603
        %v7420 = vunpack.c.l.b16 %v4604
        %v7421 = vunpack.c.l.b16 %v4605
        %v7422 = vunpack.c.l.b16 %v4606
        %v7423 = vunpack.c.l.b16 %v4607
        %v7424 = vunpack.c.l.b16 %v4608
        %v7425 = vunpack.c.l.b16 %v4609
        %v7426 = vunpack.c.l.b16 %v4610
        %v7427 = vunpack.c.l.b16 %v4611
        %v7428 = vunpack.c.l.b16 %v4612
        %v7429 = vunpack.c.l.b16 %v4613
        %v7430 = vunpack.c.l.b16 %v4614
        %v7431 = vunpack.c.l.b16 %v4615
        %v7432 = vunpack.c.l.b16 %v4616
        %v7433 = vunpack.c.l.b16 %v4617
        %v7434 = vunpack.c.l.b16 %v4618
        %v7435 = vunpack.c.l.b16 %v4619
        %v7436 = vunpack.c.l.b16 %v4620
        %v7437 = vunpack.c.l.b16 %v4621
        %v7438 = vunpack.c.l.b16 %v4622
        %v7439 = vunpack.c.l.b16 %v4623
        %v7440 = vunpack.c.l.b16 %v4624
        %v7441 = vunpack.c.l.b16 %v4625
        %v7442 = vunpack.c.l.b16 %v4626
        %v7443 = vunpack.c.l.b16 %v4627
        %v7444 = vunpack.c.l.b16 %v4628
        %v7445 = vunpack.c.l.b16 %v4629
        %v7446 = vunpack.c.l.b16 %v4630
        %v7447 = vunpack.c.l.b16 %v4631
        %v7448 = vunpack.c.l.b16 %v4632
        %v7449 = vunpack.c.l.b16 %v4633
        %v7450 = vunpack.c.l.b16 %v4634
        %v7451 = vunpack.c.l.b16 %v4635
        %v7452 = vunpack.c.l.b16 %v4636
        %v7453 = vunpack.c.l.b16 %v4637
        %v7454 = vunpack.c.l.b16 %v4638
        %v7455 = vunpack.c.l.b16 %v4639
        %v7456 = vunpack.c.l.b16 %v4640
        %v7457 = vunpack.c.l.b16 %v4641
        %v7458 = vunpack.c.l.b16 %v4642
        %v7459 = vunpack.c.l.b16 %v4643
        %v7460 = vunpack.c.l.b16 %v4644
        %v7461 = vunpack.c.l.b16 %v4645
        %v7462 = vunpack.c.l.b16 %v4646
        %v7463 = vunpack.c.l.b16 %v4647
        %v7464 = vunpack.c.l.b16 %v4648
        %v7465 = vunpack.c.l.b16 %v4649
        %v7466 = vunpack.c.l.b16 %v4650
        %v7467 = vunpack.c.l.b16 %v4651
        %v7468 = vunpack.c.l.b16 %v4652
        %v7469 = vunpack.c.l.b16 %v4653
        %v7470 = vunpack.c.l.b16 %v4654
        %v7471 = vunpack.c.l.b16 %v4655
        %v7472 = vunpack.c.l.b16 %v4656
        %v7473 = vunpack.c.l.b16 %v4657
        %v7474 = vunpack.c.l.b16 %v4658
        %v7475 = vunpack.c.l.b16 %v4659
        %v7476 = vunpack.c.l.b16 %v4660
        %v7477 = vunpack.c.l.b16 %v4661
        %v7478 = vunpack.c.l.b16 %v4662
        %v7479 = vunpack.c.l.b16 %v4663
        %v7480 = vunpack.c.l.b16 %v4664
        %v7481 = vunpack.c.l.b16 %v4665
        %v7482 = vunpack.c.l.b16 %v4666
        %v7483 = vunpack.c.l.b16 %v4667
        %v7484 = vunpack.c.l.b16 %v4668
        %v7485 = vunpack.c.l.b16 %v4669
        %v7486 = vunpack.c.l.b16 %v4670
        %v7487 = vunpack.c.l.b16 %v4671
        %v7488 = vunpack.c.l.b16 %v4672
        %v7489 = vunpack.c.l.b16 %v4673
        %v7490 = vunpack.c.l.b16 %v4674
        %v7491 = vunpack.c.l.b16 %v4675
        %v7492 = vunpack.c.l.b16 %v4676
        %v7493 = vunpack.c.l.b16 %v4677
        %v7494 = vunpack.c.l.b16 %v4678
        %v7495 = vunpack.c.l.b16 %v4679
        %v7496 = vunpack.c.l.b16 %v4680
        %v7497 = vunpack.c.l.b16 %v4681
        %v7498 = vunpack.c.l.b16 %v4682
        %v7499 = vunpack.c.l.b16 %v4683
        %v7500 = vunpack.c.l.b16 %v4684
        %v7501 = vunpack.c.l.b16 %v4685
        %v7502 = vunpack.c.l.b16 %v4686
        %v7503 = vunpack.c.l.b16 %v4687
        %v7504 = vunpack.c.l.b16 %v4688
        %v7505 = vunpack.c.l.b16 %v4689
        %v7506 = vunpack.c.l.b16 %v4690
        %v7507 = vunpack.c.l.b16 %v4691
        %v7508 = vunpack.c.l.b16 %v4692
        %v7509 = vunpack.c.l.b16 %v4693
        %v7510 = vunpack.c.l.b16 %v4694
        %v7511 = vunpack.c.l.b16 %v4695
        %v7512 = vunpack.c.l.b16 %v4696
        %v7513 = vunpack.c.l.b16 %v4697
        %v7514 = vunpack.c.l.b16 %v4698
        %v7515 = vunpack.c.l.b16 %v4699
        %v7516 = vunpack.c.l.b16 %v4700
        %v7517 = vunpack.c.l.b16 %v4701
        %v7518 = vunpack.c.l.b16 %v4702
        %v7519 = vunpack.c.l.b16 %v4703
        %v7520 = vunpack.c.l.b16 %v4704
        %v7521 = vunpack.c.l.b16 %v4705
        %v7522 = vunpack.c.l.b16 %v4706
        %v7523 = vunpack.c.l.b16 %v4707
        %v7524 = vunpack.c.l.b16 %v4708
        %v7525 = vunpack.c.l.b16 %v4709
        %v7526 = vunpack.c.l.b16 %v4710
        %v7527 = vunpack.c.l.b16 %v4711
        %v7528 = vunpack.c.l.b16 %v4712
        %v7529 = vunpack.c.l.b16 %v4713
        %v7530 = vunpack.c.l.b16 %v4714
        %v7531 = vunpack.c.l.b16 %v4715
        %v7532 = vunpack.c.l.b16 %v4716
        %v7533 = vunpack.c.l.b16 %v4717
        %v7534 = vunpack.c.l.b16 %v4718
        %v7535 = vunpack.c.l.b16 %v4719
        %v7536 = vunpack.c.l.b16 %v4720
        %v7537 = vunpack.c.l.b16 %v4721
        %v7538 = vunpack.c.l.b16 %v4722
        %v7539 = vunpack.c.l.b16 %v4723
        %v7540 = vunpack.c.l.b16 %v4724
        %v7541 = vunpack.c.l.b16 %v4725
        %v7542 = vunpack.c.l.b16 %v4726
        %v7543 = vunpack.c.l.b16 %v4727
        %v7544 = vunpack.c.l.b16 %v4728
        %v7545 = vunpack.c.l.b16 %v4729
        %v7546 = vunpack.c.l.b16 %v4730
        %v7547 = vunpack.c.l.b16 %v4731
        %v7548 = vunpack.c.l.b16 %v4732
        %v7549 = vunpack.c.l.b16 %v4733
        %v7550 = vunpack.c.l.b16 %v4734
        %v7551 = vunpack.c.l.b16 %v4735
        %v7552 = vunpack.c.l.b16 %v4736
        %v7553 = vunpack.c.l.b16 %v4737
        %v7554 = vunpack.c.l.b16 %v4738
        %v7555 = vunpack.c.l.b16 %v4739
        %v7556 = vunpack.c.l.b16 %v4740
        %v7557 = vunpack.c.l.b16 %v4741
        %v7558 = vunpack.c.l.b16 %v4742
        %v7559 = vunpack.c.l.b16 %v4743
        %v7560 = vunpack.c.l.b16 %v4744
        %v7561 = vunpack.c.l.b16 %v4745
        %v7562 = vunpack.c.l.b16 %v4746
        %v7563 = vunpack.c.l.b16 %v4747
        %v7564 = vunpack.c.l.b16 %v4748
        %v7565 = vunpack.c.l.b16 %v4749
        %v7566 = vunpack.c.l.b16 %v4750
        %v7567 = vunpack.c.l.b16 %v4751
        %v7568 = vunpack.c.l.b16 %v4752
        %v7569 = vunpack.c.l.b16 %v4753
        %v7570 = vunpack.c.l.b16 %v4754
        %v7571 = vunpack.c.l.b16 %v4755
        %v7572 = vunpack.c.l.b16 %v4756
        %v7573 = vunpack.c.l.b16 %v4757
        %v7574 = vunpack.c.l.b16 %v4758
        %v7575 = vunpack.c.l.b16 %v4759
        %v7576 = vunpack.c.l.b16 %v4760
        %v7577 = vunpack.c.l.b16 %v4761
        %v7578 = vunpack.c.l.b16 %v4762
        %v7579 = vunpack.c.l.b16 %v4763
        %v7580 = vunpack.c.l.b16 %v4764
        %v7581 = vunpack.c.l.b16 %v4765
        %v7582 = vunpack.c.l.b16 %v4766
        %v7583 = vunpack.c.l.b16 %v4767
        %v7584 = vunpack.c.l.b16 %v4768
        %v7585 = vunpack.c.l.b16 %v4769
        %v7586 = vunpack.c.l.b16 %v4770
        %v7587 = vunpack.c.l.b16 %v4771
        %v7588 = vunpack.c.l.b16 %v4772
        %v7589 = vunpack.c.l.b16 %v4773
        %v7590 = vunpack.c.l.b16 %v4774
        %v7591 = vunpack.c.l.b16 %v4775
        %v7592 = vunpack.c.l.b16 %v4776
        %v7593 = vunpack.c.l.b16 %v4777
        %v7594 = vunpack.c.l.b16 %v4778
        %v7595 = vunpack.c.l.b16 %v4779
        %v7596 = vunpack.c.l.b16 %v4780
        %v7597 = vunpack.c.l.b16 %v4781
        %v7598 = vunpack.c.l.b16 %v4782
        %v7599 = vunpack.c.l.b16 %v4783
        %v7600 = vunpack.c.l.b16 %v4784
        %v7601 = vunpack.c.l.b16 %v4785
        %v7602 = vunpack.c.l.b16 %v4786
        %v7603 = vunpack.c.l.b16 %v4787
        %v7604 = vunpack.c.l.b16 %v4788
        %v7605 = vunpack.c.l.b16 %v4789
        %v7606 = vunpack.c.l.b16 %v4790
        %v7607 = vunpack.c.l.b16 %v4791
        %v7608 = vunpack.c.l.b16 %v4792
        %v7609 = vunpack.c.l.b16 %v4793
        %v7610 = vunpack.c.l.b16 %v4794
        %v7611 = vunpack.c.l.b16 %v4795
        %v7612 = vunpack.c.l.b16 %v4796
        %v7613 = vunpack.c.l.b16 %v4797
        %v7614 = vunpack.c.l.b16 %v4798
        %v7615 = vunpack.c.l.b16 %v4799
        %v7616 = vunpack.c.l.b16 %v4800
        %v7617 = vunpack.c.l.b16 %v4801
        %v7618 = vunpack.c.l.b16 %v4802
        %v7619 = vunpack.c.l.b16 %v4803
        %v7620 = vunpack.c.l.b16 %v4804
        %v7621 = vunpack.c.l.b16 %v4805
        %v7622 = vunpack.c.l.b16 %v4806
        %v7623 = vunpack.c.l.b16 %v4807
        %v7624 = vunpack.c.l.b16 %v4808
        %v7625 = vunpack.c.l.b16 %v4809
        %v7626 = vunpack.c.l.b16 %v4810
        %v7627 = vunpack.c.l.b16 %v4811
        %v7628 = vunpack.c.l.b16 %v4812
        %v7629 = vunpack.c.l.b16 %v4813
        %v7630 = vunpack.c.l.b16 %v4814
        %v7631 = vunpack.c.l.b16 %v4815
        %v7632 = vunpack.c.l.b16 %v4816
        %v7633 = vunpack.c.l.b16 %v4817
        %v7634 = vunpack.c.l.b16 %v4818
        %v7635 = vunpack.c.l.b16 %v4819
        %v7636 = vunpack.c.l.b16 %v4820
        %v7637 = vunpack.c.l.b16 %v4821
        %v7638 = vunpack.c.l.b16 %v4822
        %v7639 = vunpack.c.l.b16 %v4823
        %v7640 = vunpack.c.l.b16 %v4824
        %v7641 = vunpack.c.l.b16 %v4825
        %v7642 = vunpack.c.l.b16 %v4826
        %v7643 = vunpack.c.l.b16 %v4827
        %v7644 = vunpack.c.l.b16 %v4828
        %v7645 = vunpack.c.l.b16 %v4829
        %v7646 = vunpack.c.l.b16 %v4830
        %v7647 = vunpack.c.l.b16 %v4831
        %v7648 = vunpack.c.l.b16 %v4832
        %v7649 = vunpack.c.l.b16 %v4833
        %v7650 = vunpack.c.l.b16 %v4834
        %v7651 = vunpack.c.l.b16 %v4835
        %v7652 = vunpack.c.l.b16 %v4836
        %v7653 = vunpack.c.l.b16 %v4837
        %v7654 = vunpack.c.l.b16 %v4838
        %v7655 = vunpack.c.l.b16 %v4839
        %v7656 = vunpack.c.l.b16 %v4840
        %v7657 = vunpack.c.l.b16 %v4841
        %v7658 = vunpack.c.l.b16 %v4842
        %v7659 = vunpack.c.l.b16 %v4843
        %v7660 = vunpack.c.l.b16 %v4844
        %v7661 = vunpack.c.l.b16 %v4845
        %v7662 = vunpack.c.l.b16 %v4846
        %v7663 = vunpack.c.l.b16 %v4847
        %v7664 = vunpack.c.l.b16 %v4848
        %v7665 = vunpack.c.l.b16 %v4849
        %v7666 = vunpack.c.l.b16 %v4850
        %v7667 = vunpack.c.l.b16 %v4851
        %v7668 = vunpack.c.l.b16 %v4852
        %v7669 = vunpack.c.l.b16 %v4853
        %v7670 = vunpack.c.l.b16 %v4854
        %v7671 = vunpack.c.l.b16 %v4855
        %v7672 = vunpack.c.l.b16 %v4856
        %v7673 = vunpack.c.l.b16 %v4857
        %v7674 = vunpack.c.l.b16 %v4858
        %v7675 = vunpack.c.l.b16 %v4859
        %v7676 = vunpack.c.l.b16 %v4860
        %v7677 = vunpack.c.l.b16 %v4861
        %v7678 = vunpack.c.l.b16 %v4862
        %v7679 = vunpack.c.l.b16 %v4863
        %v7680 = vunpack.c.l.b16 %v4864
        %v7681 = vunpack.c.l.b16 %v4865
        %v7682 = vunpack.c.l.b16 %v4866
        %v7683 = vunpack.c.l.b16 %v4867
        %v7684 = vunpack.c.l.b16 %v4868
        %v7685 = vunpack.c.l.b16 %v4869
        %v7686 = vunpack.c.l.b16 %v4870
        %v7687 = vunpack.c.l.b16 %v4871
        %v7688 = vunpack.c.l.b16 %v4872
        %v7689 = vunpack.c.l.b16 %v4873
        %v7690 = vunpack.c.l.b16 %v4874
        %v7691 = vunpack.c.l.b16 %v4875
        %v7692 = vunpack.c.l.b16 %v4876
        %v7693 = vunpack.c.l.b16 %v4877
        %v7694 = vunpack.c.l.b16 %v4878
        %v7695 = vunpack.c.l.b16 %v4879
        %v7696 = vunpack.c.l.b16 %v4880
        %v7697 = vunpack.c.l.b16 %v4881
        %v7698 = vunpack.c.l.b16 %v4882
        %v7699 = vunpack.c.l.b16 %v4883
        %v7700 = vunpack.c.l.b16 %v4884
        %v7701 = vunpack.c.l.b16 %v4885
        %v7702 = vunpack.c.l.b16 %v4886
        %v7703 = vunpack.c.l.b16 %v4887
        %v7704 = vunpack.c.l.b16 %v4888
        %v7705 = vunpack.c.l.b16 %v4889
        %v7706 = vunpack.c.l.b16 %v4890
        %v7707 = vunpack.c.l.b16 %v4891
        %v7708 = vunpack.c.l.b16 %v4892
        %v7709 = vunpack.c.l.b16 %v4893
        %v7710 = vunpack.c.l.b16 %v4894
        %v7711 = vunpack.c.l.b16 %v4895
        %v7712 = vunpack.c.l.b16 %v4896
        %v7713 = vunpack.c.l.b16 %v4897
        %v7714 = vunpack.c.l.b16 %v4898
        %v7715 = vunpack.c.l.b16 %v4899
        %v7716 = vunpack.c.l.b16 %v4900
        %v7717 = vunpack.c.l.b16 %v4901
        %v7718 = vunpack.c.l.b16 %v4902
        %v7719 = vunpack.c.l.b16 %v4903
        %v7720 = vunpack.c.l.b16 %v4904
        %v7721 = vunpack.c.l.b16 %v4905
        %v7722 = vunpack.c.l.b16 %v4906
        %v7723 = vunpack.c.l.b16 %v4907
        %v7724 = vunpack.c.l.b16 %v4908
        %v7725 = vunpack.c.l.b16 %v4909
        %v7726 = vunpack.c.l.b16 %v4910
        %v7727 = vunpack.c.l.b16 %v4911
        %v7728 = vunpack.c.l.b16 %v4912
        %v7729 = vunpack.c.l.b16 %v4913
        %v7730 = vunpack.c.l.b16 %v4914
        %v7731 = vunpack.c.l.b16 %v4915
        %v7732 = vunpack.c.l.b16 %v4916
        %v7733 = vunpack.c.l.b16 %v4917
        %v7734 = vunpack.c.l.b16 %v4918
        %v7735 = vunpack.c.l.b16 %v4919
        %v7736 = vunpack.c.l.b16 %v4920
        %v7737 = vunpack.c.l.b16 %v4921
        %v7738 = vunpack.c.l.b16 %v4922
        %v7739 = vunpack.c.l.b16 %v4923
        %v7740 = vunpack.c.l.b16 %v4924
        %v7741 = vunpack.c.l.b16 %v4925
        %v7742 = vunpack.c.l.b16 %v4926
        %v7743 = vunpack.c.l.b16 %v4927
        %v7744 = vunpack.c.l.b16 %v4928
        %v7745 = vunpack.c.l.b16 %v4929
        %v7746 = vunpack.c.l.b16 %v4930
        %v7747 = vunpack.c.l.b16 %v4931
        %v7748 = vunpack.c.l.b16 %v4932
        %v7749 = vunpack.c.l.b16 %v4933
        %v7750 = vunpack.c.l.b16 %v4934
        %v7751 = vunpack.c.l.b16 %v4935
        %v7752 = vunpack.c.l.b16 %v4936
        %v7753 = vunpack.c.l.b16 %v4937
        %v7754 = vunpack.c.l.b16 %v4938
        %v7755 = vunpack.c.l.b16 %v4939
        %v7756 = vunpack.c.l.b16 %v4940
        %v7757 = vunpack.c.l.b16 %v4941
        %v7758 = vunpack.c.l.b16 %v4942
        %v7759 = vunpack.c.l.b16 %v4943
        %v7760 = vunpack.c.l.b16 %v4944
        %v7761 = vunpack.c.l.b16 %v4945
        %v7762 = vunpack.c.l.b16 %v4946
        %v7763 = vunpack.c.l.b16 %v4947
        %v7764 = vunpack.c.l.b16 %v4948
        %v7765 = vunpack.c.l.b16 %v4949
        %v7766 = vunpack.c.l.b16 %v4950
        %v7767 = vunpack.c.l.b16 %v4951
        %v7768 = vunpack.c.l.b16 %v4952
        %v7769 = vunpack.c.l.b16 %v4953
        %v7770 = vunpack.c.l.b16 %v4954
        %v7771 = vunpack.c.l.b16 %v4955
        %v7772 = vunpack.c.l.b16 %v4956
        %v7773 = vunpack.c.l.b16 %v4957
        %v7774 = vunpack.c.l.b16 %v4958
        %v7775 = vunpack.c.l.b16 %v4959
        %v7776 = vunpack.c.l.b16 %v4960
        %v7777 = vunpack.c.l.b16 %v4961
        %v7778 = vunpack.c.l.b16 %v4962
        %v7779 = vpack.c.b16 %v7380, %v7379
        %v7780 = vpack.c.b16 %v7382, %v7381
        %v7781 = vpack.c.b16 %v7384, %v7383
        %v7782 = vpack.c.b16 %v7386, %v7385
        %v7783 = vpack.c.b16 %v7388, %v7387
        %v7784 = vpack.c.b16 %v7390, %v7389
        %v7785 = vpack.c.b16 %v7392, %v7391
        %v7786 = vpack.c.b16 %v7394, %v7393
        %v7787 = vpack.c.b16 %v7396, %v7395
        %v7788 = vpack.c.b16 %v7398, %v7397
        %v7789 = vpack.c.b16 %v7400, %v7399
        %v7790 = vpack.c.b16 %v7402, %v7401
        %v7791 = vpack.c.b16 %v7404, %v7403
        %v7792 = vpack.c.b16 %v7406, %v7405
        %v7793 = vpack.c.b16 %v7408, %v7407
        %v7794 = vpack.c.b16 %v7410, %v7409
        %v7795 = vpack.c.b16 %v7412, %v7411
        %v7796 = vpack.c.b16 %v7414, %v7413
        %v7797 = vpack.c.b16 %v7416, %v7415
        %v7798 = vpack.c.b16 %v7418, %v7417
        %v7799 = vpack.c.b16 %v7420, %v7419
        %v7800 = vpack.c.b16 %v7422, %v7421
        %v7801 = vpack.c.b16 %v7424, %v7423
        %v7802 = vpack.c.b16 %v7426, %v7425
        %v7803 = vpack.c.b16 %v7428, %v7427
        %v7804 = vpack.c.b16 %v7430, %v7429
        %v7805 = vpack.c.b16 %v7432, %v7431
        %v7806 = vpack.c.b16 %v7434, %v7433
        %v7807 = vpack.c.b16 %v7436, %v7435
        %v7808 = vpack.c.b16 %v7438, %v7437
        %v7809 = vpack.c.b16 %v7440, %v7439
        %v7810 = vpack.c.b16 %v7442, %v7441
        %v7811 = vpack.c.b16 %v7444, %v7443
        %v7812 = vpack.c.b16 %v7446, %v7445
        %v7813 = vpack.c.b16 %v7448, %v7447
        %v7814 = vpack.c.b16 %v7450, %v7449
        %v7815 = vpack.c.b16 %v7452, %v7451
        %v7816 = vpack.c.b16 %v7454, %v7453
        %v7817 = vpack.c.b16 %v7456, %v7455
        %v7818 = vpack.c.b16 %v7458, %v7457
        %v7819 = vpack.c.b16 %v7460, %v7459
        %v7820 = vpack.c.b16 %v7462, %v7461
        %v7821 = vpack.c.b16 %v7464, %v7463
        %v7822 = vpack.c.b16 %v7466, %v7465
        %v7823 = vpack.c.b16 %v7468, %v7467
        %v7824 = vpack.c.b16 %v7470, %v7469
        %v7825 = vpack.c.b16 %v7472, %v7471
        %v7826 = vpack.c.b16 %v7474, %v7473
        %v7827 = vpack.c.b16 %v7476, %v7475
        %v7828 = vpack.c.b16 %v7478, %v7477
        %v7829 = vpack.c.b16 %v7480, %v7479
        %v7830 = vpack.c.b16 %v7482, %v7481
        %v7831 = vpack.c.b16 %v7484, %v7483
        %v7832 = vpack.c.b16 %v7486, %v7485
        %v7833 = vpack.c.b16 %v7488, %v7487
        %v7834 = vpack.c.b16 %v7490, %v7489
        %v7835 = vpack.c.b16 %v7492, %v7491
        %v7836 = vpack.c.b16 %v7494, %v7493
        %v7837 = vpack.c.b16 %v7496, %v7495
        %v7838 = vpack.c.b16 %v7498, %v7497
        %v7839 = vpack.c.b16 %v7500, %v7499
        %v7840 = vpack.c.b16 %v7502, %v7501
        %v7841 = vpack.c.b16 %v7504, %v7503
        %v7842 = vpack.c.b16 %v7506, %v7505
        %v7843 = vpack.c.b16 %v7508, %v7507
        %v7844 = vpack.c.b16 %v7510, %v7509
        %v7845 = vpack.c.b16 %v7512, %v7511
        %v7846 = vpack.c.b16 %v7514, %v7513
        %v7847 = vpack.c.b16 %v7516, %v7515
        %v7848 = vpack.c.b16 %v7518, %v7517
        %v7849 = vpack.c.b16 %v7520, %v7519
        %v7850 = vpack.c.b16 %v7522, %v7521
        %v7851 = vpack.c.b16 %v7524, %v7523
        %v7852 = vpack.c.b16 %v7526, %v7525
        %v7853 = vpack.c.b16 %v7528, %v7527
        %v7854 = vpack.c.b16 %v7530, %v7529
        %v7855 = vpack.c.b16 %v7532, %v7531
        %v7856 = vpack.c.b16 %v7534, %v7533
        %v7857 = vpack.c.b16 %v7536, %v7535
        %v7858 = vpack.c.b16 %v7538, %v7537
        %v7859 = vpack.c.b16 %v7540, %v7539
        %v7860 = vpack.c.b16 %v7542, %v7541
        %v7861 = vpack.c.b16 %v7544, %v7543
        %v7862 = vpack.c.b16 %v7546, %v7545
        %v7863 = vpack.c.b16 %v7548, %v7547
        %v7864 = vpack.c.b16 %v7550, %v7549
        %v7865 = vpack.c.b16 %v7552, %v7551
        %v7866 = vpack.c.b16 %v7554, %v7553
        %v7867 = vpack.c.b16 %v7556, %v7555
        %v7868 = vpack.c.b16 %v7558, %v7557
        %v7869 = vpack.c.b16 %v7560, %v7559
        %v7870 = vpack.c.b16 %v7562, %v7561
        %v7871 = vpack.c.b16 %v7564, %v7563
        %v7872 = vpack.c.b16 %v7566, %v7565
        %v7873 = vpack.c.b16 %v7568, %v7567
        %v7874 = vpack.c.b16 %v7570, %v7569
        %v7875 = vpack.c.b16 %v7572, %v7571
        %v7876 = vpack.c.b16 %v7574, %v7573
        %v7877 = vpack.c.b16 %v7576, %v7575
        %v7878 = vpack.c.b16 %v7578, %v7577
        %v7879 = vpack.c.b16 %v7580, %v7579
        %v7880 = vpack.c.b16 %v7582, %v7581
        %v7881 = vpack.c.b16 %v7584, %v7583
        %v7882 = vpack.c.b16 %v7586, %v7585
        %v7883 = vpack.c.b16 %v7588, %v7587
        %v7884 = vpack.c.b16 %v7590, %v7589
        %v7885 = vpack.c.b16 %v7592, %v7591
        %v7886 = vpack.c.b16 %v7594, %v7593
        %v7887 = vpack.c.b16 %v7596, %v7595
        %v7888 = vpack.c.b16 %v7598, %v7597
        %v7889 = vpack.c.b16 %v7600, %v7599
        %v7890 = vpack.c.b16 %v7602, %v7601
        %v7891 = vpack.c.b16 %v7604, %v7603
        %v7892 = vpack.c.b16 %v7606, %v7605
        %v7893 = vpack.c.b16 %v7608, %v7607
        %v7894 = vpack.c.b16 %v7610, %v7609
        %v7895 = vpack.c.b16 %v7612, %v7611
        %v7896 = vpack.c.b16 %v7614, %v7613
        %v7897 = vpack.c.b16 %v7616, %v7615
        %v7898 = vpack.c.b16 %v7618, %v7617
        %v7899 = vpack.c.b16 %v7620, %v7619
        %v7900 = vpack.c.b16 %v7622, %v7621
        %v7901 = vpack.c.b16 %v7624, %v7623
        %v7902 = vpack.c.b16 %v7626, %v7625
        %v7903 = vpack.c.b16 %v7628, %v7627
        %v7904 = vpack.c.b16 %v7630, %v7629
        %v7905 = vpack.c.b16 %v7632, %v7631
        %v7906 = vpack.c.b16 %v7634, %v7633
        %v7907 = vpack.c.b16 %v7636, %v7635
        %v7908 = vpack.c.b16 %v7638, %v7637
        %v7909 = vpack.c.b16 %v7640, %v7639
        %v7910 = vpack.c.b16 %v7642, %v7641
        %v7911 = vpack.c.b16 %v7644, %v7643
        %v7912 = vpack.c.b16 %v7646, %v7645
        %v7913 = vpack.c.b16 %v7648, %v7647
        %v7914 = vpack.c.b16 %v7650, %v7649
        %v7915 = vpack.c.b16 %v7652, %v7651
        %v7916 = vpack.c.b16 %v7654, %v7653
        %v7917 = vpack.c.b16 %v7656, %v7655
        %v7918 = vpack.c.b16 %v7658, %v7657
        %v7919 = vpack.c.b16 %v7660, %v7659
        %v7920 = vpack.c.b16 %v7662, %v7661
        %v7921 = vpack.c.b16 %v7664, %v7663
        %v7922 = vpack.c.b16 %v7666, %v7665
        %v7923 = vpack.c.b16 %v7668, %v7667
        %v7924 = vpack.c.b16 %v7670, %v7669
        %v7925 = vpack.c.b16 %v7672, %v7671
        %v7926 = vpack.c.b16 %v7674, %v7673
        %v7927 = vpack.c.b16 %v7676, %v7675
        %v7928 = vpack.c.b16 %v7678, %v7677
        %v7929 = vpack.c.b16 %v7680, %v7679
        %v7930 = vpack.c.b16 %v7682, %v7681
        %v7931 = vpack.c.b16 %v7684, %v7683
        %v7932 = vpack.c.b16 %v7686, %v7685
        %v7933 = vpack.c.b16 %v7688, %v7687
        %v7934 = vpack.c.b16 %v7690, %v7689
        %v7935 = vpack.c.b16 %v7692, %v7691
        %v7936 = vpack.c.b16 %v7694, %v7693
        %v7937 = vpack.c.b16 %v7696, %v7695
        %v7938 = vpack.c.b16 %v7698, %v7697
        %v7939 = vpack.c.b16 %v7700, %v7699
        %v7940 = vpack.c.b16 %v7702, %v7701
        %v7941 = vpack.c.b16 %v7704, %v7703
        %v7942 = vpack.c.b16 %v7706, %v7705
        %v7943 = vpack.c.b16 %v7708, %v7707
        %v7944 = vpack.c.b16 %v7710, %v7709
        %v7945 = vpack.c.b16 %v7712, %v7711
        %v7946 = vpack.c.b16 %v7714, %v7713
        %v7947 = vpack.c.b16 %v7716, %v7715
        %v7948 = vpack.c.b16 %v7718, %v7717
        %v7949 = vpack.c.b16 %v7720, %v7719
        %v7950 = vpack.c.b16 %v7722, %v7721
        %v7951 = vpack.c.b16 %v7724, %v7723
        %v7952 = vpack.c.b16 %v7726, %v7725
        %v7953 = vpack.c.b16 %v7728, %v7727
        %v7954 = vpack.c.b16 %v7730, %v7729
        %v7955 = vpack.c.b16 %v7732, %v7731
        %v7956 = vpack.c.b16 %v7734, %v7733
        %v7957 = vpack.c.b16 %v7736, %v7735
        %v7958 = vpack.c.b16 %v7738, %v7737
        %v7959 = vpack.c.b16 %v7740, %v7739
        %v7960 = vpack.c.b16 %v7742, %v7741
        %v7961 = vpack.c.b16 %v7744, %v7743
        %v7962 = vpack.c.b16 %v7746, %v7745
        %v7963 = vpack.c.b16 %v7748, %v7747
        %v7964 = vpack.c.b16 %v7750, %v7749
        %v7965 = vpack.c.b16 %v7752, %v7751
        %v7966 = vpack.c.b16 %v7754, %v7753
        %v7967 = vpack.c.b16 %v7756, %v7755
        %v7968 = vpack.c.b16 %v7758, %v7757
        %v7969 = vpack.c.b16 %v7760, %v7759
        %v7970 = vpack.c.b16 %v7762, %v7761
        %v7971 = vpack.c.b16 %v7764, %v7763
        %v7972 = vpack.c.b16 %v7766, %v7765
        %v7973 = vpack.c.b16 %v7768, %v7767
        %v7974 = vpack.c.b16 %v7770, %v7769
        %v7975 = vpack.c.b16 %v7772, %v7771
        %v7976 = vpack.c.b16 %v7774, %v7773
        %v7977 = vpack.c.b16 %v7776, %v7775
        %v7978 = vpack.c.b16 %v7778, %v7777
        %8179 = vmatprep.subr.bf16.mxu0 0
        %8180 = vmatpush1.bf16.msra.mxu0 %v7786
        %8181 = vmatprep.subr.bf16.mxu0 0
        %8182 = vmatpush1.bf16.msra.mxu0 %v7785
        %8183 = vmatprep.subr.bf16.mxu0 0
        %8184 = vmatpush1.bf16.msra.mxu0 %v7784
        %8185 = vmatprep.subr.bf16.mxu0 0
        %8186 = vmatpush1.bf16.msra.mxu0 %v7783
        %8187 = vmatprep.subr.bf16.mxu0 0
        %8188 = vmatpush1.bf16.msra.mxu0 %v7782
        %8189 = vmatprep.subr.bf16.mxu0 0
        %8190 = vmatpush1.bf16.msra.mxu0 %v7781
        %8191 = vmatprep.subr.bf16.mxu0 0
        %8192 = vmatpush1.bf16.msra.mxu0 %v7780
        %8193 = vmatprep.subr.bf16.mxu0 0
        %8194 = vmatpush1.bf16.msra.mxu0 %v7779
        %8195 = vmatprep.subr.bf16.mxu0 0
        %8196 = vmatpush2.bf16.msra.mxu0 %v7794
        %8197 = vmatprep.subr.bf16.mxu0 0
        %8198 = vmatpush2.bf16.msra.mxu0 %v7793
        %8199 = vmatprep.subr.bf16.mxu0 0
        %8200 = vmatpush2.bf16.msra.mxu0 %v7792
        %8201 = vmatprep.subr.bf16.mxu0 0
        %8202 = vmatpush2.bf16.msra.mxu0 %v7791
        %8203 = vmatprep.subr.bf16.mxu0 0
        %8204 = vmatpush2.bf16.msra.mxu0 %v7790
        %8205 = vmatprep.subr.bf16.mxu0 0
        %8206 = vmatpush2.bf16.msra.mxu0 %v7789
        %8207 = vmatprep.subr.bf16.mxu0 0
        %8208 = vmatpush2.bf16.msra.mxu0 %v7788
        %8209 = vmatprep.subr.bf16.mxu0 0
        %8210 = vmatpush2.bf16.msra.mxu0 %v7787
        %8211 = vmatprep.mubr.bf16.mxu0 %v6180
        %8212 = vmatmul.mubr.bf16.gmra.mxu0 %v6179
        %v8213 = vpop.f32.mrf.mxu0
        %v8214 = vadd.f32 0.0, %v8213
        %v8215 = vpop.f32.mrf.mxu0
        %v8216 = vpop.f32.mrf.mxu0
        %v8217 = vadd.f32 0.0, %v8216
        %v8218 = vpop.f32.mrf.mxu0
        %8219 = vmatprep.mubr.bf16.mxu0 %v6205
        %8220 = vmatmul.mubr.bf16.gmra.mxu0 %v6204
        %v8221 = vpop.f32.mrf.mxu0
        %v8222 = vadd.f32 0.0, %v8221
        %v8223 = vpop.f32.mrf.mxu0
        %v8224 = vpop.f32.mrf.mxu0
        %v8225 = vadd.f32 0.0, %v8224
        %v8226 = vpop.f32.mrf.mxu0
        %8227 = vmatprep.mubr.bf16.mxu0 %v6230
        %8228 = vmatmul.mubr.bf16.gmra.mxu0 %v6229
        %v8229 = vpop.f32.mrf.mxu0
        %v8230 = vadd.f32 0.0, %v8229
        %v8231 = vpop.f32.mrf.mxu0
        %v8232 = vpop.f32.mrf.mxu0
        %v8233 = vadd.f32 0.0, %v8232
        %v8234 = vpop.f32.mrf.mxu0
        %8235 = vmatprep.mubr.bf16.mxu0 %v6255
        %8236 = vmatmul.mubr.bf16.gmra.mxu0 %v6254
        %v8237 = vpop.f32.mrf.mxu0
        %v8238 = vadd.f32 0.0, %v8237
        %v8239 = vpop.f32.mrf.mxu0
        %v8240 = vpop.f32.mrf.mxu0
        %v8241 = vadd.f32 0.0, %v8240
        %v8242 = vpop.f32.mrf.mxu0
        %8243 = vmatprep.mubr.bf16.mxu0 %v6280
        %8244 = vmatmul.mubr.bf16.gmra.mxu0 %v6279
        %v8245 = vpop.f32.mrf.mxu0
        %v8246 = vadd.f32 0.0, %v8245
        %v8247 = vpop.f32.mrf.mxu0
        %v8248 = vpop.f32.mrf.mxu0
        %v8249 = vadd.f32 0.0, %v8248
        %v8250 = vpop.f32.mrf.mxu0
        %8251 = vmatprep.mubr.bf16.mxu0 %v6305
        %8252 = vmatmul.mubr.bf16.gmra.mxu0 %v6304
        %v8253 = vpop.f32.mrf.mxu0
        %v8254 = vadd.f32 0.0, %v8253
        %v8255 = vpop.f32.mrf.mxu0
        %v8256 = vpop.f32.mrf.mxu0
        %v8257 = vadd.f32 0.0, %v8256
        %v8258 = vpop.f32.mrf.mxu0
        %8259 = vmatprep.mubr.bf16.mxu0 %v6330
        %8260 = vmatmul.mubr.bf16.gmra.mxu0 %v6329
        %v8261 = vpop.f32.mrf.mxu0
        %v8262 = vadd.f32 0.0, %v8261
        %v8263 = vpop.f32.mrf.mxu0
        %v8264 = vpop.f32.mrf.mxu0
        %v8265 = vadd.f32 0.0, %v8264
        %v8266 = vpop.f32.mrf.mxu0
        %8267 = vmatprep.mubr.bf16.mxu0 %v6355
        %8268 = vmatmul.mubr.bf16.gmra.mxu0 %v6354
        %v8269 = vpop.f32.mrf.mxu0
        %v8270 = vadd.f32 0.0, %v8269
        %v8271 = vpop.f32.mrf.mxu0
        %v8272 = vpop.f32.mrf.mxu0
        %v8273 = vadd.f32 0.0, %v8272
        %v8274 = vpop.f32.mrf.mxu0
        %8275 = vmatprep.mubr.bf16.mxu0 %v6380
        %8276 = vmatmul.mubr.bf16.gmra.mxu0 %v6379
        %v8277 = vpop.f32.mrf.mxu0
        %v8278 = vadd.f32 0.0, %v8277
        %v8279 = vpop.f32.mrf.mxu0
        %v8280 = vpop.f32.mrf.mxu0
        %v8281 = vadd.f32 0.0, %v8280
        %v8282 = vpop.f32.mrf.mxu0
        %8283 = vmatprep.mubr.bf16.mxu0 %v6405
        %8284 = vmatmul.mubr.bf16.gmra.mxu0 %v6404
        %v8285 = vpop.f32.mrf.mxu0
        %v8286 = vadd.f32 0.0, %v8285
        %v8287 = vpop.f32.mrf.mxu0
        %v8288 = vpop.f32.mrf.mxu0
        %v8289 = vadd.f32 0.0, %v8288
        %v8290 = vpop.f32.mrf.mxu0
        %8291 = vmatprep.mubr.bf16.mxu0 %v6430
        %8292 = vmatmul.mubr.bf16.gmra.mxu0 %v6429
        %v8293 = vpop.f32.mrf.mxu0
        %v8294 = vadd.f32 0.0, %v8293
        %v8295 = vpop.f32.mrf.mxu0
        %v8296 = vpop.f32.mrf.mxu0
        %v8297 = vadd.f32 0.0, %v8296
        %v8298 = vpop.f32.mrf.mxu0
        %8299 = vmatprep.mubr.bf16.mxu0 %v6455
        %8300 = vmatmul.mubr.bf16.gmra.mxu0 %v6454
        %v8301 = vpop.f32.mrf.mxu0
        %v8302 = vadd.f32 0.0, %v8301
        %v8303 = vpop.f32.mrf.mxu0
        %v8304 = vpop.f32.mrf.mxu0
        %v8305 = vadd.f32 0.0, %v8304
        %v8306 = vpop.f32.mrf.mxu0
        %8307 = vmatprep.mubr.bf16.mxu0 %v6480
        %8308 = vmatmul.mubr.bf16.gmra.mxu0 %v6479
        %v8309 = vpop.f32.mrf.mxu0
        %v8310 = vadd.f32 0.0, %v8309
        %v8311 = vpop.f32.mrf.mxu0
        %v8312 = vpop.f32.mrf.mxu0
        %v8313 = vadd.f32 0.0, %v8312
        %v8314 = vpop.f32.mrf.mxu0
        %8315 = vmatprep.mubr.bf16.mxu0 %v6505
        %8316 = vmatmul.mubr.bf16.gmra.mxu0 %v6504
        %v8317 = vpop.f32.mrf.mxu0
        %v8318 = vadd.f32 0.0, %v8317
        %v8319 = vpop.f32.mrf.mxu0
        %v8320 = vpop.f32.mrf.mxu0
        %v8321 = vadd.f32 0.0, %v8320
        %v8322 = vpop.f32.mrf.mxu0
        %8323 = vmatprep.mubr.bf16.mxu0 %v6530
        %8324 = vmatmul.mubr.bf16.gmra.mxu0 %v6529
        %v8325 = vpop.f32.mrf.mxu0
        %v8326 = vadd.f32 0.0, %v8325
        %v8327 = vpop.f32.mrf.mxu0
        %v8328 = vpop.f32.mrf.mxu0
        %v8329 = vadd.f32 0.0, %v8328
        %v8330 = vpop.f32.mrf.mxu0
        %8331 = vmatprep.mubr.bf16.mxu0 %v6555
        %8332 = vmatmul.mubr.bf16.gmra.mxu0 %v6554
        %v8333 = vpop.f32.mrf.mxu0
        %v8334 = vadd.f32 0.0, %v8333
        %v8335 = vpop.f32.mrf.mxu0
        %v8336 = vpop.f32.mrf.mxu0
        %v8337 = vadd.f32 0.0, %v8336
        %v8338 = vpop.f32.mrf.mxu0
        %8339 = vdwg.mxu0
        %8340 = vmatprep.subr.bf16.mxu0 0
        %8341 = vmatpush1.bf16.msra.mxu0 %v7802
        %8342 = vmatprep.subr.bf16.mxu0 0
        %8343 = vmatpush1.bf16.msra.mxu0 %v7801
        %8344 = vmatprep.subr.bf16.mxu0 0
        %8345 = vmatpush1.bf16.msra.mxu0 %v7800
        %8346 = vmatprep.subr.bf16.mxu0 0
        %8347 = vmatpush1.bf16.msra.mxu0 %v7799
        %8348 = vmatprep.subr.bf16.mxu0 0
        %8349 = vmatpush1.bf16.msra.mxu0 %v7798
        %8350 = vmatprep.subr.bf16.mxu0 0
        %8351 = vmatpush1.bf16.msra.mxu0 %v7797
        %8352 = vmatprep.subr.bf16.mxu0 0
        %8353 = vmatpush1.bf16.msra.mxu0 %v7796
        %8354 = vmatprep.subr.bf16.mxu0 0
        %8355 = vmatpush1.bf16.msra.mxu0 %v7795
        %8356 = vmatprep.subr.bf16.mxu0 0
        %8357 = vmatpush2.bf16.msra.mxu0 %v7810
        %8358 = vmatprep.subr.bf16.mxu0 0
        %8359 = vmatpush2.bf16.msra.mxu0 %v7809
        %8360 = vmatprep.subr.bf16.mxu0 0
        %8361 = vmatpush2.bf16.msra.mxu0 %v7808
        %8362 = vmatprep.subr.bf16.mxu0 0
        %8363 = vmatpush2.bf16.msra.mxu0 %v7807
        %8364 = vmatprep.subr.bf16.mxu0 0
        %8365 = vmatpush2.bf16.msra.mxu0 %v7806
        %8366 = vmatprep.subr.bf16.mxu0 0
        %8367 = vmatpush2.bf16.msra.mxu0 %v7805
        %8368 = vmatprep.subr.bf16.mxu0 0
        %8369 = vmatpush2.bf16.msra.mxu0 %v7804
        %8370 = vmatprep.subr.bf16.mxu0 0
        %8371 = vmatpush2.bf16.msra.mxu0 %v7803
        %8372 = vmatprep.mubr.bf16.mxu0 %v6182
        %8373 = vmatmul.mubr.bf16.gmra.mxu0 %v6181
        %v8374 = vpop.f32.mrf.mxu0
        %v8375 = vadd.f32 %v8214, %v8374
        %v8376 = vpop.f32.mrf.mxu0
        %v8377 = vpop.f32.mrf.mxu0
        %v8378 = vadd.f32 %v8217, %v8377
        %v8379 = vpop.f32.mrf.mxu0
        %8380 = vmatprep.mubr.bf16.mxu0 %v6207
        %8381 = vmatmul.mubr.bf16.gmra.mxu0 %v6206
        %v8382 = vpop.f32.mrf.mxu0
        %v8383 = vadd.f32 %v8222, %v8382
        %v8384 = vpop.f32.mrf.mxu0
        %v8385 = vpop.f32.mrf.mxu0
        %v8386 = vadd.f32 %v8225, %v8385
        %v8387 = vpop.f32.mrf.mxu0
        %8388 = vmatprep.mubr.bf16.mxu0 %v6232
        %8389 = vmatmul.mubr.bf16.gmra.mxu0 %v6231
        %v8390 = vpop.f32.mrf.mxu0
        %v8391 = vadd.f32 %v8230, %v8390
        %v8392 = vpop.f32.mrf.mxu0
        %v8393 = vpop.f32.mrf.mxu0
        %v8394 = vadd.f32 %v8233, %v8393
        %v8395 = vpop.f32.mrf.mxu0
        %8396 = vmatprep.mubr.bf16.mxu0 %v6257
        %8397 = vmatmul.mubr.bf16.gmra.mxu0 %v6256
        %v8398 = vpop.f32.mrf.mxu0
        %v8399 = vadd.f32 %v8238, %v8398
        %v8400 = vpop.f32.mrf.mxu0
        %v8401 = vpop.f32.mrf.mxu0
        %v8402 = vadd.f32 %v8241, %v8401
        %v8403 = vpop.f32.mrf.mxu0
        %8404 = vmatprep.mubr.bf16.mxu0 %v6282
        %8405 = vmatmul.mubr.bf16.gmra.mxu0 %v6281
        %v8406 = vpop.f32.mrf.mxu0
        %v8407 = vadd.f32 %v8246, %v8406
        %v8408 = vpop.f32.mrf.mxu0
        %v8409 = vpop.f32.mrf.mxu0
        %v8410 = vadd.f32 %v8249, %v8409
        %v8411 = vpop.f32.mrf.mxu0
        %8412 = vmatprep.mubr.bf16.mxu0 %v6307
        %8413 = vmatmul.mubr.bf16.gmra.mxu0 %v6306
        %v8414 = vpop.f32.mrf.mxu0
        %v8415 = vadd.f32 %v8254, %v8414
        %v8416 = vpop.f32.mrf.mxu0
        %v8417 = vpop.f32.mrf.mxu0
        %v8418 = vadd.f32 %v8257, %v8417
        %v8419 = vpop.f32.mrf.mxu0
        %8420 = vmatprep.mubr.bf16.mxu0 %v6332
        %8421 = vmatmul.mubr.bf16.gmra.mxu0 %v6331
        %v8422 = vpop.f32.mrf.mxu0
        %v8423 = vadd.f32 %v8262, %v8422
        %v8424 = vpop.f32.mrf.mxu0
        %v8425 = vpop.f32.mrf.mxu0
        %v8426 = vadd.f32 %v8265, %v8425
        %v8427 = vpop.f32.mrf.mxu0
        %8428 = vmatprep.mubr.bf16.mxu0 %v6357
        %8429 = vmatmul.mubr.bf16.gmra.mxu0 %v6356
        %v8430 = vpop.f32.mrf.mxu0
        %v8431 = vadd.f32 %v8270, %v8430
        %v8432 = vpop.f32.mrf.mxu0
        %v8433 = vpop.f32.mrf.mxu0
        %v8434 = vadd.f32 %v8273, %v8433
        %v8435 = vpop.f32.mrf.mxu0
        %8436 = vmatprep.mubr.bf16.mxu0 %v6382
        %8437 = vmatmul.mubr.bf16.gmra.mxu0 %v6381
        %v8438 = vpop.f32.mrf.mxu0
        %v8439 = vadd.f32 %v8278, %v8438
        %v8440 = vpop.f32.mrf.mxu0
        %v8441 = vpop.f32.mrf.mxu0
        %v8442 = vadd.f32 %v8281, %v8441
        %v8443 = vpop.f32.mrf.mxu0
        %8444 = vmatprep.mubr.bf16.mxu0 %v6407
        %8445 = vmatmul.mubr.bf16.gmra.mxu0 %v6406
        %v8446 = vpop.f32.mrf.mxu0
        %v8447 = vadd.f32 %v8286, %v8446
        %v8448 = vpop.f32.mrf.mxu0
        %v8449 = vpop.f32.mrf.mxu0
        %v8450 = vadd.f32 %v8289, %v8449
        %v8451 = vpop.f32.mrf.mxu0
        %8452 = vmatprep.mubr.bf16.mxu0 %v6432
        %8453 = vmatmul.mubr.bf16.gmra.mxu0 %v6431
        %v8454 = vpop.f32.mrf.mxu0
        %v8455 = vadd.f32 %v8294, %v8454
        %v8456 = vpop.f32.mrf.mxu0
        %v8457 = vpop.f32.mrf.mxu0
        %v8458 = vadd.f32 %v8297, %v8457
        %v8459 = vpop.f32.mrf.mxu0
        %8460 = vmatprep.mubr.bf16.mxu0 %v6457
        %8461 = vmatmul.mubr.bf16.gmra.mxu0 %v6456
        %v8462 = vpop.f32.mrf.mxu0
        %v8463 = vadd.f32 %v8302, %v8462
        %v8464 = vpop.f32.mrf.mxu0
        %v8465 = vpop.f32.mrf.mxu0
        %v8466 = vadd.f32 %v8305, %v8465
        %v8467 = vpop.f32.mrf.mxu0
        %8468 = vmatprep.mubr.bf16.mxu0 %v6482
        %8469 = vmatmul.mubr.bf16.gmra.mxu0 %v6481
        %v8470 = vpop.f32.mrf.mxu0
        %v8471 = vadd.f32 %v8310, %v8470
        %v8472 = vpop.f32.mrf.mxu0
        %v8473 = vpop.f32.mrf.mxu0
        %v8474 = vadd.f32 %v8313, %v8473
        %v8475 = vpop.f32.mrf.mxu0
        %8476 = vmatprep.mubr.bf16.mxu0 %v6507
        %8477 = vmatmul.mubr.bf16.gmra.mxu0 %v6506
        %v8478 = vpop.f32.mrf.mxu0
        %v8479 = vadd.f32 %v8318, %v8478
        %v8480 = vpop.f32.mrf.mxu0
        %v8481 = vpop.f32.mrf.mxu0
        %v8482 = vadd.f32 %v8321, %v8481
        %v8483 = vpop.f32.mrf.mxu0
        %8484 = vmatprep.mubr.bf16.mxu0 %v6532
        %8485 = vmatmul.mubr.bf16.gmra.mxu0 %v6531
        %v8486 = vpop.f32.mrf.mxu0
        %v8487 = vadd.f32 %v8326, %v8486
        %v8488 = vpop.f32.mrf.mxu0
        %v8489 = vpop.f32.mrf.mxu0
        %v8490 = vadd.f32 %v8329, %v8489
        %v8491 = vpop.f32.mrf.mxu0
        %8492 = vmatprep.mubr.bf16.mxu0 %v6557
        %8493 = vmatmul.mubr.bf16.gmra.mxu0 %v6556
        %v8494 = vpop.f32.mrf.mxu0
        %v8495 = vadd.f32 %v8334, %v8494
        %v8496 = vpop.f32.mrf.mxu0
        %v8497 = vpop.f32.mrf.mxu0
        %v8498 = vadd.f32 %v8337, %v8497
        %v8499 = vpop.f32.mrf.mxu0
        %8500 = vdwg.mxu0
        %8501 = vmatprep.subr.bf16.mxu0 0
        %8502 = vmatpush1.bf16.msra.mxu0 %v7818
        %8503 = vmatprep.subr.bf16.mxu0 0
        %8504 = vmatpush1.bf16.msra.mxu0 %v7817
        %8505 = vmatprep.subr.bf16.mxu0 0
        %8506 = vmatpush1.bf16.msra.mxu0 %v7816
        %8507 = vmatprep.subr.bf16.mxu0 0
        %8508 = vmatpush1.bf16.msra.mxu0 %v7815
        %8509 = vmatprep.subr.bf16.mxu0 0
        %8510 = vmatpush1.bf16.msra.mxu0 %v7814
        %8511 = vmatprep.subr.bf16.mxu0 0
        %8512 = vmatpush1.bf16.msra.mxu0 %v7813
        %8513 = vmatprep.subr.bf16.mxu0 0
        %8514 = vmatpush1.bf16.msra.mxu0 %v7812
        %8515 = vmatprep.subr.bf16.mxu0 0
        %8516 = vmatpush1.bf16.msra.mxu0 %v7811
        %8517 = vmatprep.subr.bf16.mxu0 0
        %8518 = vmatpush2.bf16.msra.mxu0 %v7826
        %8519 = vmatprep.subr.bf16.mxu0 0
        %8520 = vmatpush2.bf16.msra.mxu0 %v7825
        %8521 = vmatprep.subr.bf16.mxu0 0
        %8522 = vmatpush2.bf16.msra.mxu0 %v7824
        %8523 = vmatprep.subr.bf16.mxu0 0
        %8524 = vmatpush2.bf16.msra.mxu0 %v7823
        %8525 = vmatprep.subr.bf16.mxu0 0
        %8526 = vmatpush2.bf16.msra.mxu0 %v7822
        %8527 = vmatprep.subr.bf16.mxu0 0
        %8528 = vmatpush2.bf16.msra.mxu0 %v7821
        %8529 = vmatprep.subr.bf16.mxu0 0
        %8530 = vmatpush2.bf16.msra.mxu0 %v7820
        %8531 = vmatprep.subr.bf16.mxu0 0
        %8532 = vmatpush2.bf16.msra.mxu0 %v7819
        %8533 = vmatprep.mubr.bf16.mxu0 %v6184
        %8534 = vmatmul.mubr.bf16.gmra.mxu0 %v6183
        %v8535 = vpop.f32.mrf.mxu0
        %v8536 = vadd.f32 %v8375, %v8535
        %v8537 = vpop.f32.mrf.mxu0
        %v8538 = vpop.f32.mrf.mxu0
        %v8539 = vadd.f32 %v8378, %v8538
        %v8540 = vpop.f32.mrf.mxu0
        %8541 = vmatprep.mubr.bf16.mxu0 %v6209
        %8542 = vmatmul.mubr.bf16.gmra.mxu0 %v6208
        %v8543 = vpop.f32.mrf.mxu0
        %v8544 = vadd.f32 %v8383, %v8543
        %v8545 = vpop.f32.mrf.mxu0
        %v8546 = vpop.f32.mrf.mxu0
        %v8547 = vadd.f32 %v8386, %v8546
        %v8548 = vpop.f32.mrf.mxu0
        %8549 = vmatprep.mubr.bf16.mxu0 %v6234
        %8550 = vmatmul.mubr.bf16.gmra.mxu0 %v6233
        %v8551 = vpop.f32.mrf.mxu0
        %v8552 = vadd.f32 %v8391, %v8551
        %v8553 = vpop.f32.mrf.mxu0
        %v8554 = vpop.f32.mrf.mxu0
        %v8555 = vadd.f32 %v8394, %v8554
        %v8556 = vpop.f32.mrf.mxu0
        %8557 = vmatprep.mubr.bf16.mxu0 %v6259
        %8558 = vmatmul.mubr.bf16.gmra.mxu0 %v6258
        %v8559 = vpop.f32.mrf.mxu0
        %v8560 = vadd.f32 %v8399, %v8559
        %v8561 = vpop.f32.mrf.mxu0
        %v8562 = vpop.f32.mrf.mxu0
        %v8563 = vadd.f32 %v8402, %v8562
        %v8564 = vpop.f32.mrf.mxu0
        %8565 = vmatprep.mubr.bf16.mxu0 %v6284
        %8566 = vmatmul.mubr.bf16.gmra.mxu0 %v6283
        %v8567 = vpop.f32.mrf.mxu0
        %v8568 = vadd.f32 %v8407, %v8567
        %v8569 = vpop.f32.mrf.mxu0
        %v8570 = vpop.f32.mrf.mxu0
        %v8571 = vadd.f32 %v8410, %v8570
        %v8572 = vpop.f32.mrf.mxu0
        %8573 = vmatprep.mubr.bf16.mxu0 %v6309
        %8574 = vmatmul.mubr.bf16.gmra.mxu0 %v6308
        %v8575 = vpop.f32.mrf.mxu0
        %v8576 = vadd.f32 %v8415, %v8575
        %v8577 = vpop.f32.mrf.mxu0
        %v8578 = vpop.f32.mrf.mxu0
        %v8579 = vadd.f32 %v8418, %v8578
        %v8580 = vpop.f32.mrf.mxu0
        %8581 = vmatprep.mubr.bf16.mxu0 %v6334
        %8582 = vmatmul.mubr.bf16.gmra.mxu0 %v6333
        %v8583 = vpop.f32.mrf.mxu0
        %v8584 = vadd.f32 %v8423, %v8583
        %v8585 = vpop.f32.mrf.mxu0
        %v8586 = vpop.f32.mrf.mxu0
        %v8587 = vadd.f32 %v8426, %v8586
        %v8588 = vpop.f32.mrf.mxu0
        %8589 = vmatprep.mubr.bf16.mxu0 %v6359
        %8590 = vmatmul.mubr.bf16.gmra.mxu0 %v6358
        %v8591 = vpop.f32.mrf.mxu0
        %v8592 = vadd.f32 %v8431, %v8591
        %v8593 = vpop.f32.mrf.mxu0
        %v8594 = vpop.f32.mrf.mxu0
        %v8595 = vadd.f32 %v8434, %v8594
        %v8596 = vpop.f32.mrf.mxu0
        %8597 = vmatprep.mubr.bf16.mxu0 %v6384
        %8598 = vmatmul.mubr.bf16.gmra.mxu0 %v6383
        %v8599 = vpop.f32.mrf.mxu0
        %v8600 = vadd.f32 %v8439, %v8599
        %v8601 = vpop.f32.mrf.mxu0
        %v8602 = vpop.f32.mrf.mxu0
        %v8603 = vadd.f32 %v8442, %v8602
        %v8604 = vpop.f32.mrf.mxu0
        %8605 = vmatprep.mubr.bf16.mxu0 %v6409
        %8606 = vmatmul.mubr.bf16.gmra.mxu0 %v6408
        %v8607 = vpop.f32.mrf.mxu0
        %v8608 = vadd.f32 %v8447, %v8607
        %v8609 = vpop.f32.mrf.mxu0
        %v8610 = vpop.f32.mrf.mxu0
        %v8611 = vadd.f32 %v8450, %v8610
        %v8612 = vpop.f32.mrf.mxu0
        %8613 = vmatprep.mubr.bf16.mxu0 %v6434
        %8614 = vmatmul.mubr.bf16.gmra.mxu0 %v6433
        %v8615 = vpop.f32.mrf.mxu0
        %v8616 = vadd.f32 %v8455, %v8615
        %v8617 = vpop.f32.mrf.mxu0
        %v8618 = vpop.f32.mrf.mxu0
        %v8619 = vadd.f32 %v8458, %v8618
        %v8620 = vpop.f32.mrf.mxu0
        %8621 = vmatprep.mubr.bf16.mxu0 %v6459
        %8622 = vmatmul.mubr.bf16.gmra.mxu0 %v6458
        %v8623 = vpop.f32.mrf.mxu0
        %v8624 = vadd.f32 %v8463, %v8623
        %v8625 = vpop.f32.mrf.mxu0
        %v8626 = vpop.f32.mrf.mxu0
        %v8627 = vadd.f32 %v8466, %v8626
        %v8628 = vpop.f32.mrf.mxu0
        %8629 = vmatprep.mubr.bf16.mxu0 %v6484
        %8630 = vmatmul.mubr.bf16.gmra.mxu0 %v6483
        %v8631 = vpop.f32.mrf.mxu0
        %v8632 = vadd.f32 %v8471, %v8631
        %v8633 = vpop.f32.mrf.mxu0
        %v8634 = vpop.f32.mrf.mxu0
        %v8635 = vadd.f32 %v8474, %v8634
        %v8636 = vpop.f32.mrf.mxu0
        %8637 = vmatprep.mubr.bf16.mxu0 %v6509
        %8638 = vmatmul.mubr.bf16.gmra.mxu0 %v6508
        %v8639 = vpop.f32.mrf.mxu0
        %v8640 = vadd.f32 %v8479, %v8639
        %v8641 = vpop.f32.mrf.mxu0
        %v8642 = vpop.f32.mrf.mxu0
        %v8643 = vadd.f32 %v8482, %v8642
        %v8644 = vpop.f32.mrf.mxu0
        %8645 = vmatprep.mubr.bf16.mxu0 %v6534
        %8646 = vmatmul.mubr.bf16.gmra.mxu0 %v6533
        %v8647 = vpop.f32.mrf.mxu0
        %v8648 = vadd.f32 %v8487, %v8647
        %v8649 = vpop.f32.mrf.mxu0
        %v8650 = vpop.f32.mrf.mxu0
        %v8651 = vadd.f32 %v8490, %v8650
        %v8652 = vpop.f32.mrf.mxu0
        %8653 = vmatprep.mubr.bf16.mxu0 %v6559
        %8654 = vmatmul.mubr.bf16.gmra.mxu0 %v6558
        %v8655 = vpop.f32.mrf.mxu0
        %v8656 = vadd.f32 %v8495, %v8655
        %v8657 = vpop.f32.mrf.mxu0
        %v8658 = vpop.f32.mrf.mxu0
        %v8659 = vadd.f32 %v8498, %v8658
        %v8660 = vpop.f32.mrf.mxu0
        %8661 = vdwg.mxu0
        %8662 = vmatprep.subr.bf16.mxu0 0
        %8663 = vmatpush1.bf16.msra.mxu0 %v7834
        %8664 = vmatprep.subr.bf16.mxu0 0
        %8665 = vmatpush1.bf16.msra.mxu0 %v7833
        %8666 = vmatprep.subr.bf16.mxu0 0
        %8667 = vmatpush1.bf16.msra.mxu0 %v7832
        %8668 = vmatprep.subr.bf16.mxu0 0
        %8669 = vmatpush1.bf16.msra.mxu0 %v7831
        %8670 = vmatprep.subr.bf16.mxu0 0
        %8671 = vmatpush1.bf16.msra.mxu0 %v7830
        %8672 = vmatprep.subr.bf16.mxu0 0
        %8673 = vmatpush1.bf16.msra.mxu0 %v7829
        %8674 = vmatprep.subr.bf16.mxu0 0
        %8675 = vmatpush1.bf16.msra.mxu0 %v7828
        %8676 = vmatprep.subr.bf16.mxu0 0
        %8677 = vmatpush1.bf16.msra.mxu0 %v7827
        %8678 = vmatprep.subr.bf16.mxu0 0
        %8679 = vmatpush2.bf16.msra.mxu0 %v7842
        %8680 = vmatprep.subr.bf16.mxu0 0
        %8681 = vmatpush2.bf16.msra.mxu0 %v7841
        %8682 = vmatprep.subr.bf16.mxu0 0
        %8683 = vmatpush2.bf16.msra.mxu0 %v7840
        %8684 = vmatprep.subr.bf16.mxu0 0
        %8685 = vmatpush2.bf16.msra.mxu0 %v7839
        %8686 = vmatprep.subr.bf16.mxu0 0
        %8687 = vmatpush2.bf16.msra.mxu0 %v7838
        %8688 = vmatprep.subr.bf16.mxu0 0
        %8689 = vmatpush2.bf16.msra.mxu0 %v7837
        %8690 = vmatprep.subr.bf16.mxu0 0
        %8691 = vmatpush2.bf16.msra.mxu0 %v7836
        %8692 = vmatprep.subr.bf16.mxu0 0
        %8693 = vmatpush2.bf16.msra.mxu0 %v7835
        %8694 = vmatprep.mubr.bf16.mxu0 %v6186
        %8695 = vmatmul.mubr.bf16.gmra.mxu0 %v6185
        %v8696 = vpop.f32.mrf.mxu0
        %v8697 = vadd.f32 %v8536, %v8696
        %v8698 = vpop.f32.mrf.mxu0
        %v8699 = vpop.f32.mrf.mxu0
        %v8700 = vadd.f32 %v8539, %v8699
        %v8701 = vpop.f32.mrf.mxu0
        %8702 = vmatprep.mubr.bf16.mxu0 %v6211
        %8703 = vmatmul.mubr.bf16.gmra.mxu0 %v6210
        %v8704 = vpop.f32.mrf.mxu0
        %v8705 = vadd.f32 %v8544, %v8704
        %v8706 = vpop.f32.mrf.mxu0
        %v8707 = vpop.f32.mrf.mxu0
        %v8708 = vadd.f32 %v8547, %v8707
        %v8709 = vpop.f32.mrf.mxu0
        %8710 = vmatprep.mubr.bf16.mxu0 %v6236
        %8711 = vmatmul.mubr.bf16.gmra.mxu0 %v6235
        %v8712 = vpop.f32.mrf.mxu0
        %v8713 = vadd.f32 %v8552, %v8712
        %v8714 = vpop.f32.mrf.mxu0
        %v8715 = vpop.f32.mrf.mxu0
        %v8716 = vadd.f32 %v8555, %v8715
        %v8717 = vpop.f32.mrf.mxu0
        %8718 = vmatprep.mubr.bf16.mxu0 %v6261
        %8719 = vmatmul.mubr.bf16.gmra.mxu0 %v6260
        %v8720 = vpop.f32.mrf.mxu0
        %v8721 = vadd.f32 %v8560, %v8720
        %v8722 = vpop.f32.mrf.mxu0
        %v8723 = vpop.f32.mrf.mxu0
        %v8724 = vadd.f32 %v8563, %v8723
        %v8725 = vpop.f32.mrf.mxu0
        %8726 = vmatprep.mubr.bf16.mxu0 %v6286
        %8727 = vmatmul.mubr.bf16.gmra.mxu0 %v6285
        %v8728 = vpop.f32.mrf.mxu0
        %v8729 = vadd.f32 %v8568, %v8728
        %v8730 = vpop.f32.mrf.mxu0
        %v8731 = vpop.f32.mrf.mxu0
        %v8732 = vadd.f32 %v8571, %v8731
        %v8733 = vpop.f32.mrf.mxu0
        %8734 = vmatprep.mubr.bf16.mxu0 %v6311
        %8735 = vmatmul.mubr.bf16.gmra.mxu0 %v6310
        %v8736 = vpop.f32.mrf.mxu0
        %v8737 = vadd.f32 %v8576, %v8736
        %v8738 = vpop.f32.mrf.mxu0
        %v8739 = vpop.f32.mrf.mxu0
        %v8740 = vadd.f32 %v8579, %v8739
        %v8741 = vpop.f32.mrf.mxu0
        %8742 = vmatprep.mubr.bf16.mxu0 %v6336
        %8743 = vmatmul.mubr.bf16.gmra.mxu0 %v6335
        %v8744 = vpop.f32.mrf.mxu0
        %v8745 = vadd.f32 %v8584, %v8744
        %v8746 = vpop.f32.mrf.mxu0
        %v8747 = vpop.f32.mrf.mxu0
        %v8748 = vadd.f32 %v8587, %v8747
        %v8749 = vpop.f32.mrf.mxu0
        %8750 = vmatprep.mubr.bf16.mxu0 %v6361
        %8751 = vmatmul.mubr.bf16.gmra.mxu0 %v6360
        %v8752 = vpop.f32.mrf.mxu0
        %v8753 = vadd.f32 %v8592, %v8752
        %v8754 = vpop.f32.mrf.mxu0
        %v8755 = vpop.f32.mrf.mxu0
        %v8756 = vadd.f32 %v8595, %v8755
        %v8757 = vpop.f32.mrf.mxu0
        %8758 = vmatprep.mubr.bf16.mxu0 %v6386
        %8759 = vmatmul.mubr.bf16.gmra.mxu0 %v6385
        %v8760 = vpop.f32.mrf.mxu0
        %v8761 = vadd.f32 %v8600, %v8760
        %v8762 = vpop.f32.mrf.mxu0
        %v8763 = vpop.f32.mrf.mxu0
        %v8764 = vadd.f32 %v8603, %v8763
        %v8765 = vpop.f32.mrf.mxu0
        %8766 = vmatprep.mubr.bf16.mxu0 %v6411
        %8767 = vmatmul.mubr.bf16.gmra.mxu0 %v6410
        %v8768 = vpop.f32.mrf.mxu0
        %v8769 = vadd.f32 %v8608, %v8768
        %v8770 = vpop.f32.mrf.mxu0
        %v8771 = vpop.f32.mrf.mxu0
        %v8772 = vadd.f32 %v8611, %v8771
        %v8773 = vpop.f32.mrf.mxu0
        %8774 = vmatprep.mubr.bf16.mxu0 %v6436
        %8775 = vmatmul.mubr.bf16.gmra.mxu0 %v6435
        %v8776 = vpop.f32.mrf.mxu0
        %v8777 = vadd.f32 %v8616, %v8776
        %v8778 = vpop.f32.mrf.mxu0
        %v8779 = vpop.f32.mrf.mxu0
        %v8780 = vadd.f32 %v8619, %v8779
        %v8781 = vpop.f32.mrf.mxu0
        %8782 = vmatprep.mubr.bf16.mxu0 %v6461
        %8783 = vmatmul.mubr.bf16.gmra.mxu0 %v6460
        %v8784 = vpop.f32.mrf.mxu0
        %v8785 = vadd.f32 %v8624, %v8784
        %v8786 = vpop.f32.mrf.mxu0
        %v8787 = vpop.f32.mrf.mxu0
        %v8788 = vadd.f32 %v8627, %v8787
        %v8789 = vpop.f32.mrf.mxu0
        %8790 = vmatprep.mubr.bf16.mxu0 %v6486
        %8791 = vmatmul.mubr.bf16.gmra.mxu0 %v6485
        %v8792 = vpop.f32.mrf.mxu0
        %v8793 = vadd.f32 %v8632, %v8792
        %v8794 = vpop.f32.mrf.mxu0
        %v8795 = vpop.f32.mrf.mxu0
        %v8796 = vadd.f32 %v8635, %v8795
        %v8797 = vpop.f32.mrf.mxu0
        %8798 = vmatprep.mubr.bf16.mxu0 %v6511
        %8799 = vmatmul.mubr.bf16.gmra.mxu0 %v6510
        %v8800 = vpop.f32.mrf.mxu0
        %v8801 = vadd.f32 %v8640, %v8800
        %v8802 = vpop.f32.mrf.mxu0
        %v8803 = vpop.f32.mrf.mxu0
        %v8804 = vadd.f32 %v8643, %v8803
        %v8805 = vpop.f32.mrf.mxu0
        %8806 = vmatprep.mubr.bf16.mxu0 %v6536
        %8807 = vmatmul.mubr.bf16.gmra.mxu0 %v6535
        %v8808 = vpop.f32.mrf.mxu0
        %v8809 = vadd.f32 %v8648, %v8808
        %v8810 = vpop.f32.mrf.mxu0
        %v8811 = vpop.f32.mrf.mxu0
        %v8812 = vadd.f32 %v8651, %v8811
        %v8813 = vpop.f32.mrf.mxu0
        %8814 = vmatprep.mubr.bf16.mxu0 %v6561
        %8815 = vmatmul.mubr.bf16.gmra.mxu0 %v6560
        %v8816 = vpop.f32.mrf.mxu0
        %v8817 = vadd.f32 %v8656, %v8816
        %v8818 = vpop.f32.mrf.mxu0
        %v8819 = vpop.f32.mrf.mxu0
        %v8820 = vadd.f32 %v8659, %v8819
        %v8821 = vpop.f32.mrf.mxu0
        %8822 = vdwg.mxu0
        %8823 = vmatprep.subr.bf16.mxu0 0
        %8824 = vmatpush1.bf16.msra.mxu0 %v7850
        %8825 = vmatprep.subr.bf16.mxu0 0
        %8826 = vmatpush1.bf16.msra.mxu0 %v7849
        %8827 = vmatprep.subr.bf16.mxu0 0
        %8828 = vmatpush1.bf16.msra.mxu0 %v7848
        %8829 = vmatprep.subr.bf16.mxu0 0
        %8830 = vmatpush1.bf16.msra.mxu0 %v7847
        %8831 = vmatprep.subr.bf16.mxu0 0
        %8832 = vmatpush1.bf16.msra.mxu0 %v7846
        %8833 = vmatprep.subr.bf16.mxu0 0
        %8834 = vmatpush1.bf16.msra.mxu0 %v7845
        %8835 = vmatprep.subr.bf16.mxu0 0
        %8836 = vmatpush1.bf16.msra.mxu0 %v7844
        %8837 = vmatprep.subr.bf16.mxu0 0
        %8838 = vmatpush1.bf16.msra.mxu0 %v7843
        %8839 = vmatprep.subr.bf16.mxu0 0
        %8840 = vmatpush2.bf16.msra.mxu0 %v7858
        %8841 = vmatprep.subr.bf16.mxu0 0
        %8842 = vmatpush2.bf16.msra.mxu0 %v7857
        %8843 = vmatprep.subr.bf16.mxu0 0
        %8844 = vmatpush2.bf16.msra.mxu0 %v7856
        %8845 = vmatprep.subr.bf16.mxu0 0
        %8846 = vmatpush2.bf16.msra.mxu0 %v7855
        %8847 = vmatprep.subr.bf16.mxu0 0
        %8848 = vmatpush2.bf16.msra.mxu0 %v7854
        %8849 = vmatprep.subr.bf16.mxu0 0
        %8850 = vmatpush2.bf16.msra.mxu0 %v7853
        %8851 = vmatprep.subr.bf16.mxu0 0
        %8852 = vmatpush2.bf16.msra.mxu0 %v7852
        %8853 = vmatprep.subr.bf16.mxu0 0
        %8854 = vmatpush2.bf16.msra.mxu0 %v7851
        %8855 = vmatprep.mubr.bf16.mxu0 %v6188
        %8856 = vmatmul.mubr.bf16.gmra.mxu0 %v6187
        %v8857 = vpop.f32.mrf.mxu0
        %v8858 = vadd.f32 %v8697, %v8857
        %v8859 = vpop.f32.mrf.mxu0
        %v8860 = vpop.f32.mrf.mxu0
        %v8861 = vadd.f32 %v8700, %v8860
        %v8862 = vpop.f32.mrf.mxu0
        %8863 = vmatprep.mubr.bf16.mxu0 %v6213
        %8864 = vmatmul.mubr.bf16.gmra.mxu0 %v6212
        %v8865 = vpop.f32.mrf.mxu0
        %v8866 = vadd.f32 %v8705, %v8865
        %v8867 = vpop.f32.mrf.mxu0
        %v8868 = vpop.f32.mrf.mxu0
        %v8869 = vadd.f32 %v8708, %v8868
        %v8870 = vpop.f32.mrf.mxu0
        %8871 = vmatprep.mubr.bf16.mxu0 %v6238
        %8872 = vmatmul.mubr.bf16.gmra.mxu0 %v6237
        %v8873 = vpop.f32.mrf.mxu0
        %v8874 = vadd.f32 %v8713, %v8873
        %v8875 = vpop.f32.mrf.mxu0
        %v8876 = vpop.f32.mrf.mxu0
        %v8877 = vadd.f32 %v8716, %v8876
        %v8878 = vpop.f32.mrf.mxu0
        %8879 = vmatprep.mubr.bf16.mxu0 %v6263
        %8880 = vmatmul.mubr.bf16.gmra.mxu0 %v6262
        %v8881 = vpop.f32.mrf.mxu0
        %v8882 = vadd.f32 %v8721, %v8881
        %v8883 = vpop.f32.mrf.mxu0
        %v8884 = vpop.f32.mrf.mxu0
        %v8885 = vadd.f32 %v8724, %v8884
        %v8886 = vpop.f32.mrf.mxu0
        %8887 = vmatprep.mubr.bf16.mxu0 %v6288
        %8888 = vmatmul.mubr.bf16.gmra.mxu0 %v6287
        %v8889 = vpop.f32.mrf.mxu0
        %v8890 = vadd.f32 %v8729, %v8889
        %v8891 = vpop.f32.mrf.mxu0
        %v8892 = vpop.f32.mrf.mxu0
        %v8893 = vadd.f32 %v8732, %v8892
        %v8894 = vpop.f32.mrf.mxu0
        %8895 = vmatprep.mubr.bf16.mxu0 %v6313
        %8896 = vmatmul.mubr.bf16.gmra.mxu0 %v6312
        %v8897 = vpop.f32.mrf.mxu0
        %v8898 = vadd.f32 %v8737, %v8897
        %v8899 = vpop.f32.mrf.mxu0
        %v8900 = vpop.f32.mrf.mxu0
        %v8901 = vadd.f32 %v8740, %v8900
        %v8902 = vpop.f32.mrf.mxu0
        %8903 = vmatprep.mubr.bf16.mxu0 %v6338
        %8904 = vmatmul.mubr.bf16.gmra.mxu0 %v6337
        %v8905 = vpop.f32.mrf.mxu0
        %v8906 = vadd.f32 %v8745, %v8905
        %v8907 = vpop.f32.mrf.mxu0
        %v8908 = vpop.f32.mrf.mxu0
        %v8909 = vadd.f32 %v8748, %v8908
        %v8910 = vpop.f32.mrf.mxu0
        %8911 = vmatprep.mubr.bf16.mxu0 %v6363
        %8912 = vmatmul.mubr.bf16.gmra.mxu0 %v6362
        %v8913 = vpop.f32.mrf.mxu0
        %v8914 = vadd.f32 %v8753, %v8913
        %v8915 = vpop.f32.mrf.mxu0
        %v8916 = vpop.f32.mrf.mxu0
        %v8917 = vadd.f32 %v8756, %v8916
        %v8918 = vpop.f32.mrf.mxu0
        %8919 = vmatprep.mubr.bf16.mxu0 %v6388
        %8920 = vmatmul.mubr.bf16.gmra.mxu0 %v6387
        %v8921 = vpop.f32.mrf.mxu0
        %v8922 = vadd.f32 %v8761, %v8921
        %v8923 = vpop.f32.mrf.mxu0
        %v8924 = vpop.f32.mrf.mxu0
        %v8925 = vadd.f32 %v8764, %v8924
        %v8926 = vpop.f32.mrf.mxu0
        %8927 = vmatprep.mubr.bf16.mxu0 %v6413
        %8928 = vmatmul.mubr.bf16.gmra.mxu0 %v6412
        %v8929 = vpop.f32.mrf.mxu0
        %v8930 = vadd.f32 %v8769, %v8929
        %v8931 = vpop.f32.mrf.mxu0
        %v8932 = vpop.f32.mrf.mxu0
        %v8933 = vadd.f32 %v8772, %v8932
        %v8934 = vpop.f32.mrf.mxu0
        %8935 = vmatprep.mubr.bf16.mxu0 %v6438
        %8936 = vmatmul.mubr.bf16.gmra.mxu0 %v6437
        %v8937 = vpop.f32.mrf.mxu0
        %v8938 = vadd.f32 %v8777, %v8937
        %v8939 = vpop.f32.mrf.mxu0
        %v8940 = vpop.f32.mrf.mxu0
        %v8941 = vadd.f32 %v8780, %v8940
        %v8942 = vpop.f32.mrf.mxu0
        %8943 = vmatprep.mubr.bf16.mxu0 %v6463
        %8944 = vmatmul.mubr.bf16.gmra.mxu0 %v6462
        %v8945 = vpop.f32.mrf.mxu0
        %v8946 = vadd.f32 %v8785, %v8945
        %v8947 = vpop.f32.mrf.mxu0
        %v8948 = vpop.f32.mrf.mxu0
        %v8949 = vadd.f32 %v8788, %v8948
        %v8950 = vpop.f32.mrf.mxu0
        %8951 = vmatprep.mubr.bf16.mxu0 %v6488
        %8952 = vmatmul.mubr.bf16.gmra.mxu0 %v6487
        %v8953 = vpop.f32.mrf.mxu0
        %v8954 = vadd.f32 %v8793, %v8953
        %v8955 = vpop.f32.mrf.mxu0
        %v8956 = vpop.f32.mrf.mxu0
        %v8957 = vadd.f32 %v8796, %v8956
        %v8958 = vpop.f32.mrf.mxu0
        %8959 = vmatprep.mubr.bf16.mxu0 %v6513
        %8960 = vmatmul.mubr.bf16.gmra.mxu0 %v6512
        %v8961 = vpop.f32.mrf.mxu0
        %v8962 = vadd.f32 %v8801, %v8961
        %v8963 = vpop.f32.mrf.mxu0
        %v8964 = vpop.f32.mrf.mxu0
        %v8965 = vadd.f32 %v8804, %v8964
        %v8966 = vpop.f32.mrf.mxu0
        %8967 = vmatprep.mubr.bf16.mxu0 %v6538
        %8968 = vmatmul.mubr.bf16.gmra.mxu0 %v6537
        %v8969 = vpop.f32.mrf.mxu0
        %v8970 = vadd.f32 %v8809, %v8969
        %v8971 = vpop.f32.mrf.mxu0
        %v8972 = vpop.f32.mrf.mxu0
        %v8973 = vadd.f32 %v8812, %v8972
        %v8974 = vpop.f32.mrf.mxu0
        %8975 = vmatprep.mubr.bf16.mxu0 %v6563
        %8976 = vmatmul.mubr.bf16.gmra.mxu0 %v6562
        %v8977 = vpop.f32.mrf.mxu0
        %v8978 = vadd.f32 %v8817, %v8977
        %v8979 = vpop.f32.mrf.mxu0
        %v8980 = vpop.f32.mrf.mxu0
        %v8981 = vadd.f32 %v8820, %v8980
        %v8982 = vpop.f32.mrf.mxu0
        %8983 = vdwg.mxu0
        %8984 = vmatprep.subr.bf16.mxu0 0
        %8985 = vmatpush1.bf16.msra.mxu0 %v7866
        %8986 = vmatprep.subr.bf16.mxu0 0
        %8987 = vmatpush1.bf16.msra.mxu0 %v7865
        %8988 = vmatprep.subr.bf16.mxu0 0
        %8989 = vmatpush1.bf16.msra.mxu0 %v7864
        %8990 = vmatprep.subr.bf16.mxu0 0
        %8991 = vmatpush1.bf16.msra.mxu0 %v7863
        %8992 = vmatprep.subr.bf16.mxu0 0
        %8993 = vmatpush1.bf16.msra.mxu0 %v7862
        %8994 = vmatprep.subr.bf16.mxu0 0
        %8995 = vmatpush1.bf16.msra.mxu0 %v7861
        %8996 = vmatprep.subr.bf16.mxu0 0
        %8997 = vmatpush1.bf16.msra.mxu0 %v7860
        %8998 = vmatprep.subr.bf16.mxu0 0
        %8999 = vmatpush1.bf16.msra.mxu0 %v7859
        %9000 = vmatprep.subr.bf16.mxu0 0
        %9001 = vmatpush2.bf16.msra.mxu0 %v7874
        %9002 = vmatprep.subr.bf16.mxu0 0
        %9003 = vmatpush2.bf16.msra.mxu0 %v7873
        %9004 = vmatprep.subr.bf16.mxu0 0
        %9005 = vmatpush2.bf16.msra.mxu0 %v7872
        %9006 = vmatprep.subr.bf16.mxu0 0
        %9007 = vmatpush2.bf16.msra.mxu0 %v7871
        %9008 = vmatprep.subr.bf16.mxu0 0
        %9009 = vmatpush2.bf16.msra.mxu0 %v7870
        %9010 = vmatprep.subr.bf16.mxu0 0
        %9011 = vmatpush2.bf16.msra.mxu0 %v7869
        %9012 = vmatprep.subr.bf16.mxu0 0
        %9013 = vmatpush2.bf16.msra.mxu0 %v7868
        %9014 = vmatprep.subr.bf16.mxu0 0
        %9015 = vmatpush2.bf16.msra.mxu0 %v7867
        %9016 = vmatprep.mubr.bf16.mxu0 %v6190
        %9017 = vmatmul.mubr.bf16.gmra.mxu0 %v6189
        %v9018 = vpop.f32.mrf.mxu0
        %v9019 = vadd.f32 %v8858, %v9018
        %v9020 = vpop.f32.mrf.mxu0
        %v9021 = vpop.f32.mrf.mxu0
        %v9022 = vadd.f32 %v8861, %v9021
        %v9023 = vpop.f32.mrf.mxu0
        %9024 = vmatprep.mubr.bf16.mxu0 %v6215
        %9025 = vmatmul.mubr.bf16.gmra.mxu0 %v6214
        %v9026 = vpop.f32.mrf.mxu0
        %v9027 = vadd.f32 %v8866, %v9026
        %v9028 = vpop.f32.mrf.mxu0
        %v9029 = vpop.f32.mrf.mxu0
        %v9030 = vadd.f32 %v8869, %v9029
        %v9031 = vpop.f32.mrf.mxu0
        %9032 = vmatprep.mubr.bf16.mxu0 %v6240
        %9033 = vmatmul.mubr.bf16.gmra.mxu0 %v6239
        %v9034 = vpop.f32.mrf.mxu0
        %v9035 = vadd.f32 %v8874, %v9034
        %v9036 = vpop.f32.mrf.mxu0
        %v9037 = vpop.f32.mrf.mxu0
        %v9038 = vadd.f32 %v8877, %v9037
        %v9039 = vpop.f32.mrf.mxu0
        %9040 = vmatprep.mubr.bf16.mxu0 %v6265
        %9041 = vmatmul.mubr.bf16.gmra.mxu0 %v6264
        %v9042 = vpop.f32.mrf.mxu0
        %v9043 = vadd.f32 %v8882, %v9042
        %v9044 = vpop.f32.mrf.mxu0
        %v9045 = vpop.f32.mrf.mxu0
        %v9046 = vadd.f32 %v8885, %v9045
        %v9047 = vpop.f32.mrf.mxu0
        %9048 = vmatprep.mubr.bf16.mxu0 %v6290
        %9049 = vmatmul.mubr.bf16.gmra.mxu0 %v6289
        %v9050 = vpop.f32.mrf.mxu0
        %v9051 = vadd.f32 %v8890, %v9050
        %v9052 = vpop.f32.mrf.mxu0
        %v9053 = vpop.f32.mrf.mxu0
        %v9054 = vadd.f32 %v8893, %v9053
        %v9055 = vpop.f32.mrf.mxu0
        %9056 = vmatprep.mubr.bf16.mxu0 %v6315
        %9057 = vmatmul.mubr.bf16.gmra.mxu0 %v6314
        %v9058 = vpop.f32.mrf.mxu0
        %v9059 = vadd.f32 %v8898, %v9058
        %v9060 = vpop.f32.mrf.mxu0
        %v9061 = vpop.f32.mrf.mxu0
        %v9062 = vadd.f32 %v8901, %v9061
        %v9063 = vpop.f32.mrf.mxu0
        %9064 = vmatprep.mubr.bf16.mxu0 %v6340
        %9065 = vmatmul.mubr.bf16.gmra.mxu0 %v6339
        %v9066 = vpop.f32.mrf.mxu0
        %v9067 = vadd.f32 %v8906, %v9066
        %v9068 = vpop.f32.mrf.mxu0
        %v9069 = vpop.f32.mrf.mxu0
        %v9070 = vadd.f32 %v8909, %v9069
        %v9071 = vpop.f32.mrf.mxu0
        %9072 = vmatprep.mubr.bf16.mxu0 %v6365
        %9073 = vmatmul.mubr.bf16.gmra.mxu0 %v6364
        %v9074 = vpop.f32.mrf.mxu0
        %v9075 = vadd.f32 %v8914, %v9074
        %v9076 = vpop.f32.mrf.mxu0
        %v9077 = vpop.f32.mrf.mxu0
        %v9078 = vadd.f32 %v8917, %v9077
        %v9079 = vpop.f32.mrf.mxu0
        %9080 = vmatprep.mubr.bf16.mxu0 %v6390
        %9081 = vmatmul.mubr.bf16.gmra.mxu0 %v6389
        %v9082 = vpop.f32.mrf.mxu0
        %v9083 = vadd.f32 %v8922, %v9082
        %v9084 = vpop.f32.mrf.mxu0
        %v9085 = vpop.f32.mrf.mxu0
        %v9086 = vadd.f32 %v8925, %v9085
        %v9087 = vpop.f32.mrf.mxu0
        %9088 = vmatprep.mubr.bf16.mxu0 %v6415
        %9089 = vmatmul.mubr.bf16.gmra.mxu0 %v6414
        %v9090 = vpop.f32.mrf.mxu0
        %v9091 = vadd.f32 %v8930, %v9090
        %v9092 = vpop.f32.mrf.mxu0
        %v9093 = vpop.f32.mrf.mxu0
        %v9094 = vadd.f32 %v8933, %v9093
        %v9095 = vpop.f32.mrf.mxu0
        %9096 = vmatprep.mubr.bf16.mxu0 %v6440
        %9097 = vmatmul.mubr.bf16.gmra.mxu0 %v6439
        %v9098 = vpop.f32.mrf.mxu0
        %v9099 = vadd.f32 %v8938, %v9098
        %v9100 = vpop.f32.mrf.mxu0
        %v9101 = vpop.f32.mrf.mxu0
        %v9102 = vadd.f32 %v8941, %v9101
        %v9103 = vpop.f32.mrf.mxu0
        %9104 = vmatprep.mubr.bf16.mxu0 %v6465
        %9105 = vmatmul.mubr.bf16.gmra.mxu0 %v6464
        %v9106 = vpop.f32.mrf.mxu0
        %v9107 = vadd.f32 %v8946, %v9106
        %v9108 = vpop.f32.mrf.mxu0
        %v9109 = vpop.f32.mrf.mxu0
        %v9110 = vadd.f32 %v8949, %v9109
        %v9111 = vpop.f32.mrf.mxu0
        %9112 = vmatprep.mubr.bf16.mxu0 %v6490
        %9113 = vmatmul.mubr.bf16.gmra.mxu0 %v6489
        %v9114 = vpop.f32.mrf.mxu0
        %v9115 = vadd.f32 %v8954, %v9114
        %v9116 = vpop.f32.mrf.mxu0
        %v9117 = vpop.f32.mrf.mxu0
        %v9118 = vadd.f32 %v8957, %v9117
        %v9119 = vpop.f32.mrf.mxu0
        %9120 = vmatprep.mubr.bf16.mxu0 %v6515
        %9121 = vmatmul.mubr.bf16.gmra.mxu0 %v6514
        %v9122 = vpop.f32.mrf.mxu0
        %v9123 = vadd.f32 %v8962, %v9122
        %v9124 = vpop.f32.mrf.mxu0
        %v9125 = vpop.f32.mrf.mxu0
        %v9126 = vadd.f32 %v8965, %v9125
        %v9127 = vpop.f32.mrf.mxu0
        %9128 = vmatprep.mubr.bf16.mxu0 %v6540
        %9129 = vmatmul.mubr.bf16.gmra.mxu0 %v6539
        %v9130 = vpop.f32.mrf.mxu0
        %v9131 = vadd.f32 %v8970, %v9130
        %v9132 = vpop.f32.mrf.mxu0
        %v9133 = vpop.f32.mrf.mxu0
        %v9134 = vadd.f32 %v8973, %v9133
        %v9135 = vpop.f32.mrf.mxu0
        %9136 = vmatprep.mubr.bf16.mxu0 %v6565
        %9137 = vmatmul.mubr.bf16.gmra.mxu0 %v6564
        %v9138 = vpop.f32.mrf.mxu0
        %v9139 = vadd.f32 %v8978, %v9138
        %v9140 = vpop.f32.mrf.mxu0
        %v9141 = vpop.f32.mrf.mxu0
        %v9142 = vadd.f32 %v8981, %v9141
        %v9143 = vpop.f32.mrf.mxu0
        %9144 = vdwg.mxu0
        %9145 = vmatprep.subr.bf16.mxu0 0
        %9146 = vmatpush1.bf16.msra.mxu0 %v7882
        %9147 = vmatprep.subr.bf16.mxu0 0
        %9148 = vmatpush1.bf16.msra.mxu0 %v7881
        %9149 = vmatprep.subr.bf16.mxu0 0
        %9150 = vmatpush1.bf16.msra.mxu0 %v7880
        %9151 = vmatprep.subr.bf16.mxu0 0
        %9152 = vmatpush1.bf16.msra.mxu0 %v7879
        %9153 = vmatprep.subr.bf16.mxu0 0
        %9154 = vmatpush1.bf16.msra.mxu0 %v7878
        %9155 = vmatprep.subr.bf16.mxu0 0
        %9156 = vmatpush1.bf16.msra.mxu0 %v7877
        %9157 = vmatprep.subr.bf16.mxu0 0
        %9158 = vmatpush1.bf16.msra.mxu0 %v7876
        %9159 = vmatprep.subr.bf16.mxu0 0
        %9160 = vmatpush1.bf16.msra.mxu0 %v7875
        %9161 = vmatprep.subr.bf16.mxu0 0
        %9162 = vmatpush2.bf16.msra.mxu0 %v7890
        %9163 = vmatprep.subr.bf16.mxu0 0
        %9164 = vmatpush2.bf16.msra.mxu0 %v7889
        %9165 = vmatprep.subr.bf16.mxu0 0
        %9166 = vmatpush2.bf16.msra.mxu0 %v7888
        %9167 = vmatprep.subr.bf16.mxu0 0
        %9168 = vmatpush2.bf16.msra.mxu0 %v7887
        %9169 = vmatprep.subr.bf16.mxu0 0
        %9170 = vmatpush2.bf16.msra.mxu0 %v7886
        %9171 = vmatprep.subr.bf16.mxu0 0
        %9172 = vmatpush2.bf16.msra.mxu0 %v7885
        %9173 = vmatprep.subr.bf16.mxu0 0
        %9174 = vmatpush2.bf16.msra.mxu0 %v7884
        %9175 = vmatprep.subr.bf16.mxu0 0
        %9176 = vmatpush2.bf16.msra.mxu0 %v7883
        %9177 = vmatprep.mubr.bf16.mxu0 %v6192
        %9178 = vmatmul.mubr.bf16.gmra.mxu0 %v6191
        %v9179 = vpop.f32.mrf.mxu0
        %v9180 = vadd.f32 %v9019, %v9179
        %v9181 = vpop.f32.mrf.mxu0
        %v9182 = vpop.f32.mrf.mxu0
        %v9183 = vadd.f32 %v9022, %v9182
        %v9184 = vpop.f32.mrf.mxu0
        %9185 = vmatprep.mubr.bf16.mxu0 %v6217
        %9186 = vmatmul.mubr.bf16.gmra.mxu0 %v6216
        %v9187 = vpop.f32.mrf.mxu0
        %v9188 = vadd.f32 %v9027, %v9187
        %v9189 = vpop.f32.mrf.mxu0
        %v9190 = vpop.f32.mrf.mxu0
        %v9191 = vadd.f32 %v9030, %v9190
        %v9192 = vpop.f32.mrf.mxu0
        %9193 = vmatprep.mubr.bf16.mxu0 %v6242
        %9194 = vmatmul.mubr.bf16.gmra.mxu0 %v6241
        %v9195 = vpop.f32.mrf.mxu0
        %v9196 = vadd.f32 %v9035, %v9195
        %v9197 = vpop.f32.mrf.mxu0
        %v9198 = vpop.f32.mrf.mxu0
        %v9199 = vadd.f32 %v9038, %v9198
        %v9200 = vpop.f32.mrf.mxu0
        %9201 = vmatprep.mubr.bf16.mxu0 %v6267
        %9202 = vmatmul.mubr.bf16.gmra.mxu0 %v6266
        %v9203 = vpop.f32.mrf.mxu0
        %v9204 = vadd.f32 %v9043, %v9203
        %v9205 = vpop.f32.mrf.mxu0
        %v9206 = vpop.f32.mrf.mxu0
        %v9207 = vadd.f32 %v9046, %v9206
        %v9208 = vpop.f32.mrf.mxu0
        %9209 = vmatprep.mubr.bf16.mxu0 %v6292
        %9210 = vmatmul.mubr.bf16.gmra.mxu0 %v6291
        %v9211 = vpop.f32.mrf.mxu0
        %v9212 = vadd.f32 %v9051, %v9211
        %v9213 = vpop.f32.mrf.mxu0
        %v9214 = vpop.f32.mrf.mxu0
        %v9215 = vadd.f32 %v9054, %v9214
        %v9216 = vpop.f32.mrf.mxu0
        %9217 = vmatprep.mubr.bf16.mxu0 %v6317
        %9218 = vmatmul.mubr.bf16.gmra.mxu0 %v6316
        %v9219 = vpop.f32.mrf.mxu0
        %v9220 = vadd.f32 %v9059, %v9219
        %v9221 = vpop.f32.mrf.mxu0
        %v9222 = vpop.f32.mrf.mxu0
        %v9223 = vadd.f32 %v9062, %v9222
        %v9224 = vpop.f32.mrf.mxu0
        %9225 = vmatprep.mubr.bf16.mxu0 %v6342
        %9226 = vmatmul.mubr.bf16.gmra.mxu0 %v6341
        %v9227 = vpop.f32.mrf.mxu0
        %v9228 = vadd.f32 %v9067, %v9227
        %v9229 = vpop.f32.mrf.mxu0
        %v9230 = vpop.f32.mrf.mxu0
        %v9231 = vadd.f32 %v9070, %v9230
        %v9232 = vpop.f32.mrf.mxu0
        %9233 = vmatprep.mubr.bf16.mxu0 %v6367
        %9234 = vmatmul.mubr.bf16.gmra.mxu0 %v6366
        %v9235 = vpop.f32.mrf.mxu0
        %v9236 = vadd.f32 %v9075, %v9235
        %v9237 = vpop.f32.mrf.mxu0
        %v9238 = vpop.f32.mrf.mxu0
        %v9239 = vadd.f32 %v9078, %v9238
        %v9240 = vpop.f32.mrf.mxu0
        %9241 = vmatprep.mubr.bf16.mxu0 %v6392
        %9242 = vmatmul.mubr.bf16.gmra.mxu0 %v6391
        %v9243 = vpop.f32.mrf.mxu0
        %v9244 = vadd.f32 %v9083, %v9243
        %v9245 = vpop.f32.mrf.mxu0
        %v9246 = vpop.f32.mrf.mxu0
        %v9247 = vadd.f32 %v9086, %v9246
        %v9248 = vpop.f32.mrf.mxu0
        %9249 = vmatprep.mubr.bf16.mxu0 %v6417
        %9250 = vmatmul.mubr.bf16.gmra.mxu0 %v6416
        %v9251 = vpop.f32.mrf.mxu0
        %v9252 = vadd.f32 %v9091, %v9251
        %v9253 = vpop.f32.mrf.mxu0
        %v9254 = vpop.f32.mrf.mxu0
        %v9255 = vadd.f32 %v9094, %v9254
        %v9256 = vpop.f32.mrf.mxu0
        %9257 = vmatprep.mubr.bf16.mxu0 %v6442
        %9258 = vmatmul.mubr.bf16.gmra.mxu0 %v6441
        %v9259 = vpop.f32.mrf.mxu0
        %v9260 = vadd.f32 %v9099, %v9259
        %v9261 = vpop.f32.mrf.mxu0
        %v9262 = vpop.f32.mrf.mxu0
        %v9263 = vadd.f32 %v9102, %v9262
        %v9264 = vpop.f32.mrf.mxu0
        %9265 = vmatprep.mubr.bf16.mxu0 %v6467
        %9266 = vmatmul.mubr.bf16.gmra.mxu0 %v6466
        %v9267 = vpop.f32.mrf.mxu0
        %v9268 = vadd.f32 %v9107, %v9267
        %v9269 = vpop.f32.mrf.mxu0
        %v9270 = vpop.f32.mrf.mxu0
        %v9271 = vadd.f32 %v9110, %v9270
        %v9272 = vpop.f32.mrf.mxu0
        %9273 = vmatprep.mubr.bf16.mxu0 %v6492
        %9274 = vmatmul.mubr.bf16.gmra.mxu0 %v6491
        %v9275 = vpop.f32.mrf.mxu0
        %v9276 = vadd.f32 %v9115, %v9275
        %v9277 = vpop.f32.mrf.mxu0
        %v9278 = vpop.f32.mrf.mxu0
        %v9279 = vadd.f32 %v9118, %v9278
        %v9280 = vpop.f32.mrf.mxu0
        %9281 = vmatprep.mubr.bf16.mxu0 %v6517
        %9282 = vmatmul.mubr.bf16.gmra.mxu0 %v6516
        %v9283 = vpop.f32.mrf.mxu0
        %v9284 = vadd.f32 %v9123, %v9283
        %v9285 = vpop.f32.mrf.mxu0
        %v9286 = vpop.f32.mrf.mxu0
        %v9287 = vadd.f32 %v9126, %v9286
        %v9288 = vpop.f32.mrf.mxu0
        %9289 = vmatprep.mubr.bf16.mxu0 %v6542
        %9290 = vmatmul.mubr.bf16.gmra.mxu0 %v6541
        %v9291 = vpop.f32.mrf.mxu0
        %v9292 = vadd.f32 %v9131, %v9291
        %v9293 = vpop.f32.mrf.mxu0
        %v9294 = vpop.f32.mrf.mxu0
        %v9295 = vadd.f32 %v9134, %v9294
        %v9296 = vpop.f32.mrf.mxu0
        %9297 = vmatprep.mubr.bf16.mxu0 %v6567
        %9298 = vmatmul.mubr.bf16.gmra.mxu0 %v6566
        %v9299 = vpop.f32.mrf.mxu0
        %v9300 = vadd.f32 %v9139, %v9299
        %v9301 = vpop.f32.mrf.mxu0
        %v9302 = vpop.f32.mrf.mxu0
        %v9303 = vadd.f32 %v9142, %v9302
        %v9304 = vpop.f32.mrf.mxu0
        %9305 = vdwg.mxu0
        %9306 = vmatprep.subr.bf16.mxu0 0
        %9307 = vmatpush1.bf16.msra.mxu0 %v7898
        %9308 = vmatprep.subr.bf16.mxu0 0
        %9309 = vmatpush1.bf16.msra.mxu0 %v7897
        %9310 = vmatprep.subr.bf16.mxu0 0
        %9311 = vmatpush1.bf16.msra.mxu0 %v7896
        %9312 = vmatprep.subr.bf16.mxu0 0
        %9313 = vmatpush1.bf16.msra.mxu0 %v7895
        %9314 = vmatprep.subr.bf16.mxu0 0
        %9315 = vmatpush1.bf16.msra.mxu0 %v7894
        %9316 = vmatprep.subr.bf16.mxu0 0
        %9317 = vmatpush1.bf16.msra.mxu0 %v7893
        %9318 = vmatprep.subr.bf16.mxu0 0
        %9319 = vmatpush1.bf16.msra.mxu0 %v7892
        %9320 = vmatprep.subr.bf16.mxu0 0
        %9321 = vmatpush1.bf16.msra.mxu0 %v7891
        %9322 = vmatprep.subr.bf16.mxu0 0
        %9323 = vmatpush2.bf16.msra.mxu0 %v7906
        %9324 = vmatprep.subr.bf16.mxu0 0
        %9325 = vmatpush2.bf16.msra.mxu0 %v7905
        %9326 = vmatprep.subr.bf16.mxu0 0
        %9327 = vmatpush2.bf16.msra.mxu0 %v7904
        %9328 = vmatprep.subr.bf16.mxu0 0
        %9329 = vmatpush2.bf16.msra.mxu0 %v7903
        %9330 = vmatprep.subr.bf16.mxu0 0
        %9331 = vmatpush2.bf16.msra.mxu0 %v7902
        %9332 = vmatprep.subr.bf16.mxu0 0
        %9333 = vmatpush2.bf16.msra.mxu0 %v7901
        %9334 = vmatprep.subr.bf16.mxu0 0
        %9335 = vmatpush2.bf16.msra.mxu0 %v7900
        %9336 = vmatprep.subr.bf16.mxu0 0
        %9337 = vmatpush2.bf16.msra.mxu0 %v7899
        %9338 = vmatprep.mubr.bf16.mxu0 %v6194
        %9339 = vmatmul.mubr.bf16.gmra.mxu0 %v6193
        %v9340 = vpop.f32.mrf.mxu0
        %v9341 = vadd.f32 %v9180, %v9340
        %v9342 = vpop.f32.mrf.mxu0
        %v9343 = vpop.f32.mrf.mxu0
        %v9344 = vadd.f32 %v9183, %v9343
        %v9345 = vpop.f32.mrf.mxu0
        %9346 = vmatprep.mubr.bf16.mxu0 %v6219
        %9347 = vmatmul.mubr.bf16.gmra.mxu0 %v6218
        %v9348 = vpop.f32.mrf.mxu0
        %v9349 = vadd.f32 %v9188, %v9348
        %v9350 = vpop.f32.mrf.mxu0
        %v9351 = vpop.f32.mrf.mxu0
        %v9352 = vadd.f32 %v9191, %v9351
        %v9353 = vpop.f32.mrf.mxu0
        %9354 = vmatprep.mubr.bf16.mxu0 %v6244
        %9355 = vmatmul.mubr.bf16.gmra.mxu0 %v6243
        %v9356 = vpop.f32.mrf.mxu0
        %v9357 = vadd.f32 %v9196, %v9356
        %v9358 = vpop.f32.mrf.mxu0
        %v9359 = vpop.f32.mrf.mxu0
        %v9360 = vadd.f32 %v9199, %v9359
        %v9361 = vpop.f32.mrf.mxu0
        %9362 = vmatprep.mubr.bf16.mxu0 %v6269
        %9363 = vmatmul.mubr.bf16.gmra.mxu0 %v6268
        %v9364 = vpop.f32.mrf.mxu0
        %v9365 = vadd.f32 %v9204, %v9364
        %v9366 = vpop.f32.mrf.mxu0
        %v9367 = vpop.f32.mrf.mxu0
        %v9368 = vadd.f32 %v9207, %v9367
        %v9369 = vpop.f32.mrf.mxu0
        %9370 = vmatprep.mubr.bf16.mxu0 %v6294
        %9371 = vmatmul.mubr.bf16.gmra.mxu0 %v6293
        %v9372 = vpop.f32.mrf.mxu0
        %v9373 = vadd.f32 %v9212, %v9372
        %v9374 = vpop.f32.mrf.mxu0
        %v9375 = vpop.f32.mrf.mxu0
        %v9376 = vadd.f32 %v9215, %v9375
        %v9377 = vpop.f32.mrf.mxu0
        %9378 = vmatprep.mubr.bf16.mxu0 %v6319
        %9379 = vmatmul.mubr.bf16.gmra.mxu0 %v6318
        %v9380 = vpop.f32.mrf.mxu0
        %v9381 = vadd.f32 %v9220, %v9380
        %v9382 = vpop.f32.mrf.mxu0
        %v9383 = vpop.f32.mrf.mxu0
        %v9384 = vadd.f32 %v9223, %v9383
        %v9385 = vpop.f32.mrf.mxu0
        %9386 = vmatprep.mubr.bf16.mxu0 %v6344
        %9387 = vmatmul.mubr.bf16.gmra.mxu0 %v6343
        %v9388 = vpop.f32.mrf.mxu0
        %v9389 = vadd.f32 %v9228, %v9388
        %v9390 = vpop.f32.mrf.mxu0
        %v9391 = vpop.f32.mrf.mxu0
        %v9392 = vadd.f32 %v9231, %v9391
        %v9393 = vpop.f32.mrf.mxu0
        %9394 = vmatprep.mubr.bf16.mxu0 %v6369
        %9395 = vmatmul.mubr.bf16.gmra.mxu0 %v6368
        %v9396 = vpop.f32.mrf.mxu0
        %v9397 = vadd.f32 %v9236, %v9396
        %v9398 = vpop.f32.mrf.mxu0
        %v9399 = vpop.f32.mrf.mxu0
        %v9400 = vadd.f32 %v9239, %v9399
        %v9401 = vpop.f32.mrf.mxu0
        %9402 = vmatprep.mubr.bf16.mxu0 %v6394
        %9403 = vmatmul.mubr.bf16.gmra.mxu0 %v6393
        %v9404 = vpop.f32.mrf.mxu0
        %v9405 = vadd.f32 %v9244, %v9404
        %v9406 = vpop.f32.mrf.mxu0
        %v9407 = vpop.f32.mrf.mxu0
        %v9408 = vadd.f32 %v9247, %v9407
        %v9409 = vpop.f32.mrf.mxu0
        %9410 = vmatprep.mubr.bf16.mxu0 %v6419
        %9411 = vmatmul.mubr.bf16.gmra.mxu0 %v6418
        %v9412 = vpop.f32.mrf.mxu0
        %v9413 = vadd.f32 %v9252, %v9412
        %v9414 = vpop.f32.mrf.mxu0
        %v9415 = vpop.f32.mrf.mxu0
        %v9416 = vadd.f32 %v9255, %v9415
        %v9417 = vpop.f32.mrf.mxu0
        %9418 = vmatprep.mubr.bf16.mxu0 %v6444
        %9419 = vmatmul.mubr.bf16.gmra.mxu0 %v6443
        %v9420 = vpop.f32.mrf.mxu0
        %v9421 = vadd.f32 %v9260, %v9420
        %v9422 = vpop.f32.mrf.mxu0
        %v9423 = vpop.f32.mrf.mxu0
        %v9424 = vadd.f32 %v9263, %v9423
        %v9425 = vpop.f32.mrf.mxu0
        %9426 = vmatprep.mubr.bf16.mxu0 %v6469
        %9427 = vmatmul.mubr.bf16.gmra.mxu0 %v6468
        %v9428 = vpop.f32.mrf.mxu0
        %v9429 = vadd.f32 %v9268, %v9428
        %v9430 = vpop.f32.mrf.mxu0
        %v9431 = vpop.f32.mrf.mxu0
        %v9432 = vadd.f32 %v9271, %v9431
        %v9433 = vpop.f32.mrf.mxu0
        %9434 = vmatprep.mubr.bf16.mxu0 %v6494
        %9435 = vmatmul.mubr.bf16.gmra.mxu0 %v6493
        %v9436 = vpop.f32.mrf.mxu0
        %v9437 = vadd.f32 %v9276, %v9436
        %v9438 = vpop.f32.mrf.mxu0
        %v9439 = vpop.f32.mrf.mxu0
        %v9440 = vadd.f32 %v9279, %v9439
        %v9441 = vpop.f32.mrf.mxu0
        %9442 = vmatprep.mubr.bf16.mxu0 %v6519
        %9443 = vmatmul.mubr.bf16.gmra.mxu0 %v6518
        %v9444 = vpop.f32.mrf.mxu0
        %v9445 = vadd.f32 %v9284, %v9444
        %v9446 = vpop.f32.mrf.mxu0
        %v9447 = vpop.f32.mrf.mxu0
        %v9448 = vadd.f32 %v9287, %v9447
        %v9449 = vpop.f32.mrf.mxu0
        %9450 = vmatprep.mubr.bf16.mxu0 %v6544
        %9451 = vmatmul.mubr.bf16.gmra.mxu0 %v6543
        %v9452 = vpop.f32.mrf.mxu0
        %v9453 = vadd.f32 %v9292, %v9452
        %v9454 = vpop.f32.mrf.mxu0
        %v9455 = vpop.f32.mrf.mxu0
        %v9456 = vadd.f32 %v9295, %v9455
        %v9457 = vpop.f32.mrf.mxu0
        %9458 = vmatprep.mubr.bf16.mxu0 %v6569
        %9459 = vmatmul.mubr.bf16.gmra.mxu0 %v6568
        %v9460 = vpop.f32.mrf.mxu0
        %v9461 = vadd.f32 %v9300, %v9460
        %v9462 = vpop.f32.mrf.mxu0
        %v9463 = vpop.f32.mrf.mxu0
        %v9464 = vadd.f32 %v9303, %v9463
        %v9465 = vpop.f32.mrf.mxu0
        %9466 = vdwg.mxu0
        %9467 = vmatprep.subr.bf16.mxu0 0
        %9468 = vmatpush1.bf16.msra.mxu0 %v7914
        %9469 = vmatprep.subr.bf16.mxu0 0
        %9470 = vmatpush1.bf16.msra.mxu0 %v7913
        %9471 = vmatprep.subr.bf16.mxu0 0
        %9472 = vmatpush1.bf16.msra.mxu0 %v7912
        %9473 = vmatprep.subr.bf16.mxu0 0
        %9474 = vmatpush1.bf16.msra.mxu0 %v7911
        %9475 = vmatprep.subr.bf16.mxu0 0
        %9476 = vmatpush1.bf16.msra.mxu0 %v7910
        %9477 = vmatprep.subr.bf16.mxu0 0
        %9478 = vmatpush1.bf16.msra.mxu0 %v7909
        %9479 = vmatprep.subr.bf16.mxu0 0
        %9480 = vmatpush1.bf16.msra.mxu0 %v7908
        %9481 = vmatprep.subr.bf16.mxu0 0
        %9482 = vmatpush1.bf16.msra.mxu0 %v7907
        %9483 = vmatprep.subr.bf16.mxu0 0
        %9484 = vmatpush2.bf16.msra.mxu0 %v7922
        %9485 = vmatprep.subr.bf16.mxu0 0
        %9486 = vmatpush2.bf16.msra.mxu0 %v7921
        %9487 = vmatprep.subr.bf16.mxu0 0
        %9488 = vmatpush2.bf16.msra.mxu0 %v7920
        %9489 = vmatprep.subr.bf16.mxu0 0
        %9490 = vmatpush2.bf16.msra.mxu0 %v7919
        %9491 = vmatprep.subr.bf16.mxu0 0
        %9492 = vmatpush2.bf16.msra.mxu0 %v7918
        %9493 = vmatprep.subr.bf16.mxu0 0
        %9494 = vmatpush2.bf16.msra.mxu0 %v7917
        %9495 = vmatprep.subr.bf16.mxu0 0
        %9496 = vmatpush2.bf16.msra.mxu0 %v7916
        %9497 = vmatprep.subr.bf16.mxu0 0
        %9498 = vmatpush2.bf16.msra.mxu0 %v7915
        %9499 = vmatprep.mubr.bf16.mxu0 %v6196
        %9500 = vmatmul.mubr.bf16.gmra.mxu0 %v6195
        %v9501 = vpop.f32.mrf.mxu0
        %v9502 = vadd.f32 %v9341, %v9501
        %v9503 = vpop.f32.mrf.mxu0
        %v9504 = vpop.f32.mrf.mxu0
        %v9505 = vadd.f32 %v9344, %v9504
        %v9506 = vpop.f32.mrf.mxu0
        %9507 = vmatprep.mubr.bf16.mxu0 %v6221
        %9508 = vmatmul.mubr.bf16.gmra.mxu0 %v6220
        %v9509 = vpop.f32.mrf.mxu0
        %v9510 = vadd.f32 %v9349, %v9509
        %v9511 = vpop.f32.mrf.mxu0
        %v9512 = vpop.f32.mrf.mxu0
        %v9513 = vadd.f32 %v9352, %v9512
        %v9514 = vpop.f32.mrf.mxu0
        %9515 = vmatprep.mubr.bf16.mxu0 %v6246
        %9516 = vmatmul.mubr.bf16.gmra.mxu0 %v6245
        %v9517 = vpop.f32.mrf.mxu0
        %v9518 = vadd.f32 %v9357, %v9517
        %v9519 = vpop.f32.mrf.mxu0
        %v9520 = vpop.f32.mrf.mxu0
        %v9521 = vadd.f32 %v9360, %v9520
        %v9522 = vpop.f32.mrf.mxu0
        %9523 = vmatprep.mubr.bf16.mxu0 %v6271
        %9524 = vmatmul.mubr.bf16.gmra.mxu0 %v6270
        %v9525 = vpop.f32.mrf.mxu0
        %v9526 = vadd.f32 %v9365, %v9525
        %v9527 = vpop.f32.mrf.mxu0
        %v9528 = vpop.f32.mrf.mxu0
        %v9529 = vadd.f32 %v9368, %v9528
        %v9530 = vpop.f32.mrf.mxu0
        %9531 = vmatprep.mubr.bf16.mxu0 %v6296
        %9532 = vmatmul.mubr.bf16.gmra.mxu0 %v6295
        %v9533 = vpop.f32.mrf.mxu0
        %v9534 = vadd.f32 %v9373, %v9533
        %v9535 = vpop.f32.mrf.mxu0
        %v9536 = vpop.f32.mrf.mxu0
        %v9537 = vadd.f32 %v9376, %v9536
        %v9538 = vpop.f32.mrf.mxu0
        %9539 = vmatprep.mubr.bf16.mxu0 %v6321
        %9540 = vmatmul.mubr.bf16.gmra.mxu0 %v6320
        %v9541 = vpop.f32.mrf.mxu0
        %v9542 = vadd.f32 %v9381, %v9541
        %v9543 = vpop.f32.mrf.mxu0
        %v9544 = vpop.f32.mrf.mxu0
        %v9545 = vadd.f32 %v9384, %v9544
        %v9546 = vpop.f32.mrf.mxu0
        %9547 = vmatprep.mubr.bf16.mxu0 %v6346
        %9548 = vmatmul.mubr.bf16.gmra.mxu0 %v6345
        %v9549 = vpop.f32.mrf.mxu0
        %v9550 = vadd.f32 %v9389, %v9549
        %v9551 = vpop.f32.mrf.mxu0
        %v9552 = vpop.f32.mrf.mxu0
        %v9553 = vadd.f32 %v9392, %v9552
        %v9554 = vpop.f32.mrf.mxu0
        %9555 = vmatprep.mubr.bf16.mxu0 %v6371
        %9556 = vmatmul.mubr.bf16.gmra.mxu0 %v6370
        %v9557 = vpop.f32.mrf.mxu0
        %v9558 = vadd.f32 %v9397, %v9557
        %v9559 = vpop.f32.mrf.mxu0
        %v9560 = vpop.f32.mrf.mxu0
        %v9561 = vadd.f32 %v9400, %v9560
        %v9562 = vpop.f32.mrf.mxu0
        %9563 = vmatprep.mubr.bf16.mxu0 %v6396
        %9564 = vmatmul.mubr.bf16.gmra.mxu0 %v6395
        %v9565 = vpop.f32.mrf.mxu0
        %v9566 = vadd.f32 %v9405, %v9565
        %v9567 = vpop.f32.mrf.mxu0
        %v9568 = vpop.f32.mrf.mxu0
        %v9569 = vadd.f32 %v9408, %v9568
        %v9570 = vpop.f32.mrf.mxu0
        %9571 = vmatprep.mubr.bf16.mxu0 %v6421
        %9572 = vmatmul.mubr.bf16.gmra.mxu0 %v6420
        %v9573 = vpop.f32.mrf.mxu0
        %v9574 = vadd.f32 %v9413, %v9573
        %v9575 = vpop.f32.mrf.mxu0
        %v9576 = vpop.f32.mrf.mxu0
        %v9577 = vadd.f32 %v9416, %v9576
        %v9578 = vpop.f32.mrf.mxu0
        %9579 = vmatprep.mubr.bf16.mxu0 %v6446
        %9580 = vmatmul.mubr.bf16.gmra.mxu0 %v6445
        %v9581 = vpop.f32.mrf.mxu0
        %v9582 = vadd.f32 %v9421, %v9581
        %v9583 = vpop.f32.mrf.mxu0
        %v9584 = vpop.f32.mrf.mxu0
        %v9585 = vadd.f32 %v9424, %v9584
        %v9586 = vpop.f32.mrf.mxu0
        %9587 = vmatprep.mubr.bf16.mxu0 %v6471
        %9588 = vmatmul.mubr.bf16.gmra.mxu0 %v6470
        %v9589 = vpop.f32.mrf.mxu0
        %v9590 = vadd.f32 %v9429, %v9589
        %v9591 = vpop.f32.mrf.mxu0
        %v9592 = vpop.f32.mrf.mxu0
        %v9593 = vadd.f32 %v9432, %v9592
        %v9594 = vpop.f32.mrf.mxu0
        %9595 = vmatprep.mubr.bf16.mxu0 %v6496
        %9596 = vmatmul.mubr.bf16.gmra.mxu0 %v6495
        %v9597 = vpop.f32.mrf.mxu0
        %v9598 = vadd.f32 %v9437, %v9597
        %v9599 = vpop.f32.mrf.mxu0
        %v9600 = vpop.f32.mrf.mxu0
        %v9601 = vadd.f32 %v9440, %v9600
        %v9602 = vpop.f32.mrf.mxu0
        %9603 = vmatprep.mubr.bf16.mxu0 %v6521
        %9604 = vmatmul.mubr.bf16.gmra.mxu0 %v6520
        %v9605 = vpop.f32.mrf.mxu0
        %v9606 = vadd.f32 %v9445, %v9605
        %v9607 = vpop.f32.mrf.mxu0
        %v9608 = vpop.f32.mrf.mxu0
        %v9609 = vadd.f32 %v9448, %v9608
        %v9610 = vpop.f32.mrf.mxu0
        %9611 = vmatprep.mubr.bf16.mxu0 %v6546
        %9612 = vmatmul.mubr.bf16.gmra.mxu0 %v6545
        %v9613 = vpop.f32.mrf.mxu0
        %v9614 = vadd.f32 %v9453, %v9613
        %v9615 = vpop.f32.mrf.mxu0
        %v9616 = vpop.f32.mrf.mxu0
        %v9617 = vadd.f32 %v9456, %v9616
        %v9618 = vpop.f32.mrf.mxu0
        %9619 = vmatprep.mubr.bf16.mxu0 %v6571
        %9620 = vmatmul.mubr.bf16.gmra.mxu0 %v6570
        %v9621 = vpop.f32.mrf.mxu0
        %v9622 = vadd.f32 %v9461, %v9621
        %v9623 = vpop.f32.mrf.mxu0
        %v9624 = vpop.f32.mrf.mxu0
        %v9625 = vadd.f32 %v9464, %v9624
        %v9626 = vpop.f32.mrf.mxu0
        %9627 = vdwg.mxu0
        %9628 = vmatprep.subr.bf16.mxu0 0
        %9629 = vmatpush1.bf16.msra.mxu0 %v7930
        %9630 = vmatprep.subr.bf16.mxu0 0
        %9631 = vmatpush1.bf16.msra.mxu0 %v7929
        %9632 = vmatprep.subr.bf16.mxu0 0
        %9633 = vmatpush1.bf16.msra.mxu0 %v7928
        %9634 = vmatprep.subr.bf16.mxu0 0
        %9635 = vmatpush1.bf16.msra.mxu0 %v7927
        %9636 = vmatprep.subr.bf16.mxu0 0
        %9637 = vmatpush1.bf16.msra.mxu0 %v7926
        %9638 = vmatprep.subr.bf16.mxu0 0
        %9639 = vmatpush1.bf16.msra.mxu0 %v7925
        %9640 = vmatprep.subr.bf16.mxu0 0
        %9641 = vmatpush1.bf16.msra.mxu0 %v7924
        %9642 = vmatprep.subr.bf16.mxu0 0
        %9643 = vmatpush1.bf16.msra.mxu0 %v7923
        %9644 = vmatprep.subr.bf16.mxu0 0
        %9645 = vmatpush2.bf16.msra.mxu0 %v7938
        %9646 = vmatprep.subr.bf16.mxu0 0
        %9647 = vmatpush2.bf16.msra.mxu0 %v7937
        %9648 = vmatprep.subr.bf16.mxu0 0
        %9649 = vmatpush2.bf16.msra.mxu0 %v7936
        %9650 = vmatprep.subr.bf16.mxu0 0
        %9651 = vmatpush2.bf16.msra.mxu0 %v7935
        %9652 = vmatprep.subr.bf16.mxu0 0
        %9653 = vmatpush2.bf16.msra.mxu0 %v7934
        %9654 = vmatprep.subr.bf16.mxu0 0
        %9655 = vmatpush2.bf16.msra.mxu0 %v7933
        %9656 = vmatprep.subr.bf16.mxu0 0
        %9657 = vmatpush2.bf16.msra.mxu0 %v7932
        %9658 = vmatprep.subr.bf16.mxu0 0
        %9659 = vmatpush2.bf16.msra.mxu0 %v7931
        %9660 = vmatprep.mubr.bf16.mxu0 %v6198
        %9661 = vmatmul.mubr.bf16.gmra.mxu0 %v6197
        %v9662 = vpop.f32.mrf.mxu0
        %v9663 = vadd.f32 %v9502, %v9662
        %v9664 = vpop.f32.mrf.mxu0
        %v9665 = vpop.f32.mrf.mxu0
        %v9666 = vadd.f32 %v9505, %v9665
        %v9667 = vpop.f32.mrf.mxu0
        %9668 = vmatprep.mubr.bf16.mxu0 %v6223
        %9669 = vmatmul.mubr.bf16.gmra.mxu0 %v6222
        %v9670 = vpop.f32.mrf.mxu0
        %v9671 = vadd.f32 %v9510, %v9670
        %v9672 = vpop.f32.mrf.mxu0
        %v9673 = vpop.f32.mrf.mxu0
        %v9674 = vadd.f32 %v9513, %v9673
        %v9675 = vpop.f32.mrf.mxu0
        %9676 = vmatprep.mubr.bf16.mxu0 %v6248
        %9677 = vmatmul.mubr.bf16.gmra.mxu0 %v6247
        %v9678 = vpop.f32.mrf.mxu0
        %v9679 = vadd.f32 %v9518, %v9678
        %v9680 = vpop.f32.mrf.mxu0
        %v9681 = vpop.f32.mrf.mxu0
        %v9682 = vadd.f32 %v9521, %v9681
        %v9683 = vpop.f32.mrf.mxu0
        %9684 = vmatprep.mubr.bf16.mxu0 %v6273
        %9685 = vmatmul.mubr.bf16.gmra.mxu0 %v6272
        %v9686 = vpop.f32.mrf.mxu0
        %v9687 = vadd.f32 %v9526, %v9686
        %v9688 = vpop.f32.mrf.mxu0
        %v9689 = vpop.f32.mrf.mxu0
        %v9690 = vadd.f32 %v9529, %v9689
        %v9691 = vpop.f32.mrf.mxu0
        %9692 = vmatprep.mubr.bf16.mxu0 %v6298
        %9693 = vmatmul.mubr.bf16.gmra.mxu0 %v6297
        %v9694 = vpop.f32.mrf.mxu0
        %v9695 = vadd.f32 %v9534, %v9694
        %v9696 = vpop.f32.mrf.mxu0
        %v9697 = vpop.f32.mrf.mxu0
        %v9698 = vadd.f32 %v9537, %v9697
        %v9699 = vpop.f32.mrf.mxu0
        %9700 = vmatprep.mubr.bf16.mxu0 %v6323
        %9701 = vmatmul.mubr.bf16.gmra.mxu0 %v6322
        %v9702 = vpop.f32.mrf.mxu0
        %v9703 = vadd.f32 %v9542, %v9702
        %v9704 = vpop.f32.mrf.mxu0
        %v9705 = vpop.f32.mrf.mxu0
        %v9706 = vadd.f32 %v9545, %v9705
        %v9707 = vpop.f32.mrf.mxu0
        %9708 = vmatprep.mubr.bf16.mxu0 %v6348
        %9709 = vmatmul.mubr.bf16.gmra.mxu0 %v6347
        %v9710 = vpop.f32.mrf.mxu0
        %v9711 = vadd.f32 %v9550, %v9710
        %v9712 = vpop.f32.mrf.mxu0
        %v9713 = vpop.f32.mrf.mxu0
        %v9714 = vadd.f32 %v9553, %v9713
        %v9715 = vpop.f32.mrf.mxu0
        %9716 = vmatprep.mubr.bf16.mxu0 %v6373
        %9717 = vmatmul.mubr.bf16.gmra.mxu0 %v6372
        %v9718 = vpop.f32.mrf.mxu0
        %v9719 = vadd.f32 %v9558, %v9718
        %v9720 = vpop.f32.mrf.mxu0
        %v9721 = vpop.f32.mrf.mxu0
        %v9722 = vadd.f32 %v9561, %v9721
        %v9723 = vpop.f32.mrf.mxu0
        %9724 = vmatprep.mubr.bf16.mxu0 %v6398
        %9725 = vmatmul.mubr.bf16.gmra.mxu0 %v6397
        %v9726 = vpop.f32.mrf.mxu0
        %v9727 = vadd.f32 %v9566, %v9726
        %v9728 = vpop.f32.mrf.mxu0
        %v9729 = vpop.f32.mrf.mxu0
        %v9730 = vadd.f32 %v9569, %v9729
        %v9731 = vpop.f32.mrf.mxu0
        %9732 = vmatprep.mubr.bf16.mxu0 %v6423
        %9733 = vmatmul.mubr.bf16.gmra.mxu0 %v6422
        %v9734 = vpop.f32.mrf.mxu0
        %v9735 = vadd.f32 %v9574, %v9734
        %v9736 = vpop.f32.mrf.mxu0
        %v9737 = vpop.f32.mrf.mxu0
        %v9738 = vadd.f32 %v9577, %v9737
        %v9739 = vpop.f32.mrf.mxu0
        %9740 = vmatprep.mubr.bf16.mxu0 %v6448
        %9741 = vmatmul.mubr.bf16.gmra.mxu0 %v6447
        %v9742 = vpop.f32.mrf.mxu0
        %v9743 = vadd.f32 %v9582, %v9742
        %v9744 = vpop.f32.mrf.mxu0
        %v9745 = vpop.f32.mrf.mxu0
        %v9746 = vadd.f32 %v9585, %v9745
        %v9747 = vpop.f32.mrf.mxu0
        %9748 = vmatprep.mubr.bf16.mxu0 %v6473
        %9749 = vmatmul.mubr.bf16.gmra.mxu0 %v6472
        %v9750 = vpop.f32.mrf.mxu0
        %v9751 = vadd.f32 %v9590, %v9750
        %v9752 = vpop.f32.mrf.mxu0
        %v9753 = vpop.f32.mrf.mxu0
        %v9754 = vadd.f32 %v9593, %v9753
        %v9755 = vpop.f32.mrf.mxu0
        %9756 = vmatprep.mubr.bf16.mxu0 %v6498
        %9757 = vmatmul.mubr.bf16.gmra.mxu0 %v6497
        %v9758 = vpop.f32.mrf.mxu0
        %v9759 = vadd.f32 %v9598, %v9758
        %v9760 = vpop.f32.mrf.mxu0
        %v9761 = vpop.f32.mrf.mxu0
        %v9762 = vadd.f32 %v9601, %v9761
        %v9763 = vpop.f32.mrf.mxu0
        %9764 = vmatprep.mubr.bf16.mxu0 %v6523
        %9765 = vmatmul.mubr.bf16.gmra.mxu0 %v6522
        %v9766 = vpop.f32.mrf.mxu0
        %v9767 = vadd.f32 %v9606, %v9766
        %v9768 = vpop.f32.mrf.mxu0
        %v9769 = vpop.f32.mrf.mxu0
        %v9770 = vadd.f32 %v9609, %v9769
        %v9771 = vpop.f32.mrf.mxu0
        %9772 = vmatprep.mubr.bf16.mxu0 %v6548
        %9773 = vmatmul.mubr.bf16.gmra.mxu0 %v6547
        %v9774 = vpop.f32.mrf.mxu0
        %v9775 = vadd.f32 %v9614, %v9774
        %v9776 = vpop.f32.mrf.mxu0
        %v9777 = vpop.f32.mrf.mxu0
        %v9778 = vadd.f32 %v9617, %v9777
        %v9779 = vpop.f32.mrf.mxu0
        %9780 = vmatprep.mubr.bf16.mxu0 %v6573
        %9781 = vmatmul.mubr.bf16.gmra.mxu0 %v6572
        %v9782 = vpop.f32.mrf.mxu0
        %v9783 = vadd.f32 %v9622, %v9782
        %v9784 = vpop.f32.mrf.mxu0
        %v9785 = vpop.f32.mrf.mxu0
        %v9786 = vadd.f32 %v9625, %v9785
        %v9787 = vpop.f32.mrf.mxu0
        %9788 = vdwg.mxu0
        %9789 = vmatprep.subr.bf16.mxu0 0
        %9790 = vmatpush1.bf16.msra.mxu0 %v7946
        %9791 = vmatprep.subr.bf16.mxu0 0
        %9792 = vmatpush1.bf16.msra.mxu0 %v7945
        %9793 = vmatprep.subr.bf16.mxu0 0
        %9794 = vmatpush1.bf16.msra.mxu0 %v7944
        %9795 = vmatprep.subr.bf16.mxu0 0
        %9796 = vmatpush1.bf16.msra.mxu0 %v7943
        %9797 = vmatprep.subr.bf16.mxu0 0
        %9798 = vmatpush1.bf16.msra.mxu0 %v7942
        %9799 = vmatprep.subr.bf16.mxu0 0
        %9800 = vmatpush1.bf16.msra.mxu0 %v7941
        %9801 = vmatprep.subr.bf16.mxu0 0
        %9802 = vmatpush1.bf16.msra.mxu0 %v7940
        %9803 = vmatprep.subr.bf16.mxu0 0
        %9804 = vmatpush1.bf16.msra.mxu0 %v7939
        %9805 = vmatprep.subr.bf16.mxu0 0
        %9806 = vmatpush2.bf16.msra.mxu0 %v7954
        %9807 = vmatprep.subr.bf16.mxu0 0
        %9808 = vmatpush2.bf16.msra.mxu0 %v7953
        %9809 = vmatprep.subr.bf16.mxu0 0
        %9810 = vmatpush2.bf16.msra.mxu0 %v7952
        %9811 = vmatprep.subr.bf16.mxu0 0
        %9812 = vmatpush2.bf16.msra.mxu0 %v7951
        %9813 = vmatprep.subr.bf16.mxu0 0
        %9814 = vmatpush2.bf16.msra.mxu0 %v7950
        %9815 = vmatprep.subr.bf16.mxu0 0
        %9816 = vmatpush2.bf16.msra.mxu0 %v7949
        %9817 = vmatprep.subr.bf16.mxu0 0
        %9818 = vmatpush2.bf16.msra.mxu0 %v7948
        %9819 = vmatprep.subr.bf16.mxu0 0
        %9820 = vmatpush2.bf16.msra.mxu0 %v7947
        %9821 = vmatprep.mubr.bf16.mxu0 %v6200
        %9822 = vmatmul.mubr.bf16.gmra.mxu0 %v6199
        %v9823 = vpop.f32.mrf.mxu0
        %v9824 = vadd.f32 %v9663, %v9823
        %v9825 = vpop.f32.mrf.mxu0
        %v9826 = vpop.f32.mrf.mxu0
        %v9827 = vadd.f32 %v9666, %v9826
        %v9828 = vpop.f32.mrf.mxu0
        %9829 = vmatprep.mubr.bf16.mxu0 %v6225
        %9830 = vmatmul.mubr.bf16.gmra.mxu0 %v6224
        %v9831 = vpop.f32.mrf.mxu0
        %v9832 = vadd.f32 %v9671, %v9831
        %v9833 = vpop.f32.mrf.mxu0
        %v9834 = vpop.f32.mrf.mxu0
        %v9835 = vadd.f32 %v9674, %v9834
        %v9836 = vpop.f32.mrf.mxu0
        %9837 = vmatprep.mubr.bf16.mxu0 %v6250
        %9838 = vmatmul.mubr.bf16.gmra.mxu0 %v6249
        %v9839 = vpop.f32.mrf.mxu0
        %v9840 = vadd.f32 %v9679, %v9839
        %v9841 = vpop.f32.mrf.mxu0
        %v9842 = vpop.f32.mrf.mxu0
        %v9843 = vadd.f32 %v9682, %v9842
        %v9844 = vpop.f32.mrf.mxu0
        %9845 = vmatprep.mubr.bf16.mxu0 %v6275
        %9846 = vmatmul.mubr.bf16.gmra.mxu0 %v6274
        %v9847 = vpop.f32.mrf.mxu0
        %v9848 = vadd.f32 %v9687, %v9847
        %v9849 = vpop.f32.mrf.mxu0
        %v9850 = vpop.f32.mrf.mxu0
        %v9851 = vadd.f32 %v9690, %v9850
        %v9852 = vpop.f32.mrf.mxu0
        %9853 = vmatprep.mubr.bf16.mxu0 %v6300
        %9854 = vmatmul.mubr.bf16.gmra.mxu0 %v6299
        %v9855 = vpop.f32.mrf.mxu0
        %v9856 = vadd.f32 %v9695, %v9855
        %v9857 = vpop.f32.mrf.mxu0
        %v9858 = vpop.f32.mrf.mxu0
        %v9859 = vadd.f32 %v9698, %v9858
        %v9860 = vpop.f32.mrf.mxu0
        %9861 = vmatprep.mubr.bf16.mxu0 %v6325
        %9862 = vmatmul.mubr.bf16.gmra.mxu0 %v6324
        %v9863 = vpop.f32.mrf.mxu0
        %v9864 = vadd.f32 %v9703, %v9863
        %v9865 = vpop.f32.mrf.mxu0
        %v9866 = vpop.f32.mrf.mxu0
        %v9867 = vadd.f32 %v9706, %v9866
        %v9868 = vpop.f32.mrf.mxu0
        %9869 = vmatprep.mubr.bf16.mxu0 %v6350
        %9870 = vmatmul.mubr.bf16.gmra.mxu0 %v6349
        %v9871 = vpop.f32.mrf.mxu0
        %v9872 = vadd.f32 %v9711, %v9871
        %v9873 = vpop.f32.mrf.mxu0
        %v9874 = vpop.f32.mrf.mxu0
        %v9875 = vadd.f32 %v9714, %v9874
        %v9876 = vpop.f32.mrf.mxu0
        %9877 = vmatprep.mubr.bf16.mxu0 %v6375
        %9878 = vmatmul.mubr.bf16.gmra.mxu0 %v6374
        %v9879 = vpop.f32.mrf.mxu0
        %v9880 = vadd.f32 %v9719, %v9879
        %v9881 = vpop.f32.mrf.mxu0
        %v9882 = vpop.f32.mrf.mxu0
        %v9883 = vadd.f32 %v9722, %v9882
        %v9884 = vpop.f32.mrf.mxu0
        %9885 = vmatprep.mubr.bf16.mxu0 %v6400
        %9886 = vmatmul.mubr.bf16.gmra.mxu0 %v6399
        %v9887 = vpop.f32.mrf.mxu0
        %v9888 = vadd.f32 %v9727, %v9887
        %v9889 = vpop.f32.mrf.mxu0
        %v9890 = vpop.f32.mrf.mxu0
        %v9891 = vadd.f32 %v9730, %v9890
        %v9892 = vpop.f32.mrf.mxu0
        %9893 = vmatprep.mubr.bf16.mxu0 %v6425
        %9894 = vmatmul.mubr.bf16.gmra.mxu0 %v6424
        %v9895 = vpop.f32.mrf.mxu0
        %v9896 = vadd.f32 %v9735, %v9895
        %v9897 = vpop.f32.mrf.mxu0
        %v9898 = vpop.f32.mrf.mxu0
        %v9899 = vadd.f32 %v9738, %v9898
        %v9900 = vpop.f32.mrf.mxu0
        %9901 = vmatprep.mubr.bf16.mxu0 %v6450
        %9902 = vmatmul.mubr.bf16.gmra.mxu0 %v6449
        %v9903 = vpop.f32.mrf.mxu0
        %v9904 = vadd.f32 %v9743, %v9903
        %v9905 = vpop.f32.mrf.mxu0
        %v9906 = vpop.f32.mrf.mxu0
        %v9907 = vadd.f32 %v9746, %v9906
        %v9908 = vpop.f32.mrf.mxu0
        %9909 = vmatprep.mubr.bf16.mxu0 %v6475
        %9910 = vmatmul.mubr.bf16.gmra.mxu0 %v6474
        %v9911 = vpop.f32.mrf.mxu0
        %v9912 = vadd.f32 %v9751, %v9911
        %v9913 = vpop.f32.mrf.mxu0
        %v9914 = vpop.f32.mrf.mxu0
        %v9915 = vadd.f32 %v9754, %v9914
        %v9916 = vpop.f32.mrf.mxu0
        %9917 = vmatprep.mubr.bf16.mxu0 %v6500
        %9918 = vmatmul.mubr.bf16.gmra.mxu0 %v6499
        %v9919 = vpop.f32.mrf.mxu0
        %v9920 = vadd.f32 %v9759, %v9919
        %v9921 = vpop.f32.mrf.mxu0
        %v9922 = vpop.f32.mrf.mxu0
        %v9923 = vadd.f32 %v9762, %v9922
        %v9924 = vpop.f32.mrf.mxu0
        %9925 = vmatprep.mubr.bf16.mxu0 %v6525
        %9926 = vmatmul.mubr.bf16.gmra.mxu0 %v6524
        %v9927 = vpop.f32.mrf.mxu0
        %v9928 = vadd.f32 %v9767, %v9927
        %v9929 = vpop.f32.mrf.mxu0
        %v9930 = vpop.f32.mrf.mxu0
        %v9931 = vadd.f32 %v9770, %v9930
        %v9932 = vpop.f32.mrf.mxu0
        %9933 = vmatprep.mubr.bf16.mxu0 %v6550
        %9934 = vmatmul.mubr.bf16.gmra.mxu0 %v6549
        %v9935 = vpop.f32.mrf.mxu0
        %v9936 = vadd.f32 %v9775, %v9935
        %v9937 = vpop.f32.mrf.mxu0
        %v9938 = vpop.f32.mrf.mxu0
        %v9939 = vadd.f32 %v9778, %v9938
        %v9940 = vpop.f32.mrf.mxu0
        %9941 = vmatprep.mubr.bf16.mxu0 %v6575
        %9942 = vmatmul.mubr.bf16.gmra.mxu0 %v6574
        %v9943 = vpop.f32.mrf.mxu0
        %v9944 = vadd.f32 %v9783, %v9943
        %v9945 = vpop.f32.mrf.mxu0
        %v9946 = vpop.f32.mrf.mxu0
        %v9947 = vadd.f32 %v9786, %v9946
        %v9948 = vpop.f32.mrf.mxu0
        %9949 = vdwg.mxu0
        %9950 = vmatprep.subr.bf16.mxu0 0
        %9951 = vmatpush1.bf16.msra.mxu0 %v7962
        %9952 = vmatprep.subr.bf16.mxu0 0
        %9953 = vmatpush1.bf16.msra.mxu0 %v7961
        %9954 = vmatprep.subr.bf16.mxu0 0
        %9955 = vmatpush1.bf16.msra.mxu0 %v7960
        %9956 = vmatprep.subr.bf16.mxu0 0
        %9957 = vmatpush1.bf16.msra.mxu0 %v7959
        %9958 = vmatprep.subr.bf16.mxu0 0
        %9959 = vmatpush1.bf16.msra.mxu0 %v7958
        %9960 = vmatprep.subr.bf16.mxu0 0
        %9961 = vmatpush1.bf16.msra.mxu0 %v7957
        %9962 = vmatprep.subr.bf16.mxu0 0
        %9963 = vmatpush1.bf16.msra.mxu0 %v7956
        %9964 = vmatprep.subr.bf16.mxu0 0
        %9965 = vmatpush1.bf16.msra.mxu0 %v7955
        %9966 = vmatprep.subr.bf16.mxu0 0
        %9967 = vmatpush2.bf16.msra.mxu0 %v7970
        %9968 = vmatprep.subr.bf16.mxu0 0
        %9969 = vmatpush2.bf16.msra.mxu0 %v7969
        %9970 = vmatprep.subr.bf16.mxu0 0
        %9971 = vmatpush2.bf16.msra.mxu0 %v7968
        %9972 = vmatprep.subr.bf16.mxu0 0
        %9973 = vmatpush2.bf16.msra.mxu0 %v7967
        %9974 = vmatprep.subr.bf16.mxu0 0
        %9975 = vmatpush2.bf16.msra.mxu0 %v7966
        %9976 = vmatprep.subr.bf16.mxu0 0
        %9977 = vmatpush2.bf16.msra.mxu0 %v7965
        %9978 = vmatprep.subr.bf16.mxu0 0
        %9979 = vmatpush2.bf16.msra.mxu0 %v7964
        %9980 = vmatprep.subr.bf16.mxu0 0
        %9981 = vmatpush2.bf16.msra.mxu0 %v7963
        %9982 = vmatprep.mubr.bf16.mxu0 %v6202
        %9983 = vmatmul.mubr.bf16.gmra.mxu0 %v6201
        %v9984 = vpop.f32.mrf.mxu0
        %v9985 = vadd.f32 %v9824, %v9984
        %v9986 = vpop.f32.mrf.mxu0
        %v9987 = vpop.f32.mrf.mxu0
        %v9988 = vadd.f32 %v9827, %v9987
        %v9989 = vpop.f32.mrf.mxu0
        %9990 = vmatprep.mubr.bf16.mxu0 %v6227
        %9991 = vmatmul.mubr.bf16.gmra.mxu0 %v6226
        %v9992 = vpop.f32.mrf.mxu0
        %v9993 = vadd.f32 %v9832, %v9992
        %v9994 = vpop.f32.mrf.mxu0
        %v9995 = vpop.f32.mrf.mxu0
        %v9996 = vadd.f32 %v9835, %v9995
        %v9997 = vpop.f32.mrf.mxu0
        %9998 = vmatprep.mubr.bf16.mxu0 %v6252
        %9999 = vmatmul.mubr.bf16.gmra.mxu0 %v6251
        %v10000 = vpop.f32.mrf.mxu0
        %v10001 = vadd.f32 %v9840, %v10000
        %v10002 = vpop.f32.mrf.mxu0
        %v10003 = vpop.f32.mrf.mxu0
        %v10004 = vadd.f32 %v9843, %v10003
        %v10005 = vpop.f32.mrf.mxu0
        %10006 = vmatprep.mubr.bf16.mxu0 %v6277
        %10007 = vmatmul.mubr.bf16.gmra.mxu0 %v6276
        %v10008 = vpop.f32.mrf.mxu0
        %v10009 = vadd.f32 %v9848, %v10008
        %v10010 = vpop.f32.mrf.mxu0
        %v10011 = vpop.f32.mrf.mxu0
        %v10012 = vadd.f32 %v9851, %v10011
        %v10013 = vpop.f32.mrf.mxu0
        %10014 = vmatprep.mubr.bf16.mxu0 %v6302
        %10015 = vmatmul.mubr.bf16.gmra.mxu0 %v6301
        %v10016 = vpop.f32.mrf.mxu0
        %v10017 = vadd.f32 %v9856, %v10016
        %v10018 = vpop.f32.mrf.mxu0
        %v10019 = vpop.f32.mrf.mxu0
        %v10020 = vadd.f32 %v9859, %v10019
        %v10021 = vpop.f32.mrf.mxu0
        %10022 = vmatprep.mubr.bf16.mxu0 %v6327
        %10023 = vmatmul.mubr.bf16.gmra.mxu0 %v6326
        %v10024 = vpop.f32.mrf.mxu0
        %v10025 = vadd.f32 %v9864, %v10024
        %v10026 = vpop.f32.mrf.mxu0
        %v10027 = vpop.f32.mrf.mxu0
        %v10028 = vadd.f32 %v9867, %v10027
        %v10029 = vpop.f32.mrf.mxu0
        %10030 = vmatprep.mubr.bf16.mxu0 %v6352
        %10031 = vmatmul.mubr.bf16.gmra.mxu0 %v6351
        %v10032 = vpop.f32.mrf.mxu0
        %v10033 = vadd.f32 %v9872, %v10032
        %v10034 = vpop.f32.mrf.mxu0
        %v10035 = vpop.f32.mrf.mxu0
        %v10036 = vadd.f32 %v9875, %v10035
        %v10037 = vpop.f32.mrf.mxu0
        %10038 = vmatprep.mubr.bf16.mxu0 %v6377
        %10039 = vmatmul.mubr.bf16.gmra.mxu0 %v6376
        %v10040 = vpop.f32.mrf.mxu0
        %v10041 = vadd.f32 %v9880, %v10040
        %v10042 = vpop.f32.mrf.mxu0
        %v10043 = vpop.f32.mrf.mxu0
        %v10044 = vadd.f32 %v9883, %v10043
        %v10045 = vpop.f32.mrf.mxu0
        %10046 = vmatprep.mubr.bf16.mxu0 %v6402
        %10047 = vmatmul.mubr.bf16.gmra.mxu0 %v6401
        %v10048 = vpop.f32.mrf.mxu0
        %v10049 = vadd.f32 %v9888, %v10048
        %v10050 = vpop.f32.mrf.mxu0
        %v10051 = vpop.f32.mrf.mxu0
        %v10052 = vadd.f32 %v9891, %v10051
        %v10053 = vpop.f32.mrf.mxu0
        %10054 = vmatprep.mubr.bf16.mxu0 %v6427
        %10055 = vmatmul.mubr.bf16.gmra.mxu0 %v6426
        %v10056 = vpop.f32.mrf.mxu0
        %v10057 = vadd.f32 %v9896, %v10056
        %v10058 = vpop.f32.mrf.mxu0
        %v10059 = vpop.f32.mrf.mxu0
        %v10060 = vadd.f32 %v9899, %v10059
        %v10061 = vpop.f32.mrf.mxu0
        %10062 = vmatprep.mubr.bf16.mxu0 %v6452
        %10063 = vmatmul.mubr.bf16.gmra.mxu0 %v6451
        %v10064 = vpop.f32.mrf.mxu0
        %v10065 = vadd.f32 %v9904, %v10064
        %v10066 = vpop.f32.mrf.mxu0
        %v10067 = vpop.f32.mrf.mxu0
        %v10068 = vadd.f32 %v9907, %v10067
        %v10069 = vpop.f32.mrf.mxu0
        %10070 = vmatprep.mubr.bf16.mxu0 %v6477
        %10071 = vmatmul.mubr.bf16.gmra.mxu0 %v6476
        %v10072 = vpop.f32.mrf.mxu0
        %v10073 = vadd.f32 %v9912, %v10072
        %v10074 = vpop.f32.mrf.mxu0
        %v10075 = vpop.f32.mrf.mxu0
        %v10076 = vadd.f32 %v9915, %v10075
        %v10077 = vpop.f32.mrf.mxu0
        %10078 = vmatprep.mubr.bf16.mxu0 %v6502
        %10079 = vmatmul.mubr.bf16.gmra.mxu0 %v6501
        %v10080 = vpop.f32.mrf.mxu0
        %v10081 = vadd.f32 %v9920, %v10080
        %v10082 = vpop.f32.mrf.mxu0
        %v10083 = vpop.f32.mrf.mxu0
        %v10084 = vadd.f32 %v9923, %v10083
        %v10085 = vpop.f32.mrf.mxu0
        %10086 = vmatprep.mubr.bf16.mxu0 %v6527
        %10087 = vmatmul.mubr.bf16.gmra.mxu0 %v6526
        %v10088 = vpop.f32.mrf.mxu0
        %v10089 = vadd.f32 %v9928, %v10088
        %v10090 = vpop.f32.mrf.mxu0
        %v10091 = vpop.f32.mrf.mxu0
        %v10092 = vadd.f32 %v9931, %v10091
        %v10093 = vpop.f32.mrf.mxu0
        %10094 = vmatprep.mubr.bf16.mxu0 %v6552
        %10095 = vmatmul.mubr.bf16.gmra.mxu0 %v6551
        %v10096 = vpop.f32.mrf.mxu0
        %v10097 = vadd.f32 %v9936, %v10096
        %v10098 = vpop.f32.mrf.mxu0
        %v10099 = vpop.f32.mrf.mxu0
        %v10100 = vadd.f32 %v9939, %v10099
        %v10101 = vpop.f32.mrf.mxu0
        %10102 = vmatprep.mubr.bf16.mxu0 %v6577
        %10103 = vmatmul.mubr.bf16.gmra.mxu0 %v6576
        %v10104 = vpop.f32.mrf.mxu0
        %v10105 = vadd.f32 %v9944, %v10104
        %v10106 = vpop.f32.mrf.mxu0
        %v10107 = vpop.f32.mrf.mxu0
        %v10108 = vadd.f32 %v9947, %v10107
        %v10109 = vpop.f32.mrf.mxu0
        %10110 = vdwg.mxu0
        %10111 = vmatprep.subr.bf16.mxu0 0
        %10112 = vmatpush1.bf16.msra.mxu0 %v7978
        %10113 = vmatprep.subr.bf16.mxu0 0
        %10114 = vmatpush1.bf16.msra.mxu0 %v7977
        %10115 = vmatprep.subr.bf16.mxu0 0
        %10116 = vmatpush1.bf16.msra.mxu0 %v7976
        %10117 = vmatprep.subr.bf16.mxu0 0
        %10118 = vmatpush1.bf16.msra.mxu0 %v7975
        %10119 = vmatprep.subr.bf16.mxu0 0
        %10120 = vmatpush1.bf16.msra.mxu0 %v7974
        %10121 = vmatprep.subr.bf16.mxu0 0
        %10122 = vmatpush1.bf16.msra.mxu0 %v7973
        %10123 = vmatprep.subr.bf16.mxu0 0
        %10124 = vmatpush1.bf16.msra.mxu0 %v7972
        %10125 = vmatprep.subr.bf16.mxu0 0
        %10126 = vmatpush1.bf16.msra.mxu0 %v7971
        %10127 = vmatprep.subr.bf16.mxu0 0
        %10128 = vmatpush2.bf16.msra.mxu0 0
        %10129 = vmatprep.subr.bf16.mxu0 0
        %10130 = vmatpush2.bf16.msra.mxu0 0
        %10131 = vmatprep.subr.bf16.mxu0 0
        %10132 = vmatpush2.bf16.msra.mxu0 0
        %10133 = vmatprep.subr.bf16.mxu0 0
        %10134 = vmatpush2.bf16.msra.mxu0 0
        %10135 = vmatprep.subr.bf16.mxu0 0
        %10136 = vmatpush2.bf16.msra.mxu0 0
        %10137 = vmatprep.subr.bf16.mxu0 0
        %10138 = vmatpush2.bf16.msra.mxu0 0
        %10139 = vmatprep.subr.bf16.mxu0 0
        %10140 = vmatpush2.bf16.msra.mxu0 0
        %10141 = vmatprep.subr.bf16.mxu0 0
        %10142 = vmatpush2.bf16.msra.mxu0 0
        %10143 = vmatprep.mubr.bf16.mxu0 0
        %10144 = vmatmul.mubr.bf16.gmra.mxu0 %v6203
        %v10145 = vpop.f32.mrf.mxu0
        %v10146 = vadd.f32 %v9985, %v10145
        %v10147 = vpop.f32.mrf.mxu0
        %v10148 = vpop.f32.mrf.mxu0
        %v10149 = vadd.f32 %v9988, %v10148
        %v10150 = vpop.f32.mrf.mxu0
        %10151 = vmatprep.mubr.bf16.mxu0 0
        %10152 = vmatmul.mubr.bf16.gmra.mxu0 %v6228
        %v10153 = vpop.f32.mrf.mxu0
        %v10154 = vadd.f32 %v9993, %v10153
        %v10155 = vpop.f32.mrf.mxu0
        %v10156 = vpop.f32.mrf.mxu0
        %v10157 = vadd.f32 %v9996, %v10156
        %v10158 = vpop.f32.mrf.mxu0
        %10159 = vmatprep.mubr.bf16.mxu0 0
        %10160 = vmatmul.mubr.bf16.gmra.mxu0 %v6253
        %v10161 = vpop.f32.mrf.mxu0
        %v10162 = vadd.f32 %v10001, %v10161
        %v10163 = vpop.f32.mrf.mxu0
        %v10164 = vpop.f32.mrf.mxu0
        %v10165 = vadd.f32 %v10004, %v10164
        %v10166 = vpop.f32.mrf.mxu0
        %10167 = vmatprep.mubr.bf16.mxu0 0
        %10168 = vmatmul.mubr.bf16.gmra.mxu0 %v6278
        %v10169 = vpop.f32.mrf.mxu0
        %v10170 = vadd.f32 %v10009, %v10169
        %v10171 = vpop.f32.mrf.mxu0
        %v10172 = vpop.f32.mrf.mxu0
        %v10173 = vadd.f32 %v10012, %v10172
        %v10174 = vpop.f32.mrf.mxu0
        %10175 = vmatprep.mubr.bf16.mxu0 0
        %10176 = vmatmul.mubr.bf16.gmra.mxu0 %v6303
        %v10177 = vpop.f32.mrf.mxu0
        %v10178 = vadd.f32 %v10017, %v10177
        %v10179 = vpop.f32.mrf.mxu0
        %v10180 = vpop.f32.mrf.mxu0
        %v10181 = vadd.f32 %v10020, %v10180
        %v10182 = vpop.f32.mrf.mxu0
        %10183 = vmatprep.mubr.bf16.mxu0 0
        %10184 = vmatmul.mubr.bf16.gmra.mxu0 %v6328
        %v10185 = vpop.f32.mrf.mxu0
        %v10186 = vadd.f32 %v10025, %v10185
        %v10187 = vpop.f32.mrf.mxu0
        %v10188 = vpop.f32.mrf.mxu0
        %v10189 = vadd.f32 %v10028, %v10188
        %v10190 = vpop.f32.mrf.mxu0
        %10191 = vmatprep.mubr.bf16.mxu0 0
        %10192 = vmatmul.mubr.bf16.gmra.mxu0 %v6353
        %v10193 = vpop.f32.mrf.mxu0
        %v10194 = vadd.f32 %v10033, %v10193
        %v10195 = vpop.f32.mrf.mxu0
        %v10196 = vpop.f32.mrf.mxu0
        %v10197 = vadd.f32 %v10036, %v10196
        %v10198 = vpop.f32.mrf.mxu0
        %10199 = vmatprep.mubr.bf16.mxu0 0
        %10200 = vmatmul.mubr.bf16.gmra.mxu0 %v6378
        %v10201 = vpop.f32.mrf.mxu0
        %v10202 = vadd.f32 %v10041, %v10201
        %v10203 = vpop.f32.mrf.mxu0
        %v10204 = vpop.f32.mrf.mxu0
        %v10205 = vadd.f32 %v10044, %v10204
        %v10206 = vpop.f32.mrf.mxu0
        %10207 = vmatprep.mubr.bf16.mxu0 0
        %10208 = vmatmul.mubr.bf16.gmra.mxu0 %v6403
        %v10209 = vpop.f32.mrf.mxu0
        %v10210 = vadd.f32 %v10049, %v10209
        %v10211 = vpop.f32.mrf.mxu0
        %v10212 = vpop.f32.mrf.mxu0
        %v10213 = vadd.f32 %v10052, %v10212
        %v10214 = vpop.f32.mrf.mxu0
        %10215 = vmatprep.mubr.bf16.mxu0 0
        %10216 = vmatmul.mubr.bf16.gmra.mxu0 %v6428
        %v10217 = vpop.f32.mrf.mxu0
        %v10218 = vadd.f32 %v10057, %v10217
        %v10219 = vpop.f32.mrf.mxu0
        %v10220 = vpop.f32.mrf.mxu0
        %v10221 = vadd.f32 %v10060, %v10220
        %v10222 = vpop.f32.mrf.mxu0
        %10223 = vmatprep.mubr.bf16.mxu0 0
        %10224 = vmatmul.mubr.bf16.gmra.mxu0 %v6453
        %v10225 = vpop.f32.mrf.mxu0
        %v10226 = vadd.f32 %v10065, %v10225
        %v10227 = vpop.f32.mrf.mxu0
        %v10228 = vpop.f32.mrf.mxu0
        %v10229 = vadd.f32 %v10068, %v10228
        %v10230 = vpop.f32.mrf.mxu0
        %10231 = vmatprep.mubr.bf16.mxu0 0
        %10232 = vmatmul.mubr.bf16.gmra.mxu0 %v6478
        %v10233 = vpop.f32.mrf.mxu0
        %v10234 = vadd.f32 %v10073, %v10233
        %v10235 = vpop.f32.mrf.mxu0
        %v10236 = vpop.f32.mrf.mxu0
        %v10237 = vadd.f32 %v10076, %v10236
        %v10238 = vpop.f32.mrf.mxu0
        %10239 = vmatprep.mubr.bf16.mxu0 0
        %10240 = vmatmul.mubr.bf16.gmra.mxu0 %v6503
        %v10241 = vpop.f32.mrf.mxu0
        %v10242 = vadd.f32 %v10081, %v10241
        %v10243 = vpop.f32.mrf.mxu0
        %v10244 = vpop.f32.mrf.mxu0
        %v10245 = vadd.f32 %v10084, %v10244
        %v10246 = vpop.f32.mrf.mxu0
        %10247 = vmatprep.mubr.bf16.mxu0 0
        %10248 = vmatmul.mubr.bf16.gmra.mxu0 %v6528
        %v10249 = vpop.f32.mrf.mxu0
        %v10250 = vadd.f32 %v10089, %v10249
        %v10251 = vpop.f32.mrf.mxu0
        %v10252 = vpop.f32.mrf.mxu0
        %v10253 = vadd.f32 %v10092, %v10252
        %v10254 = vpop.f32.mrf.mxu0
        %10255 = vmatprep.mubr.bf16.mxu0 0
        %10256 = vmatmul.mubr.bf16.gmra.mxu0 %v6553
        %v10257 = vpop.f32.mrf.mxu0
        %v10258 = vadd.f32 %v10097, %v10257
        %v10259 = vpop.f32.mrf.mxu0
        %v10260 = vpop.f32.mrf.mxu0
        %v10261 = vadd.f32 %v10100, %v10260
        %v10262 = vpop.f32.mrf.mxu0
        %10263 = vmatprep.mubr.bf16.mxu0 0
        %10264 = vmatmul.mubr.bf16.gmra.mxu0 %v6578
        %v10265 = vpop.f32.mrf.mxu0
        %v10266 = vadd.f32 %v10105, %v10265
        %v10267 = vpop.f32.mrf.mxu0
        %v10268 = vpop.f32.mrf.mxu0
        %v10269 = vadd.f32 %v10108, %v10268
        %v10270 = vpop.f32.mrf.mxu0
        %10271 = vdwg.mxu0
        %v10272 = vld [vmem:[%s2] sm:$0x1]
        %v10274 = vlaneseq
        %v10275 = vshrl.u32 %v10274, 7
        %v10276 = vsub.s32 0, %v10275
        %v10277 = vrot.slane %v10272, %v10276
        %v10279 = vmul.f32 %v10146, %v10277
        %v10280 = vmul.f32 %v10149, %v10277
        %v10281 = vmul.f32 %v10154, %v10277
        %v10282 = vmul.f32 %v10157, %v10277
        %v10283 = vmul.f32 %v10162, %v10277
        %v10284 = vmul.f32 %v10165, %v10277
        %v10285 = vmul.f32 %v10170, %v10277
        %v10286 = vmul.f32 %v10173, %v10277
        %v10287 = vmul.f32 %v10178, %v10277
        %v10288 = vmul.f32 %v10181, %v10277
        %v10289 = vmul.f32 %v10186, %v10277
        %v10290 = vmul.f32 %v10189, %v10277
        %v10291 = vmul.f32 %v10194, %v10277
        %v10292 = vmul.f32 %v10197, %v10277
        %v10293 = vmul.f32 %v10202, %v10277
        %v10294 = vmul.f32 %v10205, %v10277
        %v10295 = vmul.f32 %v10210, %v10277
        %v10296 = vmul.f32 %v10213, %v10277
        %v10297 = vmul.f32 %v10218, %v10277
        %v10298 = vmul.f32 %v10221, %v10277
        %v10299 = vmul.f32 %v10226, %v10277
        %v10300 = vmul.f32 %v10229, %v10277
        %v10301 = vmul.f32 %v10234, %v10277
        %v10302 = vmul.f32 %v10237, %v10277
        %v10303 = vmul.f32 %v10242, %v10277
        %v10304 = vmul.f32 %v10245, %v10277
        %v10305 = vmul.f32 %v10250, %v10277
        %v10306 = vmul.f32 %v10253, %v10277
        %v10307 = vmul.f32 %v10258, %v10277
        %v10308 = vmul.f32 %v10261, %v10277
        %v10309 = vmul.f32 %v10266, %v10277
        %v10310 = vmul.f32 %v10269, %v10277
        %v10311 = vld [vmem:[%s3] sm:$0x1]
        %v10313 = vlaneseq
        %v10314 = vshrl.u32 %v10313, 7
        %v10315 = vsub.s32 0, %v10314
        %v10316 = vrot.slane %v10311, %v10315
        %v10318 = vadd.f32 %v10279, %v10316
        %v10319 = vadd.f32 %v10280, %v10316
        %v10320 = vadd.f32 %v10281, %v10316
        %v10321 = vadd.f32 %v10282, %v10316
        %v10322 = vadd.f32 %v10283, %v10316
        %v10323 = vadd.f32 %v10284, %v10316
        %v10324 = vadd.f32 %v10285, %v10316
        %v10325 = vadd.f32 %v10286, %v10316
        %v10326 = vadd.f32 %v10287, %v10316
        %v10327 = vadd.f32 %v10288, %v10316
        %v10328 = vadd.f32 %v10289, %v10316
        %v10329 = vadd.f32 %v10290, %v10316
        %v10330 = vadd.f32 %v10291, %v10316
        %v10331 = vadd.f32 %v10292, %v10316
        %v10332 = vadd.f32 %v10293, %v10316
        %v10333 = vadd.f32 %v10294, %v10316
        %v10334 = vadd.f32 %v10295, %v10316
        %v10335 = vadd.f32 %v10296, %v10316
        %v10336 = vadd.f32 %v10297, %v10316
        %v10337 = vadd.f32 %v10298, %v10316
        %v10338 = vadd.f32 %v10299, %v10316
        %v10339 = vadd.f32 %v10300, %v10316
        %v10340 = vadd.f32 %v10301, %v10316
        %v10341 = vadd.f32 %v10302, %v10316
        %v10342 = vadd.f32 %v10303, %v10316
        %v10343 = vadd.f32 %v10304, %v10316
        %v10344 = vadd.f32 %v10305, %v10316
        %v10345 = vadd.f32 %v10306, %v10316
        %v10346 = vadd.f32 %v10307, %v10316
        %v10347 = vadd.f32 %v10308, %v10316
        %v10348 = vadd.f32 %v10309, %v10316
        %v10349 = vadd.f32 %v10310, %v10316
        %vm10350 = vcmp.ge.f32.partialorder %v10318, 0.0
        %vm10351 = vcmp.ge.f32.partialorder %v10319, 0.0
        %vm10352 = vcmp.ge.f32.partialorder %v10320, 0.0
        %vm10353 = vcmp.ge.f32.partialorder %v10321, 0.0
        %vm10354 = vcmp.ge.f32.partialorder %v10322, 0.0
        %vm10355 = vcmp.ge.f32.partialorder %v10323, 0.0
        %vm10356 = vcmp.ge.f32.partialorder %v10324, 0.0
        %vm10357 = vcmp.ge.f32.partialorder %v10325, 0.0
        %vm10358 = vcmp.ge.f32.partialorder %v10326, 0.0
        %vm10359 = vcmp.ge.f32.partialorder %v10327, 0.0
        %vm10360 = vcmp.ge.f32.partialorder %v10328, 0.0
        %vm10361 = vcmp.ge.f32.partialorder %v10329, 0.0
        %vm10362 = vcmp.ge.f32.partialorder %v10330, 0.0
        %vm10363 = vcmp.ge.f32.partialorder %v10331, 0.0
        %vm10364 = vcmp.ge.f32.partialorder %v10332, 0.0
        %vm10365 = vcmp.ge.f32.partialorder %v10333, 0.0
        %vm10366 = vcmp.ge.f32.partialorder %v10334, 0.0
        %vm10367 = vcmp.ge.f32.partialorder %v10335, 0.0
        %vm10368 = vcmp.ge.f32.partialorder %v10336, 0.0
        %vm10369 = vcmp.ge.f32.partialorder %v10337, 0.0
        %vm10370 = vcmp.ge.f32.partialorder %v10338, 0.0
        %vm10371 = vcmp.ge.f32.partialorder %v10339, 0.0
        %vm10372 = vcmp.ge.f32.partialorder %v10340, 0.0
        %vm10373 = vcmp.ge.f32.partialorder %v10341, 0.0
        %vm10374 = vcmp.ge.f32.partialorder %v10342, 0.0
        %vm10375 = vcmp.ge.f32.partialorder %v10343, 0.0
        %vm10376 = vcmp.ge.f32.partialorder %v10344, 0.0
        %vm10377 = vcmp.ge.f32.partialorder %v10345, 0.0
        %vm10378 = vcmp.ge.f32.partialorder %v10346, 0.0
        %vm10379 = vcmp.ge.f32.partialorder %v10347, 0.0
        %vm10380 = vcmp.ge.f32.partialorder %v10348, 0.0
        %vm10381 = vcmp.ge.f32.partialorder %v10349, 0.0
        %v10382 = vmul.f32 %v10318, 0.01
        %v10383 = vmul.f32 %v10319, 0.01
        %v10384 = vmul.f32 %v10320, 0.01
        %v10385 = vmul.f32 %v10321, 0.01
        %v10386 = vmul.f32 %v10322, 0.01
        %v10387 = vmul.f32 %v10323, 0.01
        %v10388 = vmul.f32 %v10324, 0.01
        %v10389 = vmul.f32 %v10325, 0.01
        %v10390 = vmul.f32 %v10326, 0.01
        %v10391 = vmul.f32 %v10327, 0.01
        %v10392 = vmul.f32 %v10328, 0.01
        %v10393 = vmul.f32 %v10329, 0.01
        %v10394 = vmul.f32 %v10330, 0.01
        %v10395 = vmul.f32 %v10331, 0.01
        %v10396 = vmul.f32 %v10332, 0.01
        %v10397 = vmul.f32 %v10333, 0.01
        %v10398 = vmul.f32 %v10334, 0.01
        %v10399 = vmul.f32 %v10335, 0.01
        %v10400 = vmul.f32 %v10336, 0.01
        %v10401 = vmul.f32 %v10337, 0.01
        %v10402 = vmul.f32 %v10338, 0.01
        %v10403 = vmul.f32 %v10339, 0.01
        %v10404 = vmul.f32 %v10340, 0.01
        %v10405 = vmul.f32 %v10341, 0.01
        %v10406 = vmul.f32 %v10342, 0.01
        %v10407 = vmul.f32 %v10343, 0.01
        %v10408 = vmul.f32 %v10344, 0.01
        %v10409 = vmul.f32 %v10345, 0.01
        %v10410 = vmul.f32 %v10346, 0.01
        %v10411 = vmul.f32 %v10347, 0.01
        %v10412 = vmul.f32 %v10348, 0.01
        %v10413 = vmul.f32 %v10349, 0.01
        %v10414 = vsel %vm10350, %v10318, %v10382
        %v10415 = vsel %vm10351, %v10319, %v10383
        %v10416 = vsel %vm10352, %v10320, %v10384
        %v10417 = vsel %vm10353, %v10321, %v10385
        %v10418 = vsel %vm10354, %v10322, %v10386
        %v10419 = vsel %vm10355, %v10323, %v10387
        %v10420 = vsel %vm10356, %v10324, %v10388
        %v10421 = vsel %vm10357, %v10325, %v10389
        %v10422 = vsel %vm10358, %v10326, %v10390
        %v10423 = vsel %vm10359, %v10327, %v10391
        %v10424 = vsel %vm10360, %v10328, %v10392
        %v10425 = vsel %vm10361, %v10329, %v10393
        %v10426 = vsel %vm10362, %v10330, %v10394
        %v10427 = vsel %vm10363, %v10331, %v10395
        %v10428 = vsel %vm10364, %v10332, %v10396
        %v10429 = vsel %vm10365, %v10333, %v10397
        %v10430 = vsel %vm10366, %v10334, %v10398
        %v10431 = vsel %vm10367, %v10335, %v10399
        %v10432 = vsel %vm10368, %v10336, %v10400
        %v10433 = vsel %vm10369, %v10337, %v10401
        %v10434 = vsel %vm10370, %v10338, %v10402
        %v10435 = vsel %vm10371, %v10339, %v10403
        %v10436 = vsel %vm10372, %v10340, %v10404
        %v10437 = vsel %vm10373, %v10341, %v10405
        %v10438 = vsel %vm10374, %v10342, %v10406
        %v10439 = vsel %vm10375, %v10343, %v10407
        %v10440 = vsel %vm10376, %v10344, %v10408
        %v10441 = vsel %vm10377, %v10345, %v10409
        %v10442 = vsel %vm10378, %v10346, %v10410
        %v10443 = vsel %vm10379, %v10347, %v10411
        %v10444 = vsel %vm10380, %v10348, %v10412
        %v10445 = vsel %vm10381, %v10349, %v10413
        %v10446 = vpack.c.bf16 %v10415, %v10414
        %v10447 = vpack.c.bf16 %v10417, %v10416
        %v10448 = vpack.c.bf16 %v10419, %v10418
        %v10449 = vpack.c.bf16 %v10421, %v10420
        %v10450 = vpack.c.bf16 %v10423, %v10422
        %v10451 = vpack.c.bf16 %v10425, %v10424
        %v10452 = vpack.c.bf16 %v10427, %v10426
        %v10453 = vpack.c.bf16 %v10429, %v10428
        %v10454 = vpack.c.bf16 %v10431, %v10430
        %v10455 = vpack.c.bf16 %v10433, %v10432
        %v10456 = vpack.c.bf16 %v10435, %v10434
        %v10457 = vpack.c.bf16 %v10437, %v10436
        %v10458 = vpack.c.bf16 %v10439, %v10438
        %v10459 = vpack.c.bf16 %v10441, %v10440
        %v10460 = vpack.c.bf16 %v10443, %v10442
        %v10461 = vpack.c.bf16 %v10445, %v10444
        %v10478 = vunpack.c.l.b16 %v10446
        %v10479 = vunpack.c.h.b16 %v10446
        %v10480 = vunpack.c.l.b16 %v10447
        %v10481 = vunpack.c.h.b16 %v10447
        %v10482 = vunpack.c.l.b16 %v10448
        %v10483 = vunpack.c.h.b16 %v10448
        %v10484 = vunpack.c.l.b16 %v10449
        %v10485 = vunpack.c.h.b16 %v10449
        %v10486 = vunpack.c.l.b16 %v10450
        %v10487 = vunpack.c.h.b16 %v10450
        %v10488 = vunpack.c.l.b16 %v10451
        %v10489 = vunpack.c.h.b16 %v10451
        %v10490 = vunpack.c.l.b16 %v10452
        %v10491 = vunpack.c.h.b16 %v10452
        %v10492 = vunpack.c.l.b16 %v10453
        %v10493 = vunpack.c.h.b16 %v10453
        %v10494 = vunpack.c.l.b16 %v10454
        %v10495 = vunpack.c.h.b16 %v10454
        %v10496 = vunpack.c.l.b16 %v10455
        %v10497 = vunpack.c.h.b16 %v10455
        %v10498 = vunpack.c.l.b16 %v10456
        %v10499 = vunpack.c.h.b16 %v10456
        %v10500 = vunpack.c.l.b16 %v10457
        %v10501 = vunpack.c.h.b16 %v10457
        %v10502 = vunpack.c.l.b16 %v10458
        %v10503 = vunpack.c.h.b16 %v10458
        %v10504 = vunpack.c.l.b16 %v10459
        %v10505 = vunpack.c.h.b16 %v10459
        %v10506 = vunpack.c.l.b16 %v10460
        %v10507 = vunpack.c.h.b16 %v10460
        %v10508 = vunpack.c.l.b16 %v10461
        %v10509 = vunpack.c.h.b16 %v10461
        %v10510 = vpack.c.b16 %v10478, %v10478
        %v10511 = vpack.c.b16 %v10479, %v10479
        %v10512 = vpack.c.b16 %v10480, %v10480
        %v10513 = vpack.c.b16 %v10481, %v10481
        %v10514 = vpack.c.b16 %v10482, %v10482
        %v10515 = vpack.c.b16 %v10483, %v10483
        %v10516 = vpack.c.b16 %v10484, %v10484
        %v10517 = vpack.c.b16 %v10485, %v10485
        %v10518 = vpack.c.b16 %v10486, %v10486
        %v10519 = vpack.c.b16 %v10487, %v10487
        %v10520 = vpack.c.b16 %v10488, %v10488
        %v10521 = vpack.c.b16 %v10489, %v10489
        %v10522 = vpack.c.b16 %v10490, %v10490
        %v10523 = vpack.c.b16 %v10491, %v10491
        %v10524 = vpack.c.b16 %v10492, %v10492
        %v10525 = vpack.c.b16 %v10493, %v10493
        %v10526 = vpack.c.b16 %v10494, %v10494
        %v10527 = vpack.c.b16 %v10495, %v10495
        %v10528 = vpack.c.b16 %v10496, %v10496
        %v10529 = vpack.c.b16 %v10497, %v10497
        %v10530 = vpack.c.b16 %v10498, %v10498
        %v10531 = vpack.c.b16 %v10499, %v10499
        %v10532 = vpack.c.b16 %v10500, %v10500
        %v10533 = vpack.c.b16 %v10501, %v10501
        %v10534 = vpack.c.b16 %v10502, %v10502
        %v10535 = vpack.c.b16 %v10503, %v10503
        %v10536 = vpack.c.b16 %v10504, %v10504
        %v10537 = vpack.c.b16 %v10505, %v10505
        %v10538 = vpack.c.b16 %v10506, %v10506
        %v10539 = vpack.c.b16 %v10507, %v10507
        %v10540 = vpack.c.b16 %v10508, %v10508
        %v10541 = vpack.c.b16 %v10509, %v10509
        %10574 = vst [vmem:[%s244] sm:$0xf] %v10510
        %10575 = vst [vmem:[%s244 + $0x4] sm:$0xf] %v10511
        %10576 = vst [vmem:[%s244 + $0x8] sm:$0xf] %v10512
        %10577 = vst [vmem:[%s244 + $0xc] sm:$0xf] %v10513
        %10578 = vst [vmem:[%s244 + $0x10] sm:$0xf] %v10514
        %10579 = vst [vmem:[%s244 + $0x14] sm:$0xf] %v10515
        %10580 = vst [vmem:[%s244 + $0x18] sm:$0xf] %v10516
        %10581 = vst [vmem:[%s244 + $0x1c] sm:$0xf] %v10517
        %10582 = vst [vmem:[%s244 + $0x20] sm:$0xf] %v10518
        %10583 = vst [vmem:[%s244 + $0x24] sm:$0xf] %v10519
        %10584 = vst [vmem:[%s244 + $0x28] sm:$0xf] %v10520
        %10585 = vst [vmem:[%s244 + $0x2c] sm:$0xf] %v10521
        %10586 = vst [vmem:[%s244 + $0x30] sm:$0xf] %v10522
        %10587 = vst [vmem:[%s244 + $0x34] sm:$0xf] %v10523
        %10588 = vst [vmem:[%s244 + $0x38] sm:$0xf] %v10524
        %10589 = vst [vmem:[%s244 + $0x3c] sm:$0xf] %v10525
        %10590 = vst [vmem:[%s244 + $0x40] sm:$0xf] %v10526
        %10591 = vst [vmem:[%s244 + $0x44] sm:$0xf] %v10527
        %10592 = vst [vmem:[%s244 + $0x48] sm:$0xf] %v10528
        %10593 = vst [vmem:[%s244 + $0x4c] sm:$0xf] %v10529
        %10594 = vst [vmem:[%s244 + $0x50] sm:$0xf] %v10530
        %10595 = vst [vmem:[%s244 + $0x54] sm:$0xf] %v10531
        %10596 = vst [vmem:[%s244 + $0x58] sm:$0xf] %v10532
        %10597 = vst [vmem:[%s244 + $0x5c] sm:$0xf] %v10533
        %10598 = vst [vmem:[%s244 + $0x60] sm:$0xf] %v10534
        %10599 = vst [vmem:[%s244 + $0x64] sm:$0xf] %v10535
        %10600 = vst [vmem:[%s244 + $0x68] sm:$0xf] %v10536
        %10601 = vst [vmem:[%s244 + $0x6c] sm:$0xf] %v10537
        %10602 = vst [vmem:[%s244 + $0x70] sm:$0xf] %v10538
        %10603 = vst [vmem:[%s244 + $0x74] sm:$0xf] %v10539
        %10604 = vst [vmem:[%s244 + $0x78] sm:$0xf] %v10540
        %10605 = vst [vmem:[%s244 + $0x7c] sm:$0xf] %v10541
        %s10606 = sand.u32 %s133, 1
        %s10607 = scalar_lea.sflag [#allocation6], %s10606
        %s10608 = sand.u32 %s133, 1
        %s10609 = smul.addr %s10608, 128
        %s10610 = scalar_lea.vmem [#allocation9], %s10609
        // Predicated region
        $region49: #{tpu_custom_call.1} parent=35 // pred_check
          %p10611 = pneg %p143
        $region50: #{tpu_custom_call.1} parent=35 // pred_check_branch
          %10613 = sbr.rel (%p10611) target = $region52
        $region51: #{tpu_custom_call.1} parent=35 // pred_region
          %s10614 = smul.u32 32, %s27
          %s10616 = ssub.s32 2048, 2048
          %10617 = vsyncadd %s10607, %s10616
          %s10618 = smul.addr %s26, 32
          %s10619 = sadd.s32 %s10614, %s10618
          %s10620 = smul.addr %s10619, 64
          %s10621 = scalar_lea.hbm %s4, %s10620
          %s10622 = sshll.u32 %s10610, 4
          %s10623 = int_to_ptr.vmem [resolvable:$true] %s10622
          %10628 = dma.vmem_to_hbm [thread:$0]  %s10623, 2048, %s10621, %s10607, 64, 64, 4
        $region52: #{tpu_custom_call.1} parent=35 // pred_fallthru
          _
      $region36: #{tpu_custom_call.1} parent=5 // pred_fallthru
        _
      %p10629 = scmp.le.s32.totalorder 2, %s17
      // Predicated region
      $region53: #{tpu_custom_call.1} parent=5 // pred_check
        %p10630 = pneg %p10629
      $region54: #{tpu_custom_call.1} parent=5 // pred_check_branch
        %10632 = sbr.rel (%p10630) target = $region56
      $region55: #{tpu_custom_call.1} parent=5 // pred_region
        %s10633 = ssub.s32 %s17, 2
        // Predicated region
        $region57: #{tpu_custom_call.1} parent=55 // pred_check
          %p10634 = pneg %p149
        $region58: #{tpu_custom_call.1} parent=55 // pred_check_branch
          %10636 = sbr.rel (%p10634) target = $region60
        $region59: #{tpu_custom_call.1} parent=55 // pred_region
          %s10637 = sand.u32 %s134, 1
          %s10638 = scalar_lea.sflag [#allocation6], %s10637
          %s10639 = sand.u32 %s134, 1
          %s10640 = smul.addr %s10639, 128
          %s10641 = scalar_lea.vmem [#allocation9], %s10640
          %10642 = dma.done %s10638, 2048
        $region60: #{tpu_custom_call.1} parent=55 // pred_fallthru
          _
      $region56: #{tpu_custom_call.1} parent=5 // pred_fallthru
        _
    $region6: #{tpu_custom_call.1} parent=1 // loop_footer
      %s21 = sadd.s32 1, %s17
    $region7: #{tpu_custom_call.1} parent=1 // loop_footer_branch
      %16 = sbr.rel target = $region3
    $region8: #{tpu_custom_call.1} parent=1 // loop_exit
      _
    %10643 = vsyncpa [#allocation5], 1
    %s10644 = scalar_lea.sflag [#allocation5], 1
    %10645 = vsyncpa %s10644, 1
    %10646 = vsyncpa [#allocation8], 1
    %10647 = vsyncpa [#allocation6], 1
    %s10648 = scalar_lea.sflag [#allocation6], 1
    %10649 = vsyncpa %s10648, 1

</llo_original>
